<compile_context>
chip_gen: v7x
topology: tpu7x:2x2x1
jax: 0.10.0
libtpu: 0.0.40
codegen_flags: <defaults>
</compile_context>

<pallas_src>
import functools

import jax
import jax.numpy as jnp
from jax.experimental import pallas as pl
from jax.experimental.pallas import tpu as pltpu

HID = 512          # embedding width
HEADS = 8
HEAD_DIM = HID // HEADS
LN_EPS = 1e-5
BN_EPS = 1e-5


def _mm(h, w, b):
    # bf16 x bf16 -> f32 accumulation on the MXU; bias add in f32.
    return jnp.dot(h.astype(w.dtype), w, preferred_element_type=jnp.float32) + b


def _resblock(hin, w1, b1, w2, b2):
    o = jnp.maximum(_mm(hin, w1, b1), 0.0)
    o = _mm(o, w2, b2)
    return jnp.maximum(o + hin, 0.0)


def football_kernel(
    x_ref,
    # VMEM-resident (BlockSpec) params
    emb_w, emb_b, qkv_w, qkv_b, ob, ln_g, ln_b,
    r1b1, r1b2, r2b1, r2b2,
    p1b, p2w, p2b, p3w, p3b,
    c1w, c1b, c2w, c2b,
    # HBM (pl.ANY) params, streamed manually
    ow_hbm, wa_hbm, wb_hbm,
    # output
    out_ref,
    # scratch
    ow_buf, wa_buf, wb_buf, dma_sem,
):
    # ---- start streaming the back-half weights immediately; they overlap the
    #      embedding / fused-QKV matmuls and the VPU attention below. ----
    ow_cp = pltpu.make_async_copy(ow_hbm, ow_buf, dma_sem.at[0])
    wa_cp = pltpu.make_async_copy(wa_hbm, wa_buf, dma_sem.at[1])
    wb_cp = pltpu.make_async_copy(wb_hbm, wb_buf, dma_sem.at[2])
    ow_cp.start()
    wa_cp.start()
    wb_cp.start()

    x = x_ref[...].astype(jnp.float32)

    # ---- input_embedding: Linear(+folded BN) -> ReLU -> Dropout(identity) ----
    h = jnp.maximum(_mm(x, emb_w[...], emb_b[...]), 0.0)
    residual = h

    # ---- AttentionBlock: fused QKV matmul, then head-wise VPU attention ----
    # qkv: (B, 1536) = [q | k | v]; 1/sqrt(head_dim) already folded into the q third.
    qkv = _mm(h, qkv_w[...], qkv_b[...])

    att_parts = []
    for i in range(HEADS):
        q_i = qkv[:, i * HEAD_DIM:(i + 1) * HEAD_DIM]                       # (B, 64)
        # scores[:, j] for this head: elementwise mul + 64-lane reduce (VPU/XLU),
        # no batched MXU matmul, no (B,8,64) reshape.
        s = [jnp.sum(q_i * qkv[:, HID + j * HEAD_DIM: HID + (j + 1) * HEAD_DIM],
                     axis=-1, keepdims=True)                                 # (B, 1)
             for j in range(HEADS)]
        m = functools.reduce(jnp.maximum, s)
        e = [jnp.exp(si - m) for si in s]
        denom = functools.reduce(jnp.add, e)
        # TODO(synk): attention / projection Dropout layers are identity (eval mode).
        acc = e[0] * qkv[:, 2 * HID: 2 * HID + HEAD_DIM]
        for j in range(1, HEADS):
            acc = acc + e[j] * qkv[:, 2 * HID + j * HEAD_DIM: 2 * HID + (j + 1) * HEAD_DIM]
        # softmax normalization once per head; on-device this divide could be
        # pl.reciprocal(denom, approx=True) on the otherwise-idle EUP slot.
        att_parts.append(acc / denom)                                        # (B, 64)
    attended = jnp.concatenate(att_parts, axis=-1)                           # (B, 512)

    # ---- output projection (+residual) + LayerNorm ----
    ow_cp.wait()                      # out-proj weights needed now
    y = _mm(attended, ow_buf[...], ob[...]) + residual
    mu = jnp.mean(y, axis=-1, keepdims=True)
    var = jnp.mean((y - mu) ** 2, axis=-1, keepdims=True)
    h = (y - mu) * jax.lax.rsqrt(var + LN_EPS) * ln_g[...] + ln_b[...]

    # ---- residual blocks + first progressive layer (streamed weights) ----
    wa_cp.wait()                      # (3, 512, 256): r1w1, r2w1, p1w
    wb_cp.wait()                      # (2, 256, 512): r1w2, r2w2
    h = _resblock(h, wa_buf[0], r1b1[...], wb_buf[0], r1b2[...])
    h = _resblock(h, wa_buf[1], r2b1[...], wb_buf[1], r2b2[...])

    # ---- progressive: 512 -> 256 -> 128 -> 64 ----
    h = jnp.maximum(_mm(h, wa_buf[2], p1b[...]), 0.0)
    h = jnp.maximum(_mm(h, p2w[...], p2b[...]), 0.0)
    h = jnp.maximum(_mm(h, p3w[...], p3b[...]), 0.0)

    # ---- classifier: 64 -> 32 -> num_classes ----
    h = jnp.maximum(_mm(h, c1w[...], c1b[...]), 0.0)
    logits = _mm(h, c2w[...], c2b[...])

    out_ref[...] = logits.astype(out_ref.dtype)


def advanced_football_net(x, vmem_params, hbm_params, *, block_b=128,
                          min_grid_steps=1, vmem_limit_bytes=None):
    """x: (B, input_size) f32.  (vmem_params, hbm_params) from fold_for_kernel().

    Tuning per generation: block_b=128 on v5e; block_b=256 (and vmem_limit_bytes
    ~64-100 MiB) on v6e; block_b=256, min_grid_steps=2, vmem_limit_bytes<=48 MiB on v7x
    so both TensorCores get grid steps.
    """
    B, F = x.shape
    num_classes = vmem_params[-1].shape[1]          # c2b is (1, num_classes)

    # Batch tile: multiple of 8 sublanes (aligned (8,128) tiles), optionally split
    # into >= min_grid_steps steps (v7x: 2 TensorCores).
    tm = min(B, block_b)
    if min_grid_steps > 1:
        tm = min(tm, -(-B // min_grid_steps))
    tm = max(8, ((tm + 7) // 8) * 8)
    pad = (-B) % tm
    xp = jnp.pad(x, ((0, pad), (0, 0))) if pad else x
    Bp = xp.shape[0]
    grid = (Bp // tm,)

    x_spec = pl.BlockSpec((tm, F), lambda i: (i, 0))
    out_spec = pl.BlockSpec((tm, num_classes), lambda i: (i, 0))
    # Small weights/biases: constant block index -> fetched once, VMEM-resident.
    w_specs = [pl.BlockSpec(tuple(p.shape), lambda i: (0, 0)) for p in vmem_params]
    # Big back-half weights: stay in HBM, streamed manually inside the kernel.
    hbm_specs = [pl.BlockSpec(memory_space=pl.ANY) for _ in hbm_params]

    scratch = [pltpu.VMEM(tuple(p.shape), p.dtype) for p in hbm_params]
    scratch.append(pltpu.SemaphoreType.DMA((len(hbm_params),)))

    out = pl.pallas_call(
        football_kernel,
        out_shape=jax.ShapeDtypeStruct((Bp, num_classes), jnp.float32),
        grid=grid,
        in_specs=[x_spec] + w_specs + hbm_specs,
        out_specs=out_spec,
        scratch_shapes=scratch,
        compiler_params=pltpu.CompilerParams(
            dimension_semantics=("parallel",),
            vmem_limit_bytes=vmem_limit_bytes),
    )(xp, *vmem_params, *hbm_params)
    return out[:B] if pad else out


# ----------------------- deterministic parameter init -----------------------
def init_params(key, input_size, num_classes=3):
    """Raw f32 params (PyTorch semantics; BN already reduced to eval-mode scale/shift)."""
    keys = iter(jax.random.split(key, 64))

    def linear(fan_in, fan_out):
        # kaiming_normal_(mode='fan_out', nonlinearity='relu'): std = sqrt(2 / fan_out)
        std = (2.0 / fan_out) ** 0.5
        w = jax.random.normal(next(keys), (fan_in, fan_out), jnp.float32) * std
        b = jnp.zeros((1, fan_out), jnp.float32)
        return w, b

    def bn(n):
        gamma = jax.random.uniform(next(keys), (n,), jnp.float32, 0.5, 1.5)
        beta = 0.1 * jax.random.normal(next(keys), (n,), jnp.float32)
        rmean = 0.1 * jax.random.normal(next(keys), (n,), jnp.float32)
        rvar = jax.random.uniform(next(keys), (n,), jnp.float32, 0.5, 1.5)
        scale = gamma / jnp.sqrt(rvar + BN_EPS)
        shift = beta - rmean * scale
        return scale.reshape(1, n), shift.reshape(1, n)

    params = []
    # input_embedding
    w, b = linear(input_size, HID); s, t = bn(HID)
    params += [w, b, s, t]
    # attention q/k/v/output linears + layer_norm
    for _ in range(4):
        w, b = linear(HID, HID)
        params += [w, b]
    ln_g = jax.random.uniform(next(keys), (1, HID), jnp.float32, 0.5, 1.5)
    ln_b = 0.1 * jax.random.normal(next(keys), (1, HID), jnp.float32)
    params += [ln_g, ln_b]
    # two residual blocks (512 -> 256 -> 512)
    for _ in range(2):
        w1, b1 = linear(HID, 256); s1, t1 = bn(256)
        w2, b2 = linear(256, HID); s2, t2 = bn(HID)
        params += [w1, b1, s1, t1, w2, b2, s2, t2]
    # progressive
    for fi, fo in [(HID, 256), (256, 128), (128, 64)]:
        w, b = linear(fi, fo); s, t = bn(fo)
        params += [w, b, s, t]
    # classifier
    w, b = linear(64, 32); s, t = bn(32)
    params += [w, b, s, t]
    w, b = linear(32, num_classes)
    params += [w, b]
    return params


def fold_for_kernel(params, weight_dtype=jnp.bfloat16):
    """Fold eval-BN into the preceding Linear, fuse q/k/v into one (512,1536) matrix
    (with 1/sqrt(head_dim) folded into the q third), cast weight matrices to bf16,
    and split params into (VMEM-resident small params, HBM-streamed big matrices)."""
    (emb_w, emb_b, emb_s, emb_t,
     qw, qb, kw, kb, vw, vb, ow, ob, ln_g, ln_b,
     r1w1, r1b1, r1s1, r1t1, r1w2, r1b2, r1s2, r1t2,
     r2w1, r2b1, r2s1, r2t1, r2w2, r2b2, r2s2, r2t2,
     p1w, p1b, p1s, p1t, p2w, p2b, p2s, p2t, p3w, p3b, p3s, p3t,
     c1w, c1b, c1s, c1t, c2w, c2b) = params

    def fold(w, b, s, t):
        return w * s, b * s + t          # exact algebraic BN fold (eval mode)

    inv = 1.0 / (HEAD_DIM ** 0.5)
    wd = weight_dtype
    f32 = jnp.float32

    emb_wf, emb_bf = fold(emb_w, emb_b, emb_s, emb_t)
    qkv_w = jnp.concatenate([qw * inv, kw, vw], axis=1)    # (512, 1536)
    qkv_b = jnp.concatenate([qb * inv, kb, vb], axis=1)    # (1, 1536)
    r1w1f, r1b1f = fold(r1w1, r1b1, r1s1, r1t1)
    r1w2f, r1b2f = fold(r1w2, r1b2, r1s2, r1t2)
    r2w1f, r2b1f = fold(r2w1, r2b1, r2s1, r2t1)
    r2w2f, r2b2f = fold(r2w2, r2b2, r2s2, r2t2)
    p1wf, p1bf = fold(p1w, p1b, p1s, p1t)
    p2wf, p2bf = fold(p2w, p2b, p2s, p2t)
    p3wf, p3bf = fold(p3w, p3b, p3s, p3t)
    c1wf, c1bf = fold(c1w, c1b, c1s, c1t)

    vmem_params = (
        emb_wf.astype(wd), emb_bf.astype(f32),
        qkv_w.astype(wd), qkv_b.astype(f32),
        ob.astype(f32), ln_g.astype(f32), ln_b.astype(f32),
        r1b1f.astype(f32), r1b2f.astype(f32), r2b1f.astype(f32), r2b2f.astype(f32),
        p1bf.astype(f32), p2wf.astype(wd), p2bf.astype(f32),
        p3wf.astype(wd), p3bf.astype(f32),
        c1wf.astype(wd), c1bf.astype(f32), c2w.astype(wd), c2b.astype(f32),
    )
    hbm_params = (
        ow.astype(wd),                                    # (512, 512)
        jnp.stack([r1w1f, r2w1f, p1wf]).astype(wd),       # (3, 512, 256)
        jnp.stack([r1w2f, r2w2f]).astype(wd),             # (2, 256, 512)
    )
    return vmem_params, hbm_params


# --------------------------- pure-JAX reference ------------------------------
def reference_forward(x, params):
    """Exact f32 reference with the original (unfolded) parameters."""
    (emb_w, emb_b, emb_s, emb_t,
     qw, qb, kw, kb, vw, vb, ow, ob, ln_g, ln_b,
     r1w1, r1b1, r1s1, r1t1, r1w2, r1b2, r1s2, r1t2,
     r2w1, r2b1, r2s1, r2t1, r2w2, r2b2, r2s2, r2t2,
     p1w, p1b, p1s, p1t, p2w, p2b, p2s, p2t, p3w, p3b, p3s, p3t,
     c1w, c1b, c1s, c1t, c2w, c2b) = params

    def lin(h, w, b): return h @ w + b
    def bn(h, s, t): return h * s + t

    B = x.shape[0]
    h = jnp.maximum(bn(lin(x, emb_w, emb_b), emb_s, emb_t), 0.0)
    residual = h
    q = lin(h, qw, qb).reshape(B, HEADS, HEAD_DIM)
    k = lin(h, kw, kb).reshape(B, HEADS, HEAD_DIM)
    v = lin(h, vw, vb).reshape(B, HEADS, HEAD_DIM)
    scores = jnp.einsum('bhd,bgd->bhg', q, k) / jnp.sqrt(jnp.float32(HEAD_DIM))
    attn = jax.nn.softmax(scores, axis=-1)
    attended = jnp.einsum('bhg,bgd->bhd', attn, v).reshape(B, HID)
    y = lin(attended, ow, ob) + residual
    mu = jnp.mean(y, -1, keepdims=True)
    var = jnp.mean((y - mu) ** 2, -1, keepdims=True)
    h = (y - mu) / jnp.sqrt(var + LN_EPS) * ln_g + ln_b

    def res(hin, w1, b1, s1, t1, w2, b2, s2, t2):
        o = jnp.maximum(bn(lin(hin, w1, b1), s1, t1), 0.0)
        o = bn(lin(o, w2, b2), s2, t2)
        return jnp.maximum(o + hin, 0.0)

    h = res(h, r1w1, r1b1, r1s1, r1t1, r1w2, r1b2, r1s2, r1t2)
    h = res(h, r2w1, r2b1, r2s1, r2t1, r2w2, r2b2, r2s2, r2t2)
    h = jnp.maximum(bn(lin(h, p1w, p1b), p1s, p1t), 0.0)
    h = jnp.maximum(bn(lin(h, p2w, p2b), p2s, p2t), 0.0)
    h = jnp.maximum(bn(lin(h, p3w, p3b), p3s, p3t), 0.0)
    h = jnp.maximum(bn(lin(h, c1w, c1b), c1s, c1t), 0.0)
    return lin(h, c2w, c2b)


if __name__ == "__main__":
    B, INPUT_SIZE, NUM_CLASSES = 8, 64, 3
    key = jax.random.PRNGKey(0)
    pkey, xkey = jax.random.split(key)
    raw_params = init_params(pkey, INPUT_SIZE, NUM_CLASSES)
    vmem_p, hbm_p = fold_for_kernel(raw_params)
    x = jax.random.normal(xkey, (B, INPUT_SIZE), jnp.float32)

    out = advanced_football_net(x, vmem_p, hbm_p)
    out = jax.block_until_ready(out)

    ref = reference_forward(x, raw_params)
    assert out.shape == (B, NUM_CLASSES)
    max_err = float(jnp.max(jnp.abs(out - ref)))
    scale = float(jnp.max(jnp.abs(ref)))
    # bf16 weight rounding compounds multiplicatively through ~16 serial layers, so the
    # right accuracy metric is relative to the logit scale (which is O(50+) under this
    # kaiming fan_out init), not an elementwise atol.
    assert max_err <= 0.05 * max(scale, 1.0), (max_err, scale)
    print("KERNEL_OK")
</pallas_src>

<mosaic_0001>
module attributes {stable_mosaic.version = 11 : i64} {
  func.func @football_kernel(%arg0: i32, %arg1: memref<8x64xf32, #tpu.memory_space<vmem>>, %arg2: memref<64x512xbf16, #tpu.memory_space<vmem>>, %arg3: memref<1x512xf32, #tpu.memory_space<vmem>>, %arg4: memref<512x1536xbf16, #tpu.memory_space<vmem>>, %arg5: memref<1x1536xf32, #tpu.memory_space<vmem>>, %arg6: memref<1x512xf32, #tpu.memory_space<vmem>>, %arg7: memref<1x512xf32, #tpu.memory_space<vmem>>, %arg8: memref<1x512xf32, #tpu.memory_space<vmem>>, %arg9: memref<1x256xf32, #tpu.memory_space<vmem>>, %arg10: memref<1x512xf32, #tpu.memory_space<vmem>>, %arg11: memref<1x256xf32, #tpu.memory_space<vmem>>, %arg12: memref<1x512xf32, #tpu.memory_space<vmem>>, %arg13: memref<1x256xf32, #tpu.memory_space<vmem>>, %arg14: memref<256x128xbf16, #tpu.memory_space<vmem>>, %arg15: memref<1x128xf32, #tpu.memory_space<vmem>>, %arg16: memref<128x64xbf16, #tpu.memory_space<vmem>>, %arg17: memref<1x64xf32, #tpu.memory_space<vmem>>, %arg18: memref<64x32xbf16, #tpu.memory_space<vmem>>, %arg19: memref<1x32xf32, #tpu.memory_space<vmem>>, %arg20: memref<32x3xbf16, #tpu.memory_space<vmem>>, %arg21: memref<1x3xf32, #tpu.memory_space<vmem>>, %arg22: memref<512x512xbf16, #tpu.memory_space<any>>, %arg23: memref<3x512x256xbf16, #tpu.memory_space<any>>, %arg24: memref<2x256x512xbf16, #tpu.memory_space<any>>, %arg25: memref<8x3xf32, #tpu.memory_space<vmem>>, %arg26: memref<512x512xbf16, #tpu.memory_space<vmem>>, %arg27: memref<3x512x256xbf16, #tpu.memory_space<vmem>>, %arg28: memref<2x256x512xbf16, #tpu.memory_space<vmem>>, %arg29: memref<3x!tpu.dma_semaphore, #tpu.memory_space<semaphore_mem>>) attributes {dimension_semantics = [#tpu.dimension_semantics<parallel>], iteration_bounds = array<i64: 1>, scalar_prefetch = 0 : i64, scratch_operands = 4 : i64, tpu.core_type = #tpu.core_type<tc>, window_params = [{transform_indices = @transform_0, window_bounds = array<i64: 8, 64>}, {pipeline_mode = #tpu.pipeline_mode<synchronous>, transform_indices = @transform_1, window_bounds = array<i64: 64, 512>}, {pipeline_mode = #tpu.pipeline_mode<synchronous>, transform_indices = @transform_2, window_bounds = array<i64: 1, 512>}, {pipeline_mode = #tpu.pipeline_mode<synchronous>, transform_indices = @transform_3, window_bounds = array<i64: 512, 1536>}, {pipeline_mode = #tpu.pipeline_mode<synchronous>, transform_indices = @transform_4, window_bounds = array<i64: 1, 1536>}, {pipeline_mode = #tpu.pipeline_mode<synchronous>, transform_indices = @transform_5, window_bounds = array<i64: 1, 512>}, {pipeline_mode = #tpu.pipeline_mode<synchronous>, transform_indices = @transform_6, window_bounds = array<i64: 1, 512>}, {pipeline_mode = #tpu.pipeline_mode<synchronous>, transform_indices = @transform_7, window_bounds = array<i64: 1, 512>}, {pipeline_mode = #tpu.pipeline_mode<synchronous>, transform_indices = @transform_8, window_bounds = array<i64: 1, 256>}, {pipeline_mode = #tpu.pipeline_mode<synchronous>, transform_indices = @transform_9, window_bounds = array<i64: 1, 512>}, {pipeline_mode = #tpu.pipeline_mode<synchronous>, transform_indices = @transform_10, window_bounds = array<i64: 1, 256>}, {pipeline_mode = #tpu.pipeline_mode<synchronous>, transform_indices = @transform_11, window_bounds = array<i64: 1, 512>}, {pipeline_mode = #tpu.pipeline_mode<synchronous>, transform_indices = @transform_12, window_bounds = array<i64: 1, 256>}, {pipeline_mode = #tpu.pipeline_mode<synchronous>, transform_indices = @transform_13, window_bounds = array<i64: 256, 128>}, {pipeline_mode = #tpu.pipeline_mode<synchronous>, transform_indices = @transform_14, window_bounds = array<i64: 1, 128>}, {pipeline_mode = #tpu.pipeline_mode<synchronous>, transform_indices = @transform_15, window_bounds = array<i64: 128, 64>}, {pipeline_mode = #tpu.pipeline_mode<synchronous>, transform_indices = @transform_16, window_bounds = array<i64: 1, 64>}, {pipeline_mode = #tpu.pipeline_mode<synchronous>, transform_indices = @transform_17, window_bounds = array<i64: 64, 32>}, {pipeline_mode = #tpu.pipeline_mode<synchronous>, transform_indices = @transform_18, window_bounds = array<i64: 1, 32>}, {pipeline_mode = #tpu.pipeline_mode<synchronous>, transform_indices = @transform_19, window_bounds = array<i64: 32, 3>}, {pipeline_mode = #tpu.pipeline_mode<synchronous>, transform_indices = @transform_20, window_bounds = array<i64: 1, 3>}, {}, {}, {}, {transform_indices = @transform_24, window_bounds = array<i64: 8, 3>}]} {
    %c0_i32 = arith.constant 0 : i32
    %0 = tpu.memref_slice %arg29[%c0_i32] : memref<3x!tpu.dma_semaphore, #tpu.memory_space<semaphore_mem>> -> memref<1x!tpu.dma_semaphore, #tpu.memory_space<semaphore_mem>>
    %1 = tpu.memref_squeeze %0 : memref<1x!tpu.dma_semaphore, #tpu.memory_space<semaphore_mem>> -> memref<!tpu.dma_semaphore, #tpu.memory_space<semaphore_mem>>
    tpu.enqueue_dma source(%arg22 : memref<512x512xbf16, #tpu.memory_space<any>>) target(%arg26 : memref<512x512xbf16, #tpu.memory_space<vmem>>) target_semaphore(%1 : memref<!tpu.dma_semaphore, #tpu.memory_space<semaphore_mem>>)
    %c1_i32 = arith.constant 1 : i32
    %2 = tpu.memref_slice %arg29[%c1_i32] : memref<3x!tpu.dma_semaphore, #tpu.memory_space<semaphore_mem>> -> memref<1x!tpu.dma_semaphore, #tpu.memory_space<semaphore_mem>>
    %3 = tpu.memref_squeeze %2 : memref<1x!tpu.dma_semaphore, #tpu.memory_space<semaphore_mem>> -> memref<!tpu.dma_semaphore, #tpu.memory_space<semaphore_mem>>
    tpu.enqueue_dma source(%arg23 : memref<3x512x256xbf16, #tpu.memory_space<any>>) target(%arg27 : memref<3x512x256xbf16, #tpu.memory_space<vmem>>) target_semaphore(%3 : memref<!tpu.dma_semaphore, #tpu.memory_space<semaphore_mem>>)
    %c2_i32 = arith.constant 2 : i32
    %4 = tpu.memref_slice %arg29[%c2_i32] : memref<3x!tpu.dma_semaphore, #tpu.memory_space<semaphore_mem>> -> memref<1x!tpu.dma_semaphore, #tpu.memory_space<semaphore_mem>>
    %5 = tpu.memref_squeeze %4 : memref<1x!tpu.dma_semaphore, #tpu.memory_space<semaphore_mem>> -> memref<!tpu.dma_semaphore, #tpu.memory_space<semaphore_mem>>
    tpu.enqueue_dma source(%arg24 : memref<2x256x512xbf16, #tpu.memory_space<any>>) target(%arg28 : memref<2x256x512xbf16, #tpu.memory_space<vmem>>) target_semaphore(%5 : memref<!tpu.dma_semaphore, #tpu.memory_space<semaphore_mem>>)
    %c0 = arith.constant 0 : index
    %c0_0 = arith.constant 0 : index
    %6 = vector.load %arg1[%c0, %c0_0] : memref<8x64xf32, #tpu.memory_space<vmem>>, vector<8x64xf32>
    %c0_1 = arith.constant 0 : index
    %c0_2 = arith.constant 0 : index
    %7 = vector.load %arg2[%c0_1, %c0_2] : memref<64x512xbf16, #tpu.memory_space<vmem>>, vector<64x512xbf16>
    %c0_3 = arith.constant 0 : index
    %c0_4 = arith.constant 0 : index
    %8 = vector.load %arg3[%c0_3, %c0_4] : memref<1x512xf32, #tpu.memory_space<vmem>>, vector<1x512xf32>
    %9 = arith.truncf %6 : vector<8x64xf32> to vector<8x64xbf16>
    %cst = arith.constant dense<0.000000e+00> : vector<8x512xf32>
    %10 = tpu.matmul %9, %7, %cst {dimension_numbers = #tpu.dot_dimension_numbers<[1], [0], [0], [1], [0, 0, 1, 1], [], []>} : vector<8x64xbf16>, vector<64x512xbf16>, vector<8x512xf32> -> vector<8x512xf32>
    %11 = vector.broadcast %8 : vector<1x512xf32> to vector<8x512xf32>
    %12 = arith.addf %10, %11 : vector<8x512xf32>
    %cst_5 = arith.constant 0.000000e+00 : f32
    %13 = vector.broadcast %cst_5 : f32 to vector<8x512xf32>
    %14 = arith.maximumf %12, %13 : vector<8x512xf32>
    %c0_6 = arith.constant 0 : index
    %c0_7 = arith.constant 0 : index
    %15 = vector.load %arg4[%c0_6, %c0_7] : memref<512x1536xbf16, #tpu.memory_space<vmem>>, vector<512x1536xbf16>
    %c0_8 = arith.constant 0 : index
    %c0_9 = arith.constant 0 : index
    %16 = vector.load %arg5[%c0_8, %c0_9] : memref<1x1536xf32, #tpu.memory_space<vmem>>, vector<1x1536xf32>
    %17 = arith.truncf %14 : vector<8x512xf32> to vector<8x512xbf16>
    %cst_10 = arith.constant dense<0.000000e+00> : vector<8x1536xf32>
    %18 = tpu.matmul %17, %15, %cst_10 {dimension_numbers = #tpu.dot_dimension_numbers<[1], [0], [0], [1], [0, 0, 1, 1], [], []>} : vector<8x512xbf16>, vector<512x1536xbf16>, vector<8x1536xf32> -> vector<8x1536xf32>
    %19 = vector.broadcast %16 : vector<1x1536xf32> to vector<8x1536xf32>
    %20 = arith.addf %18, %19 : vector<8x1536xf32>
    %21 = vector.extract_strided_slice %20 {offsets = [0, 0], sizes = [8, 64], strides = [1, 1]} : vector<8x1536xf32> to vector<8x64xf32>
    %22 = vector.extract_strided_slice %20 {offsets = [0, 512], sizes = [8, 64], strides = [1, 1]} : vector<8x1536xf32> to vector<8x64xf32>
    %23 = arith.mulf %21, %22 : vector<8x64xf32>
    %cst_11 = arith.constant dense<0.000000e+00> : vector<8xf32>
    %24 = vector.multi_reduction <add>, %23, %cst_11 [1] : vector<8x64xf32> to vector<8xf32>
    %25 = vector.shape_cast %24 : vector<8xf32> to vector<8x1xf32>
    %26 = vector.extract_strided_slice %20 {offsets = [0, 576], sizes = [8, 64], strides = [1, 1]} : vector<8x1536xf32> to vector<8x64xf32>
    %27 = arith.mulf %21, %26 : vector<8x64xf32>
    %cst_12 = arith.constant dense<0.000000e+00> : vector<8xf32>
    %28 = vector.multi_reduction <add>, %27, %cst_12 [1] : vector<8x64xf32> to vector<8xf32>
    %29 = vector.shape_cast %28 : vector<8xf32> to vector<8x1xf32>
    %30 = vector.extract_strided_slice %20 {offsets = [0, 640], sizes = [8, 64], strides = [1, 1]} : vector<8x1536xf32> to vector<8x64xf32>
    %31 = arith.mulf %21, %30 : vector<8x64xf32>
    %cst_13 = arith.constant dense<0.000000e+00> : vector<8xf32>
    %32 = vector.multi_reduction <add>, %31, %cst_13 [1] : vector<8x64xf32> to vector<8xf32>
    %33 = vector.shape_cast %32 : vector<8xf32> to vector<8x1xf32>
    %34 = vector.extract_strided_slice %20 {offsets = [0, 704], sizes = [8, 64], strides = [1, 1]} : vector<8x1536xf32> to vector<8x64xf32>
    %35 = arith.mulf %21, %34 : vector<8x64xf32>
    %cst_14 = arith.constant dense<0.000000e+00> : vector<8xf32>
    %36 = vector.multi_reduction <add>, %35, %cst_14 [1] : vector<8x64xf32> to vector<8xf32>
    %37 = vector.shape_cast %36 : vector<8xf32> to vector<8x1xf32>
    %38 = vector.extract_strided_slice %20 {offsets = [0, 768], sizes = [8, 64], strides = [1, 1]} : vector<8x1536xf32> to vector<8x64xf32>
    %39 = arith.mulf %21, %38 : vector<8x64xf32>
    %cst_15 = arith.constant dense<0.000000e+00> : vector<8xf32>
    %40 = vector.multi_reduction <add>, %39, %cst_15 [1] : vector<8x64xf32> to vector<8xf32>
    %41 = vector.shape_cast %40 : vector<8xf32> to vector<8x1xf32>
    %42 = vector.extract_strided_slice %20 {offsets = [0, 832], sizes = [8, 64], strides = [1, 1]} : vector<8x1536xf32> to vector<8x64xf32>
    %43 = arith.mulf %21, %42 : vector<8x64xf32>
    %cst_16 = arith.constant dense<0.000000e+00> : vector<8xf32>
    %44 = vector.multi_reduction <add>, %43, %cst_16 [1] : vector<8x64xf32> to vector<8xf32>
    %45 = vector.shape_cast %44 : vector<8xf32> to vector<8x1xf32>
    %46 = vector.extract_strided_slice %20 {offsets = [0, 896], sizes = [8, 64], strides = [1, 1]} : vector<8x1536xf32> to vector<8x64xf32>
    %47 = arith.mulf %21, %46 : vector<8x64xf32>
    %cst_17 = arith.constant dense<0.000000e+00> : vector<8xf32>
    %48 = vector.multi_reduction <add>, %47, %cst_17 [1] : vector<8x64xf32> to vector<8xf32>
    %49 = vector.shape_cast %48 : vector<8xf32> to vector<8x1xf32>
    %50 = vector.extract_strided_slice %20 {offsets = [0, 960], sizes = [8, 64], strides = [1, 1]} : vector<8x1536xf32> to vector<8x64xf32>
    %51 = arith.mulf %21, %50 : vector<8x64xf32>
    %cst_18 = arith.constant dense<0.000000e+00> : vector<8xf32>
    %52 = vector.multi_reduction <add>, %51, %cst_18 [1] : vector<8x64xf32> to vector<8xf32>
    %53 = vector.shape_cast %52 : vector<8xf32> to vector<8x1xf32>
    %54 = arith.maximumf %25, %29 : vector<8x1xf32>
    %55 = arith.maximumf %54, %33 : vector<8x1xf32>
    %56 = arith.maximumf %55, %37 : vector<8x1xf32>
    %57 = arith.maximumf %56, %41 : vector<8x1xf32>
    %58 = arith.maximumf %57, %45 : vector<8x1xf32>
    %59 = arith.maximumf %58, %49 : vector<8x1xf32>
    %60 = arith.maximumf %59, %53 : vector<8x1xf32>
    %61 = arith.subf %25, %60 : vector<8x1xf32>
    %62 = math.exp %61 : vector<8x1xf32>
    %63 = arith.subf %29, %60 : vector<8x1xf32>
    %64 = math.exp %63 : vector<8x1xf32>
    %65 = arith.subf %33, %60 : vector<8x1xf32>
    %66 = math.exp %65 : vector<8x1xf32>
    %67 = arith.subf %37, %60 : vector<8x1xf32>
    %68 = math.exp %67 : vector<8x1xf32>
    %69 = arith.subf %41, %60 : vector<8x1xf32>
    %70 = math.exp %69 : vector<8x1xf32>
    %71 = arith.subf %45, %60 : vector<8x1xf32>
    %72 = math.exp %71 : vector<8x1xf32>
    %73 = arith.subf %49, %60 : vector<8x1xf32>
    %74 = math.exp %73 : vector<8x1xf32>
    %75 = arith.subf %53, %60 : vector<8x1xf32>
    %76 = math.exp %75 : vector<8x1xf32>
    %77 = arith.addf %62, %64 : vector<8x1xf32>
    %78 = arith.addf %77, %66 : vector<8x1xf32>
    %79 = arith.addf %78, %68 : vector<8x1xf32>
    %80 = arith.addf %79, %70 : vector<8x1xf32>
    %81 = arith.addf %80, %72 : vector<8x1xf32>
    %82 = arith.addf %81, %74 : vector<8x1xf32>
    %83 = arith.addf %82, %76 : vector<8x1xf32>
    %84 = vector.extract_strided_slice %20 {offsets = [0, 1024], sizes = [8, 64], strides = [1, 1]} : vector<8x1536xf32> to vector<8x64xf32>
    %85 = vector.broadcast %62 : vector<8x1xf32> to vector<8x64xf32>
    %86 = arith.mulf %85, %84 : vector<8x64xf32>
    %87 = vector.extract_strided_slice %20 {offsets = [0, 1088], sizes = [8, 64], strides = [1, 1]} : vector<8x1536xf32> to vector<8x64xf32>
    %88 = vector.broadcast %64 : vector<8x1xf32> to vector<8x64xf32>
    %89 = arith.mulf %88, %87 : vector<8x64xf32>
    %90 = arith.addf %86, %89 : vector<8x64xf32>
    %91 = vector.extract_strided_slice %20 {offsets = [0, 1152], sizes = [8, 64], strides = [1, 1]} : vector<8x1536xf32> to vector<8x64xf32>
    %92 = vector.broadcast %66 : vector<8x1xf32> to vector<8x64xf32>
    %93 = arith.mulf %92, %91 : vector<8x64xf32>
    %94 = arith.addf %90, %93 : vector<8x64xf32>
    %95 = vector.extract_strided_slice %20 {offsets = [0, 1216], sizes = [8, 64], strides = [1, 1]} : vector<8x1536xf32> to vector<8x64xf32>
    %96 = vector.broadcast %68 : vector<8x1xf32> to vector<8x64xf32>
    %97 = arith.mulf %96, %95 : vector<8x64xf32>
    %98 = arith.addf %94, %97 : vector<8x64xf32>
    %99 = vector.extract_strided_slice %20 {offsets = [0, 1280], sizes = [8, 64], strides = [1, 1]} : vector<8x1536xf32> to vector<8x64xf32>
    %100 = vector.broadcast %70 : vector<8x1xf32> to vector<8x64xf32>
    %101 = arith.mulf %100, %99 : vector<8x64xf32>
    %102 = arith.addf %98, %101 : vector<8x64xf32>
    %103 = vector.extract_strided_slice %20 {offsets = [0, 1344], sizes = [8, 64], strides = [1, 1]} : vector<8x1536xf32> to vector<8x64xf32>
    %104 = vector.broadcast %72 : vector<8x1xf32> to vector<8x64xf32>
    %105 = arith.mulf %104, %103 : vector<8x64xf32>
    %106 = arith.addf %102, %105 : vector<8x64xf32>
    %107 = vector.extract_strided_slice %20 {offsets = [0, 1408], sizes = [8, 64], strides = [1, 1]} : vector<8x1536xf32> to vector<8x64xf32>
    %108 = vector.broadcast %74 : vector<8x1xf32> to vector<8x64xf32>
    %109 = arith.mulf %108, %107 : vector<8x64xf32>
    %110 = arith.addf %106, %109 : vector<8x64xf32>
    %111 = vector.extract_strided_slice %20 {offsets = [0, 1472], sizes = [8, 64], strides = [1, 1]} : vector<8x1536xf32> to vector<8x64xf32>
    %112 = vector.broadcast %76 : vector<8x1xf32> to vector<8x64xf32>
    %113 = arith.mulf %112, %111 : vector<8x64xf32>
    %114 = arith.addf %110, %113 : vector<8x64xf32>
    %115 = vector.broadcast %83 : vector<8x1xf32> to vector<8x64xf32>
    %116 = arith.divf %114, %115 : vector<8x64xf32>
    %117 = vector.extract_strided_slice %20 {offsets = [0, 64], sizes = [8, 64], strides = [1, 1]} : vector<8x1536xf32> to vector<8x64xf32>
    %118 = vector.extract_strided_slice %20 {offsets = [0, 512], sizes = [8, 64], strides = [1, 1]} : vector<8x1536xf32> to vector<8x64xf32>
    %119 = arith.mulf %117, %118 : vector<8x64xf32>
    %cst_19 = arith.constant dense<0.000000e+00> : vector<8xf32>
    %120 = vector.multi_reduction <add>, %119, %cst_19 [1] : vector<8x64xf32> to vector<8xf32>
    %121 = vector.shape_cast %120 : vector<8xf32> to vector<8x1xf32>
    %122 = vector.extract_strided_slice %20 {offsets = [0, 576], sizes = [8, 64], strides = [1, 1]} : vector<8x1536xf32> to vector<8x64xf32>
    %123 = arith.mulf %117, %122 : vector<8x64xf32>
    %cst_20 = arith.constant dense<0.000000e+00> : vector<8xf32>
    %124 = vector.multi_reduction <add>, %123, %cst_20 [1] : vector<8x64xf32> to vector<8xf32>
    %125 = vector.shape_cast %124 : vector<8xf32> to vector<8x1xf32>
    %126 = vector.extract_strided_slice %20 {offsets = [0, 640], sizes = [8, 64], strides = [1, 1]} : vector<8x1536xf32> to vector<8x64xf32>
    %127 = arith.mulf %117, %126 : vector<8x64xf32>
    %cst_21 = arith.constant dense<0.000000e+00> : vector<8xf32>
    %128 = vector.multi_reduction <add>, %127, %cst_21 [1] : vector<8x64xf32> to vector<8xf32>
    %129 = vector.shape_cast %128 : vector<8xf32> to vector<8x1xf32>
    %130 = vector.extract_strided_slice %20 {offsets = [0, 704], sizes = [8, 64], strides = [1, 1]} : vector<8x1536xf32> to vector<8x64xf32>
    %131 = arith.mulf %117, %130 : vector<8x64xf32>
    %cst_22 = arith.constant dense<0.000000e+00> : vector<8xf32>
    %132 = vector.multi_reduction <add>, %131, %cst_22 [1] : vector<8x64xf32> to vector<8xf32>
    %133 = vector.shape_cast %132 : vector<8xf32> to vector<8x1xf32>
    %134 = vector.extract_strided_slice %20 {offsets = [0, 768], sizes = [8, 64], strides = [1, 1]} : vector<8x1536xf32> to vector<8x64xf32>
    %135 = arith.mulf %117, %134 : vector<8x64xf32>
    %cst_23 = arith.constant dense<0.000000e+00> : vector<8xf32>
    %136 = vector.multi_reduction <add>, %135, %cst_23 [1] : vector<8x64xf32> to vector<8xf32>
    %137 = vector.shape_cast %136 : vector<8xf32> to vector<8x1xf32>
    %138 = vector.extract_strided_slice %20 {offsets = [0, 832], sizes = [8, 64], strides = [1, 1]} : vector<8x1536xf32> to vector<8x64xf32>
    %139 = arith.mulf %117, %138 : vector<8x64xf32>
    %cst_24 = arith.constant dense<0.000000e+00> : vector<8xf32>
    %140 = vector.multi_reduction <add>, %139, %cst_24 [1] : vector<8x64xf32> to vector<8xf32>
    %141 = vector.shape_cast %140 : vector<8xf32> to vector<8x1xf32>
    %142 = vector.extract_strided_slice %20 {offsets = [0, 896], sizes = [8, 64], strides = [1, 1]} : vector<8x1536xf32> to vector<8x64xf32>
    %143 = arith.mulf %117, %142 : vector<8x64xf32>
    %cst_25 = arith.constant dense<0.000000e+00> : vector<8xf32>
    %144 = vector.multi_reduction <add>, %143, %cst_25 [1] : vector<8x64xf32> to vector<8xf32>
    %145 = vector.shape_cast %144 : vector<8xf32> to vector<8x1xf32>
    %146 = vector.extract_strided_slice %20 {offsets = [0, 960], sizes = [8, 64], strides = [1, 1]} : vector<8x1536xf32> to vector<8x64xf32>
    %147 = arith.mulf %117, %146 : vector<8x64xf32>
    %cst_26 = arith.constant dense<0.000000e+00> : vector<8xf32>
    %148 = vector.multi_reduction <add>, %147, %cst_26 [1] : vector<8x64xf32> to vector<8xf32>
    %149 = vector.shape_cast %148 : vector<8xf32> to vector<8x1xf32>
    %150 = arith.maximumf %121, %125 : vector<8x1xf32>
    %151 = arith.maximumf %150, %129 : vector<8x1xf32>
    %152 = arith.maximumf %151, %133 : vector<8x1xf32>
    %153 = arith.maximumf %152, %137 : vector<8x1xf32>
    %154 = arith.maximumf %153, %141 : vector<8x1xf32>
    %155 = arith.maximumf %154, %145 : vector<8x1xf32>
    %156 = arith.maximumf %155, %149 : vector<8x1xf32>
    %157 = arith.subf %121, %156 : vector<8x1xf32>
    %158 = math.exp %157 : vector<8x1xf32>
    %159 = arith.subf %125, %156 : vector<8x1xf32>
    %160 = math.exp %159 : vector<8x1xf32>
    %161 = arith.subf %129, %156 : vector<8x1xf32>
    %162 = math.exp %161 : vector<8x1xf32>
    %163 = arith.subf %133, %156 : vector<8x1xf32>
    %164 = math.exp %163 : vector<8x1xf32>
    %165 = arith.subf %137, %156 : vector<8x1xf32>
    %166 = math.exp %165 : vector<8x1xf32>
    %167 = arith.subf %141, %156 : vector<8x1xf32>
    %168 = math.exp %167 : vector<8x1xf32>
    %169 = arith.subf %145, %156 : vector<8x1xf32>
    %170 = math.exp %169 : vector<8x1xf32>
    %171 = arith.subf %149, %156 : vector<8x1xf32>
    %172 = math.exp %171 : vector<8x1xf32>
    %173 = arith.addf %158, %160 : vector<8x1xf32>
    %174 = arith.addf %173, %162 : vector<8x1xf32>
    %175 = arith.addf %174, %164 : vector<8x1xf32>
    %176 = arith.addf %175, %166 : vector<8x1xf32>
    %177 = arith.addf %176, %168 : vector<8x1xf32>
    %178 = arith.addf %177, %170 : vector<8x1xf32>
    %179 = arith.addf %178, %172 : vector<8x1xf32>
    %180 = vector.extract_strided_slice %20 {offsets = [0, 1024], sizes = [8, 64], strides = [1, 1]} : vector<8x1536xf32> to vector<8x64xf32>
    %181 = vector.broadcast %158 : vector<8x1xf32> to vector<8x64xf32>
    %182 = arith.mulf %181, %180 : vector<8x64xf32>
    %183 = vector.extract_strided_slice %20 {offsets = [0, 1088], sizes = [8, 64], strides = [1, 1]} : vector<8x1536xf32> to vector<8x64xf32>
    %184 = vector.broadcast %160 : vector<8x1xf32> to vector<8x64xf32>
    %185 = arith.mulf %184, %183 : vector<8x64xf32>
    %186 = arith.addf %182, %185 : vector<8x64xf32>
    %187 = vector.extract_strided_slice %20 {offsets = [0, 1152], sizes = [8, 64], strides = [1, 1]} : vector<8x1536xf32> to vector<8x64xf32>
    %188 = vector.broadcast %162 : vector<8x1xf32> to vector<8x64xf32>
    %189 = arith.mulf %188, %187 : vector<8x64xf32>
    %190 = arith.addf %186, %189 : vector<8x64xf32>
    %191 = vector.extract_strided_slice %20 {offsets = [0, 1216], sizes = [8, 64], strides = [1, 1]} : vector<8x1536xf32> to vector<8x64xf32>
    %192 = vector.broadcast %164 : vector<8x1xf32> to vector<8x64xf32>
    %193 = arith.mulf %192, %191 : vector<8x64xf32>
    %194 = arith.addf %190, %193 : vector<8x64xf32>
    %195 = vector.extract_strided_slice %20 {offsets = [0, 1280], sizes = [8, 64], strides = [1, 1]} : vector<8x1536xf32> to vector<8x64xf32>
    %196 = vector.broadcast %166 : vector<8x1xf32> to vector<8x64xf32>
    %197 = arith.mulf %196, %195 : vector<8x64xf32>
    %198 = arith.addf %194, %197 : vector<8x64xf32>
    %199 = vector.extract_strided_slice %20 {offsets = [0, 1344], sizes = [8, 64], strides = [1, 1]} : vector<8x1536xf32> to vector<8x64xf32>
    %200 = vector.broadcast %168 : vector<8x1xf32> to vector<8x64xf32>
    %201 = arith.mulf %200, %199 : vector<8x64xf32>
    %202 = arith.addf %198, %201 : vector<8x64xf32>
    %203 = vector.extract_strided_slice %20 {offsets = [0, 1408], sizes = [8, 64], strides = [1, 1]} : vector<8x1536xf32> to vector<8x64xf32>
    %204 = vector.broadcast %170 : vector<8x1xf32> to vector<8x64xf32>
    %205 = arith.mulf %204, %203 : vector<8x64xf32>
    %206 = arith.addf %202, %205 : vector<8x64xf32>
    %207 = vector.extract_strided_slice %20 {offsets = [0, 1472], sizes = [8, 64], strides = [1, 1]} : vector<8x1536xf32> to vector<8x64xf32>
    %208 = vector.broadcast %172 : vector<8x1xf32> to vector<8x64xf32>
    %209 = arith.mulf %208, %207 : vector<8x64xf32>
    %210 = arith.addf %206, %209 : vector<8x64xf32>
    %211 = vector.broadcast %179 : vector<8x1xf32> to vector<8x64xf32>
    %212 = arith.divf %210, %211 : vector<8x64xf32>
    %213 = vector.extract_strided_slice %20 {offsets = [0, 128], sizes = [8, 64], strides = [1, 1]} : vector<8x1536xf32> to vector<8x64xf32>
    %214 = vector.extract_strided_slice %20 {offsets = [0, 512], sizes = [8, 64], strides = [1, 1]} : vector<8x1536xf32> to vector<8x64xf32>
    %215 = arith.mulf %213, %214 : vector<8x64xf32>
    %cst_27 = arith.constant dense<0.000000e+00> : vector<8xf32>
    %216 = vector.multi_reduction <add>, %215, %cst_27 [1] : vector<8x64xf32> to vector<8xf32>
    %217 = vector.shape_cast %216 : vector<8xf32> to vector<8x1xf32>
    %218 = vector.extract_strided_slice %20 {offsets = [0, 576], sizes = [8, 64], strides = [1, 1]} : vector<8x1536xf32> to vector<8x64xf32>
    %219 = arith.mulf %213, %218 : vector<8x64xf32>
    %cst_28 = arith.constant dense<0.000000e+00> : vector<8xf32>
    %220 = vector.multi_reduction <add>, %219, %cst_28 [1] : vector<8x64xf32> to vector<8xf32>
    %221 = vector.shape_cast %220 : vector<8xf32> to vector<8x1xf32>
    %222 = vector.extract_strided_slice %20 {offsets = [0, 640], sizes = [8, 64], strides = [1, 1]} : vector<8x1536xf32> to vector<8x64xf32>
    %223 = arith.mulf %213, %222 : vector<8x64xf32>
    %cst_29 = arith.constant dense<0.000000e+00> : vector<8xf32>
    %224 = vector.multi_reduction <add>, %223, %cst_29 [1] : vector<8x64xf32> to vector<8xf32>
    %225 = vector.shape_cast %224 : vector<8xf32> to vector<8x1xf32>
    %226 = vector.extract_strided_slice %20 {offsets = [0, 704], sizes = [8, 64], strides = [1, 1]} : vector<8x1536xf32> to vector<8x64xf32>
    %227 = arith.mulf %213, %226 : vector<8x64xf32>
    %cst_30 = arith.constant dense<0.000000e+00> : vector<8xf32>
    %228 = vector.multi_reduction <add>, %227, %cst_30 [1] : vector<8x64xf32> to vector<8xf32>
    %229 = vector.shape_cast %228 : vector<8xf32> to vector<8x1xf32>
    %230 = vector.extract_strided_slice %20 {offsets = [0, 768], sizes = [8, 64], strides = [1, 1]} : vector<8x1536xf32> to vector<8x64xf32>
    %231 = arith.mulf %213, %230 : vector<8x64xf32>
    %cst_31 = arith.constant dense<0.000000e+00> : vector<8xf32>
    %232 = vector.multi_reduction <add>, %231, %cst_31 [1] : vector<8x64xf32> to vector<8xf32>
    %233 = vector.shape_cast %232 : vector<8xf32> to vector<8x1xf32>
    %234 = vector.extract_strided_slice %20 {offsets = [0, 832], sizes = [8, 64], strides = [1, 1]} : vector<8x1536xf32> to vector<8x64xf32>
    %235 = arith.mulf %213, %234 : vector<8x64xf32>
    %cst_32 = arith.constant dense<0.000000e+00> : vector<8xf32>
    %236 = vector.multi_reduction <add>, %235, %cst_32 [1] : vector<8x64xf32> to vector<8xf32>
    %237 = vector.shape_cast %236 : vector<8xf32> to vector<8x1xf32>
    %238 = vector.extract_strided_slice %20 {offsets = [0, 896], sizes = [8, 64], strides = [1, 1]} : vector<8x1536xf32> to vector<8x64xf32>
    %239 = arith.mulf %213, %238 : vector<8x64xf32>
    %cst_33 = arith.constant dense<0.000000e+00> : vector<8xf32>
    %240 = vector.multi_reduction <add>, %239, %cst_33 [1] : vector<8x64xf32> to vector<8xf32>
    %241 = vector.shape_cast %240 : vector<8xf32> to vector<8x1xf32>
    %242 = vector.extract_strided_slice %20 {offsets = [0, 960], sizes = [8, 64], strides = [1, 1]} : vector<8x1536xf32> to vector<8x64xf32>
    %243 = arith.mulf %213, %242 : vector<8x64xf32>
    %cst_34 = arith.constant dense<0.000000e+00> : vector<8xf32>
    %244 = vector.multi_reduction <add>, %243, %cst_34 [1] : vector<8x64xf32> to vector<8xf32>
    %245 = vector.shape_cast %244 : vector<8xf32> to vector<8x1xf32>
    %246 = arith.maximumf %217, %221 : vector<8x1xf32>
    %247 = arith.maximumf %246, %225 : vector<8x1xf32>
    %248 = arith.maximumf %247, %229 : vector<8x1xf32>
    %249 = arith.maximumf %248, %233 : vector<8x1xf32>
    %250 = arith.maximumf %249, %237 : vector<8x1xf32>
    %251 = arith.maximumf %250, %241 : vector<8x1xf32>
    %252 = arith.maximumf %251, %245 : vector<8x1xf32>
    %253 = arith.subf %217, %252 : vector<8x1xf32>
    %254 = math.exp %253 : vector<8x1xf32>
    %255 = arith.subf %221, %252 : vector<8x1xf32>
    %256 = math.exp %255 : vector<8x1xf32>
    %257 = arith.subf %225, %252 : vector<8x1xf32>
    %258 = math.exp %257 : vector<8x1xf32>
    %259 = arith.subf %229, %252 : vector<8x1xf32>
    %260 = math.exp %259 : vector<8x1xf32>
    %261 = arith.subf %233, %252 : vector<8x1xf32>
    %262 = math.exp %261 : vector<8x1xf32>
    %263 = arith.subf %237, %252 : vector<8x1xf32>
    %264 = math.exp %263 : vector<8x1xf32>
    %265 = arith.subf %241, %252 : vector<8x1xf32>
    %266 = math.exp %265 : vector<8x1xf32>
    %267 = arith.subf %245, %252 : vector<8x1xf32>
    %268 = math.exp %267 : vector<8x1xf32>
    %269 = arith.addf %254, %256 : vector<8x1xf32>
    %270 = arith.addf %269, %258 : vector<8x1xf32>
    %271 = arith.addf %270, %260 : vector<8x1xf32>
    %272 = arith.addf %271, %262 : vector<8x1xf32>
    %273 = arith.addf %272, %264 : vector<8x1xf32>
    %274 = arith.addf %273, %266 : vector<8x1xf32>
    %275 = arith.addf %274, %268 : vector<8x1xf32>
    %276 = vector.extract_strided_slice %20 {offsets = [0, 1024], sizes = [8, 64], strides = [1, 1]} : vector<8x1536xf32> to vector<8x64xf32>
    %277 = vector.broadcast %254 : vector<8x1xf32> to vector<8x64xf32>
    %278 = arith.mulf %277, %276 : vector<8x64xf32>
    %279 = vector.extract_strided_slice %20 {offsets = [0, 1088], sizes = [8, 64], strides = [1, 1]} : vector<8x1536xf32> to vector<8x64xf32>
    %280 = vector.broadcast %256 : vector<8x1xf32> to vector<8x64xf32>
    %281 = arith.mulf %280, %279 : vector<8x64xf32>
    %282 = arith.addf %278, %281 : vector<8x64xf32>
    %283 = vector.extract_strided_slice %20 {offsets = [0, 1152], sizes = [8, 64], strides = [1, 1]} : vector<8x1536xf32> to vector<8x64xf32>
    %284 = vector.broadcast %258 : vector<8x1xf32> to vector<8x64xf32>
    %285 = arith.mulf %284, %283 : vector<8x64xf32>
    %286 = arith.addf %282, %285 : vector<8x64xf32>
    %287 = vector.extract_strided_slice %20 {offsets = [0, 1216], sizes = [8, 64], strides = [1, 1]} : vector<8x1536xf32> to vector<8x64xf32>
    %288 = vector.broadcast %260 : vector<8x1xf32> to vector<8x64xf32>
    %289 = arith.mulf %288, %287 : vector<8x64xf32>
    %290 = arith.addf %286, %289 : vector<8x64xf32>
    %291 = vector.extract_strided_slice %20 {offsets = [0, 1280], sizes = [8, 64], strides = [1, 1]} : vector<8x1536xf32> to vector<8x64xf32>
    %292 = vector.broadcast %262 : vector<8x1xf32> to vector<8x64xf32>
    %293 = arith.mulf %292, %291 : vector<8x64xf32>
    %294 = arith.addf %290, %293 : vector<8x64xf32>
    %295 = vector.extract_strided_slice %20 {offsets = [0, 1344], sizes = [8, 64], strides = [1, 1]} : vector<8x1536xf32> to vector<8x64xf32>
    %296 = vector.broadcast %264 : vector<8x1xf32> to vector<8x64xf32>
    %297 = arith.mulf %296, %295 : vector<8x64xf32>
    %298 = arith.addf %294, %297 : vector<8x64xf32>
    %299 = vector.extract_strided_slice %20 {offsets = [0, 1408], sizes = [8, 64], strides = [1, 1]} : vector<8x1536xf32> to vector<8x64xf32>
    %300 = vector.broadcast %266 : vector<8x1xf32> to vector<8x64xf32>
    %301 = arith.mulf %300, %299 : vector<8x64xf32>
    %302 = arith.addf %298, %301 : vector<8x64xf32>
    %303 = vector.extract_strided_slice %20 {offsets = [0, 1472], sizes = [8, 64], strides = [1, 1]} : vector<8x1536xf32> to vector<8x64xf32>
    %304 = vector.broadcast %268 : vector<8x1xf32> to vector<8x64xf32>
    %305 = arith.mulf %304, %303 : vector<8x64xf32>
    %306 = arith.addf %302, %305 : vector<8x64xf32>
    %307 = vector.broadcast %275 : vector<8x1xf32> to vector<8x64xf32>
    %308 = arith.divf %306, %307 : vector<8x64xf32>
    %309 = vector.extract_strided_slice %20 {offsets = [0, 192], sizes = [8, 64], strides = [1, 1]} : vector<8x1536xf32> to vector<8x64xf32>
    %310 = vector.extract_strided_slice %20 {offsets = [0, 512], sizes = [8, 64], strides = [1, 1]} : vector<8x1536xf32> to vector<8x64xf32>
    %311 = arith.mulf %309, %310 : vector<8x64xf32>
    %cst_35 = arith.constant dense<0.000000e+00> : vector<8xf32>
    %312 = vector.multi_reduction <add>, %311, %cst_35 [1] : vector<8x64xf32> to vector<8xf32>
    %313 = vector.shape_cast %312 : vector<8xf32> to vector<8x1xf32>
    %314 = vector.extract_strided_slice %20 {offsets = [0, 576], sizes = [8, 64], strides = [1, 1]} : vector<8x1536xf32> to vector<8x64xf32>
    %315 = arith.mulf %309, %314 : vector<8x64xf32>
    %cst_36 = arith.constant dense<0.000000e+00> : vector<8xf32>
    %316 = vector.multi_reduction <add>, %315, %cst_36 [1] : vector<8x64xf32> to vector<8xf32>
    %317 = vector.shape_cast %316 : vector<8xf32> to vector<8x1xf32>
    %318 = vector.extract_strided_slice %20 {offsets = [0, 640], sizes = [8, 64], strides = [1, 1]} : vector<8x1536xf32> to vector<8x64xf32>
    %319 = arith.mulf %309, %318 : vector<8x64xf32>
    %cst_37 = arith.constant dense<0.000000e+00> : vector<8xf32>
    %320 = vector.multi_reduction <add>, %319, %cst_37 [1] : vector<8x64xf32> to vector<8xf32>
    %321 = vector.shape_cast %320 : vector<8xf32> to vector<8x1xf32>
    %322 = vector.extract_strided_slice %20 {offsets = [0, 704], sizes = [8, 64], strides = [1, 1]} : vector<8x1536xf32> to vector<8x64xf32>
    %323 = arith.mulf %309, %322 : vector<8x64xf32>
    %cst_38 = arith.constant dense<0.000000e+00> : vector<8xf32>
    %324 = vector.multi_reduction <add>, %323, %cst_38 [1] : vector<8x64xf32> to vector<8xf32>
    %325 = vector.shape_cast %324 : vector<8xf32> to vector<8x1xf32>
    %326 = vector.extract_strided_slice %20 {offsets = [0, 768], sizes = [8, 64], strides = [1, 1]} : vector<8x1536xf32> to vector<8x64xf32>
    %327 = arith.mulf %309, %326 : vector<8x64xf32>
    %cst_39 = arith.constant dense<0.000000e+00> : vector<8xf32>
    %328 = vector.multi_reduction <add>, %327, %cst_39 [1] : vector<8x64xf32> to vector<8xf32>
    %329 = vector.shape_cast %328 : vector<8xf32> to vector<8x1xf32>
    %330 = vector.extract_strided_slice %20 {offsets = [0, 832], sizes = [8, 64], strides = [1, 1]} : vector<8x1536xf32> to vector<8x64xf32>
    %331 = arith.mulf %309, %330 : vector<8x64xf32>
    %cst_40 = arith.constant dense<0.000000e+00> : vector<8xf32>
    %332 = vector.multi_reduction <add>, %331, %cst_40 [1] : vector<8x64xf32> to vector<8xf32>
    %333 = vector.shape_cast %332 : vector<8xf32> to vector<8x1xf32>
    %334 = vector.extract_strided_slice %20 {offsets = [0, 896], sizes = [8, 64], strides = [1, 1]} : vector<8x1536xf32> to vector<8x64xf32>
    %335 = arith.mulf %309, %334 : vector<8x64xf32>
    %cst_41 = arith.constant dense<0.000000e+00> : vector<8xf32>
    %336 = vector.multi_reduction <add>, %335, %cst_41 [1] : vector<8x64xf32> to vector<8xf32>
    %337 = vector.shape_cast %336 : vector<8xf32> to vector<8x1xf32>
    %338 = vector.extract_strided_slice %20 {offsets = [0, 960], sizes = [8, 64], strides = [1, 1]} : vector<8x1536xf32> to vector<8x64xf32>
    %339 = arith.mulf %309, %338 : vector<8x64xf32>
    %cst_42 = arith.constant dense<0.000000e+00> : vector<8xf32>
    %340 = vector.multi_reduction <add>, %339, %cst_42 [1] : vector<8x64xf32> to vector<8xf32>
    %341 = vector.shape_cast %340 : vector<8xf32> to vector<8x1xf32>
    %342 = arith.maximumf %313, %317 : vector<8x1xf32>
    %343 = arith.maximumf %342, %321 : vector<8x1xf32>
    %344 = arith.maximumf %343, %325 : vector<8x1xf32>
    %345 = arith.maximumf %344, %329 : vector<8x1xf32>
    %346 = arith.maximumf %345, %333 : vector<8x1xf32>
    %347 = arith.maximumf %346, %337 : vector<8x1xf32>
    %348 = arith.maximumf %347, %341 : vector<8x1xf32>
    %349 = arith.subf %313, %348 : vector<8x1xf32>
    %350 = math.exp %349 : vector<8x1xf32>
    %351 = arith.subf %317, %348 : vector<8x1xf32>
    %352 = math.exp %351 : vector<8x1xf32>
    %353 = arith.subf %321, %348 : vector<8x1xf32>
    %354 = math.exp %353 : vector<8x1xf32>
    %355 = arith.subf %325, %348 : vector<8x1xf32>
    %356 = math.exp %355 : vector<8x1xf32>
    %357 = arith.subf %329, %348 : vector<8x1xf32>
    %358 = math.exp %357 : vector<8x1xf32>
    %359 = arith.subf %333, %348 : vector<8x1xf32>
    %360 = math.exp %359 : vector<8x1xf32>
    %361 = arith.subf %337, %348 : vector<8x1xf32>
    %362 = math.exp %361 : vector<8x1xf32>
    %363 = arith.subf %341, %348 : vector<8x1xf32>
    %364 = math.exp %363 : vector<8x1xf32>
    %365 = arith.addf %350, %352 : vector<8x1xf32>
    %366 = arith.addf %365, %354 : vector<8x1xf32>
    %367 = arith.addf %366, %356 : vector<8x1xf32>
    %368 = arith.addf %367, %358 : vector<8x1xf32>
    %369 = arith.addf %368, %360 : vector<8x1xf32>
    %370 = arith.addf %369, %362 : vector<8x1xf32>
    %371 = arith.addf %370, %364 : vector<8x1xf32>
    %372 = vector.extract_strided_slice %20 {offsets = [0, 1024], sizes = [8, 64], strides = [1, 1]} : vector<8x1536xf32> to vector<8x64xf32>
    %373 = vector.broadcast %350 : vector<8x1xf32> to vector<8x64xf32>
    %374 = arith.mulf %373, %372 : vector<8x64xf32>
    %375 = vector.extract_strided_slice %20 {offsets = [0, 1088], sizes = [8, 64], strides = [1, 1]} : vector<8x1536xf32> to vector<8x64xf32>
    %376 = vector.broadcast %352 : vector<8x1xf32> to vector<8x64xf32>
    %377 = arith.mulf %376, %375 : vector<8x64xf32>
    %378 = arith.addf %374, %377 : vector<8x64xf32>
    %379 = vector.extract_strided_slice %20 {offsets = [0, 1152], sizes = [8, 64], strides = [1, 1]} : vector<8x1536xf32> to vector<8x64xf32>
    %380 = vector.broadcast %354 : vector<8x1xf32> to vector<8x64xf32>
    %381 = arith.mulf %380, %379 : vector<8x64xf32>
    %382 = arith.addf %378, %381 : vector<8x64xf32>
    %383 = vector.extract_strided_slice %20 {offsets = [0, 1216], sizes = [8, 64], strides = [1, 1]} : vector<8x1536xf32> to vector<8x64xf32>
    %384 = vector.broadcast %356 : vector<8x1xf32> to vector<8x64xf32>
    %385 = arith.mulf %384, %383 : vector<8x64xf32>
    %386 = arith.addf %382, %385 : vector<8x64xf32>
    %387 = vector.extract_strided_slice %20 {offsets = [0, 1280], sizes = [8, 64], strides = [1, 1]} : vector<8x1536xf32> to vector<8x64xf32>
    %388 = vector.broadcast %358 : vector<8x1xf32> to vector<8x64xf32>
    %389 = arith.mulf %388, %387 : vector<8x64xf32>
    %390 = arith.addf %386, %389 : vector<8x64xf32>
    %391 = vector.extract_strided_slice %20 {offsets = [0, 1344], sizes = [8, 64], strides = [1, 1]} : vector<8x1536xf32> to vector<8x64xf32>
    %392 = vector.broadcast %360 : vector<8x1xf32> to vector<8x64xf32>
    %393 = arith.mulf %392, %391 : vector<8x64xf32>
    %394 = arith.addf %390, %393 : vector<8x64xf32>
    %395 = vector.extract_strided_slice %20 {offsets = [0, 1408], sizes = [8, 64], strides = [1, 1]} : vector<8x1536xf32> to vector<8x64xf32>
    %396 = vector.broadcast %362 : vector<8x1xf32> to vector<8x64xf32>
    %397 = arith.mulf %396, %395 : vector<8x64xf32>
    %398 = arith.addf %394, %397 : vector<8x64xf32>
    %399 = vector.extract_strided_slice %20 {offsets = [0, 1472], sizes = [8, 64], strides = [1, 1]} : vector<8x1536xf32> to vector<8x64xf32>
    %400 = vector.broadcast %364 : vector<8x1xf32> to vector<8x64xf32>
    %401 = arith.mulf %400, %399 : vector<8x64xf32>
    %402 = arith.addf %398, %401 : vector<8x64xf32>
    %403 = vector.broadcast %371 : vector<8x1xf32> to vector<8x64xf32>
    %404 = arith.divf %402, %403 : vector<8x64xf32>
    %405 = vector.extract_strided_slice %20 {offsets = [0, 256], sizes = [8, 64], strides = [1, 1]} : vector<8x1536xf32> to vector<8x64xf32>
    %406 = vector.extract_strided_slice %20 {offsets = [0, 512], sizes = [8, 64], strides = [1, 1]} : vector<8x1536xf32> to vector<8x64xf32>
    %407 = arith.mulf %405, %406 : vector<8x64xf32>
    %cst_43 = arith.constant dense<0.000000e+00> : vector<8xf32>
    %408 = vector.multi_reduction <add>, %407, %cst_43 [1] : vector<8x64xf32> to vector<8xf32>
    %409 = vector.shape_cast %408 : vector<8xf32> to vector<8x1xf32>
    %410 = vector.extract_strided_slice %20 {offsets = [0, 576], sizes = [8, 64], strides = [1, 1]} : vector<8x1536xf32> to vector<8x64xf32>
    %411 = arith.mulf %405, %410 : vector<8x64xf32>
    %cst_44 = arith.constant dense<0.000000e+00> : vector<8xf32>
    %412 = vector.multi_reduction <add>, %411, %cst_44 [1] : vector<8x64xf32> to vector<8xf32>
    %413 = vector.shape_cast %412 : vector<8xf32> to vector<8x1xf32>
    %414 = vector.extract_strided_slice %20 {offsets = [0, 640], sizes = [8, 64], strides = [1, 1]} : vector<8x1536xf32> to vector<8x64xf32>
    %415 = arith.mulf %405, %414 : vector<8x64xf32>
    %cst_45 = arith.constant dense<0.000000e+00> : vector<8xf32>
    %416 = vector.multi_reduction <add>, %415, %cst_45 [1] : vector<8x64xf32> to vector<8xf32>
    %417 = vector.shape_cast %416 : vector<8xf32> to vector<8x1xf32>
    %418 = vector.extract_strided_slice %20 {offsets = [0, 704], sizes = [8, 64], strides = [1, 1]} : vector<8x1536xf32> to vector<8x64xf32>
    %419 = arith.mulf %405, %418 : vector<8x64xf32>
    %cst_46 = arith.constant dense<0.000000e+00> : vector<8xf32>
    %420 = vector.multi_reduction <add>, %419, %cst_46 [1] : vector<8x64xf32> to vector<8xf32>
    %421 = vector.shape_cast %420 : vector<8xf32> to vector<8x1xf32>
    %422 = vector.extract_strided_slice %20 {offsets = [0, 768], sizes = [8, 64], strides = [1, 1]} : vector<8x1536xf32> to vector<8x64xf32>
    %423 = arith.mulf %405, %422 : vector<8x64xf32>
    %cst_47 = arith.constant dense<0.000000e+00> : vector<8xf32>
    %424 = vector.multi_reduction <add>, %423, %cst_47 [1] : vector<8x64xf32> to vector<8xf32>
    %425 = vector.shape_cast %424 : vector<8xf32> to vector<8x1xf32>
    %426 = vector.extract_strided_slice %20 {offsets = [0, 832], sizes = [8, 64], strides = [1, 1]} : vector<8x1536xf32> to vector<8x64xf32>
    %427 = arith.mulf %405, %426 : vector<8x64xf32>
    %cst_48 = arith.constant dense<0.000000e+00> : vector<8xf32>
    %428 = vector.multi_reduction <add>, %427, %cst_48 [1] : vector<8x64xf32> to vector<8xf32>
    %429 = vector.shape_cast %428 : vector<8xf32> to vector<8x1xf32>
    %430 = vector.extract_strided_slice %20 {offsets = [0, 896], sizes = [8, 64], strides = [1, 1]} : vector<8x1536xf32> to vector<8x64xf32>
    %431 = arith.mulf %405, %430 : vector<8x64xf32>
    %cst_49 = arith.constant dense<0.000000e+00> : vector<8xf32>
    %432 = vector.multi_reduction <add>, %431, %cst_49 [1] : vector<8x64xf32> to vector<8xf32>
    %433 = vector.shape_cast %432 : vector<8xf32> to vector<8x1xf32>
    %434 = vector.extract_strided_slice %20 {offsets = [0, 960], sizes = [8, 64], strides = [1, 1]} : vector<8x1536xf32> to vector<8x64xf32>
    %435 = arith.mulf %405, %434 : vector<8x64xf32>
    %cst_50 = arith.constant dense<0.000000e+00> : vector<8xf32>
    %436 = vector.multi_reduction <add>, %435, %cst_50 [1] : vector<8x64xf32> to vector<8xf32>
    %437 = vector.shape_cast %436 : vector<8xf32> to vector<8x1xf32>
    %438 = arith.maximumf %409, %413 : vector<8x1xf32>
    %439 = arith.maximumf %438, %417 : vector<8x1xf32>
    %440 = arith.maximumf %439, %421 : vector<8x1xf32>
    %441 = arith.maximumf %440, %425 : vector<8x1xf32>
    %442 = arith.maximumf %441, %429 : vector<8x1xf32>
    %443 = arith.maximumf %442, %433 : vector<8x1xf32>
    %444 = arith.maximumf %443, %437 : vector<8x1xf32>
    %445 = arith.subf %409, %444 : vector<8x1xf32>
    %446 = math.exp %445 : vector<8x1xf32>
    %447 = arith.subf %413, %444 : vector<8x1xf32>
    %448 = math.exp %447 : vector<8x1xf32>
    %449 = arith.subf %417, %444 : vector<8x1xf32>
    %450 = math.exp %449 : vector<8x1xf32>
    %451 = arith.subf %421, %444 : vector<8x1xf32>
    %452 = math.exp %451 : vector<8x1xf32>
    %453 = arith.subf %425, %444 : vector<8x1xf32>
    %454 = math.exp %453 : vector<8x1xf32>
    %455 = arith.subf %429, %444 : vector<8x1xf32>
    %456 = math.exp %455 : vector<8x1xf32>
    %457 = arith.subf %433, %444 : vector<8x1xf32>
    %458 = math.exp %457 : vector<8x1xf32>
    %459 = arith.subf %437, %444 : vector<8x1xf32>
    %460 = math.exp %459 : vector<8x1xf32>
    %461 = arith.addf %446, %448 : vector<8x1xf32>
    %462 = arith.addf %461, %450 : vector<8x1xf32>
    %463 = arith.addf %462, %452 : vector<8x1xf32>
    %464 = arith.addf %463, %454 : vector<8x1xf32>
    %465 = arith.addf %464, %456 : vector<8x1xf32>
    %466 = arith.addf %465, %458 : vector<8x1xf32>
    %467 = arith.addf %466, %460 : vector<8x1xf32>
    %468 = vector.extract_strided_slice %20 {offsets = [0, 1024], sizes = [8, 64], strides = [1, 1]} : vector<8x1536xf32> to vector<8x64xf32>
    %469 = vector.broadcast %446 : vector<8x1xf32> to vector<8x64xf32>
    %470 = arith.mulf %469, %468 : vector<8x64xf32>
    %471 = vector.extract_strided_slice %20 {offsets = [0, 1088], sizes = [8, 64], strides = [1, 1]} : vector<8x1536xf32> to vector<8x64xf32>
    %472 = vector.broadcast %448 : vector<8x1xf32> to vector<8x64xf32>
    %473 = arith.mulf %472, %471 : vector<8x64xf32>
    %474 = arith.addf %470, %473 : vector<8x64xf32>
    %475 = vector.extract_strided_slice %20 {offsets = [0, 1152], sizes = [8, 64], strides = [1, 1]} : vector<8x1536xf32> to vector<8x64xf32>
    %476 = vector.broadcast %450 : vector<8x1xf32> to vector<8x64xf32>
    %477 = arith.mulf %476, %475 : vector<8x64xf32>
    %478 = arith.addf %474, %477 : vector<8x64xf32>
    %479 = vector.extract_strided_slice %20 {offsets = [0, 1216], sizes = [8, 64], strides = [1, 1]} : vector<8x1536xf32> to vector<8x64xf32>
    %480 = vector.broadcast %452 : vector<8x1xf32> to vector<8x64xf32>
    %481 = arith.mulf %480, %479 : vector<8x64xf32>
    %482 = arith.addf %478, %481 : vector<8x64xf32>
    %483 = vector.extract_strided_slice %20 {offsets = [0, 1280], sizes = [8, 64], strides = [1, 1]} : vector<8x1536xf32> to vector<8x64xf32>
    %484 = vector.broadcast %454 : vector<8x1xf32> to vector<8x64xf32>
    %485 = arith.mulf %484, %483 : vector<8x64xf32>
    %486 = arith.addf %482, %485 : vector<8x64xf32>
    %487 = vector.extract_strided_slice %20 {offsets = [0, 1344], sizes = [8, 64], strides = [1, 1]} : vector<8x1536xf32> to vector<8x64xf32>
    %488 = vector.broadcast %456 : vector<8x1xf32> to vector<8x64xf32>
    %489 = arith.mulf %488, %487 : vector<8x64xf32>
    %490 = arith.addf %486, %489 : vector<8x64xf32>
    %491 = vector.extract_strided_slice %20 {offsets = [0, 1408], sizes = [8, 64], strides = [1, 1]} : vector<8x1536xf32> to vector<8x64xf32>
    %492 = vector.broadcast %458 : vector<8x1xf32> to vector<8x64xf32>
    %493 = arith.mulf %492, %491 : vector<8x64xf32>
    %494 = arith.addf %490, %493 : vector<8x64xf32>
    %495 = vector.extract_strided_slice %20 {offsets = [0, 1472], sizes = [8, 64], strides = [1, 1]} : vector<8x1536xf32> to vector<8x64xf32>
    %496 = vector.broadcast %460 : vector<8x1xf32> to vector<8x64xf32>
    %497 = arith.mulf %496, %495 : vector<8x64xf32>
    %498 = arith.addf %494, %497 : vector<8x64xf32>
    %499 = vector.broadcast %467 : vector<8x1xf32> to vector<8x64xf32>
    %500 = arith.divf %498, %499 : vector<8x64xf32>
    %501 = vector.extract_strided_slice %20 {offsets = [0, 320], sizes = [8, 64], strides = [1, 1]} : vector<8x1536xf32> to vector<8x64xf32>
    %502 = vector.extract_strided_slice %20 {offsets = [0, 512], sizes = [8, 64], strides = [1, 1]} : vector<8x1536xf32> to vector<8x64xf32>
    %503 = arith.mulf %501, %502 : vector<8x64xf32>
    %cst_51 = arith.constant dense<0.000000e+00> : vector<8xf32>
    %504 = vector.multi_reduction <add>, %503, %cst_51 [1] : vector<8x64xf32> to vector<8xf32>
    %505 = vector.shape_cast %504 : vector<8xf32> to vector<8x1xf32>
    %506 = vector.extract_strided_slice %20 {offsets = [0, 576], sizes = [8, 64], strides = [1, 1]} : vector<8x1536xf32> to vector<8x64xf32>
    %507 = arith.mulf %501, %506 : vector<8x64xf32>
    %cst_52 = arith.constant dense<0.000000e+00> : vector<8xf32>
    %508 = vector.multi_reduction <add>, %507, %cst_52 [1] : vector<8x64xf32> to vector<8xf32>
    %509 = vector.shape_cast %508 : vector<8xf32> to vector<8x1xf32>
    %510 = vector.extract_strided_slice %20 {offsets = [0, 640], sizes = [8, 64], strides = [1, 1]} : vector<8x1536xf32> to vector<8x64xf32>
    %511 = arith.mulf %501, %510 : vector<8x64xf32>
    %cst_53 = arith.constant dense<0.000000e+00> : vector<8xf32>
    %512 = vector.multi_reduction <add>, %511, %cst_53 [1] : vector<8x64xf32> to vector<8xf32>
    %513 = vector.shape_cast %512 : vector<8xf32> to vector<8x1xf32>
    %514 = vector.extract_strided_slice %20 {offsets = [0, 704], sizes = [8, 64], strides = [1, 1]} : vector<8x1536xf32> to vector<8x64xf32>
    %515 = arith.mulf %501, %514 : vector<8x64xf32>
    %cst_54 = arith.constant dense<0.000000e+00> : vector<8xf32>
    %516 = vector.multi_reduction <add>, %515, %cst_54 [1] : vector<8x64xf32> to vector<8xf32>
    %517 = vector.shape_cast %516 : vector<8xf32> to vector<8x1xf32>
    %518 = vector.extract_strided_slice %20 {offsets = [0, 768], sizes = [8, 64], strides = [1, 1]} : vector<8x1536xf32> to vector<8x64xf32>
    %519 = arith.mulf %501, %518 : vector<8x64xf32>
    %cst_55 = arith.constant dense<0.000000e+00> : vector<8xf32>
    %520 = vector.multi_reduction <add>, %519, %cst_55 [1] : vector<8x64xf32> to vector<8xf32>
    %521 = vector.shape_cast %520 : vector<8xf32> to vector<8x1xf32>
    %522 = vector.extract_strided_slice %20 {offsets = [0, 832], sizes = [8, 64], strides = [1, 1]} : vector<8x1536xf32> to vector<8x64xf32>
    %523 = arith.mulf %501, %522 : vector<8x64xf32>
    %cst_56 = arith.constant dense<0.000000e+00> : vector<8xf32>
    %524 = vector.multi_reduction <add>, %523, %cst_56 [1] : vector<8x64xf32> to vector<8xf32>
    %525 = vector.shape_cast %524 : vector<8xf32> to vector<8x1xf32>
    %526 = vector.extract_strided_slice %20 {offsets = [0, 896], sizes = [8, 64], strides = [1, 1]} : vector<8x1536xf32> to vector<8x64xf32>
    %527 = arith.mulf %501, %526 : vector<8x64xf32>
    %cst_57 = arith.constant dense<0.000000e+00> : vector<8xf32>
    %528 = vector.multi_reduction <add>, %527, %cst_57 [1] : vector<8x64xf32> to vector<8xf32>
    %529 = vector.shape_cast %528 : vector<8xf32> to vector<8x1xf32>
    %530 = vector.extract_strided_slice %20 {offsets = [0, 960], sizes = [8, 64], strides = [1, 1]} : vector<8x1536xf32> to vector<8x64xf32>
    %531 = arith.mulf %501, %530 : vector<8x64xf32>
    %cst_58 = arith.constant dense<0.000000e+00> : vector<8xf32>
    %532 = vector.multi_reduction <add>, %531, %cst_58 [1] : vector<8x64xf32> to vector<8xf32>
    %533 = vector.shape_cast %532 : vector<8xf32> to vector<8x1xf32>
    %534 = arith.maximumf %505, %509 : vector<8x1xf32>
    %535 = arith.maximumf %534, %513 : vector<8x1xf32>
    %536 = arith.maximumf %535, %517 : vector<8x1xf32>
    %537 = arith.maximumf %536, %521 : vector<8x1xf32>
    %538 = arith.maximumf %537, %525 : vector<8x1xf32>
    %539 = arith.maximumf %538, %529 : vector<8x1xf32>
    %540 = arith.maximumf %539, %533 : vector<8x1xf32>
    %541 = arith.subf %505, %540 : vector<8x1xf32>
    %542 = math.exp %541 : vector<8x1xf32>
    %543 = arith.subf %509, %540 : vector<8x1xf32>
    %544 = math.exp %543 : vector<8x1xf32>
    %545 = arith.subf %513, %540 : vector<8x1xf32>
    %546 = math.exp %545 : vector<8x1xf32>
    %547 = arith.subf %517, %540 : vector<8x1xf32>
    %548 = math.exp %547 : vector<8x1xf32>
    %549 = arith.subf %521, %540 : vector<8x1xf32>
    %550 = math.exp %549 : vector<8x1xf32>
    %551 = arith.subf %525, %540 : vector<8x1xf32>
    %552 = math.exp %551 : vector<8x1xf32>
    %553 = arith.subf %529, %540 : vector<8x1xf32>
    %554 = math.exp %553 : vector<8x1xf32>
    %555 = arith.subf %533, %540 : vector<8x1xf32>
    %556 = math.exp %555 : vector<8x1xf32>
    %557 = arith.addf %542, %544 : vector<8x1xf32>
    %558 = arith.addf %557, %546 : vector<8x1xf32>
    %559 = arith.addf %558, %548 : vector<8x1xf32>
    %560 = arith.addf %559, %550 : vector<8x1xf32>
    %561 = arith.addf %560, %552 : vector<8x1xf32>
    %562 = arith.addf %561, %554 : vector<8x1xf32>
    %563 = arith.addf %562, %556 : vector<8x1xf32>
    %564 = vector.extract_strided_slice %20 {offsets = [0, 1024], sizes = [8, 64], strides = [1, 1]} : vector<8x1536xf32> to vector<8x64xf32>
    %565 = vector.broadcast %542 : vector<8x1xf32> to vector<8x64xf32>
    %566 = arith.mulf %565, %564 : vector<8x64xf32>
    %567 = vector.extract_strided_slice %20 {offsets = [0, 1088], sizes = [8, 64], strides = [1, 1]} : vector<8x1536xf32> to vector<8x64xf32>
    %568 = vector.broadcast %544 : vector<8x1xf32> to vector<8x64xf32>
    %569 = arith.mulf %568, %567 : vector<8x64xf32>
    %570 = arith.addf %566, %569 : vector<8x64xf32>
    %571 = vector.extract_strided_slice %20 {offsets = [0, 1152], sizes = [8, 64], strides = [1, 1]} : vector<8x1536xf32> to vector<8x64xf32>
    %572 = vector.broadcast %546 : vector<8x1xf32> to vector<8x64xf32>
    %573 = arith.mulf %572, %571 : vector<8x64xf32>
    %574 = arith.addf %570, %573 : vector<8x64xf32>
    %575 = vector.extract_strided_slice %20 {offsets = [0, 1216], sizes = [8, 64], strides = [1, 1]} : vector<8x1536xf32> to vector<8x64xf32>
    %576 = vector.broadcast %548 : vector<8x1xf32> to vector<8x64xf32>
    %577 = arith.mulf %576, %575 : vector<8x64xf32>
    %578 = arith.addf %574, %577 : vector<8x64xf32>
    %579 = vector.extract_strided_slice %20 {offsets = [0, 1280], sizes = [8, 64], strides = [1, 1]} : vector<8x1536xf32> to vector<8x64xf32>
    %580 = vector.broadcast %550 : vector<8x1xf32> to vector<8x64xf32>
    %581 = arith.mulf %580, %579 : vector<8x64xf32>
    %582 = arith.addf %578, %581 : vector<8x64xf32>
    %583 = vector.extract_strided_slice %20 {offsets = [0, 1344], sizes = [8, 64], strides = [1, 1]} : vector<8x1536xf32> to vector<8x64xf32>
    %584 = vector.broadcast %552 : vector<8x1xf32> to vector<8x64xf32>
    %585 = arith.mulf %584, %583 : vector<8x64xf32>
    %586 = arith.addf %582, %585 : vector<8x64xf32>
    %587 = vector.extract_strided_slice %20 {offsets = [0, 1408], sizes = [8, 64], strides = [1, 1]} : vector<8x1536xf32> to vector<8x64xf32>
    %588 = vector.broadcast %554 : vector<8x1xf32> to vector<8x64xf32>
    %589 = arith.mulf %588, %587 : vector<8x64xf32>
    %590 = arith.addf %586, %589 : vector<8x64xf32>
    %591 = vector.extract_strided_slice %20 {offsets = [0, 1472], sizes = [8, 64], strides = [1, 1]} : vector<8x1536xf32> to vector<8x64xf32>
    %592 = vector.broadcast %556 : vector<8x1xf32> to vector<8x64xf32>
    %593 = arith.mulf %592, %591 : vector<8x64xf32>
    %594 = arith.addf %590, %593 : vector<8x64xf32>
    %595 = vector.broadcast %563 : vector<8x1xf32> to vector<8x64xf32>
    %596 = arith.divf %594, %595 : vector<8x64xf32>
    %597 = vector.extract_strided_slice %20 {offsets = [0, 384], sizes = [8, 64], strides = [1, 1]} : vector<8x1536xf32> to vector<8x64xf32>
    %598 = vector.extract_strided_slice %20 {offsets = [0, 512], sizes = [8, 64], strides = [1, 1]} : vector<8x1536xf32> to vector<8x64xf32>
    %599 = arith.mulf %597, %598 : vector<8x64xf32>
    %cst_59 = arith.constant dense<0.000000e+00> : vector<8xf32>
    %600 = vector.multi_reduction <add>, %599, %cst_59 [1] : vector<8x64xf32> to vector<8xf32>
    %601 = vector.shape_cast %600 : vector<8xf32> to vector<8x1xf32>
    %602 = vector.extract_strided_slice %20 {offsets = [0, 576], sizes = [8, 64], strides = [1, 1]} : vector<8x1536xf32> to vector<8x64xf32>
    %603 = arith.mulf %597, %602 : vector<8x64xf32>
    %cst_60 = arith.constant dense<0.000000e+00> : vector<8xf32>
    %604 = vector.multi_reduction <add>, %603, %cst_60 [1] : vector<8x64xf32> to vector<8xf32>
    %605 = vector.shape_cast %604 : vector<8xf32> to vector<8x1xf32>
    %606 = vector.extract_strided_slice %20 {offsets = [0, 640], sizes = [8, 64], strides = [1, 1]} : vector<8x1536xf32> to vector<8x64xf32>
    %607 = arith.mulf %597, %606 : vector<8x64xf32>
    %cst_61 = arith.constant dense<0.000000e+00> : vector<8xf32>
    %608 = vector.multi_reduction <add>, %607, %cst_61 [1] : vector<8x64xf32> to vector<8xf32>
    %609 = vector.shape_cast %608 : vector<8xf32> to vector<8x1xf32>
    %610 = vector.extract_strided_slice %20 {offsets = [0, 704], sizes = [8, 64], strides = [1, 1]} : vector<8x1536xf32> to vector<8x64xf32>
    %611 = arith.mulf %597, %610 : vector<8x64xf32>
    %cst_62 = arith.constant dense<0.000000e+00> : vector<8xf32>
    %612 = vector.multi_reduction <add>, %611, %cst_62 [1] : vector<8x64xf32> to vector<8xf32>
    %613 = vector.shape_cast %612 : vector<8xf32> to vector<8x1xf32>
    %614 = vector.extract_strided_slice %20 {offsets = [0, 768], sizes = [8, 64], strides = [1, 1]} : vector<8x1536xf32> to vector<8x64xf32>
    %615 = arith.mulf %597, %614 : vector<8x64xf32>
    %cst_63 = arith.constant dense<0.000000e+00> : vector<8xf32>
    %616 = vector.multi_reduction <add>, %615, %cst_63 [1] : vector<8x64xf32> to vector<8xf32>
    %617 = vector.shape_cast %616 : vector<8xf32> to vector<8x1xf32>
    %618 = vector.extract_strided_slice %20 {offsets = [0, 832], sizes = [8, 64], strides = [1, 1]} : vector<8x1536xf32> to vector<8x64xf32>
    %619 = arith.mulf %597, %618 : vector<8x64xf32>
    %cst_64 = arith.constant dense<0.000000e+00> : vector<8xf32>
    %620 = vector.multi_reduction <add>, %619, %cst_64 [1] : vector<8x64xf32> to vector<8xf32>
    %621 = vector.shape_cast %620 : vector<8xf32> to vector<8x1xf32>
    %622 = vector.extract_strided_slice %20 {offsets = [0, 896], sizes = [8, 64], strides = [1, 1]} : vector<8x1536xf32> to vector<8x64xf32>
    %623 = arith.mulf %597, %622 : vector<8x64xf32>
    %cst_65 = arith.constant dense<0.000000e+00> : vector<8xf32>
    %624 = vector.multi_reduction <add>, %623, %cst_65 [1] : vector<8x64xf32> to vector<8xf32>
    %625 = vector.shape_cast %624 : vector<8xf32> to vector<8x1xf32>
    %626 = vector.extract_strided_slice %20 {offsets = [0, 960], sizes = [8, 64], strides = [1, 1]} : vector<8x1536xf32> to vector<8x64xf32>
    %627 = arith.mulf %597, %626 : vector<8x64xf32>
    %cst_66 = arith.constant dense<0.000000e+00> : vector<8xf32>
    %628 = vector.multi_reduction <add>, %627, %cst_66 [1] : vector<8x64xf32> to vector<8xf32>
    %629 = vector.shape_cast %628 : vector<8xf32> to vector<8x1xf32>
    %630 = arith.maximumf %601, %605 : vector<8x1xf32>
    %631 = arith.maximumf %630, %609 : vector<8x1xf32>
    %632 = arith.maximumf %631, %613 : vector<8x1xf32>
    %633 = arith.maximumf %632, %617 : vector<8x1xf32>
    %634 = arith.maximumf %633, %621 : vector<8x1xf32>
    %635 = arith.maximumf %634, %625 : vector<8x1xf32>
    %636 = arith.maximumf %635, %629 : vector<8x1xf32>
    %637 = arith.subf %601, %636 : vector<8x1xf32>
    %638 = math.exp %637 : vector<8x1xf32>
    %639 = arith.subf %605, %636 : vector<8x1xf32>
    %640 = math.exp %639 : vector<8x1xf32>
    %641 = arith.subf %609, %636 : vector<8x1xf32>
    %642 = math.exp %641 : vector<8x1xf32>
    %643 = arith.subf %613, %636 : vector<8x1xf32>
    %644 = math.exp %643 : vector<8x1xf32>
    %645 = arith.subf %617, %636 : vector<8x1xf32>
    %646 = math.exp %645 : vector<8x1xf32>
    %647 = arith.subf %621, %636 : vector<8x1xf32>
    %648 = math.exp %647 : vector<8x1xf32>
    %649 = arith.subf %625, %636 : vector<8x1xf32>
    %650 = math.exp %649 : vector<8x1xf32>
    %651 = arith.subf %629, %636 : vector<8x1xf32>
    %652 = math.exp %651 : vector<8x1xf32>
    %653 = arith.addf %638, %640 : vector<8x1xf32>
    %654 = arith.addf %653, %642 : vector<8x1xf32>
    %655 = arith.addf %654, %644 : vector<8x1xf32>
    %656 = arith.addf %655, %646 : vector<8x1xf32>
    %657 = arith.addf %656, %648 : vector<8x1xf32>
    %658 = arith.addf %657, %650 : vector<8x1xf32>
    %659 = arith.addf %658, %652 : vector<8x1xf32>
    %660 = vector.extract_strided_slice %20 {offsets = [0, 1024], sizes = [8, 64], strides = [1, 1]} : vector<8x1536xf32> to vector<8x64xf32>
    %661 = vector.broadcast %638 : vector<8x1xf32> to vector<8x64xf32>
    %662 = arith.mulf %661, %660 : vector<8x64xf32>
    %663 = vector.extract_strided_slice %20 {offsets = [0, 1088], sizes = [8, 64], strides = [1, 1]} : vector<8x1536xf32> to vector<8x64xf32>
    %664 = vector.broadcast %640 : vector<8x1xf32> to vector<8x64xf32>
    %665 = arith.mulf %664, %663 : vector<8x64xf32>
    %666 = arith.addf %662, %665 : vector<8x64xf32>
    %667 = vector.extract_strided_slice %20 {offsets = [0, 1152], sizes = [8, 64], strides = [1, 1]} : vector<8x1536xf32> to vector<8x64xf32>
    %668 = vector.broadcast %642 : vector<8x1xf32> to vector<8x64xf32>
    %669 = arith.mulf %668, %667 : vector<8x64xf32>
    %670 = arith.addf %666, %669 : vector<8x64xf32>
    %671 = vector.extract_strided_slice %20 {offsets = [0, 1216], sizes = [8, 64], strides = [1, 1]} : vector<8x1536xf32> to vector<8x64xf32>
    %672 = vector.broadcast %644 : vector<8x1xf32> to vector<8x64xf32>
    %673 = arith.mulf %672, %671 : vector<8x64xf32>
    %674 = arith.addf %670, %673 : vector<8x64xf32>
    %675 = vector.extract_strided_slice %20 {offsets = [0, 1280], sizes = [8, 64], strides = [1, 1]} : vector<8x1536xf32> to vector<8x64xf32>
    %676 = vector.broadcast %646 : vector<8x1xf32> to vector<8x64xf32>
    %677 = arith.mulf %676, %675 : vector<8x64xf32>
    %678 = arith.addf %674, %677 : vector<8x64xf32>
    %679 = vector.extract_strided_slice %20 {offsets = [0, 1344], sizes = [8, 64], strides = [1, 1]} : vector<8x1536xf32> to vector<8x64xf32>
    %680 = vector.broadcast %648 : vector<8x1xf32> to vector<8x64xf32>
    %681 = arith.mulf %680, %679 : vector<8x64xf32>
    %682 = arith.addf %678, %681 : vector<8x64xf32>
    %683 = vector.extract_strided_slice %20 {offsets = [0, 1408], sizes = [8, 64], strides = [1, 1]} : vector<8x1536xf32> to vector<8x64xf32>
    %684 = vector.broadcast %650 : vector<8x1xf32> to vector<8x64xf32>
    %685 = arith.mulf %684, %683 : vector<8x64xf32>
    %686 = arith.addf %682, %685 : vector<8x64xf32>
    %687 = vector.extract_strided_slice %20 {offsets = [0, 1472], sizes = [8, 64], strides = [1, 1]} : vector<8x1536xf32> to vector<8x64xf32>
    %688 = vector.broadcast %652 : vector<8x1xf32> to vector<8x64xf32>
    %689 = arith.mulf %688, %687 : vector<8x64xf32>
    %690 = arith.addf %686, %689 : vector<8x64xf32>
    %691 = vector.broadcast %659 : vector<8x1xf32> to vector<8x64xf32>
    %692 = arith.divf %690, %691 : vector<8x64xf32>
    %693 = vector.extract_strided_slice %20 {offsets = [0, 448], sizes = [8, 64], strides = [1, 1]} : vector<8x1536xf32> to vector<8x64xf32>
    %694 = vector.extract_strided_slice %20 {offsets = [0, 512], sizes = [8, 64], strides = [1, 1]} : vector<8x1536xf32> to vector<8x64xf32>
    %695 = arith.mulf %693, %694 : vector<8x64xf32>
    %cst_67 = arith.constant dense<0.000000e+00> : vector<8xf32>
    %696 = vector.multi_reduction <add>, %695, %cst_67 [1] : vector<8x64xf32> to vector<8xf32>
    %697 = vector.shape_cast %696 : vector<8xf32> to vector<8x1xf32>
    %698 = vector.extract_strided_slice %20 {offsets = [0, 576], sizes = [8, 64], strides = [1, 1]} : vector<8x1536xf32> to vector<8x64xf32>
    %699 = arith.mulf %693, %698 : vector<8x64xf32>
    %cst_68 = arith.constant dense<0.000000e+00> : vector<8xf32>
    %700 = vector.multi_reduction <add>, %699, %cst_68 [1] : vector<8x64xf32> to vector<8xf32>
    %701 = vector.shape_cast %700 : vector<8xf32> to vector<8x1xf32>
    %702 = vector.extract_strided_slice %20 {offsets = [0, 640], sizes = [8, 64], strides = [1, 1]} : vector<8x1536xf32> to vector<8x64xf32>
    %703 = arith.mulf %693, %702 : vector<8x64xf32>
    %cst_69 = arith.constant dense<0.000000e+00> : vector<8xf32>
    %704 = vector.multi_reduction <add>, %703, %cst_69 [1] : vector<8x64xf32> to vector<8xf32>
    %705 = vector.shape_cast %704 : vector<8xf32> to vector<8x1xf32>
    %706 = vector.extract_strided_slice %20 {offsets = [0, 704], sizes = [8, 64], strides = [1, 1]} : vector<8x1536xf32> to vector<8x64xf32>
    %707 = arith.mulf %693, %706 : vector<8x64xf32>
    %cst_70 = arith.constant dense<0.000000e+00> : vector<8xf32>
    %708 = vector.multi_reduction <add>, %707, %cst_70 [1] : vector<8x64xf32> to vector<8xf32>
    %709 = vector.shape_cast %708 : vector<8xf32> to vector<8x1xf32>
    %710 = vector.extract_strided_slice %20 {offsets = [0, 768], sizes = [8, 64], strides = [1, 1]} : vector<8x1536xf32> to vector<8x64xf32>
    %711 = arith.mulf %693, %710 : vector<8x64xf32>
    %cst_71 = arith.constant dense<0.000000e+00> : vector<8xf32>
    %712 = vector.multi_reduction <add>, %711, %cst_71 [1] : vector<8x64xf32> to vector<8xf32>
    %713 = vector.shape_cast %712 : vector<8xf32> to vector<8x1xf32>
    %714 = vector.extract_strided_slice %20 {offsets = [0, 832], sizes = [8, 64], strides = [1, 1]} : vector<8x1536xf32> to vector<8x64xf32>
    %715 = arith.mulf %693, %714 : vector<8x64xf32>
    %cst_72 = arith.constant dense<0.000000e+00> : vector<8xf32>
    %716 = vector.multi_reduction <add>, %715, %cst_72 [1] : vector<8x64xf32> to vector<8xf32>
    %717 = vector.shape_cast %716 : vector<8xf32> to vector<8x1xf32>
    %718 = vector.extract_strided_slice %20 {offsets = [0, 896], sizes = [8, 64], strides = [1, 1]} : vector<8x1536xf32> to vector<8x64xf32>
    %719 = arith.mulf %693, %718 : vector<8x64xf32>
    %cst_73 = arith.constant dense<0.000000e+00> : vector<8xf32>
    %720 = vector.multi_reduction <add>, %719, %cst_73 [1] : vector<8x64xf32> to vector<8xf32>
    %721 = vector.shape_cast %720 : vector<8xf32> to vector<8x1xf32>
    %722 = vector.extract_strided_slice %20 {offsets = [0, 960], sizes = [8, 64], strides = [1, 1]} : vector<8x1536xf32> to vector<8x64xf32>
    %723 = arith.mulf %693, %722 : vector<8x64xf32>
    %cst_74 = arith.constant dense<0.000000e+00> : vector<8xf32>
    %724 = vector.multi_reduction <add>, %723, %cst_74 [1] : vector<8x64xf32> to vector<8xf32>
    %725 = vector.shape_cast %724 : vector<8xf32> to vector<8x1xf32>
    %726 = arith.maximumf %697, %701 : vector<8x1xf32>
    %727 = arith.maximumf %726, %705 : vector<8x1xf32>
    %728 = arith.maximumf %727, %709 : vector<8x1xf32>
    %729 = arith.maximumf %728, %713 : vector<8x1xf32>
    %730 = arith.maximumf %729, %717 : vector<8x1xf32>
    %731 = arith.maximumf %730, %721 : vector<8x1xf32>
    %732 = arith.maximumf %731, %725 : vector<8x1xf32>
    %733 = arith.subf %697, %732 : vector<8x1xf32>
    %734 = math.exp %733 : vector<8x1xf32>
    %735 = arith.subf %701, %732 : vector<8x1xf32>
    %736 = math.exp %735 : vector<8x1xf32>
    %737 = arith.subf %705, %732 : vector<8x1xf32>
    %738 = math.exp %737 : vector<8x1xf32>
    %739 = arith.subf %709, %732 : vector<8x1xf32>
    %740 = math.exp %739 : vector<8x1xf32>
    %741 = arith.subf %713, %732 : vector<8x1xf32>
    %742 = math.exp %741 : vector<8x1xf32>
    %743 = arith.subf %717, %732 : vector<8x1xf32>
    %744 = math.exp %743 : vector<8x1xf32>
    %745 = arith.subf %721, %732 : vector<8x1xf32>
    %746 = math.exp %745 : vector<8x1xf32>
    %747 = arith.subf %725, %732 : vector<8x1xf32>
    %748 = math.exp %747 : vector<8x1xf32>
    %749 = arith.addf %734, %736 : vector<8x1xf32>
    %750 = arith.addf %749, %738 : vector<8x1xf32>
    %751 = arith.addf %750, %740 : vector<8x1xf32>
    %752 = arith.addf %751, %742 : vector<8x1xf32>
    %753 = arith.addf %752, %744 : vector<8x1xf32>
    %754 = arith.addf %753, %746 : vector<8x1xf32>
    %755 = arith.addf %754, %748 : vector<8x1xf32>
    %756 = vector.extract_strided_slice %20 {offsets = [0, 1024], sizes = [8, 64], strides = [1, 1]} : vector<8x1536xf32> to vector<8x64xf32>
    %757 = vector.broadcast %734 : vector<8x1xf32> to vector<8x64xf32>
    %758 = arith.mulf %757, %756 : vector<8x64xf32>
    %759 = vector.extract_strided_slice %20 {offsets = [0, 1088], sizes = [8, 64], strides = [1, 1]} : vector<8x1536xf32> to vector<8x64xf32>
    %760 = vector.broadcast %736 : vector<8x1xf32> to vector<8x64xf32>
    %761 = arith.mulf %760, %759 : vector<8x64xf32>
    %762 = arith.addf %758, %761 : vector<8x64xf32>
    %763 = vector.extract_strided_slice %20 {offsets = [0, 1152], sizes = [8, 64], strides = [1, 1]} : vector<8x1536xf32> to vector<8x64xf32>
    %764 = vector.broadcast %738 : vector<8x1xf32> to vector<8x64xf32>
    %765 = arith.mulf %764, %763 : vector<8x64xf32>
    %766 = arith.addf %762, %765 : vector<8x64xf32>
    %767 = vector.extract_strided_slice %20 {offsets = [0, 1216], sizes = [8, 64], strides = [1, 1]} : vector<8x1536xf32> to vector<8x64xf32>
    %768 = vector.broadcast %740 : vector<8x1xf32> to vector<8x64xf32>
    %769 = arith.mulf %768, %767 : vector<8x64xf32>
    %770 = arith.addf %766, %769 : vector<8x64xf32>
    %771 = vector.extract_strided_slice %20 {offsets = [0, 1280], sizes = [8, 64], strides = [1, 1]} : vector<8x1536xf32> to vector<8x64xf32>
    %772 = vector.broadcast %742 : vector<8x1xf32> to vector<8x64xf32>
    %773 = arith.mulf %772, %771 : vector<8x64xf32>
    %774 = arith.addf %770, %773 : vector<8x64xf32>
    %775 = vector.extract_strided_slice %20 {offsets = [0, 1344], sizes = [8, 64], strides = [1, 1]} : vector<8x1536xf32> to vector<8x64xf32>
    %776 = vector.broadcast %744 : vector<8x1xf32> to vector<8x64xf32>
    %777 = arith.mulf %776, %775 : vector<8x64xf32>
    %778 = arith.addf %774, %777 : vector<8x64xf32>
    %779 = vector.extract_strided_slice %20 {offsets = [0, 1408], sizes = [8, 64], strides = [1, 1]} : vector<8x1536xf32> to vector<8x64xf32>
    %780 = vector.broadcast %746 : vector<8x1xf32> to vector<8x64xf32>
    %781 = arith.mulf %780, %779 : vector<8x64xf32>
    %782 = arith.addf %778, %781 : vector<8x64xf32>
    %783 = vector.extract_strided_slice %20 {offsets = [0, 1472], sizes = [8, 64], strides = [1, 1]} : vector<8x1536xf32> to vector<8x64xf32>
    %784 = vector.broadcast %748 : vector<8x1xf32> to vector<8x64xf32>
    %785 = arith.mulf %784, %783 : vector<8x64xf32>
    %786 = arith.addf %782, %785 : vector<8x64xf32>
    %787 = vector.broadcast %755 : vector<8x1xf32> to vector<8x64xf32>
    %788 = arith.divf %786, %787 : vector<8x64xf32>
    %789 = tpu.concatenate %116, %212, %308, %404, %500, %596, %692, %788 in 1 : vector<8x64xf32>, vector<8x64xf32>, vector<8x64xf32>, vector<8x64xf32>, vector<8x64xf32>, vector<8x64xf32>, vector<8x64xf32>, vector<8x64xf32> -> vector<8x512xf32>
    %c0_i32_75 = arith.constant 0 : i32
    %790 = tpu.memref_slice %arg29[%c0_i32_75] : memref<3x!tpu.dma_semaphore, #tpu.memory_space<semaphore_mem>> -> memref<1x!tpu.dma_semaphore, #tpu.memory_space<semaphore_mem>>
    %791 = tpu.memref_squeeze %790 : memref<1x!tpu.dma_semaphore, #tpu.memory_space<semaphore_mem>> -> memref<!tpu.dma_semaphore, #tpu.memory_space<semaphore_mem>>
    tpu.wait_dma2 semaphore(%791 : memref<!tpu.dma_semaphore, #tpu.memory_space<semaphore_mem>>) src(%arg22 : memref<512x512xbf16, #tpu.memory_space<any>>) dst(%arg26 : memref<512x512xbf16, #tpu.memory_space<vmem>>)
    %c0_76 = arith.constant 0 : index
    %c0_77 = arith.constant 0 : index
    %792 = vector.load %arg26[%c0_76, %c0_77] : memref<512x512xbf16, #tpu.memory_space<vmem>>, vector<512x512xbf16>
    %c0_78 = arith.constant 0 : index
    %c0_79 = arith.constant 0 : index
    %793 = vector.load %arg6[%c0_78, %c0_79] : memref<1x512xf32, #tpu.memory_space<vmem>>, vector<1x512xf32>
    %794 = arith.truncf %789 : vector<8x512xf32> to vector<8x512xbf16>
    %cst_80 = arith.constant dense<0.000000e+00> : vector<8x512xf32>
    %795 = tpu.matmul %794, %792, %cst_80 {dimension_numbers = #tpu.dot_dimension_numbers<[1], [0], [0], [1], [0, 0, 1, 1], [], []>} : vector<8x512xbf16>, vector<512x512xbf16>, vector<8x512xf32> -> vector<8x512xf32>
    %796 = vector.broadcast %793 : vector<1x512xf32> to vector<8x512xf32>
    %797 = arith.addf %795, %796 : vector<8x512xf32>
    %798 = arith.addf %797, %14 : vector<8x512xf32>
    %cst_81 = arith.constant dense<0.000000e+00> : vector<8xf32>
    %799 = vector.multi_reduction <add>, %798, %cst_81 [1] : vector<8x512xf32> to vector<8xf32>
    %800 = vector.shape_cast %799 : vector<8xf32> to vector<8x1xf32>
    %cst_82 = arith.constant 5.120000e+02 : f32
    %801 = vector.broadcast %cst_82 : f32 to vector<8x1xf32>
    %802 = arith.divf %800, %801 : vector<8x1xf32>
    %803 = vector.broadcast %802 : vector<8x1xf32> to vector<8x512xf32>
    %804 = arith.subf %798, %803 : vector<8x512xf32>
    %805 = arith.mulf %804, %804 : vector<8x512xf32>
    %cst_83 = arith.constant dense<0.000000e+00> : vector<8xf32>
    %806 = vector.multi_reduction <add>, %805, %cst_83 [1] : vector<8x512xf32> to vector<8xf32>
    %807 = vector.shape_cast %806 : vector<8xf32> to vector<8x1xf32>
    %cst_84 = arith.constant 5.120000e+02 : f32
    %808 = vector.broadcast %cst_84 : f32 to vector<8x1xf32>
    %809 = arith.divf %807, %808 : vector<8x1xf32>
    %810 = vector.broadcast %802 : vector<8x1xf32> to vector<8x512xf32>
    %811 = arith.subf %798, %810 : vector<8x512xf32>
    %cst_85 = arith.constant 9.99999974E-6 : f32
    %812 = vector.broadcast %cst_85 : f32 to vector<8x1xf32>
    %813 = arith.addf %809, %812 : vector<8x1xf32>
    %814 = math.rsqrt %813 : vector<8x1xf32>
    %815 = vector.broadcast %814 : vector<8x1xf32> to vector<8x512xf32>
    %816 = arith.mulf %811, %815 : vector<8x512xf32>
    %c0_86 = arith.constant 0 : index
    %c0_87 = arith.constant 0 : index
    %817 = vector.load %arg7[%c0_86, %c0_87] : memref<1x512xf32, #tpu.memory_space<vmem>>, vector<1x512xf32>
    %818 = vector.broadcast %817 : vector<1x512xf32> to vector<8x512xf32>
    %819 = arith.mulf %816, %818 : vector<8x512xf32>
    %c0_88 = arith.constant 0 : index
    %c0_89 = arith.constant 0 : index
    %820 = vector.load %arg8[%c0_88, %c0_89] : memref<1x512xf32, #tpu.memory_space<vmem>>, vector<1x512xf32>
    %821 = vector.broadcast %820 : vector<1x512xf32> to vector<8x512xf32>
    %822 = arith.addf %819, %821 : vector<8x512xf32>
    %c1_i32_90 = arith.constant 1 : i32
    %823 = tpu.memref_slice %arg29[%c1_i32_90] : memref<3x!tpu.dma_semaphore, #tpu.memory_space<semaphore_mem>> -> memref<1x!tpu.dma_semaphore, #tpu.memory_space<semaphore_mem>>
    %824 = tpu.memref_squeeze %823 : memref<1x!tpu.dma_semaphore, #tpu.memory_space<semaphore_mem>> -> memref<!tpu.dma_semaphore, #tpu.memory_space<semaphore_mem>>
    tpu.wait_dma2 semaphore(%824 : memref<!tpu.dma_semaphore, #tpu.memory_space<semaphore_mem>>) src(%arg23 : memref<3x512x256xbf16, #tpu.memory_space<any>>) dst(%arg27 : memref<3x512x256xbf16, #tpu.memory_space<vmem>>)
    %c2_i32_91 = arith.constant 2 : i32
    %825 = tpu.memref_slice %arg29[%c2_i32_91] : memref<3x!tpu.dma_semaphore, #tpu.memory_space<semaphore_mem>> -> memref<1x!tpu.dma_semaphore, #tpu.memory_space<semaphore_mem>>
    %826 = tpu.memref_squeeze %825 : memref<1x!tpu.dma_semaphore, #tpu.memory_space<semaphore_mem>> -> memref<!tpu.dma_semaphore, #tpu.memory_space<semaphore_mem>>
    tpu.wait_dma2 semaphore(%826 : memref<!tpu.dma_semaphore, #tpu.memory_space<semaphore_mem>>) src(%arg24 : memref<2x256x512xbf16, #tpu.memory_space<any>>) dst(%arg28 : memref<2x256x512xbf16, #tpu.memory_space<vmem>>)
    %c0_92 = arith.constant 0 : index
    %c0_93 = arith.constant 0 : index
    %c0_94 = arith.constant 0 : index
    %827 = vector.load %arg27[%c0_92, %c0_93, %c0_94] : memref<3x512x256xbf16, #tpu.memory_space<vmem>>, vector<1x512x256xbf16>
    %828 = vector.shape_cast %827 : vector<1x512x256xbf16> to vector<512x256xbf16>
    %c0_95 = arith.constant 0 : index
    %c0_96 = arith.constant 0 : index
    %829 = vector.load %arg9[%c0_95, %c0_96] : memref<1x256xf32, #tpu.memory_space<vmem>>, vector<1x256xf32>
    %c0_97 = arith.constant 0 : index
    %c0_98 = arith.constant 0 : index
    %c0_99 = arith.constant 0 : index
    %830 = vector.load %arg28[%c0_97, %c0_98, %c0_99] : memref<2x256x512xbf16, #tpu.memory_space<vmem>>, vector<1x256x512xbf16>
    %831 = vector.shape_cast %830 : vector<1x256x512xbf16> to vector<256x512xbf16>
    %c0_100 = arith.constant 0 : index
    %c0_101 = arith.constant 0 : index
    %832 = vector.load %arg10[%c0_100, %c0_101] : memref<1x512xf32, #tpu.memory_space<vmem>>, vector<1x512xf32>
    %833 = arith.truncf %822 : vector<8x512xf32> to vector<8x512xbf16>
    %cst_102 = arith.constant dense<0.000000e+00> : vector<8x256xf32>
    %834 = tpu.matmul %833, %828, %cst_102 {dimension_numbers = #tpu.dot_dimension_numbers<[1], [0], [0], [1], [0, 0, 1, 1], [], []>} : vector<8x512xbf16>, vector<512x256xbf16>, vector<8x256xf32> -> vector<8x256xf32>
    %835 = vector.broadcast %829 : vector<1x256xf32> to vector<8x256xf32>
    %836 = arith.addf %834, %835 : vector<8x256xf32>
    %cst_103 = arith.constant 0.000000e+00 : f32
    %837 = vector.broadcast %cst_103 : f32 to vector<8x256xf32>
    %838 = arith.maximumf %836, %837 : vector<8x256xf32>
    %839 = arith.truncf %838 : vector<8x256xf32> to vector<8x256xbf16>
    %cst_104 = arith.constant dense<0.000000e+00> : vector<8x512xf32>
    %840 = tpu.matmul %839, %831, %cst_104 {dimension_numbers = #tpu.dot_dimension_numbers<[1], [0], [0], [1], [0, 0, 1, 1], [], []>} : vector<8x256xbf16>, vector<256x512xbf16>, vector<8x512xf32> -> vector<8x512xf32>
    %841 = vector.broadcast %832 : vector<1x512xf32> to vector<8x512xf32>
    %842 = arith.addf %840, %841 : vector<8x512xf32>
    %843 = arith.addf %842, %822 : vector<8x512xf32>
    %cst_105 = arith.constant 0.000000e+00 : f32
    %844 = vector.broadcast %cst_105 : f32 to vector<8x512xf32>
    %845 = arith.maximumf %843, %844 : vector<8x512xf32>
    %c1 = arith.constant 1 : index
    %c0_106 = arith.constant 0 : index
    %c0_107 = arith.constant 0 : index
    %846 = vector.load %arg27[%c1, %c0_106, %c0_107] : memref<3x512x256xbf16, #tpu.memory_space<vmem>>, vector<1x512x256xbf16>
    %847 = vector.shape_cast %846 : vector<1x512x256xbf16> to vector<512x256xbf16>
    %c0_108 = arith.constant 0 : index
    %c0_109 = arith.constant 0 : index
    %848 = vector.load %arg11[%c0_108, %c0_109] : memref<1x256xf32, #tpu.memory_space<vmem>>, vector<1x256xf32>
    %c1_110 = arith.constant 1 : index
    %c0_111 = arith.constant 0 : index
    %c0_112 = arith.constant 0 : index
    %849 = vector.load %arg28[%c1_110, %c0_111, %c0_112] : memref<2x256x512xbf16, #tpu.memory_space<vmem>>, vector<1x256x512xbf16>
    %850 = vector.shape_cast %849 : vector<1x256x512xbf16> to vector<256x512xbf16>
    %c0_113 = arith.constant 0 : index
    %c0_114 = arith.constant 0 : index
    %851 = vector.load %arg12[%c0_113, %c0_114] : memref<1x512xf32, #tpu.memory_space<vmem>>, vector<1x512xf32>
    %852 = arith.truncf %845 : vector<8x512xf32> to vector<8x512xbf16>
    %cst_115 = arith.constant dense<0.000000e+00> : vector<8x256xf32>
    %853 = tpu.matmul %852, %847, %cst_115 {dimension_numbers = #tpu.dot_dimension_numbers<[1], [0], [0], [1], [0, 0, 1, 1], [], []>} : vector<8x512xbf16>, vector<512x256xbf16>, vector<8x256xf32> -> vector<8x256xf32>
    %854 = vector.broadcast %848 : vector<1x256xf32> to vector<8x256xf32>
    %855 = arith.addf %853, %854 : vector<8x256xf32>
    %cst_116 = arith.constant 0.000000e+00 : f32
    %856 = vector.broadcast %cst_116 : f32 to vector<8x256xf32>
    %857 = arith.maximumf %855, %856 : vector<8x256xf32>
    %858 = arith.truncf %857 : vector<8x256xf32> to vector<8x256xbf16>
    %cst_117 = arith.constant dense<0.000000e+00> : vector<8x512xf32>
    %859 = tpu.matmul %858, %850, %cst_117 {dimension_numbers = #tpu.dot_dimension_numbers<[1], [0], [0], [1], [0, 0, 1, 1], [], []>} : vector<8x256xbf16>, vector<256x512xbf16>, vector<8x512xf32> -> vector<8x512xf32>
    %860 = vector.broadcast %851 : vector<1x512xf32> to vector<8x512xf32>
    %861 = arith.addf %859, %860 : vector<8x512xf32>
    %862 = arith.addf %861, %845 : vector<8x512xf32>
    %cst_118 = arith.constant 0.000000e+00 : f32
    %863 = vector.broadcast %cst_118 : f32 to vector<8x512xf32>
    %864 = arith.maximumf %862, %863 : vector<8x512xf32>
    %c2 = arith.constant 2 : index
    %c0_119 = arith.constant 0 : index
    %c0_120 = arith.constant 0 : index
    %865 = vector.load %arg27[%c2, %c0_119, %c0_120] : memref<3x512x256xbf16, #tpu.memory_space<vmem>>, vector<1x512x256xbf16>
    %866 = vector.shape_cast %865 : vector<1x512x256xbf16> to vector<512x256xbf16>
    %c0_121 = arith.constant 0 : index
    %c0_122 = arith.constant 0 : index
    %867 = vector.load %arg13[%c0_121, %c0_122] : memref<1x256xf32, #tpu.memory_space<vmem>>, vector<1x256xf32>
    %868 = arith.truncf %864 : vector<8x512xf32> to vector<8x512xbf16>
    %cst_123 = arith.constant dense<0.000000e+00> : vector<8x256xf32>
    %869 = tpu.matmul %868, %866, %cst_123 {dimension_numbers = #tpu.dot_dimension_numbers<[1], [0], [0], [1], [0, 0, 1, 1], [], []>} : vector<8x512xbf16>, vector<512x256xbf16>, vector<8x256xf32> -> vector<8x256xf32>
    %870 = vector.broadcast %867 : vector<1x256xf32> to vector<8x256xf32>
    %871 = arith.addf %869, %870 : vector<8x256xf32>
    %cst_124 = arith.constant 0.000000e+00 : f32
    %872 = vector.broadcast %cst_124 : f32 to vector<8x256xf32>
    %873 = arith.maximumf %871, %872 : vector<8x256xf32>
    %c0_125 = arith.constant 0 : index
    %c0_126 = arith.constant 0 : index
    %874 = vector.load %arg14[%c0_125, %c0_126] : memref<256x128xbf16, #tpu.memory_space<vmem>>, vector<256x128xbf16>
    %c0_127 = arith.constant 0 : index
    %c0_128 = arith.constant 0 : index
    %875 = vector.load %arg15[%c0_127, %c0_128] : memref<1x128xf32, #tpu.memory_space<vmem>>, vector<1x128xf32>
    %876 = arith.truncf %873 : vector<8x256xf32> to vector<8x256xbf16>
    %cst_129 = arith.constant dense<0.000000e+00> : vector<8x128xf32>
    %877 = tpu.matmul %876, %874, %cst_129 {dimension_numbers = #tpu.dot_dimension_numbers<[1], [0], [0], [1], [0, 0, 1, 1], [], []>} : vector<8x256xbf16>, vector<256x128xbf16>, vector<8x128xf32> -> vector<8x128xf32>
    %878 = vector.broadcast %875 : vector<1x128xf32> to vector<8x128xf32>
    %879 = arith.addf %877, %878 : vector<8x128xf32>
    %cst_130 = arith.constant 0.000000e+00 : f32
    %880 = vector.broadcast %cst_130 : f32 to vector<8x128xf32>
    %881 = arith.maximumf %879, %880 : vector<8x128xf32>
    %c0_131 = arith.constant 0 : index
    %c0_132 = arith.constant 0 : index
    %882 = vector.load %arg16[%c0_131, %c0_132] : memref<128x64xbf16, #tpu.memory_space<vmem>>, vector<128x64xbf16>
    %c0_133 = arith.constant 0 : index
    %c0_134 = arith.constant 0 : index
    %883 = vector.load %arg17[%c0_133, %c0_134] : memref<1x64xf32, #tpu.memory_space<vmem>>, vector<1x64xf32>
    %884 = arith.truncf %881 : vector<8x128xf32> to vector<8x128xbf16>
    %cst_135 = arith.constant dense<0.000000e+00> : vector<8x64xf32>
    %885 = tpu.matmul %884, %882, %cst_135 {dimension_numbers = #tpu.dot_dimension_numbers<[1], [0], [0], [1], [0, 0, 1, 1], [], []>} : vector<8x128xbf16>, vector<128x64xbf16>, vector<8x64xf32> -> vector<8x64xf32>
    %886 = vector.broadcast %883 : vector<1x64xf32> to vector<8x64xf32>
    %887 = arith.addf %885, %886 : vector<8x64xf32>
    %cst_136 = arith.constant 0.000000e+00 : f32
    %888 = vector.broadcast %cst_136 : f32 to vector<8x64xf32>
    %889 = arith.maximumf %887, %888 : vector<8x64xf32>
    %c0_137 = arith.constant 0 : index
    %c0_138 = arith.constant 0 : index
    %890 = vector.load %arg18[%c0_137, %c0_138] : memref<64x32xbf16, #tpu.memory_space<vmem>>, vector<64x32xbf16>
    %c0_139 = arith.constant 0 : index
    %c0_140 = arith.constant 0 : index
    %891 = vector.load %arg19[%c0_139, %c0_140] : memref<1x32xf32, #tpu.memory_space<vmem>>, vector<1x32xf32>
    %892 = arith.truncf %889 : vector<8x64xf32> to vector<8x64xbf16>
    %cst_141 = arith.constant dense<0.000000e+00> : vector<8x32xf32>
    %893 = tpu.matmul %892, %890, %cst_141 {dimension_numbers = #tpu.dot_dimension_numbers<[1], [0], [0], [1], [0, 0, 1, 1], [], []>} : vector<8x64xbf16>, vector<64x32xbf16>, vector<8x32xf32> -> vector<8x32xf32>
    %894 = vector.broadcast %891 : vector<1x32xf32> to vector<8x32xf32>
    %895 = arith.addf %893, %894 : vector<8x32xf32>
    %cst_142 = arith.constant 0.000000e+00 : f32
    %896 = vector.broadcast %cst_142 : f32 to vector<8x32xf32>
    %897 = arith.maximumf %895, %896 : vector<8x32xf32>
    %c0_143 = arith.constant 0 : index
    %c0_144 = arith.constant 0 : index
    %898 = vector.load %arg20[%c0_143, %c0_144] : memref<32x3xbf16, #tpu.memory_space<vmem>>, vector<32x3xbf16>
    %c0_145 = arith.constant 0 : index
    %c0_146 = arith.constant 0 : index
    %899 = vector.load %arg21[%c0_145, %c0_146] : memref<1x3xf32, #tpu.memory_space<vmem>>, vector<1x3xf32>
    %900 = arith.truncf %897 : vector<8x32xf32> to vector<8x32xbf16>
    %cst_147 = arith.constant dense<0.000000e+00> : vector<8x3xf32>
    %901 = tpu.matmul %900, %898, %cst_147 {dimension_numbers = #tpu.dot_dimension_numbers<[1], [0], [0], [1], [0, 0, 1, 1], [], []>} : vector<8x32xbf16>, vector<32x3xbf16>, vector<8x3xf32> -> vector<8x3xf32>
    %902 = vector.broadcast %899 : vector<1x3xf32> to vector<8x3xf32>
    %903 = arith.addf %901, %902 : vector<8x3xf32>
    %c0_148 = arith.constant 0 : index
    %c0_149 = arith.constant 0 : index
    %904 = vector.load %arg25[%c0_148, %c0_149] : memref<8x3xf32, #tpu.memory_space<vmem>>, vector<8x3xf32>
    tpu.vector_store %arg25[%c0_148, %c0_149], %903 {strides = array<i32>} : memref<8x3xf32, #tpu.memory_space<vmem>>, vector<8x3xf32>,
    return
  }
  func.func @transform_0(%arg0: i32) -> (i32, i32) {
    %c0_i32 = arith.constant 0 : i32
    %c0_i32_0 = arith.constant 0 : i32
    return %arg0, %c0_i32 : i32, i32
  }
  func.func @transform_1(%arg0: i32) -> (i32, i32) {
    %c0_i32 = arith.constant 0 : i32
    %c0_i32_0 = arith.constant 0 : i32
    %c0_i32_1 = arith.constant 0 : i32
    return %c0_i32, %c0_i32_0 : i32, i32
  }
  func.func @transform_2(%arg0: i32) -> (i32, i32) {
    %c0_i32 = arith.constant 0 : i32
    %c0_i32_0 = arith.constant 0 : i32
    %c0_i32_1 = arith.constant 0 : i32
    return %c0_i32, %c0_i32_0 : i32, i32
  }
  func.func @transform_3(%arg0: i32) -> (i32, i32) {
    %c0_i32 = arith.constant 0 : i32
    %c0_i32_0 = arith.constant 0 : i32
    %c0_i32_1 = arith.constant 0 : i32
    return %c0_i32, %c0_i32_0 : i32, i32
  }
  func.func @transform_4(%arg0: i32) -> (i32, i32) {
    %c0_i32 = arith.constant 0 : i32
    %c0_i32_0 = arith.constant 0 : i32
    %c0_i32_1 = arith.constant 0 : i32
    return %c0_i32, %c0_i32_0 : i32, i32
  }
  func.func @transform_5(%arg0: i32) -> (i32, i32) {
    %c0_i32 = arith.constant 0 : i32
    %c0_i32_0 = arith.constant 0 : i32
    %c0_i32_1 = arith.constant 0 : i32
    return %c0_i32, %c0_i32_0 : i32, i32
  }
  func.func @transform_6(%arg0: i32) -> (i32, i32) {
    %c0_i32 = arith.constant 0 : i32
    %c0_i32_0 = arith.constant 0 : i32
    %c0_i32_1 = arith.constant 0 : i32
    return %c0_i32, %c0_i32_0 : i32, i32
  }
  func.func @transform_7(%arg0: i32) -> (i32, i32) {
    %c0_i32 = arith.constant 0 : i32
    %c0_i32_0 = arith.constant 0 : i32
    %c0_i32_1 = arith.constant 0 : i32
    return %c0_i32, %c0_i32_0 : i32, i32
  }
  func.func @transform_8(%arg0: i32) -> (i32, i32) {
    %c0_i32 = arith.constant 0 : i32
    %c0_i32_0 = arith.constant 0 : i32
    %c0_i32_1 = arith.constant 0 : i32
    return %c0_i32, %c0_i32_0 : i32, i32
  }
  func.func @transform_9(%arg0: i32) -> (i32, i32) {
    %c0_i32 = arith.constant 0 : i32
    %c0_i32_0 = arith.constant 0 : i32
    %c0_i32_1 = arith.constant 0 : i32
    return %c0_i32, %c0_i32_0 : i32, i32
  }
  func.func @transform_10(%arg0: i32) -> (i32, i32) {
    %c0_i32 = arith.constant 0 : i32
    %c0_i32_0 = arith.constant 0 : i32
    %c0_i32_1 = arith.constant 0 : i32
    return %c0_i32, %c0_i32_0 : i32, i32
  }
  func.func @transform_11(%arg0: i32) -> (i32, i32) {
    %c0_i32 = arith.constant 0 : i32
    %c0_i32_0 = arith.constant 0 : i32
    %c0_i32_1 = arith.constant 0 : i32
    return %c0_i32, %c0_i32_0 : i32, i32
  }
  func.func @transform_12(%arg0: i32) -> (i32, i32) {
    %c0_i32 = arith.constant 0 : i32
    %c0_i32_0 = arith.constant 0 : i32
    %c0_i32_1 = arith.constant 0 : i32
    return %c0_i32, %c0_i32_0 : i32, i32
  }
  func.func @transform_13(%arg0: i32) -> (i32, i32) {
    %c0_i32 = arith.constant 0 : i32
    %c0_i32_0 = arith.constant 0 : i32
    %c0_i32_1 = arith.constant 0 : i32
    return %c0_i32, %c0_i32_0 : i32, i32
  }
  func.func @transform_14(%arg0: i32) -> (i32, i32) {
    %c0_i32 = arith.constant 0 : i32
    %c0_i32_0 = arith.constant 0 : i32
    %c0_i32_1 = arith.constant 0 : i32
    return %c0_i32, %c0_i32_0 : i32, i32
  }
  func.func @transform_15(%arg0: i32) -> (i32, i32) {
    %c0_i32 = arith.constant 0 : i32
    %c0_i32_0 = arith.constant 0 : i32
    %c0_i32_1 = arith.constant 0 : i32
    return %c0_i32, %c0_i32_0 : i32, i32
  }
  func.func @transform_16(%arg0: i32) -> (i32, i32) {
    %c0_i32 = arith.constant 0 : i32
    %c0_i32_0 = arith.constant 0 : i32
    %c0_i32_1 = arith.constant 0 : i32
    return %c0_i32, %c0_i32_0 : i32, i32
  }
  func.func @transform_17(%arg0: i32) -> (i32, i32) {
    %c0_i32 = arith.constant 0 : i32
    %c0_i32_0 = arith.constant 0 : i32
    %c0_i32_1 = arith.constant 0 : i32
    return %c0_i32, %c0_i32_0 : i32, i32
  }
  func.func @transform_18(%arg0: i32) -> (i32, i32) {
    %c0_i32 = arith.constant 0 : i32
    %c0_i32_0 = arith.constant 0 : i32
    %c0_i32_1 = arith.constant 0 : i32
    return %c0_i32, %c0_i32_0 : i32, i32
  }
  func.func @transform_19(%arg0: i32) -> (i32, i32) {
    %c0_i32 = arith.constant 0 : i32
    %c0_i32_0 = arith.constant 0 : i32
    %c0_i32_1 = arith.constant 0 : i32
    return %c0_i32, %c0_i32_0 : i32, i32
  }
  func.func @transform_20(%arg0: i32) -> (i32, i32) {
    %c0_i32 = arith.constant 0 : i32
    %c0_i32_0 = arith.constant 0 : i32
    %c0_i32_1 = arith.constant 0 : i32
    return %c0_i32, %c0_i32_0 : i32, i32
  }
  func.func @transform_24(%arg0: i32) -> (i32, i32) {
    %c0_i32 = arith.constant 0 : i32
    %c0_i32_0 = arith.constant 0 : i32
    return %arg0, %c0_i32 : i32, i32
  }
}

</mosaic_0001>

<llo_original>
// kernel: tpu_custom_call.1
$region0: #{tpu_custom_call.1}
  #allocation0 [shape = 'u32[]', space=smem, size = 0x4, offset = 0x4, fixed_abs, tag = 'smem constant byte address 0x4 - core index']
  #allocation1 [shape = 'u32[144,128]{1,0:T(1,128)}', space=vmem, size = 0x12000, scoped, tag = 'internal scratch']
  #allocation2 [shape = 'bf16[512,512]{1,0:T(16,128)(2,1)}', space=vmem, size = 0x80000, scoped, tag = 'scratch operand']
  #allocation3 [shape = 'bf16[3,512,256]{2,1,0:T(16,128)(2,1)}', space=vmem, size = 0xc0000, scoped, tag = 'scratch operand']
  #allocation4 [shape = 'bf16[2,256,512]{2,1,0:T(16,128)(2,1)}', space=vmem, size = 0x80000, scoped, tag = 'scratch operand']
  #allocation5 [shape = 's32[3]{0}', space=sflag, size = 0xc, scoped, tag = 'scratch operand']
  #allocation34 [shape = 's32[]', space=sflag, size = 0x4, offset = 0, fixed_abs, tag = 'sflag constant byte address 0x0 - dummy sync flag']
  #allocation36 [shape = 's32[]', space=sflag, size = 0x4, offset = 0, fixed_abs, tag = 'sflag constant byte address 0x0 - dummy sync flag']
  #allocation38 [shape = 's32[]', space=sflag, size = 0x4, offset = 0, fixed_abs, tag = 'sflag constant byte address 0x0 - dummy sync flag']
  %s0 = inlined_call_operand.hbm [shape: f32[8,64], index: 0, kind: input, shape index: {}]
  %s1 = inlined_call_operand.hbm [shape: bf16[64,512], index: 1, kind: input, shape index: {}]
  %s2 = inlined_call_operand.hbm [shape: f32[1,512], index: 2, kind: input, shape index: {}]
  %s3 = inlined_call_operand.hbm [shape: bf16[512,1536], index: 3, kind: input, shape index: {}]
  %s4 = inlined_call_operand.hbm [shape: f32[1,1536], index: 4, kind: input, shape index: {}]
  %s5 = inlined_call_operand.hbm [shape: f32[1,512], index: 5, kind: input, shape index: {}]
  %s6 = inlined_call_operand.hbm [shape: f32[1,512], index: 6, kind: input, shape index: {}]
  %s7 = inlined_call_operand.hbm [shape: f32[1,512], index: 7, kind: input, shape index: {}]
  %s8 = inlined_call_operand.hbm [shape: f32[1,256], index: 8, kind: input, shape index: {}]
  %s9 = inlined_call_operand.hbm [shape: f32[1,512], index: 9, kind: input, shape index: {}]
  %s10 = inlined_call_operand.hbm [shape: f32[1,256], index: 10, kind: input, shape index: {}]
  %s11 = inlined_call_operand.hbm [shape: f32[1,512], index: 11, kind: input, shape index: {}]
  %s12 = inlined_call_operand.hbm [shape: f32[1,256], index: 12, kind: input, shape index: {}]
  %s13 = inlined_call_operand.hbm [shape: bf16[256,128], index: 13, kind: input, shape index: {}]
  %s14 = inlined_call_operand.hbm [shape: f32[1,128], index: 14, kind: input, shape index: {}]
  %s15 = inlined_call_operand.vmem [shape: bf16[128,64], index: 15, kind: input, shape index: {}]
  %s16 = inlined_call_operand.hbm [shape: f32[1,64], index: 16, kind: input, shape index: {}]
  %s17 = inlined_call_operand.vmem [shape: bf16[64,32], index: 17, kind: input, shape index: {}]
  %s18 = inlined_call_operand.hbm [shape: f32[1,32], index: 18, kind: input, shape index: {}]
  %s19 = inlined_call_operand.vmem [shape: bf16[32,3], index: 19, kind: input, shape index: {}]
  %s20 = inlined_call_operand.hbm [shape: f32[1,3], index: 20, kind: input, shape index: {}]
  %s21 = inlined_call_operand.hbm [shape: bf16[512,512], index: 21, kind: input, shape index: {}]
  %s22 = inlined_call_operand.hbm [shape: bf16[3,512,256], index: 22, kind: input, shape index: {}]
  %s23 = inlined_call_operand.hbm [shape: bf16[2,256,512], index: 23, kind: input, shape index: {}]
  %s24 = inlined_call_operand.vmem [shape: f32[8,3], index: 24, kind: output, shape index: {}]
  %s25 = sld [smem:[#allocation0]]
  $region166: #{tpu_custom_call.1} parent=0
    _
  %s27 = ssub.s32 1, %s25
  %s28 = scalar_select 0, %s27, %s25
  $region1: #{tpu_custom_call.1} parent=0
    #allocation6 [shape = 'u8[4096]{0}', space=vmem, size = 0x1000, scoped, tag = 'input window, operand 0, single buffered']
    #allocation7 [shape = 's32[1]{0}', space=sflag, size = 0x4, scoped, tag = 'scoped memory for tpu_custom_call.1']
    #allocation8 [shape = 'u8[65536]{0}', space=vmem, size = 0x10000, scoped, tag = 'input window, operand 1, single buffered']
    #allocation9 [shape = 's32[1]{0}', space=sflag, size = 0x4, scoped, tag = 'scoped memory for tpu_custom_call.1']
    #allocation10 [shape = 'u8[2048]{0}', space=vmem, size = 0x800, scoped, tag = 'input window, operand 2, single buffered']
    #allocation11 [shape = 'u8[1572864]{0}', space=vmem, size = 0x180000, scoped, tag = 'input window, operand 3, single buffered']
    #allocation12 [shape = 's32[1]{0}', space=sflag, size = 0x4, scoped, tag = 'scoped memory for tpu_custom_call.1']
    #allocation13 [shape = 'u8[6144]{0}', space=vmem, size = 0x1800, scoped, tag = 'input window, operand 4, single buffered']
    #allocation14 [shape = 'u8[2048]{0}', space=vmem, size = 0x800, scoped, tag = 'input window, operand 5, single buffered']
    #allocation15 [shape = 's32[1]{0}', space=sflag, size = 0x4, scoped, tag = 'scoped memory for tpu_custom_call.1']
    #allocation16 [shape = 'u8[2048]{0}', space=vmem, size = 0x800, scoped, tag = 'input window, operand 6, single buffered']
    #allocation17 [shape = 'u8[2048]{0}', space=vmem, size = 0x800, scoped, tag = 'input window, operand 7, single buffered']
    #allocation18 [shape = 's32[1]{0}', space=sflag, size = 0x4, scoped, tag = 'scoped memory for tpu_custom_call.1']
    #allocation19 [shape = 'u8[1024]{0}', space=vmem, size = 0x400, scoped, tag = 'input window, operand 8, single buffered']
    #allocation20 [shape = 'u8[2048]{0}', space=vmem, size = 0x800, scoped, tag = 'input window, operand 9, single buffered']
    #allocation21 [shape = 's32[1]{0}', space=sflag, size = 0x4, scoped, tag = 'scoped memory for tpu_custom_call.1']
    #allocation22 [shape = 'u8[1024]{0}', space=vmem, size = 0x400, scoped, tag = 'input window, operand 10, single buffered']
    #allocation23 [shape = 'u8[2048]{0}', space=vmem, size = 0x800, scoped, tag = 'input window, operand 11, single buffered']
    #allocation24 [shape = 's32[1]{0}', space=sflag, size = 0x4, scoped, tag = 'scoped memory for tpu_custom_call.1']
    #allocation25 [shape = 'u8[1024]{0}', space=vmem, size = 0x400, scoped, tag = 'input window, operand 12, single buffered']
    #allocation26 [shape = 'u8[65536]{0}', space=vmem, size = 0x10000, scoped, tag = 'input window, operand 13, single buffered']
    #allocation27 [shape = 's32[1]{0}', space=sflag, size = 0x4, scoped, tag = 'scoped memory for tpu_custom_call.1']
    #allocation28 [shape = 'u8[512]{0}', space=vmem, size = 0x400, scoped, tag = 'input window, operand 14, single buffered']
    #allocation29 [shape = 'u8[512]{0}', space=vmem, size = 0x400, scoped, tag = 'input window, operand 16, single buffered']
    #allocation30 [shape = 's32[1]{0}', space=sflag, size = 0x4, scoped, tag = 'scoped memory for tpu_custom_call.1']
    #allocation31 [shape = 'u8[512]{0}', space=vmem, size = 0x400, scoped, tag = 'input window, operand 18, single buffered']
    #allocation32 [shape = 'u8[512]{0}', space=vmem, size = 0x400, scoped, tag = 'input window, operand 20, single buffered']
    #allocation33 [shape = 's32[1]{0}', space=sflag, size = 0x4, scoped, tag = 'scoped memory for tpu_custom_call.1']
    #allocation35 [shape = 'u32[9]{0}', space=smem, size = 0x24, scoped, tag = 'DMA stride descriptor']
    #allocation37 [shape = 'u32[9]{0}', space=smem, size = 0x24, scoped, tag = 'DMA stride descriptor']
    #allocation39 [shape = 'u32[9]{0}', space=smem, size = 0x24, scoped, tag = 'DMA stride descriptor']
    %29 = vsyncpa [#allocation7], 0
    %30 = vsyncpa [#allocation9], 0
    %31 = vsyncpa [#allocation12], 0
    %32 = vsyncpa [#allocation15], 0
    %33 = vsyncpa [#allocation18], 0
    %34 = vsyncpa [#allocation21], 0
    %35 = vsyncpa [#allocation24], 0
    %36 = vsyncpa [#allocation27], 0
    %37 = vsyncpa [#allocation30], 0
    %38 = vsyncpa [#allocation33], 0
    // Predicated region
    $region2: #{tpu_custom_call.1} parent=1 // pred_check
      _
    $region3: #{tpu_custom_call.1} parent=1 // pred_check_branch
      %40 = sbr.rel (0) target = $region5
    $region4: #{tpu_custom_call.1} parent=1 // pred_region
      %s42 = ssub.s32 128, 128
      %43 = vsyncadd [#allocation7], %s42
      %s45 = sshll.u32 [#allocation6], 4
      %s46 = int_to_ptr.vmem [resolvable:$true] %s45
      %48 = dma.hbm_to_vmem [thread:$0]  %s0, 128, %s46, [#allocation7]
    $region5: #{tpu_custom_call.1} parent=1 // pred_fallthru
      _
    // Predicated region
    $region6: #{tpu_custom_call.1} parent=1 // pred_check
      _
    $region7: #{tpu_custom_call.1} parent=1 // pred_check_branch
      %50 = sbr.rel (0) target = $region9
    $region8: #{tpu_custom_call.1} parent=1 // pred_region
      %s52 = ssub.s32 2048, 2048
      %53 = vsyncadd [#allocation9], %s52
      %s54 = sshll.u32 [#allocation8], 4
      %s55 = int_to_ptr.vmem [resolvable:$true] %s54
      %60 = dma.hbm_to_vmem [thread:$0]  %s1, 2048, %s55, [#allocation9], 256, 256, 16
    $region9: #{tpu_custom_call.1} parent=1 // pred_fallthru
      _
    // Predicated region
    $region10: #{tpu_custom_call.1} parent=1 // pred_check
      _
    $region11: #{tpu_custom_call.1} parent=1 // pred_check_branch
      %62 = sbr.rel (0) target = $region13
    $region12: #{tpu_custom_call.1} parent=1 // pred_region
      %s64 = ssub.s32 64, 64
      %65 = vsyncadd [#allocation9], %s64
      %s67 = sshll.u32 [#allocation10], 4
      %s68 = int_to_ptr.vmem [resolvable:$true] %s67
      %70 = dma.hbm_to_vmem [thread:$0]  %s2, 64, %s68, [#allocation9]
    $region13: #{tpu_custom_call.1} parent=1 // pred_fallthru
      _
    // Predicated region
    $region14: #{tpu_custom_call.1} parent=1 // pred_check
      _
    $region15: #{tpu_custom_call.1} parent=1 // pred_check_branch
      %72 = sbr.rel (0) target = $region17
    $region16: #{tpu_custom_call.1} parent=1 // pred_region
      %s74 = ssub.s32 49152, 49152
      %75 = vsyncadd [#allocation12], %s74
      %s76 = sshll.u32 [#allocation11], 4
      %s77 = int_to_ptr.vmem [resolvable:$true] %s76
      %82 = dma.hbm_to_vmem [thread:$0]  %s3, 49152, %s77, [#allocation12], 768, 768, 48
    $region17: #{tpu_custom_call.1} parent=1 // pred_fallthru
      _
    // Predicated region
    $region18: #{tpu_custom_call.1} parent=1 // pred_check
      _
    $region19: #{tpu_custom_call.1} parent=1 // pred_check_branch
      %84 = sbr.rel (0) target = $region21
    $region20: #{tpu_custom_call.1} parent=1 // pred_region
      %s86 = ssub.s32 192, 192
      %87 = vsyncadd [#allocation12], %s86
      %s89 = sshll.u32 [#allocation13], 4
      %s90 = int_to_ptr.vmem [resolvable:$true] %s89
      %92 = dma.hbm_to_vmem [thread:$0]  %s4, 192, %s90, [#allocation12]
    $region21: #{tpu_custom_call.1} parent=1 // pred_fallthru
      _
    // Predicated region
    $region22: #{tpu_custom_call.1} parent=1 // pred_check
      _
    $region23: #{tpu_custom_call.1} parent=1 // pred_check_branch
      %94 = sbr.rel (0) target = $region25
    $region24: #{tpu_custom_call.1} parent=1 // pred_region
      %s96 = ssub.s32 64, 64
      %97 = vsyncadd [#allocation15], %s96
      %s99 = sshll.u32 [#allocation14], 4
      %s100 = int_to_ptr.vmem [resolvable:$true] %s99
      %102 = dma.hbm_to_vmem [thread:$0]  %s5, 64, %s100, [#allocation15]
    $region25: #{tpu_custom_call.1} parent=1 // pred_fallthru
      _
    // Predicated region
    $region26: #{tpu_custom_call.1} parent=1 // pred_check
      _
    $region27: #{tpu_custom_call.1} parent=1 // pred_check_branch
      %104 = sbr.rel (0) target = $region29
    $region28: #{tpu_custom_call.1} parent=1 // pred_region
      %s106 = ssub.s32 64, 64
      %107 = vsyncadd [#allocation15], %s106
      %s109 = sshll.u32 [#allocation16], 4
      %s110 = int_to_ptr.vmem [resolvable:$true] %s109
      %112 = dma.hbm_to_vmem [thread:$0]  %s6, 64, %s110, [#allocation15]
    $region29: #{tpu_custom_call.1} parent=1 // pred_fallthru
      _
    // Predicated region
    $region30: #{tpu_custom_call.1} parent=1 // pred_check
      _
    $region31: #{tpu_custom_call.1} parent=1 // pred_check_branch
      %114 = sbr.rel (0) target = $region33
    $region32: #{tpu_custom_call.1} parent=1 // pred_region
      %s116 = ssub.s32 64, 64
      %117 = vsyncadd [#allocation18], %s116
      %s119 = sshll.u32 [#allocation17], 4
      %s120 = int_to_ptr.vmem [resolvable:$true] %s119
      %122 = dma.hbm_to_vmem [thread:$0]  %s7, 64, %s120, [#allocation18]
    $region33: #{tpu_custom_call.1} parent=1 // pred_fallthru
      _
    // Predicated region
    $region34: #{tpu_custom_call.1} parent=1 // pred_check
      _
    $region35: #{tpu_custom_call.1} parent=1 // pred_check_branch
      %124 = sbr.rel (0) target = $region37
    $region36: #{tpu_custom_call.1} parent=1 // pred_region
      %s126 = ssub.s32 32, 32
      %127 = vsyncadd [#allocation18], %s126
      %s129 = sshll.u32 [#allocation19], 4
      %s130 = int_to_ptr.vmem [resolvable:$true] %s129
      %132 = dma.hbm_to_vmem [thread:$0]  %s8, 32, %s130, [#allocation18]
    $region37: #{tpu_custom_call.1} parent=1 // pred_fallthru
      _
    // Predicated region
    $region38: #{tpu_custom_call.1} parent=1 // pred_check
      _
    $region39: #{tpu_custom_call.1} parent=1 // pred_check_branch
      %134 = sbr.rel (0) target = $region41
    $region40: #{tpu_custom_call.1} parent=1 // pred_region
      %s136 = ssub.s32 64, 64
      %137 = vsyncadd [#allocation21], %s136
      %s139 = sshll.u32 [#allocation20], 4
      %s140 = int_to_ptr.vmem [resolvable:$true] %s139
      %142 = dma.hbm_to_vmem [thread:$0]  %s9, 64, %s140, [#allocation21]
    $region41: #{tpu_custom_call.1} parent=1 // pred_fallthru
      _
    // Predicated region
    $region42: #{tpu_custom_call.1} parent=1 // pred_check
      _
    $region43: #{tpu_custom_call.1} parent=1 // pred_check_branch
      %144 = sbr.rel (0) target = $region45
    $region44: #{tpu_custom_call.1} parent=1 // pred_region
      %s146 = ssub.s32 32, 32
      %147 = vsyncadd [#allocation21], %s146
      %s149 = sshll.u32 [#allocation22], 4
      %s150 = int_to_ptr.vmem [resolvable:$true] %s149
      %152 = dma.hbm_to_vmem [thread:$0]  %s10, 32, %s150, [#allocation21]
    $region45: #{tpu_custom_call.1} parent=1 // pred_fallthru
      _
    // Predicated region
    $region46: #{tpu_custom_call.1} parent=1 // pred_check
      _
    $region47: #{tpu_custom_call.1} parent=1 // pred_check_branch
      %154 = sbr.rel (0) target = $region49
    $region48: #{tpu_custom_call.1} parent=1 // pred_region
      %s156 = ssub.s32 64, 64
      %157 = vsyncadd [#allocation24], %s156
      %s159 = sshll.u32 [#allocation23], 4
      %s160 = int_to_ptr.vmem [resolvable:$true] %s159
      %162 = dma.hbm_to_vmem [thread:$0]  %s11, 64, %s160, [#allocation24]
    $region49: #{tpu_custom_call.1} parent=1 // pred_fallthru
      _
    // Predicated region
    $region50: #{tpu_custom_call.1} parent=1 // pred_check
      _
    $region51: #{tpu_custom_call.1} parent=1 // pred_check_branch
      %164 = sbr.rel (0) target = $region53
    $region52: #{tpu_custom_call.1} parent=1 // pred_region
      %s166 = ssub.s32 32, 32
      %167 = vsyncadd [#allocation24], %s166
      %s169 = sshll.u32 [#allocation25], 4
      %s170 = int_to_ptr.vmem [resolvable:$true] %s169
      %172 = dma.hbm_to_vmem [thread:$0]  %s12, 32, %s170, [#allocation24]
    $region53: #{tpu_custom_call.1} parent=1 // pred_fallthru
      _
    // Predicated region
    $region54: #{tpu_custom_call.1} parent=1 // pred_check
      _
    $region55: #{tpu_custom_call.1} parent=1 // pred_check_branch
      %174 = sbr.rel (0) target = $region57
    $region56: #{tpu_custom_call.1} parent=1 // pred_region
      %s176 = ssub.s32 2048, 2048
      %177 = vsyncadd [#allocation27], %s176
      %s178 = sshll.u32 [#allocation26], 4
      %s179 = int_to_ptr.vmem [resolvable:$true] %s178
      %184 = dma.hbm_to_vmem [thread:$0]  %s13, 2048, %s179, [#allocation27], 64, 64, 4
    $region57: #{tpu_custom_call.1} parent=1 // pred_fallthru
      _
    // Predicated region
    $region58: #{tpu_custom_call.1} parent=1 // pred_check
      _
    $region59: #{tpu_custom_call.1} parent=1 // pred_check_branch
      %186 = sbr.rel (0) target = $region61
    $region60: #{tpu_custom_call.1} parent=1 // pred_region
      %s188 = ssub.s32 16, 16
      %189 = vsyncadd [#allocation27], %s188
      %s191 = sshll.u32 [#allocation28], 4
      %s192 = int_to_ptr.vmem [resolvable:$true] %s191
      %194 = dma.hbm_to_vmem [thread:$0]  %s14, 16, %s192, [#allocation27]
    $region61: #{tpu_custom_call.1} parent=1 // pred_fallthru
      _
    // Predicated region
    $region62: #{tpu_custom_call.1} parent=1 // pred_check
      _
    $region63: #{tpu_custom_call.1} parent=1 // pred_check_branch
      %196 = sbr.rel (0) target = $region65
    $region64: #{tpu_custom_call.1} parent=1 // pred_region
      _
    $region65: #{tpu_custom_call.1} parent=1 // pred_fallthru
      _
    // Predicated region
    $region66: #{tpu_custom_call.1} parent=1 // pred_check
      _
    $region67: #{tpu_custom_call.1} parent=1 // pred_check_branch
      %198 = sbr.rel (0) target = $region69
    $region68: #{tpu_custom_call.1} parent=1 // pred_region
      %s200 = ssub.s32 16, 16
      %201 = vsyncadd [#allocation30], %s200
      %s203 = sshll.u32 [#allocation29], 4
      %s204 = int_to_ptr.vmem [resolvable:$true] %s203
      %206 = dma.hbm_to_vmem [thread:$0]  %s16, 16, %s204, [#allocation30]
    $region69: #{tpu_custom_call.1} parent=1 // pred_fallthru
      _
    // Predicated region
    $region70: #{tpu_custom_call.1} parent=1 // pred_check
      _
    $region71: #{tpu_custom_call.1} parent=1 // pred_check_branch
      %208 = sbr.rel (0) target = $region73
    $region72: #{tpu_custom_call.1} parent=1 // pred_region
      _
    $region73: #{tpu_custom_call.1} parent=1 // pred_fallthru
      _
    // Predicated region
    $region74: #{tpu_custom_call.1} parent=1 // pred_check
      _
    $region75: #{tpu_custom_call.1} parent=1 // pred_check_branch
      %210 = sbr.rel (0) target = $region77
    $region76: #{tpu_custom_call.1} parent=1 // pred_region
      %s212 = ssub.s32 16, 16
      %213 = vsyncadd [#allocation30], %s212
      %s215 = sshll.u32 [#allocation31], 4
      %s216 = int_to_ptr.vmem [resolvable:$true] %s215
      %218 = dma.hbm_to_vmem [thread:$0]  %s18, 16, %s216, [#allocation30]
    $region77: #{tpu_custom_call.1} parent=1 // pred_fallthru
      _
    // Predicated region
    $region78: #{tpu_custom_call.1} parent=1 // pred_check
      _
    $region79: #{tpu_custom_call.1} parent=1 // pred_check_branch
      %220 = sbr.rel (0) target = $region81
    $region80: #{tpu_custom_call.1} parent=1 // pred_region
      _
    $region81: #{tpu_custom_call.1} parent=1 // pred_fallthru
      _
    // Predicated region
    $region82: #{tpu_custom_call.1} parent=1 // pred_check
      _
    $region83: #{tpu_custom_call.1} parent=1 // pred_check_branch
      %222 = sbr.rel (0) target = $region85
    $region84: #{tpu_custom_call.1} parent=1 // pred_region
      %s224 = ssub.s32 16, 16
      %225 = vsyncadd [#allocation33], %s224
      %s227 = sshll.u32 [#allocation32], 4
      %s228 = int_to_ptr.vmem [resolvable:$true] %s227
      %230 = dma.hbm_to_vmem [thread:$0]  %s20, 16, %s228, [#allocation33]
    $region85: #{tpu_custom_call.1} parent=1 // pred_fallthru
      _
    // Predicated region
    $region86: #{tpu_custom_call.1} parent=1 // pred_check
      _
    $region87: #{tpu_custom_call.1} parent=1 // pred_check_branch
      %232 = sbr.rel (0) target = $region89
    $region88: #{tpu_custom_call.1} parent=1 // pred_region
      %233 = dma.done [#allocation7], 128
    $region89: #{tpu_custom_call.1} parent=1 // pred_fallthru
      _
    // Predicated region
    $region90: #{tpu_custom_call.1} parent=1 // pred_check
      _
    $region91: #{tpu_custom_call.1} parent=1 // pred_check_branch
      %235 = sbr.rel (0) target = $region93
    $region92: #{tpu_custom_call.1} parent=1 // pred_region
      %236 = dma.done [#allocation9], 2048
    $region93: #{tpu_custom_call.1} parent=1 // pred_fallthru
      _
    // Predicated region
    $region94: #{tpu_custom_call.1} parent=1 // pred_check
      _
    $region95: #{tpu_custom_call.1} parent=1 // pred_check_branch
      %238 = sbr.rel (0) target = $region97
    $region96: #{tpu_custom_call.1} parent=1 // pred_region
      %239 = dma.done [#allocation9], 64
    $region97: #{tpu_custom_call.1} parent=1 // pred_fallthru
      _
    // Predicated region
    $region98: #{tpu_custom_call.1} parent=1 // pred_check
      _
    $region99: #{tpu_custom_call.1} parent=1 // pred_check_branch
      %241 = sbr.rel (0) target = $region101
    $region100: #{tpu_custom_call.1} parent=1 // pred_region
      %242 = dma.done [#allocation12], 49152
    $region101: #{tpu_custom_call.1} parent=1 // pred_fallthru
      _
    // Predicated region
    $region102: #{tpu_custom_call.1} parent=1 // pred_check
      _
    $region103: #{tpu_custom_call.1} parent=1 // pred_check_branch
      %244 = sbr.rel (0) target = $region105
    $region104: #{tpu_custom_call.1} parent=1 // pred_region
      %245 = dma.done [#allocation12], 192
    $region105: #{tpu_custom_call.1} parent=1 // pred_fallthru
      _
    // Predicated region
    $region106: #{tpu_custom_call.1} parent=1 // pred_check
      _
    $region107: #{tpu_custom_call.1} parent=1 // pred_check_branch
      %247 = sbr.rel (0) target = $region109
    $region108: #{tpu_custom_call.1} parent=1 // pred_region
      %248 = dma.done [#allocation15], 64
    $region109: #{tpu_custom_call.1} parent=1 // pred_fallthru
      _
    // Predicated region
    $region110: #{tpu_custom_call.1} parent=1 // pred_check
      _
    $region111: #{tpu_custom_call.1} parent=1 // pred_check_branch
      %250 = sbr.rel (0) target = $region113
    $region112: #{tpu_custom_call.1} parent=1 // pred_region
      %251 = dma.done [#allocation15], 64
    $region113: #{tpu_custom_call.1} parent=1 // pred_fallthru
      _
    // Predicated region
    $region114: #{tpu_custom_call.1} parent=1 // pred_check
      _
    $region115: #{tpu_custom_call.1} parent=1 // pred_check_branch
      %253 = sbr.rel (0) target = $region117
    $region116: #{tpu_custom_call.1} parent=1 // pred_region
      %254 = dma.done [#allocation18], 64
    $region117: #{tpu_custom_call.1} parent=1 // pred_fallthru
      _
    // Predicated region
    $region118: #{tpu_custom_call.1} parent=1 // pred_check
      _
    $region119: #{tpu_custom_call.1} parent=1 // pred_check_branch
      %256 = sbr.rel (0) target = $region121
    $region120: #{tpu_custom_call.1} parent=1 // pred_region
      %257 = dma.done [#allocation18], 32
    $region121: #{tpu_custom_call.1} parent=1 // pred_fallthru
      _
    // Predicated region
    $region122: #{tpu_custom_call.1} parent=1 // pred_check
      _
    $region123: #{tpu_custom_call.1} parent=1 // pred_check_branch
      %259 = sbr.rel (0) target = $region125
    $region124: #{tpu_custom_call.1} parent=1 // pred_region
      %260 = dma.done [#allocation21], 64
    $region125: #{tpu_custom_call.1} parent=1 // pred_fallthru
      _
    // Predicated region
    $region126: #{tpu_custom_call.1} parent=1 // pred_check
      _
    $region127: #{tpu_custom_call.1} parent=1 // pred_check_branch
      %262 = sbr.rel (0) target = $region129
    $region128: #{tpu_custom_call.1} parent=1 // pred_region
      %263 = dma.done [#allocation21], 32
    $region129: #{tpu_custom_call.1} parent=1 // pred_fallthru
      _
    // Predicated region
    $region130: #{tpu_custom_call.1} parent=1 // pred_check
      _
    $region131: #{tpu_custom_call.1} parent=1 // pred_check_branch
      %265 = sbr.rel (0) target = $region133
    $region132: #{tpu_custom_call.1} parent=1 // pred_region
      %266 = dma.done [#allocation24], 64
    $region133: #{tpu_custom_call.1} parent=1 // pred_fallthru
      _
    // Predicated region
    $region134: #{tpu_custom_call.1} parent=1 // pred_check
      _
    $region135: #{tpu_custom_call.1} parent=1 // pred_check_branch
      %268 = sbr.rel (0) target = $region137
    $region136: #{tpu_custom_call.1} parent=1 // pred_region
      %269 = dma.done [#allocation24], 32
    $region137: #{tpu_custom_call.1} parent=1 // pred_fallthru
      _
    // Predicated region
    $region138: #{tpu_custom_call.1} parent=1 // pred_check
      _
    $region139: #{tpu_custom_call.1} parent=1 // pred_check_branch
      %271 = sbr.rel (0) target = $region141
    $region140: #{tpu_custom_call.1} parent=1 // pred_region
      %272 = dma.done [#allocation27], 2048
    $region141: #{tpu_custom_call.1} parent=1 // pred_fallthru
      _
    // Predicated region
    $region142: #{tpu_custom_call.1} parent=1 // pred_check
      _
    $region143: #{tpu_custom_call.1} parent=1 // pred_check_branch
      %274 = sbr.rel (0) target = $region145
    $region144: #{tpu_custom_call.1} parent=1 // pred_region
      %275 = dma.done [#allocation27], 16
    $region145: #{tpu_custom_call.1} parent=1 // pred_fallthru
      _
    // Predicated region
    $region146: #{tpu_custom_call.1} parent=1 // pred_check
      _
    $region147: #{tpu_custom_call.1} parent=1 // pred_check_branch
      %277 = sbr.rel (0) target = $region149
    $region148: #{tpu_custom_call.1} parent=1 // pred_region
      %278 = dma.done [#allocation30], 16
    $region149: #{tpu_custom_call.1} parent=1 // pred_fallthru
      _
    // Predicated region
    $region150: #{tpu_custom_call.1} parent=1 // pred_check
      _
    $region151: #{tpu_custom_call.1} parent=1 // pred_check_branch
      %280 = sbr.rel (0) target = $region153
    $region152: #{tpu_custom_call.1} parent=1 // pred_region
      %281 = dma.done [#allocation30], 16
    $region153: #{tpu_custom_call.1} parent=1 // pred_fallthru
      _
    // Predicated region
    $region154: #{tpu_custom_call.1} parent=1 // pred_check
      _
    $region155: #{tpu_custom_call.1} parent=1 // pred_check_branch
      %283 = sbr.rel (0) target = $region157
    $region156: #{tpu_custom_call.1} parent=1 // pred_region
      %284 = dma.done [#allocation33], 16
    $region157: #{tpu_custom_call.1} parent=1 // pred_fallthru
      _
    %s287 = sshll.u32 1, 14
    %s288 = sxor.u32 4294967295, %s287
    %s290 = sld [smem:[#allocation0]]
    %s291 = sadd.s32 2, %s290
    %s293 = sshll.u32 7, 26
    %s294 = sxor.u32 4294967295, %s293
    %s295 = sand.u32 0, %s294
    %s296 = sshll.u32 %s291, 26
    %s297 = sor.u32 %s295, %s296
    %s298 = sshll.u32 [#allocation2], 4
    %s299 = int_to_ptr.vmem [resolvable:$true] %s298
    %302 = sst [smem:[#allocation35]] 512
    %s303 = scalar_lea.smem [#allocation35], 1
    %304 = sst [smem:[%s303]] 512
    %s305 = scalar_lea.smem [#allocation35], 2
    %306 = sst [smem:[%s305]] 4
    %s307 = scalar_lea.smem [#allocation35], 3
    %308 = sst [smem:[%s307]] 64
    %s309 = scalar_lea.smem [#allocation35], 4
    %310 = sst [smem:[%s309]] 128
    %s311 = scalar_lea.smem [#allocation35], 5
    %312 = sst [smem:[%s311]] 2
    %s313 = scalar_lea.smem [#allocation35], 6
    %314 = sst [smem:[%s313]] 256
    %s315 = scalar_lea.smem [#allocation35], 7
    %316 = sst [smem:[%s315]] 64
    %s317 = scalar_lea.smem [#allocation35], 8
    %318 = sst [smem:[%s317]] 4
    %320 = dma.general %s21, 16384, %s299, [#allocation5], [#allocation34], [#allocation35], %s297, 0
    %s321 = scalar_lea.sflag [#allocation5], 1
    %s323 = sshll.u32 1, 14
    %s324 = sxor.u32 4294967295, %s323
    %s326 = sadd.s32 2, %s290
    %s328 = sshll.u32 7, 26
    %s329 = sxor.u32 4294967295, %s328
    %s330 = sand.u32 0, %s329
    %s331 = sshll.u32 %s326, 26
    %s332 = sor.u32 %s330, %s331
    %s333 = sshll.u32 [#allocation3], 4
    %s334 = int_to_ptr.vmem [resolvable:$true] %s333
    %337 = sst [smem:[#allocation37]] 256
    %s338 = scalar_lea.smem [#allocation37], 1
    %339 = sst [smem:[%s338]] 256
    %s340 = scalar_lea.smem [#allocation37], 2
    %341 = sst [smem:[%s340]] 2
    %s342 = scalar_lea.smem [#allocation37], 3
    %343 = sst [smem:[%s342]] 64
    %s344 = scalar_lea.smem [#allocation37], 4
    %345 = sst [smem:[%s344]] 128
    %s346 = scalar_lea.smem [#allocation37], 5
    %347 = sst [smem:[%s346]] 2
    %s348 = scalar_lea.smem [#allocation37], 6
    %349 = sst [smem:[%s348]] 128
    %s350 = scalar_lea.smem [#allocation37], 7
    %351 = sst [smem:[%s350]] 64
    %s352 = scalar_lea.smem [#allocation37], 8
    %353 = sst [smem:[%s352]] 4
    %355 = dma.general %s22, 24576, %s334, %s321, [#allocation36], [#allocation37], %s332, 0
    %s356 = scalar_lea.sflag [#allocation5], 2
    %s358 = sshll.u32 1, 14
    %s359 = sxor.u32 4294967295, %s358
    %s361 = sadd.s32 2, %s290
    %s363 = sshll.u32 7, 26
    %s364 = sxor.u32 4294967295, %s363
    %s365 = sand.u32 0, %s364
    %s366 = sshll.u32 %s361, 26
    %s367 = sor.u32 %s365, %s366
    %s368 = sshll.u32 [#allocation4], 4
    %s369 = int_to_ptr.vmem [resolvable:$true] %s368
    %372 = sst [smem:[#allocation39]] 512
    %s373 = scalar_lea.smem [#allocation39], 1
    %374 = sst [smem:[%s373]] 512
    %s375 = scalar_lea.smem [#allocation39], 2
    %376 = sst [smem:[%s375]] 4
    %s377 = scalar_lea.smem [#allocation39], 3
    %378 = sst [smem:[%s377]] 64
    %s379 = scalar_lea.smem [#allocation39], 4
    %380 = sst [smem:[%s379]] 128
    %s381 = scalar_lea.smem [#allocation39], 5
    %382 = sst [smem:[%s381]] 2
    %s383 = scalar_lea.smem [#allocation39], 6
    %384 = sst [smem:[%s383]] 256
    %s385 = scalar_lea.smem [#allocation39], 7
    %386 = sst [smem:[%s385]] 64
    %s387 = scalar_lea.smem [#allocation39], 8
    %388 = sst [smem:[%s387]] 4
    %390 = dma.general %s23, 16384, %s369, %s356, [#allocation38], [#allocation39], %s367, 0
    %v391 = vld [vmem:[#allocation6] sm:$0xff]
    %v392 = vld [vmem:[#allocation8] sm:$0xff]
    %v393 = vld [vmem:[#allocation8 + $0x8] sm:$0xff]
    %v394 = vld [vmem:[#allocation8 + $0x10] sm:$0xff]
    %v395 = vld [vmem:[#allocation8 + $0x18] sm:$0xff]
    %v396 = vld [vmem:[#allocation8 + $0x20] sm:$0xff]
    %v397 = vld [vmem:[#allocation8 + $0x28] sm:$0xff]
    %v398 = vld [vmem:[#allocation8 + $0x30] sm:$0xff]
    %v399 = vld [vmem:[#allocation8 + $0x38] sm:$0xff]
    %v400 = vld [vmem:[#allocation8 + $0x40] sm:$0xff]
    %v401 = vld [vmem:[#allocation8 + $0x48] sm:$0xff]
    %v402 = vld [vmem:[#allocation8 + $0x50] sm:$0xff]
    %v403 = vld [vmem:[#allocation8 + $0x58] sm:$0xff]
    %v404 = vld [vmem:[#allocation8 + $0x60] sm:$0xff]
    %v405 = vld [vmem:[#allocation8 + $0x68] sm:$0xff]
    %v406 = vld [vmem:[#allocation8 + $0x70] sm:$0xff]
    %v407 = vld [vmem:[#allocation8 + $0x78] sm:$0xff]
    %v408 = vld [vmem:[#allocation10] sm:$0xf]
    %v409 = vpack.c.bf16 %v391, %v391
    %v411 = vlaneseq
    %v412 = vshrl.u32 %v411, 7
    %v413 = vsub.s32 0, %v412
    %v414 = vrot.slane %v408, %v413
    %v415 = vlaneseq
    %v416 = vshrl.u32 %v415, 7
    %v417 = vsub.s32 1, %v416
    %v418 = vrot.slane %v408, %v417
    %v419 = vlaneseq
    %v420 = vshrl.u32 %v419, 7
    %v421 = vsub.s32 2, %v420
    %v422 = vrot.slane %v408, %v421
    %v423 = vlaneseq
    %v424 = vshrl.u32 %v423, 7
    %v425 = vsub.s32 3, %v424
    %v426 = vrot.slane %v408, %v425
    %v447 = vunpack.c.l.b16 %v392
    %v448 = vunpack.c.h.b16 %v392
    %v449 = vunpack.c.l.b16 %v393
    %v450 = vunpack.c.h.b16 %v393
    %v451 = vunpack.c.l.b16 %v394
    %v452 = vunpack.c.h.b16 %v394
    %v453 = vunpack.c.l.b16 %v395
    %v454 = vunpack.c.h.b16 %v395
    %v455 = vunpack.c.l.b16 %v396
    %v456 = vunpack.c.h.b16 %v396
    %v457 = vunpack.c.l.b16 %v397
    %v458 = vunpack.c.h.b16 %v397
    %v459 = vunpack.c.l.b16 %v398
    %v460 = vunpack.c.h.b16 %v398
    %v461 = vunpack.c.l.b16 %v399
    %v462 = vunpack.c.h.b16 %v399
    %v463 = vunpack.c.l.b16 %v400
    %v464 = vunpack.c.h.b16 %v400
    %v465 = vunpack.c.l.b16 %v401
    %v466 = vunpack.c.h.b16 %v401
    %v467 = vunpack.c.l.b16 %v402
    %v468 = vunpack.c.h.b16 %v402
    %v469 = vunpack.c.l.b16 %v403
    %v470 = vunpack.c.h.b16 %v403
    %v471 = vunpack.c.l.b16 %v404
    %v472 = vunpack.c.h.b16 %v404
    %v473 = vunpack.c.l.b16 %v405
    %v474 = vunpack.c.h.b16 %v405
    %v475 = vunpack.c.l.b16 %v406
    %v476 = vunpack.c.h.b16 %v406
    %v477 = vunpack.c.l.b16 %v407
    %v478 = vunpack.c.h.b16 %v407
    %v479 = vpack.c.b16 %v451, %v447
    %v480 = vpack.c.b16 %v452, %v448
    %v481 = vpack.c.b16 %v453, %v449
    %v482 = vpack.c.b16 %v454, %v450
    %v483 = vpack.c.b16 %v459, %v455
    %v484 = vpack.c.b16 %v460, %v456
    %v485 = vpack.c.b16 %v461, %v457
    %v486 = vpack.c.b16 %v462, %v458
    %v487 = vpack.c.b16 %v467, %v463
    %v488 = vpack.c.b16 %v468, %v464
    %v489 = vpack.c.b16 %v469, %v465
    %v490 = vpack.c.b16 %v470, %v466
    %v491 = vpack.c.b16 %v475, %v471
    %v492 = vpack.c.b16 %v476, %v472
    %v493 = vpack.c.b16 %v477, %v473
    %v494 = vpack.c.b16 %v478, %v474
    %vm511 = vcmask 523264
    %v513 = vsel %vm511, %v409, 0
    %515 = vmatprep.subr.bf16.mxu0 %v480
    %516 = vmatpush1.bf16.msra.mxu0 %v479
    %517 = vmatprep.subr.bf16.mxu0 %v484
    %518 = vmatpush1.bf16.msra.mxu0 %v483
    %519 = vmatprep.subr.bf16.mxu0 %v488
    %520 = vmatpush1.bf16.msra.mxu0 %v487
    %521 = vmatprep.subr.bf16.mxu0 %v492
    %522 = vmatpush1.bf16.msra.mxu0 %v491
    %523 = vmatprep.subr.bf16.mxu0 0
    %524 = vmatpush1.bf16.msra.mxu0 0
    %525 = vmatprep.subr.bf16.mxu0 0
    %526 = vmatpush1.bf16.msra.mxu0 0
    %527 = vmatprep.subr.bf16.mxu0 0
    %528 = vmatpush1.bf16.msra.mxu0 0
    %529 = vmatprep.subr.bf16.mxu0 0
    %530 = vmatpush1.bf16.msra.mxu0 0
    %531 = vmatprep.subr.bf16.mxu0 0
    %532 = vmatpush1.bf16.msra.mxu0 0
    %533 = vmatprep.subr.bf16.mxu0 0
    %534 = vmatpush1.bf16.msra.mxu0 0
    %535 = vmatprep.subr.bf16.mxu0 0
    %536 = vmatpush1.bf16.msra.mxu0 0
    %537 = vmatprep.subr.bf16.mxu0 0
    %538 = vmatpush1.bf16.msra.mxu0 0
    %539 = vmatprep.subr.bf16.mxu0 0
    %540 = vmatpush1.bf16.msra.mxu0 0
    %541 = vmatprep.subr.bf16.mxu0 0
    %542 = vmatpush1.bf16.msra.mxu0 0
    %543 = vmatprep.subr.bf16.mxu0 0
    %544 = vmatpush1.bf16.msra.mxu0 0
    %545 = vmatprep.subr.bf16.mxu0 0
    %546 = vmatpush1.bf16.msra.mxu0 0
    %547 = vmatprep.mubr.bf16.mxu0 0
    %548 = vmatmul.mubr.bf16.gmra.mrb[0].mxu0 %v513
    %v549 = vpop.f32.mrb[0].mxu0
    %v550 = vadd.f32 %v414, %v549
    %v551 = vpop.f32.mrb[0].mxu0
    %v552 = vadd.f32 %v418, %v551
    %v553 = vpop.f32.mrb[0].mxu0
    %v554 = vpop.f32.mrb[0].mxu0
    %555 = vdwg.mxu0
    %556 = vmatprep.subr.bf16.mxu0 %v482
    %557 = vmatpush1.bf16.msra.mxu0 %v481
    %558 = vmatprep.subr.bf16.mxu0 %v486
    %559 = vmatpush1.bf16.msra.mxu0 %v485
    %560 = vmatprep.subr.bf16.mxu0 %v490
    %561 = vmatpush1.bf16.msra.mxu0 %v489
    %562 = vmatprep.subr.bf16.mxu0 %v494
    %563 = vmatpush1.bf16.msra.mxu0 %v493
    %564 = vmatprep.subr.bf16.mxu0 0
    %565 = vmatpush1.bf16.msra.mxu0 0
    %566 = vmatprep.subr.bf16.mxu0 0
    %567 = vmatpush1.bf16.msra.mxu0 0
    %568 = vmatprep.subr.bf16.mxu0 0
    %569 = vmatpush1.bf16.msra.mxu0 0
    %570 = vmatprep.subr.bf16.mxu0 0
    %571 = vmatpush1.bf16.msra.mxu0 0
    %572 = vmatprep.subr.bf16.mxu0 0
    %573 = vmatpush1.bf16.msra.mxu0 0
    %574 = vmatprep.subr.bf16.mxu0 0
    %575 = vmatpush1.bf16.msra.mxu0 0
    %576 = vmatprep.subr.bf16.mxu0 0
    %577 = vmatpush1.bf16.msra.mxu0 0
    %578 = vmatprep.subr.bf16.mxu0 0
    %579 = vmatpush1.bf16.msra.mxu0 0
    %580 = vmatprep.subr.bf16.mxu0 0
    %581 = vmatpush1.bf16.msra.mxu0 0
    %582 = vmatprep.subr.bf16.mxu0 0
    %583 = vmatpush1.bf16.msra.mxu0 0
    %584 = vmatprep.subr.bf16.mxu0 0
    %585 = vmatpush1.bf16.msra.mxu0 0
    %586 = vmatprep.subr.bf16.mxu0 0
    %587 = vmatpush1.bf16.msra.mxu0 0
    %588 = vmatprep.mubr.bf16.mxu0 0
    %589 = vmatmul.mubr.bf16.gmra.mrb[0].mxu0 %v513
    %v590 = vpop.f32.mrb[0].mxu0
    %v591 = vadd.f32 %v422, %v590
    %v592 = vpop.f32.mrb[0].mxu0
    %v593 = vadd.f32 %v426, %v592
    %v594 = vpop.f32.mrb[0].mxu0
    %v595 = vpop.f32.mrb[0].mxu0
    %596 = vdwg.mxu0
    %v597 = vmax.f32 %v550, 0.0
    %v598 = vmax.f32 %v552, 0.0
    %v599 = vmax.f32 %v591, 0.0
    %v600 = vmax.f32 %v593, 0.0
    %v601 = vld [vmem:[#allocation11] sm:$0xff]
    %v602 = vld [vmem:[#allocation11 + $0x8] sm:$0xff]
    %v603 = vld [vmem:[#allocation11 + $0x10] sm:$0xff]
    %v604 = vld [vmem:[#allocation11 + $0x18] sm:$0xff]
    %v605 = vld [vmem:[#allocation11 + $0x20] sm:$0xff]
    %v606 = vld [vmem:[#allocation11 + $0x28] sm:$0xff]
    %v607 = vld [vmem:[#allocation11 + $0x30] sm:$0xff]
    %v608 = vld [vmem:[#allocation11 + $0x38] sm:$0xff]
    %v609 = vld [vmem:[#allocation11 + $0x40] sm:$0xff]
    %v610 = vld [vmem:[#allocation11 + $0x48] sm:$0xff]
    %v611 = vld [vmem:[#allocation11 + $0x50] sm:$0xff]
    %v612 = vld [vmem:[#allocation11 + $0x58] sm:$0xff]
    %v613 = vld [vmem:[#allocation11 + $0x60] sm:$0xff]
    %v614 = vld [vmem:[#allocation11 + $0x68] sm:$0xff]
    %v615 = vld [vmem:[#allocation11 + $0x70] sm:$0xff]
    %v616 = vld [vmem:[#allocation11 + $0x78] sm:$0xff]
    %v617 = vld [vmem:[#allocation11 + $0x80] sm:$0xff]
    %v618 = vld [vmem:[#allocation11 + $0x88] sm:$0xff]
    %v619 = vld [vmem:[#allocation11 + $0x90] sm:$0xff]
    %v620 = vld [vmem:[#allocation11 + $0x98] sm:$0xff]
    %v621 = vld [vmem:[#allocation11 + $0xa0] sm:$0xff]
    %v622 = vld [vmem:[#allocation11 + $0xa8] sm:$0xff]
    %v623 = vld [vmem:[#allocation11 + $0xb0] sm:$0xff]
    %v624 = vld [vmem:[#allocation11 + $0xb8] sm:$0xff]
    %v625 = vld [vmem:[#allocation11 + $0xc0] sm:$0xff]
    %v626 = vld [vmem:[#allocation11 + $0xc8] sm:$0xff]
    %v627 = vld [vmem:[#allocation11 + $0xd0] sm:$0xff]
    %v628 = vld [vmem:[#allocation11 + $0xd8] sm:$0xff]
    %v629 = vld [vmem:[#allocation11 + $0xe0] sm:$0xff]
    %v630 = vld [vmem:[#allocation11 + $0xe8] sm:$0xff]
    %v631 = vld [vmem:[#allocation11 + $0xf0] sm:$0xff]
    %v632 = vld [vmem:[#allocation11 + $0xf8] sm:$0xff]
    %v633 = vld [vmem:[#allocation11 + $0x100] sm:$0xff]
    %v634 = vld [vmem:[#allocation11 + $0x108] sm:$0xff]
    %v635 = vld [vmem:[#allocation11 + $0x110] sm:$0xff]
    %v636 = vld [vmem:[#allocation11 + $0x118] sm:$0xff]
    %v637 = vld [vmem:[#allocation11 + $0x120] sm:$0xff]
    %v638 = vld [vmem:[#allocation11 + $0x128] sm:$0xff]
    %v639 = vld [vmem:[#allocation11 + $0x130] sm:$0xff]
    %v640 = vld [vmem:[#allocation11 + $0x138] sm:$0xff]
    %v641 = vld [vmem:[#allocation11 + $0x140] sm:$0xff]
    %v642 = vld [vmem:[#allocation11 + $0x148] sm:$0xff]
    %v643 = vld [vmem:[#allocation11 + $0x150] sm:$0xff]
    %v644 = vld [vmem:[#allocation11 + $0x158] sm:$0xff]
    %v645 = vld [vmem:[#allocation11 + $0x160] sm:$0xff]
    %v646 = vld [vmem:[#allocation11 + $0x168] sm:$0xff]
    %v647 = vld [vmem:[#allocation11 + $0x170] sm:$0xff]
    %v648 = vld [vmem:[#allocation11 + $0x178] sm:$0xff]
    %v649 = vld [vmem:[#allocation11 + $0x180] sm:$0xff]
    %v650 = vld [vmem:[#allocation11 + $0x188] sm:$0xff]
    %v651 = vld [vmem:[#allocation11 + $0x190] sm:$0xff]
    %v652 = vld [vmem:[#allocation11 + $0x198] sm:$0xff]
    %v653 = vld [vmem:[#allocation11 + $0x1a0] sm:$0xff]
    %v654 = vld [vmem:[#allocation11 + $0x1a8] sm:$0xff]
    %v655 = vld [vmem:[#allocation11 + $0x1b0] sm:$0xff]
    %v656 = vld [vmem:[#allocation11 + $0x1b8] sm:$0xff]
    %v657 = vld [vmem:[#allocation11 + $0x1c0] sm:$0xff]
    %v658 = vld [vmem:[#allocation11 + $0x1c8] sm:$0xff]
    %v659 = vld [vmem:[#allocation11 + $0x1d0] sm:$0xff]
    %v660 = vld [vmem:[#allocation11 + $0x1d8] sm:$0xff]
    %v661 = vld [vmem:[#allocation11 + $0x1e0] sm:$0xff]
    %v662 = vld [vmem:[#allocation11 + $0x1e8] sm:$0xff]
    %v663 = vld [vmem:[#allocation11 + $0x1f0] sm:$0xff]
    %v664 = vld [vmem:[#allocation11 + $0x1f8] sm:$0xff]
    %v665 = vld [vmem:[#allocation11 + $0x200] sm:$0xff]
    %v666 = vld [vmem:[#allocation11 + $0x208] sm:$0xff]
    %v667 = vld [vmem:[#allocation11 + $0x210] sm:$0xff]
    %v668 = vld [vmem:[#allocation11 + $0x218] sm:$0xff]
    %v669 = vld [vmem:[#allocation11 + $0x220] sm:$0xff]
    %v670 = vld [vmem:[#allocation11 + $0x228] sm:$0xff]
    %v671 = vld [vmem:[#allocation11 + $0x230] sm:$0xff]
    %v672 = vld [vmem:[#allocation11 + $0x238] sm:$0xff]
    %v673 = vld [vmem:[#allocation11 + $0x240] sm:$0xff]
    %v674 = vld [vmem:[#allocation11 + $0x248] sm:$0xff]
    %v675 = vld [vmem:[#allocation11 + $0x250] sm:$0xff]
    %v676 = vld [vmem:[#allocation11 + $0x258] sm:$0xff]
    %v677 = vld [vmem:[#allocation11 + $0x260] sm:$0xff]
    %v678 = vld [vmem:[#allocation11 + $0x268] sm:$0xff]
    %v679 = vld [vmem:[#allocation11 + $0x270] sm:$0xff]
    %v680 = vld [vmem:[#allocation11 + $0x278] sm:$0xff]
    %v681 = vld [vmem:[#allocation11 + $0x280] sm:$0xff]
    %v682 = vld [vmem:[#allocation11 + $0x288] sm:$0xff]
    %v683 = vld [vmem:[#allocation11 + $0x290] sm:$0xff]
    %v684 = vld [vmem:[#allocation11 + $0x298] sm:$0xff]
    %v685 = vld [vmem:[#allocation11 + $0x2a0] sm:$0xff]
    %v686 = vld [vmem:[#allocation11 + $0x2a8] sm:$0xff]
    %v687 = vld [vmem:[#allocation11 + $0x2b0] sm:$0xff]
    %v688 = vld [vmem:[#allocation11 + $0x2b8] sm:$0xff]
    %v689 = vld [vmem:[#allocation11 + $0x2c0] sm:$0xff]
    %v690 = vld [vmem:[#allocation11 + $0x2c8] sm:$0xff]
    %v691 = vld [vmem:[#allocation11 + $0x2d0] sm:$0xff]
    %v692 = vld [vmem:[#allocation11 + $0x2d8] sm:$0xff]
    %v693 = vld [vmem:[#allocation11 + $0x2e0] sm:$0xff]
    %v694 = vld [vmem:[#allocation11 + $0x2e8] sm:$0xff]
    %v695 = vld [vmem:[#allocation11 + $0x2f0] sm:$0xff]
    %v696 = vld [vmem:[#allocation11 + $0x2f8] sm:$0xff]
    %v697 = vld [vmem:[#allocation11 + $0x300] sm:$0xff]
    %v698 = vld [vmem:[#allocation11 + $0x308] sm:$0xff]
    %v699 = vld [vmem:[#allocation11 + $0x310] sm:$0xff]
    %v700 = vld [vmem:[#allocation11 + $0x318] sm:$0xff]
    %v701 = vld [vmem:[#allocation11 + $0x320] sm:$0xff]
    %v702 = vld [vmem:[#allocation11 + $0x328] sm:$0xff]
    %v703 = vld [vmem:[#allocation11 + $0x330] sm:$0xff]
    %v704 = vld [vmem:[#allocation11 + $0x338] sm:$0xff]
    %v705 = vld [vmem:[#allocation11 + $0x340] sm:$0xff]
    %v706 = vld [vmem:[#allocation11 + $0x348] sm:$0xff]
    %v707 = vld [vmem:[#allocation11 + $0x350] sm:$0xff]
    %v708 = vld [vmem:[#allocation11 + $0x358] sm:$0xff]
    %v709 = vld [vmem:[#allocation11 + $0x360] sm:$0xff]
    %v710 = vld [vmem:[#allocation11 + $0x368] sm:$0xff]
    %v711 = vld [vmem:[#allocation11 + $0x370] sm:$0xff]
    %v712 = vld [vmem:[#allocation11 + $0x378] sm:$0xff]
    %v713 = vld [vmem:[#allocation11 + $0x380] sm:$0xff]
    %v714 = vld [vmem:[#allocation11 + $0x388] sm:$0xff]
    %v715 = vld [vmem:[#allocation11 + $0x390] sm:$0xff]
    %v716 = vld [vmem:[#allocation11 + $0x398] sm:$0xff]
    %v717 = vld [vmem:[#allocation11 + $0x3a0] sm:$0xff]
    %v718 = vld [vmem:[#allocation11 + $0x3a8] sm:$0xff]
    %v719 = vld [vmem:[#allocation11 + $0x3b0] sm:$0xff]
    %v720 = vld [vmem:[#allocation11 + $0x3b8] sm:$0xff]
    %v721 = vld [vmem:[#allocation11 + $0x3c0] sm:$0xff]
    %v722 = vld [vmem:[#allocation11 + $0x3c8] sm:$0xff]
    %v723 = vld [vmem:[#allocation11 + $0x3d0] sm:$0xff]
    %v724 = vld [vmem:[#allocation11 + $0x3d8] sm:$0xff]
    %v725 = vld [vmem:[#allocation11 + $0x3e0] sm:$0xff]
    %v726 = vld [vmem:[#allocation11 + $0x3e8] sm:$0xff]
    %v727 = vld [vmem:[#allocation11 + $0x3f0] sm:$0xff]
    %v728 = vld [vmem:[#allocation11 + $0x3f8] sm:$0xff]
    %v729 = vld [vmem:[#allocation11 + $0x400] sm:$0xff]
    %v730 = vld [vmem:[#allocation11 + $0x408] sm:$0xff]
    %v731 = vld [vmem:[#allocation11 + $0x410] sm:$0xff]
    %v732 = vld [vmem:[#allocation11 + $0x418] sm:$0xff]
    %v733 = vld [vmem:[#allocation11 + $0x420] sm:$0xff]
    %v734 = vld [vmem:[#allocation11 + $0x428] sm:$0xff]
    %v735 = vld [vmem:[#allocation11 + $0x430] sm:$0xff]
    %v736 = vld [vmem:[#allocation11 + $0x438] sm:$0xff]
    %v737 = vld [vmem:[#allocation11 + $0x440] sm:$0xff]
    %v738 = vld [vmem:[#allocation11 + $0x448] sm:$0xff]
    %v739 = vld [vmem:[#allocation11 + $0x450] sm:$0xff]
    %v740 = vld [vmem:[#allocation11 + $0x458] sm:$0xff]
    %v741 = vld [vmem:[#allocation11 + $0x460] sm:$0xff]
    %v742 = vld [vmem:[#allocation11 + $0x468] sm:$0xff]
    %v743 = vld [vmem:[#allocation11 + $0x470] sm:$0xff]
    %v744 = vld [vmem:[#allocation11 + $0x478] sm:$0xff]
    %v745 = vld [vmem:[#allocation11 + $0x480] sm:$0xff]
    %v746 = vld [vmem:[#allocation11 + $0x488] sm:$0xff]
    %v747 = vld [vmem:[#allocation11 + $0x490] sm:$0xff]
    %v748 = vld [vmem:[#allocation11 + $0x498] sm:$0xff]
    %v749 = vld [vmem:[#allocation11 + $0x4a0] sm:$0xff]
    %v750 = vld [vmem:[#allocation11 + $0x4a8] sm:$0xff]
    %v751 = vld [vmem:[#allocation11 + $0x4b0] sm:$0xff]
    %v752 = vld [vmem:[#allocation11 + $0x4b8] sm:$0xff]
    %v753 = vld [vmem:[#allocation11 + $0x4c0] sm:$0xff]
    %v754 = vld [vmem:[#allocation11 + $0x4c8] sm:$0xff]
    %v755 = vld [vmem:[#allocation11 + $0x4d0] sm:$0xff]
    %v756 = vld [vmem:[#allocation11 + $0x4d8] sm:$0xff]
    %v757 = vld [vmem:[#allocation11 + $0x4e0] sm:$0xff]
    %v758 = vld [vmem:[#allocation11 + $0x4e8] sm:$0xff]
    %v759 = vld [vmem:[#allocation11 + $0x4f0] sm:$0xff]
    %v760 = vld [vmem:[#allocation11 + $0x4f8] sm:$0xff]
    %v761 = vld [vmem:[#allocation11 + $0x500] sm:$0xff]
    %v762 = vld [vmem:[#allocation11 + $0x508] sm:$0xff]
    %v763 = vld [vmem:[#allocation11 + $0x510] sm:$0xff]
    %v764 = vld [vmem:[#allocation11 + $0x518] sm:$0xff]
    %v765 = vld [vmem:[#allocation11 + $0x520] sm:$0xff]
    %v766 = vld [vmem:[#allocation11 + $0x528] sm:$0xff]
    %v767 = vld [vmem:[#allocation11 + $0x530] sm:$0xff]
    %v768 = vld [vmem:[#allocation11 + $0x538] sm:$0xff]
    %v769 = vld [vmem:[#allocation11 + $0x540] sm:$0xff]
    %v770 = vld [vmem:[#allocation11 + $0x548] sm:$0xff]
    %v771 = vld [vmem:[#allocation11 + $0x550] sm:$0xff]
    %v772 = vld [vmem:[#allocation11 + $0x558] sm:$0xff]
    %v773 = vld [vmem:[#allocation11 + $0x560] sm:$0xff]
    %v774 = vld [vmem:[#allocation11 + $0x568] sm:$0xff]
    %v775 = vld [vmem:[#allocation11 + $0x570] sm:$0xff]
    %v776 = vld [vmem:[#allocation11 + $0x578] sm:$0xff]
    %v777 = vld [vmem:[#allocation11 + $0x580] sm:$0xff]
    %v778 = vld [vmem:[#allocation11 + $0x588] sm:$0xff]
    %v779 = vld [vmem:[#allocation11 + $0x590] sm:$0xff]
    %v780 = vld [vmem:[#allocation11 + $0x598] sm:$0xff]
    %v781 = vld [vmem:[#allocation11 + $0x5a0] sm:$0xff]
    %v782 = vld [vmem:[#allocation11 + $0x5a8] sm:$0xff]
    %v783 = vld [vmem:[#allocation11 + $0x5b0] sm:$0xff]
    %v784 = vld [vmem:[#allocation11 + $0x5b8] sm:$0xff]
    %v785 = vld [vmem:[#allocation11 + $0x5c0] sm:$0xff]
    %v786 = vld [vmem:[#allocation11 + $0x5c8] sm:$0xff]
    %v787 = vld [vmem:[#allocation11 + $0x5d0] sm:$0xff]
    %v788 = vld [vmem:[#allocation11 + $0x5d8] sm:$0xff]
    %v789 = vld [vmem:[#allocation11 + $0x5e0] sm:$0xff]
    %v790 = vld [vmem:[#allocation11 + $0x5e8] sm:$0xff]
    %v791 = vld [vmem:[#allocation11 + $0x5f0] sm:$0xff]
    %v792 = vld [vmem:[#allocation11 + $0x5f8] sm:$0xff]
    %v793 = vld [vmem:[#allocation11 + $0x600] sm:$0xff]
    %v794 = vld [vmem:[#allocation11 + $0x608] sm:$0xff]
    %v795 = vld [vmem:[#allocation11 + $0x610] sm:$0xff]
    %v796 = vld [vmem:[#allocation11 + $0x618] sm:$0xff]
    %v797 = vld [vmem:[#allocation11 + $0x620] sm:$0xff]
    %v798 = vld [vmem:[#allocation11 + $0x628] sm:$0xff]
    %v799 = vld [vmem:[#allocation11 + $0x630] sm:$0xff]
    %v800 = vld [vmem:[#allocation11 + $0x638] sm:$0xff]
    %v801 = vld [vmem:[#allocation11 + $0x640] sm:$0xff]
    %v802 = vld [vmem:[#allocation11 + $0x648] sm:$0xff]
    %v803 = vld [vmem:[#allocation11 + $0x650] sm:$0xff]
    %v804 = vld [vmem:[#allocation11 + $0x658] sm:$0xff]
    %v805 = vld [vmem:[#allocation11 + $0x660] sm:$0xff]
    %v806 = vld [vmem:[#allocation11 + $0x668] sm:$0xff]
    %v807 = vld [vmem:[#allocation11 + $0x670] sm:$0xff]
    %v808 = vld [vmem:[#allocation11 + $0x678] sm:$0xff]
    %v809 = vld [vmem:[#allocation11 + $0x680] sm:$0xff]
    %v810 = vld [vmem:[#allocation11 + $0x688] sm:$0xff]
    %v811 = vld [vmem:[#allocation11 + $0x690] sm:$0xff]
    %v812 = vld [vmem:[#allocation11 + $0x698] sm:$0xff]
    %v813 = vld [vmem:[#allocation11 + $0x6a0] sm:$0xff]
    %v814 = vld [vmem:[#allocation11 + $0x6a8] sm:$0xff]
    %v815 = vld [vmem:[#allocation11 + $0x6b0] sm:$0xff]
    %v816 = vld [vmem:[#allocation11 + $0x6b8] sm:$0xff]
    %v817 = vld [vmem:[#allocation11 + $0x6c0] sm:$0xff]
    %v818 = vld [vmem:[#allocation11 + $0x6c8] sm:$0xff]
    %v819 = vld [vmem:[#allocation11 + $0x6d0] sm:$0xff]
    %v820 = vld [vmem:[#allocation11 + $0x6d8] sm:$0xff]
    %v821 = vld [vmem:[#allocation11 + $0x6e0] sm:$0xff]
    %v822 = vld [vmem:[#allocation11 + $0x6e8] sm:$0xff]
    %v823 = vld [vmem:[#allocation11 + $0x6f0] sm:$0xff]
    %v824 = vld [vmem:[#allocation11 + $0x6f8] sm:$0xff]
    %v825 = vld [vmem:[#allocation11 + $0x700] sm:$0xff]
    %v826 = vld [vmem:[#allocation11 + $0x708] sm:$0xff]
    %v827 = vld [vmem:[#allocation11 + $0x710] sm:$0xff]
    %v828 = vld [vmem:[#allocation11 + $0x718] sm:$0xff]
    %v829 = vld [vmem:[#allocation11 + $0x720] sm:$0xff]
    %v830 = vld [vmem:[#allocation11 + $0x728] sm:$0xff]
    %v831 = vld [vmem:[#allocation11 + $0x730] sm:$0xff]
    %v832 = vld [vmem:[#allocation11 + $0x738] sm:$0xff]
    %v833 = vld [vmem:[#allocation11 + $0x740] sm:$0xff]
    %v834 = vld [vmem:[#allocation11 + $0x748] sm:$0xff]
    %v835 = vld [vmem:[#allocation11 + $0x750] sm:$0xff]
    %v836 = vld [vmem:[#allocation11 + $0x758] sm:$0xff]
    %v837 = vld [vmem:[#allocation11 + $0x760] sm:$0xff]
    %v838 = vld [vmem:[#allocation11 + $0x768] sm:$0xff]
    %v839 = vld [vmem:[#allocation11 + $0x770] sm:$0xff]
    %v840 = vld [vmem:[#allocation11 + $0x778] sm:$0xff]
    %v841 = vld [vmem:[#allocation11 + $0x780] sm:$0xff]
    %v842 = vld [vmem:[#allocation11 + $0x788] sm:$0xff]
    %v843 = vld [vmem:[#allocation11 + $0x790] sm:$0xff]
    %v844 = vld [vmem:[#allocation11 + $0x798] sm:$0xff]
    %v845 = vld [vmem:[#allocation11 + $0x7a0] sm:$0xff]
    %v846 = vld [vmem:[#allocation11 + $0x7a8] sm:$0xff]
    %v847 = vld [vmem:[#allocation11 + $0x7b0] sm:$0xff]
    %v848 = vld [vmem:[#allocation11 + $0x7b8] sm:$0xff]
    %v849 = vld [vmem:[#allocation11 + $0x7c0] sm:$0xff]
    %v850 = vld [vmem:[#allocation11 + $0x7c8] sm:$0xff]
    %v851 = vld [vmem:[#allocation11 + $0x7d0] sm:$0xff]
    %v852 = vld [vmem:[#allocation11 + $0x7d8] sm:$0xff]
    %v853 = vld [vmem:[#allocation11 + $0x7e0] sm:$0xff]
    %v854 = vld [vmem:[#allocation11 + $0x7e8] sm:$0xff]
    %v855 = vld [vmem:[#allocation11 + $0x7f0] sm:$0xff]
    %v856 = vld [vmem:[#allocation11 + $0x7f8] sm:$0xff]
    %v857 = vld [vmem:[#allocation11 + $0x800] sm:$0xff]
    %v858 = vld [vmem:[#allocation11 + $0x808] sm:$0xff]
    %v859 = vld [vmem:[#allocation11 + $0x810] sm:$0xff]
    %v860 = vld [vmem:[#allocation11 + $0x818] sm:$0xff]
    %v861 = vld [vmem:[#allocation11 + $0x820] sm:$0xff]
    %v862 = vld [vmem:[#allocation11 + $0x828] sm:$0xff]
    %v863 = vld [vmem:[#allocation11 + $0x830] sm:$0xff]
    %v864 = vld [vmem:[#allocation11 + $0x838] sm:$0xff]
    %v865 = vld [vmem:[#allocation11 + $0x840] sm:$0xff]
    %v866 = vld [vmem:[#allocation11 + $0x848] sm:$0xff]
    %v867 = vld [vmem:[#allocation11 + $0x850] sm:$0xff]
    %v868 = vld [vmem:[#allocation11 + $0x858] sm:$0xff]
    %v869 = vld [vmem:[#allocation11 + $0x860] sm:$0xff]
    %v870 = vld [vmem:[#allocation11 + $0x868] sm:$0xff]
    %v871 = vld [vmem:[#allocation11 + $0x870] sm:$0xff]
    %v872 = vld [vmem:[#allocation11 + $0x878] sm:$0xff]
    %v873 = vld [vmem:[#allocation11 + $0x880] sm:$0xff]
    %v874 = vld [vmem:[#allocation11 + $0x888] sm:$0xff]
    %v875 = vld [vmem:[#allocation11 + $0x890] sm:$0xff]
    %v876 = vld [vmem:[#allocation11 + $0x898] sm:$0xff]
    %v877 = vld [vmem:[#allocation11 + $0x8a0] sm:$0xff]
    %v878 = vld [vmem:[#allocation11 + $0x8a8] sm:$0xff]
    %v879 = vld [vmem:[#allocation11 + $0x8b0] sm:$0xff]
    %v880 = vld [vmem:[#allocation11 + $0x8b8] sm:$0xff]
    %v881 = vld [vmem:[#allocation11 + $0x8c0] sm:$0xff]
    %v882 = vld [vmem:[#allocation11 + $0x8c8] sm:$0xff]
    %v883 = vld [vmem:[#allocation11 + $0x8d0] sm:$0xff]
    %v884 = vld [vmem:[#allocation11 + $0x8d8] sm:$0xff]
    %v885 = vld [vmem:[#allocation11 + $0x8e0] sm:$0xff]
    %v886 = vld [vmem:[#allocation11 + $0x8e8] sm:$0xff]
    %v887 = vld [vmem:[#allocation11 + $0x8f0] sm:$0xff]
    %v888 = vld [vmem:[#allocation11 + $0x8f8] sm:$0xff]
    %v889 = vld [vmem:[#allocation11 + $0x900] sm:$0xff]
    %v890 = vld [vmem:[#allocation11 + $0x908] sm:$0xff]
    %v891 = vld [vmem:[#allocation11 + $0x910] sm:$0xff]
    %v892 = vld [vmem:[#allocation11 + $0x918] sm:$0xff]
    %v893 = vld [vmem:[#allocation11 + $0x920] sm:$0xff]
    %v894 = vld [vmem:[#allocation11 + $0x928] sm:$0xff]
    %v895 = vld [vmem:[#allocation11 + $0x930] sm:$0xff]
    %v896 = vld [vmem:[#allocation11 + $0x938] sm:$0xff]
    %v897 = vld [vmem:[#allocation11 + $0x940] sm:$0xff]
    %v898 = vld [vmem:[#allocation11 + $0x948] sm:$0xff]
    %v899 = vld [vmem:[#allocation11 + $0x950] sm:$0xff]
    %v900 = vld [vmem:[#allocation11 + $0x958] sm:$0xff]
    %v901 = vld [vmem:[#allocation11 + $0x960] sm:$0xff]
    %v902 = vld [vmem:[#allocation11 + $0x968] sm:$0xff]
    %v903 = vld [vmem:[#allocation11 + $0x970] sm:$0xff]
    %v904 = vld [vmem:[#allocation11 + $0x978] sm:$0xff]
    %v905 = vld [vmem:[#allocation11 + $0x980] sm:$0xff]
    %v906 = vld [vmem:[#allocation11 + $0x988] sm:$0xff]
    %v907 = vld [vmem:[#allocation11 + $0x990] sm:$0xff]
    %v908 = vld [vmem:[#allocation11 + $0x998] sm:$0xff]
    %v909 = vld [vmem:[#allocation11 + $0x9a0] sm:$0xff]
    %v910 = vld [vmem:[#allocation11 + $0x9a8] sm:$0xff]
    %v911 = vld [vmem:[#allocation11 + $0x9b0] sm:$0xff]
    %v912 = vld [vmem:[#allocation11 + $0x9b8] sm:$0xff]
    %v913 = vld [vmem:[#allocation11 + $0x9c0] sm:$0xff]
    %v914 = vld [vmem:[#allocation11 + $0x9c8] sm:$0xff]
    %v915 = vld [vmem:[#allocation11 + $0x9d0] sm:$0xff]
    %v916 = vld [vmem:[#allocation11 + $0x9d8] sm:$0xff]
    %v917 = vld [vmem:[#allocation11 + $0x9e0] sm:$0xff]
    %v918 = vld [vmem:[#allocation11 + $0x9e8] sm:$0xff]
    %v919 = vld [vmem:[#allocation11 + $0x9f0] sm:$0xff]
    %v920 = vld [vmem:[#allocation11 + $0x9f8] sm:$0xff]
    %v921 = vld [vmem:[#allocation11 + $0xa00] sm:$0xff]
    %v922 = vld [vmem:[#allocation11 + $0xa08] sm:$0xff]
    %v923 = vld [vmem:[#allocation11 + $0xa10] sm:$0xff]
    %v924 = vld [vmem:[#allocation11 + $0xa18] sm:$0xff]
    %v925 = vld [vmem:[#allocation11 + $0xa20] sm:$0xff]
    %v926 = vld [vmem:[#allocation11 + $0xa28] sm:$0xff]
    %v927 = vld [vmem:[#allocation11 + $0xa30] sm:$0xff]
    %v928 = vld [vmem:[#allocation11 + $0xa38] sm:$0xff]
    %v929 = vld [vmem:[#allocation11 + $0xa40] sm:$0xff]
    %v930 = vld [vmem:[#allocation11 + $0xa48] sm:$0xff]
    %v931 = vld [vmem:[#allocation11 + $0xa50] sm:$0xff]
    %v932 = vld [vmem:[#allocation11 + $0xa58] sm:$0xff]
    %v933 = vld [vmem:[#allocation11 + $0xa60] sm:$0xff]
    %v934 = vld [vmem:[#allocation11 + $0xa68] sm:$0xff]
    %v935 = vld [vmem:[#allocation11 + $0xa70] sm:$0xff]
    %v936 = vld [vmem:[#allocation11 + $0xa78] sm:$0xff]
    %v937 = vld [vmem:[#allocation11 + $0xa80] sm:$0xff]
    %v938 = vld [vmem:[#allocation11 + $0xa88] sm:$0xff]
    %v939 = vld [vmem:[#allocation11 + $0xa90] sm:$0xff]
    %v940 = vld [vmem:[#allocation11 + $0xa98] sm:$0xff]
    %v941 = vld [vmem:[#allocation11 + $0xaa0] sm:$0xff]
    %v942 = vld [vmem:[#allocation11 + $0xaa8] sm:$0xff]
    %v943 = vld [vmem:[#allocation11 + $0xab0] sm:$0xff]
    %v944 = vld [vmem:[#allocation11 + $0xab8] sm:$0xff]
    %v945 = vld [vmem:[#allocation11 + $0xac0] sm:$0xff]
    %v946 = vld [vmem:[#allocation11 + $0xac8] sm:$0xff]
    %v947 = vld [vmem:[#allocation11 + $0xad0] sm:$0xff]
    %v948 = vld [vmem:[#allocation11 + $0xad8] sm:$0xff]
    %v949 = vld [vmem:[#allocation11 + $0xae0] sm:$0xff]
    %v950 = vld [vmem:[#allocation11 + $0xae8] sm:$0xff]
    %v951 = vld [vmem:[#allocation11 + $0xaf0] sm:$0xff]
    %v952 = vld [vmem:[#allocation11 + $0xaf8] sm:$0xff]
    %v953 = vld [vmem:[#allocation11 + $0xb00] sm:$0xff]
    %v954 = vld [vmem:[#allocation11 + $0xb08] sm:$0xff]
    %v955 = vld [vmem:[#allocation11 + $0xb10] sm:$0xff]
    %v956 = vld [vmem:[#allocation11 + $0xb18] sm:$0xff]
    %v957 = vld [vmem:[#allocation11 + $0xb20] sm:$0xff]
    %v958 = vld [vmem:[#allocation11 + $0xb28] sm:$0xff]
    %v959 = vld [vmem:[#allocation11 + $0xb30] sm:$0xff]
    %v960 = vld [vmem:[#allocation11 + $0xb38] sm:$0xff]
    %v961 = vld [vmem:[#allocation11 + $0xb40] sm:$0xff]
    %v962 = vld [vmem:[#allocation11 + $0xb48] sm:$0xff]
    %v963 = vld [vmem:[#allocation11 + $0xb50] sm:$0xff]
    %v964 = vld [vmem:[#allocation11 + $0xb58] sm:$0xff]
    %v965 = vld [vmem:[#allocation11 + $0xb60] sm:$0xff]
    %v966 = vld [vmem:[#allocation11 + $0xb68] sm:$0xff]
    %v967 = vld [vmem:[#allocation11 + $0xb70] sm:$0xff]
    %v968 = vld [vmem:[#allocation11 + $0xb78] sm:$0xff]
    %v969 = vld [vmem:[#allocation11 + $0xb80] sm:$0xff]
    %v970 = vld [vmem:[#allocation11 + $0xb88] sm:$0xff]
    %v971 = vld [vmem:[#allocation11 + $0xb90] sm:$0xff]
    %v972 = vld [vmem:[#allocation11 + $0xb98] sm:$0xff]
    %v973 = vld [vmem:[#allocation11 + $0xba0] sm:$0xff]
    %v974 = vld [vmem:[#allocation11 + $0xba8] sm:$0xff]
    %v975 = vld [vmem:[#allocation11 + $0xbb0] sm:$0xff]
    %v976 = vld [vmem:[#allocation11 + $0xbb8] sm:$0xff]
    %v977 = vld [vmem:[#allocation11 + $0xbc0] sm:$0xff]
    %v978 = vld [vmem:[#allocation11 + $0xbc8] sm:$0xff]
    %v979 = vld [vmem:[#allocation11 + $0xbd0] sm:$0xff]
    %v980 = vld [vmem:[#allocation11 + $0xbd8] sm:$0xff]
    %v981 = vld [vmem:[#allocation11 + $0xbe0] sm:$0xff]
    %v982 = vld [vmem:[#allocation11 + $0xbe8] sm:$0xff]
    %v983 = vld [vmem:[#allocation11 + $0xbf0] sm:$0xff]
    %v984 = vld [vmem:[#allocation11 + $0xbf8] sm:$0xff]
    %v985 = vld [vmem:[#allocation13] sm:$0xff]
    %v986 = vld [vmem:[#allocation13 + $0x8] sm:$0xf]
    %v987 = vpack.c.bf16 %v597, %v597
    %v988 = vpack.c.bf16 %v598, %v598
    %v989 = vpack.c.bf16 %v599, %v599
    %v990 = vpack.c.bf16 %v600, %v600
    %v993 = vlaneseq
    %v994 = vshrl.u32 %v993, 7
    %v995 = vsub.s32 0, %v994
    %v996 = vrot.slane %v985, %v995
    %v997 = vlaneseq
    %v998 = vshrl.u32 %v997, 7
    %v999 = vsub.s32 1, %v998
    %v1000 = vrot.slane %v985, %v999
    %v1001 = vlaneseq
    %v1002 = vshrl.u32 %v1001, 7
    %v1003 = vsub.s32 2, %v1002
    %v1004 = vrot.slane %v985, %v1003
    %v1005 = vlaneseq
    %v1006 = vshrl.u32 %v1005, 7
    %v1007 = vsub.s32 3, %v1006
    %v1008 = vrot.slane %v985, %v1007
    %v1009 = vlaneseq
    %v1010 = vshrl.u32 %v1009, 7
    %v1011 = vsub.s32 4, %v1010
    %v1012 = vrot.slane %v985, %v1011
    %v1013 = vlaneseq
    %v1014 = vshrl.u32 %v1013, 7
    %v1015 = vsub.s32 5, %v1014
    %v1016 = vrot.slane %v985, %v1015
    %v1017 = vlaneseq
    %v1018 = vshrl.u32 %v1017, 7
    %v1019 = vsub.s32 6, %v1018
    %v1020 = vrot.slane %v985, %v1019
    %v1021 = vlaneseq
    %v1022 = vshrl.u32 %v1021, 7
    %v1023 = vsub.s32 7, %v1022
    %v1024 = vrot.slane %v985, %v1023
    %v1025 = vlaneseq
    %v1026 = vshrl.u32 %v1025, 7
    %v1027 = vsub.s32 0, %v1026
    %v1028 = vrot.slane %v986, %v1027
    %v1029 = vlaneseq
    %v1030 = vshrl.u32 %v1029, 7
    %v1031 = vsub.s32 1, %v1030
    %v1032 = vrot.slane %v986, %v1031
    %v1033 = vlaneseq
    %v1034 = vshrl.u32 %v1033, 7
    %v1035 = vsub.s32 2, %v1034
    %v1036 = vrot.slane %v986, %v1035
    %v1037 = vlaneseq
    %v1038 = vshrl.u32 %v1037, 7
    %v1039 = vsub.s32 3, %v1038
    %v1040 = vrot.slane %v986, %v1039
    %v1437 = vunpack.c.l.b16 %v601
    %v1438 = vunpack.c.h.b16 %v601
    %v1439 = vunpack.c.l.b16 %v602
    %v1440 = vunpack.c.h.b16 %v602
    %v1441 = vunpack.c.l.b16 %v603
    %v1442 = vunpack.c.h.b16 %v603
    %v1443 = vunpack.c.l.b16 %v604
    %v1444 = vunpack.c.h.b16 %v604
    %v1445 = vunpack.c.l.b16 %v605
    %v1446 = vunpack.c.h.b16 %v605
    %v1447 = vunpack.c.l.b16 %v606
    %v1448 = vunpack.c.h.b16 %v606
    %v1449 = vunpack.c.l.b16 %v607
    %v1450 = vunpack.c.h.b16 %v607
    %v1451 = vunpack.c.l.b16 %v608
    %v1452 = vunpack.c.h.b16 %v608
    %v1453 = vunpack.c.l.b16 %v609
    %v1454 = vunpack.c.h.b16 %v609
    %v1455 = vunpack.c.l.b16 %v610
    %v1456 = vunpack.c.h.b16 %v610
    %v1457 = vunpack.c.l.b16 %v611
    %v1458 = vunpack.c.h.b16 %v611
    %v1459 = vunpack.c.l.b16 %v612
    %v1460 = vunpack.c.h.b16 %v612
    %v1461 = vunpack.c.l.b16 %v613
    %v1462 = vunpack.c.h.b16 %v613
    %v1463 = vunpack.c.l.b16 %v614
    %v1464 = vunpack.c.h.b16 %v614
    %v1465 = vunpack.c.l.b16 %v615
    %v1466 = vunpack.c.h.b16 %v615
    %v1467 = vunpack.c.l.b16 %v616
    %v1468 = vunpack.c.h.b16 %v616
    %v1469 = vunpack.c.l.b16 %v617
    %v1470 = vunpack.c.h.b16 %v617
    %v1471 = vunpack.c.l.b16 %v618
    %v1472 = vunpack.c.h.b16 %v618
    %v1473 = vunpack.c.l.b16 %v619
    %v1474 = vunpack.c.h.b16 %v619
    %v1475 = vunpack.c.l.b16 %v620
    %v1476 = vunpack.c.h.b16 %v620
    %v1477 = vunpack.c.l.b16 %v621
    %v1478 = vunpack.c.h.b16 %v621
    %v1479 = vunpack.c.l.b16 %v622
    %v1480 = vunpack.c.h.b16 %v622
    %v1481 = vunpack.c.l.b16 %v623
    %v1482 = vunpack.c.h.b16 %v623
    %v1483 = vunpack.c.l.b16 %v624
    %v1484 = vunpack.c.h.b16 %v624
    %v1485 = vunpack.c.l.b16 %v625
    %v1486 = vunpack.c.h.b16 %v625
    %v1487 = vunpack.c.l.b16 %v626
    %v1488 = vunpack.c.h.b16 %v626
    %v1489 = vunpack.c.l.b16 %v627
    %v1490 = vunpack.c.h.b16 %v627
    %v1491 = vunpack.c.l.b16 %v628
    %v1492 = vunpack.c.h.b16 %v628
    %v1493 = vunpack.c.l.b16 %v629
    %v1494 = vunpack.c.h.b16 %v629
    %v1495 = vunpack.c.l.b16 %v630
    %v1496 = vunpack.c.h.b16 %v630
    %v1497 = vunpack.c.l.b16 %v631
    %v1498 = vunpack.c.h.b16 %v631
    %v1499 = vunpack.c.l.b16 %v632
    %v1500 = vunpack.c.h.b16 %v632
    %v1501 = vunpack.c.l.b16 %v633
    %v1502 = vunpack.c.h.b16 %v633
    %v1503 = vunpack.c.l.b16 %v634
    %v1504 = vunpack.c.h.b16 %v634
    %v1505 = vunpack.c.l.b16 %v635
    %v1506 = vunpack.c.h.b16 %v635
    %v1507 = vunpack.c.l.b16 %v636
    %v1508 = vunpack.c.h.b16 %v636
    %v1509 = vunpack.c.l.b16 %v637
    %v1510 = vunpack.c.h.b16 %v637
    %v1511 = vunpack.c.l.b16 %v638
    %v1512 = vunpack.c.h.b16 %v638
    %v1513 = vunpack.c.l.b16 %v639
    %v1514 = vunpack.c.h.b16 %v639
    %v1515 = vunpack.c.l.b16 %v640
    %v1516 = vunpack.c.h.b16 %v640
    %v1517 = vunpack.c.l.b16 %v641
    %v1518 = vunpack.c.h.b16 %v641
    %v1519 = vunpack.c.l.b16 %v642
    %v1520 = vunpack.c.h.b16 %v642
    %v1521 = vunpack.c.l.b16 %v643
    %v1522 = vunpack.c.h.b16 %v643
    %v1523 = vunpack.c.l.b16 %v644
    %v1524 = vunpack.c.h.b16 %v644
    %v1525 = vunpack.c.l.b16 %v645
    %v1526 = vunpack.c.h.b16 %v645
    %v1527 = vunpack.c.l.b16 %v646
    %v1528 = vunpack.c.h.b16 %v646
    %v1529 = vunpack.c.l.b16 %v647
    %v1530 = vunpack.c.h.b16 %v647
    %v1531 = vunpack.c.l.b16 %v648
    %v1532 = vunpack.c.h.b16 %v648
    %v1533 = vunpack.c.l.b16 %v649
    %v1534 = vunpack.c.h.b16 %v649
    %v1535 = vunpack.c.l.b16 %v650
    %v1536 = vunpack.c.h.b16 %v650
    %v1537 = vunpack.c.l.b16 %v651
    %v1538 = vunpack.c.h.b16 %v651
    %v1539 = vunpack.c.l.b16 %v652
    %v1540 = vunpack.c.h.b16 %v652
    %v1541 = vunpack.c.l.b16 %v653
    %v1542 = vunpack.c.h.b16 %v653
    %v1543 = vunpack.c.l.b16 %v654
    %v1544 = vunpack.c.h.b16 %v654
    %v1545 = vunpack.c.l.b16 %v655
    %v1546 = vunpack.c.h.b16 %v655
    %v1547 = vunpack.c.l.b16 %v656
    %v1548 = vunpack.c.h.b16 %v656
    %v1549 = vunpack.c.l.b16 %v657
    %v1550 = vunpack.c.h.b16 %v657
    %v1551 = vunpack.c.l.b16 %v658
    %v1552 = vunpack.c.h.b16 %v658
    %v1553 = vunpack.c.l.b16 %v659
    %v1554 = vunpack.c.h.b16 %v659
    %v1555 = vunpack.c.l.b16 %v660
    %v1556 = vunpack.c.h.b16 %v660
    %v1557 = vunpack.c.l.b16 %v661
    %v1558 = vunpack.c.h.b16 %v661
    %v1559 = vunpack.c.l.b16 %v662
    %v1560 = vunpack.c.h.b16 %v662
    %v1561 = vunpack.c.l.b16 %v663
    %v1562 = vunpack.c.h.b16 %v663
    %v1563 = vunpack.c.l.b16 %v664
    %v1564 = vunpack.c.h.b16 %v664
    %v1565 = vunpack.c.l.b16 %v665
    %v1566 = vunpack.c.h.b16 %v665
    %v1567 = vunpack.c.l.b16 %v666
    %v1568 = vunpack.c.h.b16 %v666
    %v1569 = vunpack.c.l.b16 %v667
    %v1570 = vunpack.c.h.b16 %v667
    %v1571 = vunpack.c.l.b16 %v668
    %v1572 = vunpack.c.h.b16 %v668
    %v1573 = vunpack.c.l.b16 %v669
    %v1574 = vunpack.c.h.b16 %v669
    %v1575 = vunpack.c.l.b16 %v670
    %v1576 = vunpack.c.h.b16 %v670
    %v1577 = vunpack.c.l.b16 %v671
    %v1578 = vunpack.c.h.b16 %v671
    %v1579 = vunpack.c.l.b16 %v672
    %v1580 = vunpack.c.h.b16 %v672
    %v1581 = vunpack.c.l.b16 %v673
    %v1582 = vunpack.c.h.b16 %v673
    %v1583 = vunpack.c.l.b16 %v674
    %v1584 = vunpack.c.h.b16 %v674
    %v1585 = vunpack.c.l.b16 %v675
    %v1586 = vunpack.c.h.b16 %v675
    %v1587 = vunpack.c.l.b16 %v676
    %v1588 = vunpack.c.h.b16 %v676
    %v1589 = vunpack.c.l.b16 %v677
    %v1590 = vunpack.c.h.b16 %v677
    %v1591 = vunpack.c.l.b16 %v678
    %v1592 = vunpack.c.h.b16 %v678
    %v1593 = vunpack.c.l.b16 %v679
    %v1594 = vunpack.c.h.b16 %v679
    %v1595 = vunpack.c.l.b16 %v680
    %v1596 = vunpack.c.h.b16 %v680
    %v1597 = vunpack.c.l.b16 %v681
    %v1598 = vunpack.c.h.b16 %v681
    %v1599 = vunpack.c.l.b16 %v682
    %v1600 = vunpack.c.h.b16 %v682
    %v1601 = vunpack.c.l.b16 %v683
    %v1602 = vunpack.c.h.b16 %v683
    %v1603 = vunpack.c.l.b16 %v684
    %v1604 = vunpack.c.h.b16 %v684
    %v1605 = vunpack.c.l.b16 %v685
    %v1606 = vunpack.c.h.b16 %v685
    %v1607 = vunpack.c.l.b16 %v686
    %v1608 = vunpack.c.h.b16 %v686
    %v1609 = vunpack.c.l.b16 %v687
    %v1610 = vunpack.c.h.b16 %v687
    %v1611 = vunpack.c.l.b16 %v688
    %v1612 = vunpack.c.h.b16 %v688
    %v1613 = vunpack.c.l.b16 %v689
    %v1614 = vunpack.c.h.b16 %v689
    %v1615 = vunpack.c.l.b16 %v690
    %v1616 = vunpack.c.h.b16 %v690
    %v1617 = vunpack.c.l.b16 %v691
    %v1618 = vunpack.c.h.b16 %v691
    %v1619 = vunpack.c.l.b16 %v692
    %v1620 = vunpack.c.h.b16 %v692
    %v1621 = vunpack.c.l.b16 %v693
    %v1622 = vunpack.c.h.b16 %v693
    %v1623 = vunpack.c.l.b16 %v694
    %v1624 = vunpack.c.h.b16 %v694
    %v1625 = vunpack.c.l.b16 %v695
    %v1626 = vunpack.c.h.b16 %v695
    %v1627 = vunpack.c.l.b16 %v696
    %v1628 = vunpack.c.h.b16 %v696
    %v1629 = vunpack.c.l.b16 %v697
    %v1630 = vunpack.c.h.b16 %v697
    %v1631 = vunpack.c.l.b16 %v698
    %v1632 = vunpack.c.h.b16 %v698
    %v1633 = vunpack.c.l.b16 %v699
    %v1634 = vunpack.c.h.b16 %v699
    %v1635 = vunpack.c.l.b16 %v700
    %v1636 = vunpack.c.h.b16 %v700
    %v1637 = vunpack.c.l.b16 %v701
    %v1638 = vunpack.c.h.b16 %v701
    %v1639 = vunpack.c.l.b16 %v702
    %v1640 = vunpack.c.h.b16 %v702
    %v1641 = vunpack.c.l.b16 %v703
    %v1642 = vunpack.c.h.b16 %v703
    %v1643 = vunpack.c.l.b16 %v704
    %v1644 = vunpack.c.h.b16 %v704
    %v1645 = vunpack.c.l.b16 %v705
    %v1646 = vunpack.c.h.b16 %v705
    %v1647 = vunpack.c.l.b16 %v706
    %v1648 = vunpack.c.h.b16 %v706
    %v1649 = vunpack.c.l.b16 %v707
    %v1650 = vunpack.c.h.b16 %v707
    %v1651 = vunpack.c.l.b16 %v708
    %v1652 = vunpack.c.h.b16 %v708
    %v1653 = vunpack.c.l.b16 %v709
    %v1654 = vunpack.c.h.b16 %v709
    %v1655 = vunpack.c.l.b16 %v710
    %v1656 = vunpack.c.h.b16 %v710
    %v1657 = vunpack.c.l.b16 %v711
    %v1658 = vunpack.c.h.b16 %v711
    %v1659 = vunpack.c.l.b16 %v712
    %v1660 = vunpack.c.h.b16 %v712
    %v1661 = vunpack.c.l.b16 %v713
    %v1662 = vunpack.c.h.b16 %v713
    %v1663 = vunpack.c.l.b16 %v714
    %v1664 = vunpack.c.h.b16 %v714
    %v1665 = vunpack.c.l.b16 %v715
    %v1666 = vunpack.c.h.b16 %v715
    %v1667 = vunpack.c.l.b16 %v716
    %v1668 = vunpack.c.h.b16 %v716
    %v1669 = vunpack.c.l.b16 %v717
    %v1670 = vunpack.c.h.b16 %v717
    %v1671 = vunpack.c.l.b16 %v718
    %v1672 = vunpack.c.h.b16 %v718
    %v1673 = vunpack.c.l.b16 %v719
    %v1674 = vunpack.c.h.b16 %v719
    %v1675 = vunpack.c.l.b16 %v720
    %v1676 = vunpack.c.h.b16 %v720
    %v1677 = vunpack.c.l.b16 %v721
    %v1678 = vunpack.c.h.b16 %v721
    %v1679 = vunpack.c.l.b16 %v722
    %v1680 = vunpack.c.h.b16 %v722
    %v1681 = vunpack.c.l.b16 %v723
    %v1682 = vunpack.c.h.b16 %v723
    %v1683 = vunpack.c.l.b16 %v724
    %v1684 = vunpack.c.h.b16 %v724
    %v1685 = vunpack.c.l.b16 %v725
    %v1686 = vunpack.c.h.b16 %v725
    %v1687 = vunpack.c.l.b16 %v726
    %v1688 = vunpack.c.h.b16 %v726
    %v1689 = vunpack.c.l.b16 %v727
    %v1690 = vunpack.c.h.b16 %v727
    %v1691 = vunpack.c.l.b16 %v728
    %v1692 = vunpack.c.h.b16 %v728
    %v1693 = vunpack.c.l.b16 %v729
    %v1694 = vunpack.c.h.b16 %v729
    %v1695 = vunpack.c.l.b16 %v730
    %v1696 = vunpack.c.h.b16 %v730
    %v1697 = vunpack.c.l.b16 %v731
    %v1698 = vunpack.c.h.b16 %v731
    %v1699 = vunpack.c.l.b16 %v732
    %v1700 = vunpack.c.h.b16 %v732
    %v1701 = vunpack.c.l.b16 %v733
    %v1702 = vunpack.c.h.b16 %v733
    %v1703 = vunpack.c.l.b16 %v734
    %v1704 = vunpack.c.h.b16 %v734
    %v1705 = vunpack.c.l.b16 %v735
    %v1706 = vunpack.c.h.b16 %v735
    %v1707 = vunpack.c.l.b16 %v736
    %v1708 = vunpack.c.h.b16 %v736
    %v1709 = vunpack.c.l.b16 %v737
    %v1710 = vunpack.c.h.b16 %v737
    %v1711 = vunpack.c.l.b16 %v738
    %v1712 = vunpack.c.h.b16 %v738
    %v1713 = vunpack.c.l.b16 %v739
    %v1714 = vunpack.c.h.b16 %v739
    %v1715 = vunpack.c.l.b16 %v740
    %v1716 = vunpack.c.h.b16 %v740
    %v1717 = vunpack.c.l.b16 %v741
    %v1718 = vunpack.c.h.b16 %v741
    %v1719 = vunpack.c.l.b16 %v742
    %v1720 = vunpack.c.h.b16 %v742
    %v1721 = vunpack.c.l.b16 %v743
    %v1722 = vunpack.c.h.b16 %v743
    %v1723 = vunpack.c.l.b16 %v744
    %v1724 = vunpack.c.h.b16 %v744
    %v1725 = vunpack.c.l.b16 %v745
    %v1726 = vunpack.c.h.b16 %v745
    %v1727 = vunpack.c.l.b16 %v746
    %v1728 = vunpack.c.h.b16 %v746
    %v1729 = vunpack.c.l.b16 %v747
    %v1730 = vunpack.c.h.b16 %v747
    %v1731 = vunpack.c.l.b16 %v748
    %v1732 = vunpack.c.h.b16 %v748
    %v1733 = vunpack.c.l.b16 %v749
    %v1734 = vunpack.c.h.b16 %v749
    %v1735 = vunpack.c.l.b16 %v750
    %v1736 = vunpack.c.h.b16 %v750
    %v1737 = vunpack.c.l.b16 %v751
    %v1738 = vunpack.c.h.b16 %v751
    %v1739 = vunpack.c.l.b16 %v752
    %v1740 = vunpack.c.h.b16 %v752
    %v1741 = vunpack.c.l.b16 %v753
    %v1742 = vunpack.c.h.b16 %v753
    %v1743 = vunpack.c.l.b16 %v754
    %v1744 = vunpack.c.h.b16 %v754
    %v1745 = vunpack.c.l.b16 %v755
    %v1746 = vunpack.c.h.b16 %v755
    %v1747 = vunpack.c.l.b16 %v756
    %v1748 = vunpack.c.h.b16 %v756
    %v1749 = vunpack.c.l.b16 %v757
    %v1750 = vunpack.c.h.b16 %v757
    %v1751 = vunpack.c.l.b16 %v758
    %v1752 = vunpack.c.h.b16 %v758
    %v1753 = vunpack.c.l.b16 %v759
    %v1754 = vunpack.c.h.b16 %v759
    %v1755 = vunpack.c.l.b16 %v760
    %v1756 = vunpack.c.h.b16 %v760
    %v1757 = vunpack.c.l.b16 %v761
    %v1758 = vunpack.c.h.b16 %v761
    %v1759 = vunpack.c.l.b16 %v762
    %v1760 = vunpack.c.h.b16 %v762
    %v1761 = vunpack.c.l.b16 %v763
    %v1762 = vunpack.c.h.b16 %v763
    %v1763 = vunpack.c.l.b16 %v764
    %v1764 = vunpack.c.h.b16 %v764
    %v1765 = vunpack.c.l.b16 %v765
    %v1766 = vunpack.c.h.b16 %v765
    %v1767 = vunpack.c.l.b16 %v766
    %v1768 = vunpack.c.h.b16 %v766
    %v1769 = vunpack.c.l.b16 %v767
    %v1770 = vunpack.c.h.b16 %v767
    %v1771 = vunpack.c.l.b16 %v768
    %v1772 = vunpack.c.h.b16 %v768
    %v1773 = vunpack.c.l.b16 %v769
    %v1774 = vunpack.c.h.b16 %v769
    %v1775 = vunpack.c.l.b16 %v770
    %v1776 = vunpack.c.h.b16 %v770
    %v1777 = vunpack.c.l.b16 %v771
    %v1778 = vunpack.c.h.b16 %v771
    %v1779 = vunpack.c.l.b16 %v772
    %v1780 = vunpack.c.h.b16 %v772
    %v1781 = vunpack.c.l.b16 %v773
    %v1782 = vunpack.c.h.b16 %v773
    %v1783 = vunpack.c.l.b16 %v774
    %v1784 = vunpack.c.h.b16 %v774
    %v1785 = vunpack.c.l.b16 %v775
    %v1786 = vunpack.c.h.b16 %v775
    %v1787 = vunpack.c.l.b16 %v776
    %v1788 = vunpack.c.h.b16 %v776
    %v1789 = vunpack.c.l.b16 %v777
    %v1790 = vunpack.c.h.b16 %v777
    %v1791 = vunpack.c.l.b16 %v778
    %v1792 = vunpack.c.h.b16 %v778
    %v1793 = vunpack.c.l.b16 %v779
    %v1794 = vunpack.c.h.b16 %v779
    %v1795 = vunpack.c.l.b16 %v780
    %v1796 = vunpack.c.h.b16 %v780
    %v1797 = vunpack.c.l.b16 %v781
    %v1798 = vunpack.c.h.b16 %v781
    %v1799 = vunpack.c.l.b16 %v782
    %v1800 = vunpack.c.h.b16 %v782
    %v1801 = vunpack.c.l.b16 %v783
    %v1802 = vunpack.c.h.b16 %v783
    %v1803 = vunpack.c.l.b16 %v784
    %v1804 = vunpack.c.h.b16 %v784
    %v1805 = vunpack.c.l.b16 %v785
    %v1806 = vunpack.c.h.b16 %v785
    %v1807 = vunpack.c.l.b16 %v786
    %v1808 = vunpack.c.h.b16 %v786
    %v1809 = vunpack.c.l.b16 %v787
    %v1810 = vunpack.c.h.b16 %v787
    %v1811 = vunpack.c.l.b16 %v788
    %v1812 = vunpack.c.h.b16 %v788
    %v1813 = vunpack.c.l.b16 %v789
    %v1814 = vunpack.c.h.b16 %v789
    %v1815 = vunpack.c.l.b16 %v790
    %v1816 = vunpack.c.h.b16 %v790
    %v1817 = vunpack.c.l.b16 %v791
    %v1818 = vunpack.c.h.b16 %v791
    %v1819 = vunpack.c.l.b16 %v792
    %v1820 = vunpack.c.h.b16 %v792
    %v1821 = vunpack.c.l.b16 %v793
    %v1822 = vunpack.c.h.b16 %v793
    %v1823 = vunpack.c.l.b16 %v794
    %v1824 = vunpack.c.h.b16 %v794
    %v1825 = vunpack.c.l.b16 %v795
    %v1826 = vunpack.c.h.b16 %v795
    %v1827 = vunpack.c.l.b16 %v796
    %v1828 = vunpack.c.h.b16 %v796
    %v1829 = vunpack.c.l.b16 %v797
    %v1830 = vunpack.c.h.b16 %v797
    %v1831 = vunpack.c.l.b16 %v798
    %v1832 = vunpack.c.h.b16 %v798
    %v1833 = vunpack.c.l.b16 %v799
    %v1834 = vunpack.c.h.b16 %v799
    %v1835 = vunpack.c.l.b16 %v800
    %v1836 = vunpack.c.h.b16 %v800
    %v1837 = vunpack.c.l.b16 %v801
    %v1838 = vunpack.c.h.b16 %v801
    %v1839 = vunpack.c.l.b16 %v802
    %v1840 = vunpack.c.h.b16 %v802
    %v1841 = vunpack.c.l.b16 %v803
    %v1842 = vunpack.c.h.b16 %v803
    %v1843 = vunpack.c.l.b16 %v804
    %v1844 = vunpack.c.h.b16 %v804
    %v1845 = vunpack.c.l.b16 %v805
    %v1846 = vunpack.c.h.b16 %v805
    %v1847 = vunpack.c.l.b16 %v806
    %v1848 = vunpack.c.h.b16 %v806
    %v1849 = vunpack.c.l.b16 %v807
    %v1850 = vunpack.c.h.b16 %v807
    %v1851 = vunpack.c.l.b16 %v808
    %v1852 = vunpack.c.h.b16 %v808
    %v1853 = vunpack.c.l.b16 %v809
    %v1854 = vunpack.c.h.b16 %v809
    %v1855 = vunpack.c.l.b16 %v810
    %v1856 = vunpack.c.h.b16 %v810
    %v1857 = vunpack.c.l.b16 %v811
    %v1858 = vunpack.c.h.b16 %v811
    %v1859 = vunpack.c.l.b16 %v812
    %v1860 = vunpack.c.h.b16 %v812
    %v1861 = vunpack.c.l.b16 %v813
    %v1862 = vunpack.c.h.b16 %v813
    %v1863 = vunpack.c.l.b16 %v814
    %v1864 = vunpack.c.h.b16 %v814
    %v1865 = vunpack.c.l.b16 %v815
    %v1866 = vunpack.c.h.b16 %v815
    %v1867 = vunpack.c.l.b16 %v816
    %v1868 = vunpack.c.h.b16 %v816
    %v1869 = vunpack.c.l.b16 %v817
    %v1870 = vunpack.c.h.b16 %v817
    %v1871 = vunpack.c.l.b16 %v818
    %v1872 = vunpack.c.h.b16 %v818
    %v1873 = vunpack.c.l.b16 %v819
    %v1874 = vunpack.c.h.b16 %v819
    %v1875 = vunpack.c.l.b16 %v820
    %v1876 = vunpack.c.h.b16 %v820
    %v1877 = vunpack.c.l.b16 %v821
    %v1878 = vunpack.c.h.b16 %v821
    %v1879 = vunpack.c.l.b16 %v822
    %v1880 = vunpack.c.h.b16 %v822
    %v1881 = vunpack.c.l.b16 %v823
    %v1882 = vunpack.c.h.b16 %v823
    %v1883 = vunpack.c.l.b16 %v824
    %v1884 = vunpack.c.h.b16 %v824
    %v1885 = vunpack.c.l.b16 %v825
    %v1886 = vunpack.c.h.b16 %v825
    %v1887 = vunpack.c.l.b16 %v826
    %v1888 = vunpack.c.h.b16 %v826
    %v1889 = vunpack.c.l.b16 %v827
    %v1890 = vunpack.c.h.b16 %v827
    %v1891 = vunpack.c.l.b16 %v828
    %v1892 = vunpack.c.h.b16 %v828
    %v1893 = vunpack.c.l.b16 %v829
    %v1894 = vunpack.c.h.b16 %v829
    %v1895 = vunpack.c.l.b16 %v830
    %v1896 = vunpack.c.h.b16 %v830
    %v1897 = vunpack.c.l.b16 %v831
    %v1898 = vunpack.c.h.b16 %v831
    %v1899 = vunpack.c.l.b16 %v832
    %v1900 = vunpack.c.h.b16 %v832
    %v1901 = vunpack.c.l.b16 %v833
    %v1902 = vunpack.c.h.b16 %v833
    %v1903 = vunpack.c.l.b16 %v834
    %v1904 = vunpack.c.h.b16 %v834
    %v1905 = vunpack.c.l.b16 %v835
    %v1906 = vunpack.c.h.b16 %v835
    %v1907 = vunpack.c.l.b16 %v836
    %v1908 = vunpack.c.h.b16 %v836
    %v1909 = vunpack.c.l.b16 %v837
    %v1910 = vunpack.c.h.b16 %v837
    %v1911 = vunpack.c.l.b16 %v838
    %v1912 = vunpack.c.h.b16 %v838
    %v1913 = vunpack.c.l.b16 %v839
    %v1914 = vunpack.c.h.b16 %v839
    %v1915 = vunpack.c.l.b16 %v840
    %v1916 = vunpack.c.h.b16 %v840
    %v1917 = vunpack.c.l.b16 %v841
    %v1918 = vunpack.c.h.b16 %v841
    %v1919 = vunpack.c.l.b16 %v842
    %v1920 = vunpack.c.h.b16 %v842
    %v1921 = vunpack.c.l.b16 %v843
    %v1922 = vunpack.c.h.b16 %v843
    %v1923 = vunpack.c.l.b16 %v844
    %v1924 = vunpack.c.h.b16 %v844
    %v1925 = vunpack.c.l.b16 %v845
    %v1926 = vunpack.c.h.b16 %v845
    %v1927 = vunpack.c.l.b16 %v846
    %v1928 = vunpack.c.h.b16 %v846
    %v1929 = vunpack.c.l.b16 %v847
    %v1930 = vunpack.c.h.b16 %v847
    %v1931 = vunpack.c.l.b16 %v848
    %v1932 = vunpack.c.h.b16 %v848
    %v1933 = vunpack.c.l.b16 %v849
    %v1934 = vunpack.c.h.b16 %v849
    %v1935 = vunpack.c.l.b16 %v850
    %v1936 = vunpack.c.h.b16 %v850
    %v1937 = vunpack.c.l.b16 %v851
    %v1938 = vunpack.c.h.b16 %v851
    %v1939 = vunpack.c.l.b16 %v852
    %v1940 = vunpack.c.h.b16 %v852
    %v1941 = vunpack.c.l.b16 %v853
    %v1942 = vunpack.c.h.b16 %v853
    %v1943 = vunpack.c.l.b16 %v854
    %v1944 = vunpack.c.h.b16 %v854
    %v1945 = vunpack.c.l.b16 %v855
    %v1946 = vunpack.c.h.b16 %v855
    %v1947 = vunpack.c.l.b16 %v856
    %v1948 = vunpack.c.h.b16 %v856
    %v1949 = vunpack.c.l.b16 %v857
    %v1950 = vunpack.c.h.b16 %v857
    %v1951 = vunpack.c.l.b16 %v858
    %v1952 = vunpack.c.h.b16 %v858
    %v1953 = vunpack.c.l.b16 %v859
    %v1954 = vunpack.c.h.b16 %v859
    %v1955 = vunpack.c.l.b16 %v860
    %v1956 = vunpack.c.h.b16 %v860
    %v1957 = vunpack.c.l.b16 %v861
    %v1958 = vunpack.c.h.b16 %v861
    %v1959 = vunpack.c.l.b16 %v862
    %v1960 = vunpack.c.h.b16 %v862
    %v1961 = vunpack.c.l.b16 %v863
    %v1962 = vunpack.c.h.b16 %v863
    %v1963 = vunpack.c.l.b16 %v864
    %v1964 = vunpack.c.h.b16 %v864
    %v1965 = vunpack.c.l.b16 %v865
    %v1966 = vunpack.c.h.b16 %v865
    %v1967 = vunpack.c.l.b16 %v866
    %v1968 = vunpack.c.h.b16 %v866
    %v1969 = vunpack.c.l.b16 %v867
    %v1970 = vunpack.c.h.b16 %v867
    %v1971 = vunpack.c.l.b16 %v868
    %v1972 = vunpack.c.h.b16 %v868
    %v1973 = vunpack.c.l.b16 %v869
    %v1974 = vunpack.c.h.b16 %v869
    %v1975 = vunpack.c.l.b16 %v870
    %v1976 = vunpack.c.h.b16 %v870
    %v1977 = vunpack.c.l.b16 %v871
    %v1978 = vunpack.c.h.b16 %v871
    %v1979 = vunpack.c.l.b16 %v872
    %v1980 = vunpack.c.h.b16 %v872
    %v1981 = vunpack.c.l.b16 %v873
    %v1982 = vunpack.c.h.b16 %v873
    %v1983 = vunpack.c.l.b16 %v874
    %v1984 = vunpack.c.h.b16 %v874
    %v1985 = vunpack.c.l.b16 %v875
    %v1986 = vunpack.c.h.b16 %v875
    %v1987 = vunpack.c.l.b16 %v876
    %v1988 = vunpack.c.h.b16 %v876
    %v1989 = vunpack.c.l.b16 %v877
    %v1990 = vunpack.c.h.b16 %v877
    %v1991 = vunpack.c.l.b16 %v878
    %v1992 = vunpack.c.h.b16 %v878
    %v1993 = vunpack.c.l.b16 %v879
    %v1994 = vunpack.c.h.b16 %v879
    %v1995 = vunpack.c.l.b16 %v880
    %v1996 = vunpack.c.h.b16 %v880
    %v1997 = vunpack.c.l.b16 %v881
    %v1998 = vunpack.c.h.b16 %v881
    %v1999 = vunpack.c.l.b16 %v882
    %v2000 = vunpack.c.h.b16 %v882
    %v2001 = vunpack.c.l.b16 %v883
    %v2002 = vunpack.c.h.b16 %v883
    %v2003 = vunpack.c.l.b16 %v884
    %v2004 = vunpack.c.h.b16 %v884
    %v2005 = vunpack.c.l.b16 %v885
    %v2006 = vunpack.c.h.b16 %v885
    %v2007 = vunpack.c.l.b16 %v886
    %v2008 = vunpack.c.h.b16 %v886
    %v2009 = vunpack.c.l.b16 %v887
    %v2010 = vunpack.c.h.b16 %v887
    %v2011 = vunpack.c.l.b16 %v888
    %v2012 = vunpack.c.h.b16 %v888
    %v2013 = vunpack.c.l.b16 %v889
    %v2014 = vunpack.c.h.b16 %v889
    %v2015 = vunpack.c.l.b16 %v890
    %v2016 = vunpack.c.h.b16 %v890
    %v2017 = vunpack.c.l.b16 %v891
    %v2018 = vunpack.c.h.b16 %v891
    %v2019 = vunpack.c.l.b16 %v892
    %v2020 = vunpack.c.h.b16 %v892
    %v2021 = vunpack.c.l.b16 %v893
    %v2022 = vunpack.c.h.b16 %v893
    %v2023 = vunpack.c.l.b16 %v894
    %v2024 = vunpack.c.h.b16 %v894
    %v2025 = vunpack.c.l.b16 %v895
    %v2026 = vunpack.c.h.b16 %v895
    %v2027 = vunpack.c.l.b16 %v896
    %v2028 = vunpack.c.h.b16 %v896
    %v2029 = vunpack.c.l.b16 %v897
    %v2030 = vunpack.c.h.b16 %v897
    %v2031 = vunpack.c.l.b16 %v898
    %v2032 = vunpack.c.h.b16 %v898
    %v2033 = vunpack.c.l.b16 %v899
    %v2034 = vunpack.c.h.b16 %v899
    %v2035 = vunpack.c.l.b16 %v900
    %v2036 = vunpack.c.h.b16 %v900
    %v2037 = vunpack.c.l.b16 %v901
    %v2038 = vunpack.c.h.b16 %v901
    %v2039 = vunpack.c.l.b16 %v902
    %v2040 = vunpack.c.h.b16 %v902
    %v2041 = vunpack.c.l.b16 %v903
    %v2042 = vunpack.c.h.b16 %v903
    %v2043 = vunpack.c.l.b16 %v904
    %v2044 = vunpack.c.h.b16 %v904
    %v2045 = vunpack.c.l.b16 %v905
    %v2046 = vunpack.c.h.b16 %v905
    %v2047 = vunpack.c.l.b16 %v906
    %v2048 = vunpack.c.h.b16 %v906
    %v2049 = vunpack.c.l.b16 %v907
    %v2050 = vunpack.c.h.b16 %v907
    %v2051 = vunpack.c.l.b16 %v908
    %v2052 = vunpack.c.h.b16 %v908
    %v2053 = vunpack.c.l.b16 %v909
    %v2054 = vunpack.c.h.b16 %v909
    %v2055 = vunpack.c.l.b16 %v910
    %v2056 = vunpack.c.h.b16 %v910
    %v2057 = vunpack.c.l.b16 %v911
    %v2058 = vunpack.c.h.b16 %v911
    %v2059 = vunpack.c.l.b16 %v912
    %v2060 = vunpack.c.h.b16 %v912
    %v2061 = vunpack.c.l.b16 %v913
    %v2062 = vunpack.c.h.b16 %v913
    %v2063 = vunpack.c.l.b16 %v914
    %v2064 = vunpack.c.h.b16 %v914
    %v2065 = vunpack.c.l.b16 %v915
    %v2066 = vunpack.c.h.b16 %v915
    %v2067 = vunpack.c.l.b16 %v916
    %v2068 = vunpack.c.h.b16 %v916
    %v2069 = vunpack.c.l.b16 %v917
    %v2070 = vunpack.c.h.b16 %v917
    %v2071 = vunpack.c.l.b16 %v918
    %v2072 = vunpack.c.h.b16 %v918
    %v2073 = vunpack.c.l.b16 %v919
    %v2074 = vunpack.c.h.b16 %v919
    %v2075 = vunpack.c.l.b16 %v920
    %v2076 = vunpack.c.h.b16 %v920
    %v2077 = vunpack.c.l.b16 %v921
    %v2078 = vunpack.c.h.b16 %v921
    %v2079 = vunpack.c.l.b16 %v922
    %v2080 = vunpack.c.h.b16 %v922
    %v2081 = vunpack.c.l.b16 %v923
    %v2082 = vunpack.c.h.b16 %v923
    %v2083 = vunpack.c.l.b16 %v924
    %v2084 = vunpack.c.h.b16 %v924
    %v2085 = vunpack.c.l.b16 %v925
    %v2086 = vunpack.c.h.b16 %v925
    %v2087 = vunpack.c.l.b16 %v926
    %v2088 = vunpack.c.h.b16 %v926
    %v2089 = vunpack.c.l.b16 %v927
    %v2090 = vunpack.c.h.b16 %v927
    %v2091 = vunpack.c.l.b16 %v928
    %v2092 = vunpack.c.h.b16 %v928
    %v2093 = vunpack.c.l.b16 %v929
    %v2094 = vunpack.c.h.b16 %v929
    %v2095 = vunpack.c.l.b16 %v930
    %v2096 = vunpack.c.h.b16 %v930
    %v2097 = vunpack.c.l.b16 %v931
    %v2098 = vunpack.c.h.b16 %v931
    %v2099 = vunpack.c.l.b16 %v932
    %v2100 = vunpack.c.h.b16 %v932
    %v2101 = vunpack.c.l.b16 %v933
    %v2102 = vunpack.c.h.b16 %v933
    %v2103 = vunpack.c.l.b16 %v934
    %v2104 = vunpack.c.h.b16 %v934
    %v2105 = vunpack.c.l.b16 %v935
    %v2106 = vunpack.c.h.b16 %v935
    %v2107 = vunpack.c.l.b16 %v936
    %v2108 = vunpack.c.h.b16 %v936
    %v2109 = vunpack.c.l.b16 %v937
    %v2110 = vunpack.c.h.b16 %v937
    %v2111 = vunpack.c.l.b16 %v938
    %v2112 = vunpack.c.h.b16 %v938
    %v2113 = vunpack.c.l.b16 %v939
    %v2114 = vunpack.c.h.b16 %v939
    %v2115 = vunpack.c.l.b16 %v940
    %v2116 = vunpack.c.h.b16 %v940
    %v2117 = vunpack.c.l.b16 %v941
    %v2118 = vunpack.c.h.b16 %v941
    %v2119 = vunpack.c.l.b16 %v942
    %v2120 = vunpack.c.h.b16 %v942
    %v2121 = vunpack.c.l.b16 %v943
    %v2122 = vunpack.c.h.b16 %v943
    %v2123 = vunpack.c.l.b16 %v944
    %v2124 = vunpack.c.h.b16 %v944
    %v2125 = vunpack.c.l.b16 %v945
    %v2126 = vunpack.c.h.b16 %v945
    %v2127 = vunpack.c.l.b16 %v946
    %v2128 = vunpack.c.h.b16 %v946
    %v2129 = vunpack.c.l.b16 %v947
    %v2130 = vunpack.c.h.b16 %v947
    %v2131 = vunpack.c.l.b16 %v948
    %v2132 = vunpack.c.h.b16 %v948
    %v2133 = vunpack.c.l.b16 %v949
    %v2134 = vunpack.c.h.b16 %v949
    %v2135 = vunpack.c.l.b16 %v950
    %v2136 = vunpack.c.h.b16 %v950
    %v2137 = vunpack.c.l.b16 %v951
    %v2138 = vunpack.c.h.b16 %v951
    %v2139 = vunpack.c.l.b16 %v952
    %v2140 = vunpack.c.h.b16 %v952
    %v2141 = vunpack.c.l.b16 %v953
    %v2142 = vunpack.c.h.b16 %v953
    %v2143 = vunpack.c.l.b16 %v954
    %v2144 = vunpack.c.h.b16 %v954
    %v2145 = vunpack.c.l.b16 %v955
    %v2146 = vunpack.c.h.b16 %v955
    %v2147 = vunpack.c.l.b16 %v956
    %v2148 = vunpack.c.h.b16 %v956
    %v2149 = vunpack.c.l.b16 %v957
    %v2150 = vunpack.c.h.b16 %v957
    %v2151 = vunpack.c.l.b16 %v958
    %v2152 = vunpack.c.h.b16 %v958
    %v2153 = vunpack.c.l.b16 %v959
    %v2154 = vunpack.c.h.b16 %v959
    %v2155 = vunpack.c.l.b16 %v960
    %v2156 = vunpack.c.h.b16 %v960
    %v2157 = vunpack.c.l.b16 %v961
    %v2158 = vunpack.c.h.b16 %v961
    %v2159 = vunpack.c.l.b16 %v962
    %v2160 = vunpack.c.h.b16 %v962
    %v2161 = vunpack.c.l.b16 %v963
    %v2162 = vunpack.c.h.b16 %v963
    %v2163 = vunpack.c.l.b16 %v964
    %v2164 = vunpack.c.h.b16 %v964
    %v2165 = vunpack.c.l.b16 %v965
    %v2166 = vunpack.c.h.b16 %v965
    %v2167 = vunpack.c.l.b16 %v966
    %v2168 = vunpack.c.h.b16 %v966
    %v2169 = vunpack.c.l.b16 %v967
    %v2170 = vunpack.c.h.b16 %v967
    %v2171 = vunpack.c.l.b16 %v968
    %v2172 = vunpack.c.h.b16 %v968
    %v2173 = vunpack.c.l.b16 %v969
    %v2174 = vunpack.c.h.b16 %v969
    %v2175 = vunpack.c.l.b16 %v970
    %v2176 = vunpack.c.h.b16 %v970
    %v2177 = vunpack.c.l.b16 %v971
    %v2178 = vunpack.c.h.b16 %v971
    %v2179 = vunpack.c.l.b16 %v972
    %v2180 = vunpack.c.h.b16 %v972
    %v2181 = vunpack.c.l.b16 %v973
    %v2182 = vunpack.c.h.b16 %v973
    %v2183 = vunpack.c.l.b16 %v974
    %v2184 = vunpack.c.h.b16 %v974
    %v2185 = vunpack.c.l.b16 %v975
    %v2186 = vunpack.c.h.b16 %v975
    %v2187 = vunpack.c.l.b16 %v976
    %v2188 = vunpack.c.h.b16 %v976
    %v2189 = vunpack.c.l.b16 %v977
    %v2190 = vunpack.c.h.b16 %v977
    %v2191 = vunpack.c.l.b16 %v978
    %v2192 = vunpack.c.h.b16 %v978
    %v2193 = vunpack.c.l.b16 %v979
    %v2194 = vunpack.c.h.b16 %v979
    %v2195 = vunpack.c.l.b16 %v980
    %v2196 = vunpack.c.h.b16 %v980
    %v2197 = vunpack.c.l.b16 %v981
    %v2198 = vunpack.c.h.b16 %v981
    %v2199 = vunpack.c.l.b16 %v982
    %v2200 = vunpack.c.h.b16 %v982
    %v2201 = vunpack.c.l.b16 %v983
    %v2202 = vunpack.c.h.b16 %v983
    %v2203 = vunpack.c.l.b16 %v984
    %v2204 = vunpack.c.h.b16 %v984
    %v2205 = vpack.c.b16 %v1449, %v1437
    %v2206 = vpack.c.b16 %v1450, %v1438
    %v2207 = vpack.c.b16 %v1451, %v1439
    %v2208 = vpack.c.b16 %v1452, %v1440
    %v2209 = vpack.c.b16 %v1453, %v1441
    %v2210 = vpack.c.b16 %v1454, %v1442
    %v2211 = vpack.c.b16 %v1455, %v1443
    %v2212 = vpack.c.b16 %v1456, %v1444
    %v2213 = vpack.c.b16 %v1457, %v1445
    %v2214 = vpack.c.b16 %v1458, %v1446
    %v2215 = vpack.c.b16 %v1459, %v1447
    %v2216 = vpack.c.b16 %v1460, %v1448
    %v2217 = vpack.c.b16 %v1473, %v1461
    %v2218 = vpack.c.b16 %v1474, %v1462
    %v2219 = vpack.c.b16 %v1475, %v1463
    %v2220 = vpack.c.b16 %v1476, %v1464
    %v2221 = vpack.c.b16 %v1477, %v1465
    %v2222 = vpack.c.b16 %v1478, %v1466
    %v2223 = vpack.c.b16 %v1479, %v1467
    %v2224 = vpack.c.b16 %v1480, %v1468
    %v2225 = vpack.c.b16 %v1481, %v1469
    %v2226 = vpack.c.b16 %v1482, %v1470
    %v2227 = vpack.c.b16 %v1483, %v1471
    %v2228 = vpack.c.b16 %v1484, %v1472
    %v2229 = vpack.c.b16 %v1497, %v1485
    %v2230 = vpack.c.b16 %v1498, %v1486
    %v2231 = vpack.c.b16 %v1499, %v1487
    %v2232 = vpack.c.b16 %v1500, %v1488
    %v2233 = vpack.c.b16 %v1501, %v1489
    %v2234 = vpack.c.b16 %v1502, %v1490
    %v2235 = vpack.c.b16 %v1503, %v1491
    %v2236 = vpack.c.b16 %v1504, %v1492
    %v2237 = vpack.c.b16 %v1505, %v1493
    %v2238 = vpack.c.b16 %v1506, %v1494
    %v2239 = vpack.c.b16 %v1507, %v1495
    %v2240 = vpack.c.b16 %v1508, %v1496
    %v2241 = vpack.c.b16 %v1521, %v1509
    %v2242 = vpack.c.b16 %v1522, %v1510
    %v2243 = vpack.c.b16 %v1523, %v1511
    %v2244 = vpack.c.b16 %v1524, %v1512
    %v2245 = vpack.c.b16 %v1525, %v1513
    %v2246 = vpack.c.b16 %v1526, %v1514
    %v2247 = vpack.c.b16 %v1527, %v1515
    %v2248 = vpack.c.b16 %v1528, %v1516
    %v2249 = vpack.c.b16 %v1529, %v1517
    %v2250 = vpack.c.b16 %v1530, %v1518
    %v2251 = vpack.c.b16 %v1531, %v1519
    %v2252 = vpack.c.b16 %v1532, %v1520
    %v2253 = vpack.c.b16 %v1545, %v1533
    %v2254 = vpack.c.b16 %v1546, %v1534
    %v2255 = vpack.c.b16 %v1547, %v1535
    %v2256 = vpack.c.b16 %v1548, %v1536
    %v2257 = vpack.c.b16 %v1549, %v1537
    %v2258 = vpack.c.b16 %v1550, %v1538
    %v2259 = vpack.c.b16 %v1551, %v1539
    %v2260 = vpack.c.b16 %v1552, %v1540
    %v2261 = vpack.c.b16 %v1553, %v1541
    %v2262 = vpack.c.b16 %v1554, %v1542
    %v2263 = vpack.c.b16 %v1555, %v1543
    %v2264 = vpack.c.b16 %v1556, %v1544
    %v2265 = vpack.c.b16 %v1569, %v1557
    %v2266 = vpack.c.b16 %v1570, %v1558
    %v2267 = vpack.c.b16 %v1571, %v1559
    %v2268 = vpack.c.b16 %v1572, %v1560
    %v2269 = vpack.c.b16 %v1573, %v1561
    %v2270 = vpack.c.b16 %v1574, %v1562
    %v2271 = vpack.c.b16 %v1575, %v1563
    %v2272 = vpack.c.b16 %v1576, %v1564
    %v2273 = vpack.c.b16 %v1577, %v1565
    %v2274 = vpack.c.b16 %v1578, %v1566
    %v2275 = vpack.c.b16 %v1579, %v1567
    %v2276 = vpack.c.b16 %v1580, %v1568
    %v2277 = vpack.c.b16 %v1593, %v1581
    %v2278 = vpack.c.b16 %v1594, %v1582
    %v2279 = vpack.c.b16 %v1595, %v1583
    %v2280 = vpack.c.b16 %v1596, %v1584
    %v2281 = vpack.c.b16 %v1597, %v1585
    %v2282 = vpack.c.b16 %v1598, %v1586
    %v2283 = vpack.c.b16 %v1599, %v1587
    %v2284 = vpack.c.b16 %v1600, %v1588
    %v2285 = vpack.c.b16 %v1601, %v1589
    %v2286 = vpack.c.b16 %v1602, %v1590
    %v2287 = vpack.c.b16 %v1603, %v1591
    %v2288 = vpack.c.b16 %v1604, %v1592
    %v2289 = vpack.c.b16 %v1617, %v1605
    %v2290 = vpack.c.b16 %v1618, %v1606
    %v2291 = vpack.c.b16 %v1619, %v1607
    %v2292 = vpack.c.b16 %v1620, %v1608
    %v2293 = vpack.c.b16 %v1621, %v1609
    %v2294 = vpack.c.b16 %v1622, %v1610
    %v2295 = vpack.c.b16 %v1623, %v1611
    %v2296 = vpack.c.b16 %v1624, %v1612
    %v2297 = vpack.c.b16 %v1625, %v1613
    %v2298 = vpack.c.b16 %v1626, %v1614
    %v2299 = vpack.c.b16 %v1627, %v1615
    %v2300 = vpack.c.b16 %v1628, %v1616
    %v2301 = vpack.c.b16 %v1641, %v1629
    %v2302 = vpack.c.b16 %v1642, %v1630
    %v2303 = vpack.c.b16 %v1643, %v1631
    %v2304 = vpack.c.b16 %v1644, %v1632
    %v2305 = vpack.c.b16 %v1645, %v1633
    %v2306 = vpack.c.b16 %v1646, %v1634
    %v2307 = vpack.c.b16 %v1647, %v1635
    %v2308 = vpack.c.b16 %v1648, %v1636
    %v2309 = vpack.c.b16 %v1649, %v1637
    %v2310 = vpack.c.b16 %v1650, %v1638
    %v2311 = vpack.c.b16 %v1651, %v1639
    %v2312 = vpack.c.b16 %v1652, %v1640
    %v2313 = vpack.c.b16 %v1665, %v1653
    %v2314 = vpack.c.b16 %v1666, %v1654
    %v2315 = vpack.c.b16 %v1667, %v1655
    %v2316 = vpack.c.b16 %v1668, %v1656
    %v2317 = vpack.c.b16 %v1669, %v1657
    %v2318 = vpack.c.b16 %v1670, %v1658
    %v2319 = vpack.c.b16 %v1671, %v1659
    %v2320 = vpack.c.b16 %v1672, %v1660
    %v2321 = vpack.c.b16 %v1673, %v1661
    %v2322 = vpack.c.b16 %v1674, %v1662
    %v2323 = vpack.c.b16 %v1675, %v1663
    %v2324 = vpack.c.b16 %v1676, %v1664
    %v2325 = vpack.c.b16 %v1689, %v1677
    %v2326 = vpack.c.b16 %v1690, %v1678
    %v2327 = vpack.c.b16 %v1691, %v1679
    %v2328 = vpack.c.b16 %v1692, %v1680
    %v2329 = vpack.c.b16 %v1693, %v1681
    %v2330 = vpack.c.b16 %v1694, %v1682
    %v2331 = vpack.c.b16 %v1695, %v1683
    %v2332 = vpack.c.b16 %v1696, %v1684
    %v2333 = vpack.c.b16 %v1697, %v1685
    %v2334 = vpack.c.b16 %v1698, %v1686
    %v2335 = vpack.c.b16 %v1699, %v1687
    %v2336 = vpack.c.b16 %v1700, %v1688
    %v2337 = vpack.c.b16 %v1713, %v1701
    %v2338 = vpack.c.b16 %v1714, %v1702
    %v2339 = vpack.c.b16 %v1715, %v1703
    %v2340 = vpack.c.b16 %v1716, %v1704
    %v2341 = vpack.c.b16 %v1717, %v1705
    %v2342 = vpack.c.b16 %v1718, %v1706
    %v2343 = vpack.c.b16 %v1719, %v1707
    %v2344 = vpack.c.b16 %v1720, %v1708
    %v2345 = vpack.c.b16 %v1721, %v1709
    %v2346 = vpack.c.b16 %v1722, %v1710
    %v2347 = vpack.c.b16 %v1723, %v1711
    %v2348 = vpack.c.b16 %v1724, %v1712
    %v2349 = vpack.c.b16 %v1737, %v1725
    %v2350 = vpack.c.b16 %v1738, %v1726
    %v2351 = vpack.c.b16 %v1739, %v1727
    %v2352 = vpack.c.b16 %v1740, %v1728
    %v2353 = vpack.c.b16 %v1741, %v1729
    %v2354 = vpack.c.b16 %v1742, %v1730
    %v2355 = vpack.c.b16 %v1743, %v1731
    %v2356 = vpack.c.b16 %v1744, %v1732
    %v2357 = vpack.c.b16 %v1745, %v1733
    %v2358 = vpack.c.b16 %v1746, %v1734
    %v2359 = vpack.c.b16 %v1747, %v1735
    %v2360 = vpack.c.b16 %v1748, %v1736
    %v2361 = vpack.c.b16 %v1761, %v1749
    %v2362 = vpack.c.b16 %v1762, %v1750
    %v2363 = vpack.c.b16 %v1763, %v1751
    %v2364 = vpack.c.b16 %v1764, %v1752
    %v2365 = vpack.c.b16 %v1765, %v1753
    %v2366 = vpack.c.b16 %v1766, %v1754
    %v2367 = vpack.c.b16 %v1767, %v1755
    %v2368 = vpack.c.b16 %v1768, %v1756
    %v2369 = vpack.c.b16 %v1769, %v1757
    %v2370 = vpack.c.b16 %v1770, %v1758
    %v2371 = vpack.c.b16 %v1771, %v1759
    %v2372 = vpack.c.b16 %v1772, %v1760
    %v2373 = vpack.c.b16 %v1785, %v1773
    %v2374 = vpack.c.b16 %v1786, %v1774
    %v2375 = vpack.c.b16 %v1787, %v1775
    %v2376 = vpack.c.b16 %v1788, %v1776
    %v2377 = vpack.c.b16 %v1789, %v1777
    %v2378 = vpack.c.b16 %v1790, %v1778
    %v2379 = vpack.c.b16 %v1791, %v1779
    %v2380 = vpack.c.b16 %v1792, %v1780
    %v2381 = vpack.c.b16 %v1793, %v1781
    %v2382 = vpack.c.b16 %v1794, %v1782
    %v2383 = vpack.c.b16 %v1795, %v1783
    %v2384 = vpack.c.b16 %v1796, %v1784
    %v2385 = vpack.c.b16 %v1809, %v1797
    %v2386 = vpack.c.b16 %v1810, %v1798
    %v2387 = vpack.c.b16 %v1811, %v1799
    %v2388 = vpack.c.b16 %v1812, %v1800
    %v2389 = vpack.c.b16 %v1813, %v1801
    %v2390 = vpack.c.b16 %v1814, %v1802
    %v2391 = vpack.c.b16 %v1815, %v1803
    %v2392 = vpack.c.b16 %v1816, %v1804
    %v2393 = vpack.c.b16 %v1817, %v1805
    %v2394 = vpack.c.b16 %v1818, %v1806
    %v2395 = vpack.c.b16 %v1819, %v1807
    %v2396 = vpack.c.b16 %v1820, %v1808
    %v2397 = vpack.c.b16 %v1833, %v1821
    %v2398 = vpack.c.b16 %v1834, %v1822
    %v2399 = vpack.c.b16 %v1835, %v1823
    %v2400 = vpack.c.b16 %v1836, %v1824
    %v2401 = vpack.c.b16 %v1837, %v1825
    %v2402 = vpack.c.b16 %v1838, %v1826
    %v2403 = vpack.c.b16 %v1839, %v1827
    %v2404 = vpack.c.b16 %v1840, %v1828
    %v2405 = vpack.c.b16 %v1841, %v1829
    %v2406 = vpack.c.b16 %v1842, %v1830
    %v2407 = vpack.c.b16 %v1843, %v1831
    %v2408 = vpack.c.b16 %v1844, %v1832
    %v2409 = vpack.c.b16 %v1857, %v1845
    %v2410 = vpack.c.b16 %v1858, %v1846
    %v2411 = vpack.c.b16 %v1859, %v1847
    %v2412 = vpack.c.b16 %v1860, %v1848
    %v2413 = vpack.c.b16 %v1861, %v1849
    %v2414 = vpack.c.b16 %v1862, %v1850
    %v2415 = vpack.c.b16 %v1863, %v1851
    %v2416 = vpack.c.b16 %v1864, %v1852
    %v2417 = vpack.c.b16 %v1865, %v1853
    %v2418 = vpack.c.b16 %v1866, %v1854
    %v2419 = vpack.c.b16 %v1867, %v1855
    %v2420 = vpack.c.b16 %v1868, %v1856
    %v2421 = vpack.c.b16 %v1881, %v1869
    %v2422 = vpack.c.b16 %v1882, %v1870
    %v2423 = vpack.c.b16 %v1883, %v1871
    %v2424 = vpack.c.b16 %v1884, %v1872
    %v2425 = vpack.c.b16 %v1885, %v1873
    %v2426 = vpack.c.b16 %v1886, %v1874
    %v2427 = vpack.c.b16 %v1887, %v1875
    %v2428 = vpack.c.b16 %v1888, %v1876
    %v2429 = vpack.c.b16 %v1889, %v1877
    %v2430 = vpack.c.b16 %v1890, %v1878
    %v2431 = vpack.c.b16 %v1891, %v1879
    %v2432 = vpack.c.b16 %v1892, %v1880
    %v2433 = vpack.c.b16 %v1905, %v1893
    %v2434 = vpack.c.b16 %v1906, %v1894
    %v2435 = vpack.c.b16 %v1907, %v1895
    %v2436 = vpack.c.b16 %v1908, %v1896
    %v2437 = vpack.c.b16 %v1909, %v1897
    %v2438 = vpack.c.b16 %v1910, %v1898
    %v2439 = vpack.c.b16 %v1911, %v1899
    %v2440 = vpack.c.b16 %v1912, %v1900
    %v2441 = vpack.c.b16 %v1913, %v1901
    %v2442 = vpack.c.b16 %v1914, %v1902
    %v2443 = vpack.c.b16 %v1915, %v1903
    %v2444 = vpack.c.b16 %v1916, %v1904
    %v2445 = vpack.c.b16 %v1929, %v1917
    %v2446 = vpack.c.b16 %v1930, %v1918
    %v2447 = vpack.c.b16 %v1931, %v1919
    %v2448 = vpack.c.b16 %v1932, %v1920
    %v2449 = vpack.c.b16 %v1933, %v1921
    %v2450 = vpack.c.b16 %v1934, %v1922
    %v2451 = vpack.c.b16 %v1935, %v1923
    %v2452 = vpack.c.b16 %v1936, %v1924
    %v2453 = vpack.c.b16 %v1937, %v1925
    %v2454 = vpack.c.b16 %v1938, %v1926
    %v2455 = vpack.c.b16 %v1939, %v1927
    %v2456 = vpack.c.b16 %v1940, %v1928
    %v2457 = vpack.c.b16 %v1953, %v1941
    %v2458 = vpack.c.b16 %v1954, %v1942
    %v2459 = vpack.c.b16 %v1955, %v1943
    %v2460 = vpack.c.b16 %v1956, %v1944
    %v2461 = vpack.c.b16 %v1957, %v1945
    %v2462 = vpack.c.b16 %v1958, %v1946
    %v2463 = vpack.c.b16 %v1959, %v1947
    %v2464 = vpack.c.b16 %v1960, %v1948
    %v2465 = vpack.c.b16 %v1961, %v1949
    %v2466 = vpack.c.b16 %v1962, %v1950
    %v2467 = vpack.c.b16 %v1963, %v1951
    %v2468 = vpack.c.b16 %v1964, %v1952
    %v2469 = vpack.c.b16 %v1977, %v1965
    %v2470 = vpack.c.b16 %v1978, %v1966
    %v2471 = vpack.c.b16 %v1979, %v1967
    %v2472 = vpack.c.b16 %v1980, %v1968
    %v2473 = vpack.c.b16 %v1981, %v1969
    %v2474 = vpack.c.b16 %v1982, %v1970
    %v2475 = vpack.c.b16 %v1983, %v1971
    %v2476 = vpack.c.b16 %v1984, %v1972
    %v2477 = vpack.c.b16 %v1985, %v1973
    %v2478 = vpack.c.b16 %v1986, %v1974
    %v2479 = vpack.c.b16 %v1987, %v1975
    %v2480 = vpack.c.b16 %v1988, %v1976
    %v2481 = vpack.c.b16 %v2001, %v1989
    %v2482 = vpack.c.b16 %v2002, %v1990
    %v2483 = vpack.c.b16 %v2003, %v1991
    %v2484 = vpack.c.b16 %v2004, %v1992
    %v2485 = vpack.c.b16 %v2005, %v1993
    %v2486 = vpack.c.b16 %v2006, %v1994
    %v2487 = vpack.c.b16 %v2007, %v1995
    %v2488 = vpack.c.b16 %v2008, %v1996
    %v2489 = vpack.c.b16 %v2009, %v1997
    %v2490 = vpack.c.b16 %v2010, %v1998
    %v2491 = vpack.c.b16 %v2011, %v1999
    %v2492 = vpack.c.b16 %v2012, %v2000
    %v2493 = vpack.c.b16 %v2025, %v2013
    %v2494 = vpack.c.b16 %v2026, %v2014
    %v2495 = vpack.c.b16 %v2027, %v2015
    %v2496 = vpack.c.b16 %v2028, %v2016
    %v2497 = vpack.c.b16 %v2029, %v2017
    %v2498 = vpack.c.b16 %v2030, %v2018
    %v2499 = vpack.c.b16 %v2031, %v2019
    %v2500 = vpack.c.b16 %v2032, %v2020
    %v2501 = vpack.c.b16 %v2033, %v2021
    %v2502 = vpack.c.b16 %v2034, %v2022
    %v2503 = vpack.c.b16 %v2035, %v2023
    %v2504 = vpack.c.b16 %v2036, %v2024
    %v2505 = vpack.c.b16 %v2049, %v2037
    %v2506 = vpack.c.b16 %v2050, %v2038
    %v2507 = vpack.c.b16 %v2051, %v2039
    %v2508 = vpack.c.b16 %v2052, %v2040
    %v2509 = vpack.c.b16 %v2053, %v2041
    %v2510 = vpack.c.b16 %v2054, %v2042
    %v2511 = vpack.c.b16 %v2055, %v2043
    %v2512 = vpack.c.b16 %v2056, %v2044
    %v2513 = vpack.c.b16 %v2057, %v2045
    %v2514 = vpack.c.b16 %v2058, %v2046
    %v2515 = vpack.c.b16 %v2059, %v2047
    %v2516 = vpack.c.b16 %v2060, %v2048
    %v2517 = vpack.c.b16 %v2073, %v2061
    %v2518 = vpack.c.b16 %v2074, %v2062
    %v2519 = vpack.c.b16 %v2075, %v2063
    %v2520 = vpack.c.b16 %v2076, %v2064
    %v2521 = vpack.c.b16 %v2077, %v2065
    %v2522 = vpack.c.b16 %v2078, %v2066
    %v2523 = vpack.c.b16 %v2079, %v2067
    %v2524 = vpack.c.b16 %v2080, %v2068
    %v2525 = vpack.c.b16 %v2081, %v2069
    %v2526 = vpack.c.b16 %v2082, %v2070
    %v2527 = vpack.c.b16 %v2083, %v2071
    %v2528 = vpack.c.b16 %v2084, %v2072
    %v2529 = vpack.c.b16 %v2097, %v2085
    %v2530 = vpack.c.b16 %v2098, %v2086
    %v2531 = vpack.c.b16 %v2099, %v2087
    %v2532 = vpack.c.b16 %v2100, %v2088
    %v2533 = vpack.c.b16 %v2101, %v2089
    %v2534 = vpack.c.b16 %v2102, %v2090
    %v2535 = vpack.c.b16 %v2103, %v2091
    %v2536 = vpack.c.b16 %v2104, %v2092
    %v2537 = vpack.c.b16 %v2105, %v2093
    %v2538 = vpack.c.b16 %v2106, %v2094
    %v2539 = vpack.c.b16 %v2107, %v2095
    %v2540 = vpack.c.b16 %v2108, %v2096
    %v2541 = vpack.c.b16 %v2121, %v2109
    %v2542 = vpack.c.b16 %v2122, %v2110
    %v2543 = vpack.c.b16 %v2123, %v2111
    %v2544 = vpack.c.b16 %v2124, %v2112
    %v2545 = vpack.c.b16 %v2125, %v2113
    %v2546 = vpack.c.b16 %v2126, %v2114
    %v2547 = vpack.c.b16 %v2127, %v2115
    %v2548 = vpack.c.b16 %v2128, %v2116
    %v2549 = vpack.c.b16 %v2129, %v2117
    %v2550 = vpack.c.b16 %v2130, %v2118
    %v2551 = vpack.c.b16 %v2131, %v2119
    %v2552 = vpack.c.b16 %v2132, %v2120
    %v2553 = vpack.c.b16 %v2145, %v2133
    %v2554 = vpack.c.b16 %v2146, %v2134
    %v2555 = vpack.c.b16 %v2147, %v2135
    %v2556 = vpack.c.b16 %v2148, %v2136
    %v2557 = vpack.c.b16 %v2149, %v2137
    %v2558 = vpack.c.b16 %v2150, %v2138
    %v2559 = vpack.c.b16 %v2151, %v2139
    %v2560 = vpack.c.b16 %v2152, %v2140
    %v2561 = vpack.c.b16 %v2153, %v2141
    %v2562 = vpack.c.b16 %v2154, %v2142
    %v2563 = vpack.c.b16 %v2155, %v2143
    %v2564 = vpack.c.b16 %v2156, %v2144
    %v2565 = vpack.c.b16 %v2169, %v2157
    %v2566 = vpack.c.b16 %v2170, %v2158
    %v2567 = vpack.c.b16 %v2171, %v2159
    %v2568 = vpack.c.b16 %v2172, %v2160
    %v2569 = vpack.c.b16 %v2173, %v2161
    %v2570 = vpack.c.b16 %v2174, %v2162
    %v2571 = vpack.c.b16 %v2175, %v2163
    %v2572 = vpack.c.b16 %v2176, %v2164
    %v2573 = vpack.c.b16 %v2177, %v2165
    %v2574 = vpack.c.b16 %v2178, %v2166
    %v2575 = vpack.c.b16 %v2179, %v2167
    %v2576 = vpack.c.b16 %v2180, %v2168
    %v2577 = vpack.c.b16 %v2193, %v2181
    %v2578 = vpack.c.b16 %v2194, %v2182
    %v2579 = vpack.c.b16 %v2195, %v2183
    %v2580 = vpack.c.b16 %v2196, %v2184
    %v2581 = vpack.c.b16 %v2197, %v2185
    %v2582 = vpack.c.b16 %v2198, %v2186
    %v2583 = vpack.c.b16 %v2199, %v2187
    %v2584 = vpack.c.b16 %v2200, %v2188
    %v2585 = vpack.c.b16 %v2201, %v2189
    %v2586 = vpack.c.b16 %v2202, %v2190
    %v2587 = vpack.c.b16 %v2203, %v2191
    %v2588 = vpack.c.b16 %v2204, %v2192
    %2973 = vmatprep.subr.bf16.mxu0 %v2206
    %2974 = vmatpush1.bf16.msra.mxu0 %v2205
    %2975 = vmatprep.subr.bf16.mxu0 %v2218
    %2976 = vmatpush1.bf16.msra.mxu0 %v2217
    %2977 = vmatprep.subr.bf16.mxu0 %v2230
    %2978 = vmatpush1.bf16.msra.mxu0 %v2229
    %2979 = vmatprep.subr.bf16.mxu0 %v2242
    %2980 = vmatpush1.bf16.msra.mxu0 %v2241
    %2981 = vmatprep.subr.bf16.mxu0 %v2254
    %2982 = vmatpush1.bf16.msra.mxu0 %v2253
    %2983 = vmatprep.subr.bf16.mxu0 %v2266
    %2984 = vmatpush1.bf16.msra.mxu0 %v2265
    %2985 = vmatprep.subr.bf16.mxu0 %v2278
    %2986 = vmatpush1.bf16.msra.mxu0 %v2277
    %2987 = vmatprep.subr.bf16.mxu0 %v2290
    %2988 = vmatpush1.bf16.msra.mxu0 %v2289
    %2989 = vmatprep.subr.bf16.mxu0 %v2302
    %2990 = vmatpush1.bf16.msra.mxu0 %v2301
    %2991 = vmatprep.subr.bf16.mxu0 %v2314
    %2992 = vmatpush1.bf16.msra.mxu0 %v2313
    %2993 = vmatprep.subr.bf16.mxu0 %v2326
    %2994 = vmatpush1.bf16.msra.mxu0 %v2325
    %2995 = vmatprep.subr.bf16.mxu0 %v2338
    %2996 = vmatpush1.bf16.msra.mxu0 %v2337
    %2997 = vmatprep.subr.bf16.mxu0 %v2350
    %2998 = vmatpush1.bf16.msra.mxu0 %v2349
    %2999 = vmatprep.subr.bf16.mxu0 %v2362
    %3000 = vmatpush1.bf16.msra.mxu0 %v2361
    %3001 = vmatprep.subr.bf16.mxu0 %v2374
    %3002 = vmatpush1.bf16.msra.mxu0 %v2373
    %3003 = vmatprep.subr.bf16.mxu0 %v2386
    %3004 = vmatpush1.bf16.msra.mxu0 %v2385
    %3005 = vmatprep.mubr.bf16.mxu0 %v988
    %3006 = vmatmul.mubr.bf16.gmra.mrb[0].mxu0 %v987
    %v3007 = vpop.f32.mrb[0].mxu0
    %v3008 = vadd.f32 %v996, %v3007
    %v3009 = vpop.f32.mrb[0].mxu0
    %v3010 = vadd.f32 %v1000, %v3009
    %v3011 = vpop.f32.mrb[0].mxu0
    %v3012 = vpop.f32.mrb[0].mxu0
    %3013 = vdwg.mxu0
    %3014 = vmatprep.subr.bf16.mxu0 %v2398
    %3015 = vmatpush1.bf16.msra.mxu0 %v2397
    %3016 = vmatprep.subr.bf16.mxu0 %v2410
    %3017 = vmatpush1.bf16.msra.mxu0 %v2409
    %3018 = vmatprep.subr.bf16.mxu0 %v2422
    %3019 = vmatpush1.bf16.msra.mxu0 %v2421
    %3020 = vmatprep.subr.bf16.mxu0 %v2434
    %3021 = vmatpush1.bf16.msra.mxu0 %v2433
    %3022 = vmatprep.subr.bf16.mxu0 %v2446
    %3023 = vmatpush1.bf16.msra.mxu0 %v2445
    %3024 = vmatprep.subr.bf16.mxu0 %v2458
    %3025 = vmatpush1.bf16.msra.mxu0 %v2457
    %3026 = vmatprep.subr.bf16.mxu0 %v2470
    %3027 = vmatpush1.bf16.msra.mxu0 %v2469
    %3028 = vmatprep.subr.bf16.mxu0 %v2482
    %3029 = vmatpush1.bf16.msra.mxu0 %v2481
    %3030 = vmatprep.subr.bf16.mxu0 %v2494
    %3031 = vmatpush1.bf16.msra.mxu0 %v2493
    %3032 = vmatprep.subr.bf16.mxu0 %v2506
    %3033 = vmatpush1.bf16.msra.mxu0 %v2505
    %3034 = vmatprep.subr.bf16.mxu0 %v2518
    %3035 = vmatpush1.bf16.msra.mxu0 %v2517
    %3036 = vmatprep.subr.bf16.mxu0 %v2530
    %3037 = vmatpush1.bf16.msra.mxu0 %v2529
    %3038 = vmatprep.subr.bf16.mxu0 %v2542
    %3039 = vmatpush1.bf16.msra.mxu0 %v2541
    %3040 = vmatprep.subr.bf16.mxu0 %v2554
    %3041 = vmatpush1.bf16.msra.mxu0 %v2553
    %3042 = vmatprep.subr.bf16.mxu0 %v2566
    %3043 = vmatpush1.bf16.msra.mxu0 %v2565
    %3044 = vmatprep.subr.bf16.mxu0 %v2578
    %3045 = vmatpush1.bf16.msra.mxu0 %v2577
    %3046 = vmatprep.mubr.bf16.mxu0 %v990
    %3047 = vmatmul.mubr.bf16.gmra.mrb[0].mxu0 %v989
    %v3048 = vpop.f32.mrb[0].mxu0
    %v3049 = vadd.f32 %v3008, %v3048
    %v3050 = vpop.f32.mrb[0].mxu0
    %v3051 = vadd.f32 %v3010, %v3050
    %v3052 = vpop.f32.mrb[0].mxu0
    %v3053 = vpop.f32.mrb[0].mxu0
    %3054 = vdwg.mxu0
    %3055 = vmatprep.subr.bf16.mxu0 %v2208
    %3056 = vmatpush1.bf16.msra.mxu0 %v2207
    %3057 = vmatprep.subr.bf16.mxu0 %v2220
    %3058 = vmatpush1.bf16.msra.mxu0 %v2219
    %3059 = vmatprep.subr.bf16.mxu0 %v2232
    %3060 = vmatpush1.bf16.msra.mxu0 %v2231
    %3061 = vmatprep.subr.bf16.mxu0 %v2244
    %3062 = vmatpush1.bf16.msra.mxu0 %v2243
    %3063 = vmatprep.subr.bf16.mxu0 %v2256
    %3064 = vmatpush1.bf16.msra.mxu0 %v2255
    %3065 = vmatprep.subr.bf16.mxu0 %v2268
    %3066 = vmatpush1.bf16.msra.mxu0 %v2267
    %3067 = vmatprep.subr.bf16.mxu0 %v2280
    %3068 = vmatpush1.bf16.msra.mxu0 %v2279
    %3069 = vmatprep.subr.bf16.mxu0 %v2292
    %3070 = vmatpush1.bf16.msra.mxu0 %v2291
    %3071 = vmatprep.subr.bf16.mxu0 %v2304
    %3072 = vmatpush1.bf16.msra.mxu0 %v2303
    %3073 = vmatprep.subr.bf16.mxu0 %v2316
    %3074 = vmatpush1.bf16.msra.mxu0 %v2315
    %3075 = vmatprep.subr.bf16.mxu0 %v2328
    %3076 = vmatpush1.bf16.msra.mxu0 %v2327
    %3077 = vmatprep.subr.bf16.mxu0 %v2340
    %3078 = vmatpush1.bf16.msra.mxu0 %v2339
    %3079 = vmatprep.subr.bf16.mxu0 %v2352
    %3080 = vmatpush1.bf16.msra.mxu0 %v2351
    %3081 = vmatprep.subr.bf16.mxu0 %v2364
    %3082 = vmatpush1.bf16.msra.mxu0 %v2363
    %3083 = vmatprep.subr.bf16.mxu0 %v2376
    %3084 = vmatpush1.bf16.msra.mxu0 %v2375
    %3085 = vmatprep.subr.bf16.mxu0 %v2388
    %3086 = vmatpush1.bf16.msra.mxu0 %v2387
    %3087 = vmatprep.mubr.bf16.mxu0 %v988
    %3088 = vmatmul.mubr.bf16.gmra.mrb[0].mxu0 %v987
    %v3089 = vpop.f32.mrb[0].mxu0
    %v3090 = vadd.f32 %v1004, %v3089
    %v3091 = vpop.f32.mrb[0].mxu0
    %v3092 = vadd.f32 %v1008, %v3091
    %v3093 = vpop.f32.mrb[0].mxu0
    %v3094 = vpop.f32.mrb[0].mxu0
    %3095 = vdwg.mxu0
    %3096 = vmatprep.subr.bf16.mxu0 %v2400
    %3097 = vmatpush1.bf16.msra.mxu0 %v2399
    %3098 = vmatprep.subr.bf16.mxu0 %v2412
    %3099 = vmatpush1.bf16.msra.mxu0 %v2411
    %3100 = vmatprep.subr.bf16.mxu0 %v2424
    %3101 = vmatpush1.bf16.msra.mxu0 %v2423
    %3102 = vmatprep.subr.bf16.mxu0 %v2436
    %3103 = vmatpush1.bf16.msra.mxu0 %v2435
    %3104 = vmatprep.subr.bf16.mxu0 %v2448
    %3105 = vmatpush1.bf16.msra.mxu0 %v2447
    %3106 = vmatprep.subr.bf16.mxu0 %v2460
    %3107 = vmatpush1.bf16.msra.mxu0 %v2459
    %3108 = vmatprep.subr.bf16.mxu0 %v2472
    %3109 = vmatpush1.bf16.msra.mxu0 %v2471
    %3110 = vmatprep.subr.bf16.mxu0 %v2484
    %3111 = vmatpush1.bf16.msra.mxu0 %v2483
    %3112 = vmatprep.subr.bf16.mxu0 %v2496
    %3113 = vmatpush1.bf16.msra.mxu0 %v2495
    %3114 = vmatprep.subr.bf16.mxu0 %v2508
    %3115 = vmatpush1.bf16.msra.mxu0 %v2507
    %3116 = vmatprep.subr.bf16.mxu0 %v2520
    %3117 = vmatpush1.bf16.msra.mxu0 %v2519
    %3118 = vmatprep.subr.bf16.mxu0 %v2532
    %3119 = vmatpush1.bf16.msra.mxu0 %v2531
    %3120 = vmatprep.subr.bf16.mxu0 %v2544
    %3121 = vmatpush1.bf16.msra.mxu0 %v2543
    %3122 = vmatprep.subr.bf16.mxu0 %v2556
    %3123 = vmatpush1.bf16.msra.mxu0 %v2555
    %3124 = vmatprep.subr.bf16.mxu0 %v2568
    %3125 = vmatpush1.bf16.msra.mxu0 %v2567
    %3126 = vmatprep.subr.bf16.mxu0 %v2580
    %3127 = vmatpush1.bf16.msra.mxu0 %v2579
    %3128 = vmatprep.mubr.bf16.mxu0 %v990
    %3129 = vmatmul.mubr.bf16.gmra.mrb[0].mxu0 %v989
    %v3130 = vpop.f32.mrb[0].mxu0
    %v3131 = vadd.f32 %v3090, %v3130
    %v3132 = vpop.f32.mrb[0].mxu0
    %v3133 = vadd.f32 %v3092, %v3132
    %v3134 = vpop.f32.mrb[0].mxu0
    %v3135 = vpop.f32.mrb[0].mxu0
    %3136 = vdwg.mxu0
    %3137 = vmatprep.subr.bf16.mxu0 %v2210
    %3138 = vmatpush1.bf16.msra.mxu0 %v2209
    %3139 = vmatprep.subr.bf16.mxu0 %v2222
    %3140 = vmatpush1.bf16.msra.mxu0 %v2221
    %3141 = vmatprep.subr.bf16.mxu0 %v2234
    %3142 = vmatpush1.bf16.msra.mxu0 %v2233
    %3143 = vmatprep.subr.bf16.mxu0 %v2246
    %3144 = vmatpush1.bf16.msra.mxu0 %v2245
    %3145 = vmatprep.subr.bf16.mxu0 %v2258
    %3146 = vmatpush1.bf16.msra.mxu0 %v2257
    %3147 = vmatprep.subr.bf16.mxu0 %v2270
    %3148 = vmatpush1.bf16.msra.mxu0 %v2269
    %3149 = vmatprep.subr.bf16.mxu0 %v2282
    %3150 = vmatpush1.bf16.msra.mxu0 %v2281
    %3151 = vmatprep.subr.bf16.mxu0 %v2294
    %3152 = vmatpush1.bf16.msra.mxu0 %v2293
    %3153 = vmatprep.subr.bf16.mxu0 %v2306
    %3154 = vmatpush1.bf16.msra.mxu0 %v2305
    %3155 = vmatprep.subr.bf16.mxu0 %v2318
    %3156 = vmatpush1.bf16.msra.mxu0 %v2317
    %3157 = vmatprep.subr.bf16.mxu0 %v2330
    %3158 = vmatpush1.bf16.msra.mxu0 %v2329
    %3159 = vmatprep.subr.bf16.mxu0 %v2342
    %3160 = vmatpush1.bf16.msra.mxu0 %v2341
    %3161 = vmatprep.subr.bf16.mxu0 %v2354
    %3162 = vmatpush1.bf16.msra.mxu0 %v2353
    %3163 = vmatprep.subr.bf16.mxu0 %v2366
    %3164 = vmatpush1.bf16.msra.mxu0 %v2365
    %3165 = vmatprep.subr.bf16.mxu0 %v2378
    %3166 = vmatpush1.bf16.msra.mxu0 %v2377
    %3167 = vmatprep.subr.bf16.mxu0 %v2390
    %3168 = vmatpush1.bf16.msra.mxu0 %v2389
    %3169 = vmatprep.mubr.bf16.mxu0 %v988
    %3170 = vmatmul.mubr.bf16.gmra.mrb[0].mxu0 %v987
    %v3171 = vpop.f32.mrb[0].mxu0
    %v3172 = vadd.f32 %v1012, %v3171
    %v3173 = vpop.f32.mrb[0].mxu0
    %v3174 = vadd.f32 %v1016, %v3173
    %v3175 = vpop.f32.mrb[0].mxu0
    %v3176 = vpop.f32.mrb[0].mxu0
    %3177 = vdwg.mxu0
    %3178 = vmatprep.subr.bf16.mxu0 %v2402
    %3179 = vmatpush1.bf16.msra.mxu0 %v2401
    %3180 = vmatprep.subr.bf16.mxu0 %v2414
    %3181 = vmatpush1.bf16.msra.mxu0 %v2413
    %3182 = vmatprep.subr.bf16.mxu0 %v2426
    %3183 = vmatpush1.bf16.msra.mxu0 %v2425
    %3184 = vmatprep.subr.bf16.mxu0 %v2438
    %3185 = vmatpush1.bf16.msra.mxu0 %v2437
    %3186 = vmatprep.subr.bf16.mxu0 %v2450
    %3187 = vmatpush1.bf16.msra.mxu0 %v2449
    %3188 = vmatprep.subr.bf16.mxu0 %v2462
    %3189 = vmatpush1.bf16.msra.mxu0 %v2461
    %3190 = vmatprep.subr.bf16.mxu0 %v2474
    %3191 = vmatpush1.bf16.msra.mxu0 %v2473
    %3192 = vmatprep.subr.bf16.mxu0 %v2486
    %3193 = vmatpush1.bf16.msra.mxu0 %v2485
    %3194 = vmatprep.subr.bf16.mxu0 %v2498
    %3195 = vmatpush1.bf16.msra.mxu0 %v2497
    %3196 = vmatprep.subr.bf16.mxu0 %v2510
    %3197 = vmatpush1.bf16.msra.mxu0 %v2509
    %3198 = vmatprep.subr.bf16.mxu0 %v2522
    %3199 = vmatpush1.bf16.msra.mxu0 %v2521
    %3200 = vmatprep.subr.bf16.mxu0 %v2534
    %3201 = vmatpush1.bf16.msra.mxu0 %v2533
    %3202 = vmatprep.subr.bf16.mxu0 %v2546
    %3203 = vmatpush1.bf16.msra.mxu0 %v2545
    %3204 = vmatprep.subr.bf16.mxu0 %v2558
    %3205 = vmatpush1.bf16.msra.mxu0 %v2557
    %3206 = vmatprep.subr.bf16.mxu0 %v2570
    %3207 = vmatpush1.bf16.msra.mxu0 %v2569
    %3208 = vmatprep.subr.bf16.mxu0 %v2582
    %3209 = vmatpush1.bf16.msra.mxu0 %v2581
    %3210 = vmatprep.mubr.bf16.mxu0 %v990
    %3211 = vmatmul.mubr.bf16.gmra.mrb[0].mxu0 %v989
    %v3212 = vpop.f32.mrb[0].mxu0
    %v3213 = vadd.f32 %v3172, %v3212
    %v3214 = vpop.f32.mrb[0].mxu0
    %v3215 = vadd.f32 %v3174, %v3214
    %v3216 = vpop.f32.mrb[0].mxu0
    %v3217 = vpop.f32.mrb[0].mxu0
    %3218 = vdwg.mxu0
    %3219 = vmatprep.subr.bf16.mxu0 %v2212
    %3220 = vmatpush1.bf16.msra.mxu0 %v2211
    %3221 = vmatprep.subr.bf16.mxu0 %v2224
    %3222 = vmatpush1.bf16.msra.mxu0 %v2223
    %3223 = vmatprep.subr.bf16.mxu0 %v2236
    %3224 = vmatpush1.bf16.msra.mxu0 %v2235
    %3225 = vmatprep.subr.bf16.mxu0 %v2248
    %3226 = vmatpush1.bf16.msra.mxu0 %v2247
    %3227 = vmatprep.subr.bf16.mxu0 %v2260
    %3228 = vmatpush1.bf16.msra.mxu0 %v2259
    %3229 = vmatprep.subr.bf16.mxu0 %v2272
    %3230 = vmatpush1.bf16.msra.mxu0 %v2271
    %3231 = vmatprep.subr.bf16.mxu0 %v2284
    %3232 = vmatpush1.bf16.msra.mxu0 %v2283
    %3233 = vmatprep.subr.bf16.mxu0 %v2296
    %3234 = vmatpush1.bf16.msra.mxu0 %v2295
    %3235 = vmatprep.subr.bf16.mxu0 %v2308
    %3236 = vmatpush1.bf16.msra.mxu0 %v2307
    %3237 = vmatprep.subr.bf16.mxu0 %v2320
    %3238 = vmatpush1.bf16.msra.mxu0 %v2319
    %3239 = vmatprep.subr.bf16.mxu0 %v2332
    %3240 = vmatpush1.bf16.msra.mxu0 %v2331
    %3241 = vmatprep.subr.bf16.mxu0 %v2344
    %3242 = vmatpush1.bf16.msra.mxu0 %v2343
    %3243 = vmatprep.subr.bf16.mxu0 %v2356
    %3244 = vmatpush1.bf16.msra.mxu0 %v2355
    %3245 = vmatprep.subr.bf16.mxu0 %v2368
    %3246 = vmatpush1.bf16.msra.mxu0 %v2367
    %3247 = vmatprep.subr.bf16.mxu0 %v2380
    %3248 = vmatpush1.bf16.msra.mxu0 %v2379
    %3249 = vmatprep.subr.bf16.mxu0 %v2392
    %3250 = vmatpush1.bf16.msra.mxu0 %v2391
    %3251 = vmatprep.mubr.bf16.mxu0 %v988
    %3252 = vmatmul.mubr.bf16.gmra.mrb[0].mxu0 %v987
    %v3253 = vpop.f32.mrb[0].mxu0
    %v3254 = vadd.f32 %v1020, %v3253
    %v3255 = vpop.f32.mrb[0].mxu0
    %v3256 = vadd.f32 %v1024, %v3255
    %v3257 = vpop.f32.mrb[0].mxu0
    %v3258 = vpop.f32.mrb[0].mxu0
    %3259 = vdwg.mxu0
    %3260 = vmatprep.subr.bf16.mxu0 %v2404
    %3261 = vmatpush1.bf16.msra.mxu0 %v2403
    %3262 = vmatprep.subr.bf16.mxu0 %v2416
    %3263 = vmatpush1.bf16.msra.mxu0 %v2415
    %3264 = vmatprep.subr.bf16.mxu0 %v2428
    %3265 = vmatpush1.bf16.msra.mxu0 %v2427
    %3266 = vmatprep.subr.bf16.mxu0 %v2440
    %3267 = vmatpush1.bf16.msra.mxu0 %v2439
    %3268 = vmatprep.subr.bf16.mxu0 %v2452
    %3269 = vmatpush1.bf16.msra.mxu0 %v2451
    %3270 = vmatprep.subr.bf16.mxu0 %v2464
    %3271 = vmatpush1.bf16.msra.mxu0 %v2463
    %3272 = vmatprep.subr.bf16.mxu0 %v2476
    %3273 = vmatpush1.bf16.msra.mxu0 %v2475
    %3274 = vmatprep.subr.bf16.mxu0 %v2488
    %3275 = vmatpush1.bf16.msra.mxu0 %v2487
    %3276 = vmatprep.subr.bf16.mxu0 %v2500
    %3277 = vmatpush1.bf16.msra.mxu0 %v2499
    %3278 = vmatprep.subr.bf16.mxu0 %v2512
    %3279 = vmatpush1.bf16.msra.mxu0 %v2511
    %3280 = vmatprep.subr.bf16.mxu0 %v2524
    %3281 = vmatpush1.bf16.msra.mxu0 %v2523
    %3282 = vmatprep.subr.bf16.mxu0 %v2536
    %3283 = vmatpush1.bf16.msra.mxu0 %v2535
    %3284 = vmatprep.subr.bf16.mxu0 %v2548
    %3285 = vmatpush1.bf16.msra.mxu0 %v2547
    %3286 = vmatprep.subr.bf16.mxu0 %v2560
    %3287 = vmatpush1.bf16.msra.mxu0 %v2559
    %3288 = vmatprep.subr.bf16.mxu0 %v2572
    %3289 = vmatpush1.bf16.msra.mxu0 %v2571
    %3290 = vmatprep.subr.bf16.mxu0 %v2584
    %3291 = vmatpush1.bf16.msra.mxu0 %v2583
    %3292 = vmatprep.mubr.bf16.mxu0 %v990
    %3293 = vmatmul.mubr.bf16.gmra.mrb[0].mxu0 %v989
    %v3294 = vpop.f32.mrb[0].mxu0
    %v3295 = vadd.f32 %v3254, %v3294
    %v3296 = vpop.f32.mrb[0].mxu0
    %v3297 = vadd.f32 %v3256, %v3296
    %v3298 = vpop.f32.mrb[0].mxu0
    %v3299 = vpop.f32.mrb[0].mxu0
    %3300 = vdwg.mxu0
    %3301 = vmatprep.subr.bf16.mxu0 %v2214
    %3302 = vmatpush1.bf16.msra.mxu0 %v2213
    %3303 = vmatprep.subr.bf16.mxu0 %v2226
    %3304 = vmatpush1.bf16.msra.mxu0 %v2225
    %3305 = vmatprep.subr.bf16.mxu0 %v2238
    %3306 = vmatpush1.bf16.msra.mxu0 %v2237
    %3307 = vmatprep.subr.bf16.mxu0 %v2250
    %3308 = vmatpush1.bf16.msra.mxu0 %v2249
    %3309 = vmatprep.subr.bf16.mxu0 %v2262
    %3310 = vmatpush1.bf16.msra.mxu0 %v2261
    %3311 = vmatprep.subr.bf16.mxu0 %v2274
    %3312 = vmatpush1.bf16.msra.mxu0 %v2273
    %3313 = vmatprep.subr.bf16.mxu0 %v2286
    %3314 = vmatpush1.bf16.msra.mxu0 %v2285
    %3315 = vmatprep.subr.bf16.mxu0 %v2298
    %3316 = vmatpush1.bf16.msra.mxu0 %v2297
    %3317 = vmatprep.subr.bf16.mxu0 %v2310
    %3318 = vmatpush1.bf16.msra.mxu0 %v2309
    %3319 = vmatprep.subr.bf16.mxu0 %v2322
    %3320 = vmatpush1.bf16.msra.mxu0 %v2321
    %3321 = vmatprep.subr.bf16.mxu0 %v2334
    %3322 = vmatpush1.bf16.msra.mxu0 %v2333
    %3323 = vmatprep.subr.bf16.mxu0 %v2346
    %3324 = vmatpush1.bf16.msra.mxu0 %v2345
    %3325 = vmatprep.subr.bf16.mxu0 %v2358
    %3326 = vmatpush1.bf16.msra.mxu0 %v2357
    %3327 = vmatprep.subr.bf16.mxu0 %v2370
    %3328 = vmatpush1.bf16.msra.mxu0 %v2369
    %3329 = vmatprep.subr.bf16.mxu0 %v2382
    %3330 = vmatpush1.bf16.msra.mxu0 %v2381
    %3331 = vmatprep.subr.bf16.mxu0 %v2394
    %3332 = vmatpush1.bf16.msra.mxu0 %v2393
    %3333 = vmatprep.mubr.bf16.mxu0 %v988
    %3334 = vmatmul.mubr.bf16.gmra.mrb[0].mxu0 %v987
    %v3335 = vpop.f32.mrb[0].mxu0
    %v3336 = vadd.f32 %v1028, %v3335
    %v3337 = vpop.f32.mrb[0].mxu0
    %v3338 = vadd.f32 %v1032, %v3337
    %v3339 = vpop.f32.mrb[0].mxu0
    %v3340 = vpop.f32.mrb[0].mxu0
    %3341 = vdwg.mxu0
    %3342 = vmatprep.subr.bf16.mxu0 %v2406
    %3343 = vmatpush1.bf16.msra.mxu0 %v2405
    %3344 = vmatprep.subr.bf16.mxu0 %v2418
    %3345 = vmatpush1.bf16.msra.mxu0 %v2417
    %3346 = vmatprep.subr.bf16.mxu0 %v2430
    %3347 = vmatpush1.bf16.msra.mxu0 %v2429
    %3348 = vmatprep.subr.bf16.mxu0 %v2442
    %3349 = vmatpush1.bf16.msra.mxu0 %v2441
    %3350 = vmatprep.subr.bf16.mxu0 %v2454
    %3351 = vmatpush1.bf16.msra.mxu0 %v2453
    %3352 = vmatprep.subr.bf16.mxu0 %v2466
    %3353 = vmatpush1.bf16.msra.mxu0 %v2465
    %3354 = vmatprep.subr.bf16.mxu0 %v2478
    %3355 = vmatpush1.bf16.msra.mxu0 %v2477
    %3356 = vmatprep.subr.bf16.mxu0 %v2490
    %3357 = vmatpush1.bf16.msra.mxu0 %v2489
    %3358 = vmatprep.subr.bf16.mxu0 %v2502
    %3359 = vmatpush1.bf16.msra.mxu0 %v2501
    %3360 = vmatprep.subr.bf16.mxu0 %v2514
    %3361 = vmatpush1.bf16.msra.mxu0 %v2513
    %3362 = vmatprep.subr.bf16.mxu0 %v2526
    %3363 = vmatpush1.bf16.msra.mxu0 %v2525
    %3364 = vmatprep.subr.bf16.mxu0 %v2538
    %3365 = vmatpush1.bf16.msra.mxu0 %v2537
    %3366 = vmatprep.subr.bf16.mxu0 %v2550
    %3367 = vmatpush1.bf16.msra.mxu0 %v2549
    %3368 = vmatprep.subr.bf16.mxu0 %v2562
    %3369 = vmatpush1.bf16.msra.mxu0 %v2561
    %3370 = vmatprep.subr.bf16.mxu0 %v2574
    %3371 = vmatpush1.bf16.msra.mxu0 %v2573
    %3372 = vmatprep.subr.bf16.mxu0 %v2586
    %3373 = vmatpush1.bf16.msra.mxu0 %v2585
    %3374 = vmatprep.mubr.bf16.mxu0 %v990
    %3375 = vmatmul.mubr.bf16.gmra.mrb[0].mxu0 %v989
    %v3376 = vpop.f32.mrb[0].mxu0
    %v3377 = vadd.f32 %v3336, %v3376
    %v3378 = vpop.f32.mrb[0].mxu0
    %v3379 = vadd.f32 %v3338, %v3378
    %v3380 = vpop.f32.mrb[0].mxu0
    %v3381 = vpop.f32.mrb[0].mxu0
    %3382 = vdwg.mxu0
    %3383 = vmatprep.subr.bf16.mxu0 %v2216
    %3384 = vmatpush1.bf16.msra.mxu0 %v2215
    %3385 = vmatprep.subr.bf16.mxu0 %v2228
    %3386 = vmatpush1.bf16.msra.mxu0 %v2227
    %3387 = vmatprep.subr.bf16.mxu0 %v2240
    %3388 = vmatpush1.bf16.msra.mxu0 %v2239
    %3389 = vmatprep.subr.bf16.mxu0 %v2252
    %3390 = vmatpush1.bf16.msra.mxu0 %v2251
    %3391 = vmatprep.subr.bf16.mxu0 %v2264
    %3392 = vmatpush1.bf16.msra.mxu0 %v2263
    %3393 = vmatprep.subr.bf16.mxu0 %v2276
    %3394 = vmatpush1.bf16.msra.mxu0 %v2275
    %3395 = vmatprep.subr.bf16.mxu0 %v2288
    %3396 = vmatpush1.bf16.msra.mxu0 %v2287
    %3397 = vmatprep.subr.bf16.mxu0 %v2300
    %3398 = vmatpush1.bf16.msra.mxu0 %v2299
    %3399 = vmatprep.subr.bf16.mxu0 %v2312
    %3400 = vmatpush1.bf16.msra.mxu0 %v2311
    %3401 = vmatprep.subr.bf16.mxu0 %v2324
    %3402 = vmatpush1.bf16.msra.mxu0 %v2323
    %3403 = vmatprep.subr.bf16.mxu0 %v2336
    %3404 = vmatpush1.bf16.msra.mxu0 %v2335
    %3405 = vmatprep.subr.bf16.mxu0 %v2348
    %3406 = vmatpush1.bf16.msra.mxu0 %v2347
    %3407 = vmatprep.subr.bf16.mxu0 %v2360
    %3408 = vmatpush1.bf16.msra.mxu0 %v2359
    %3409 = vmatprep.subr.bf16.mxu0 %v2372
    %3410 = vmatpush1.bf16.msra.mxu0 %v2371
    %3411 = vmatprep.subr.bf16.mxu0 %v2384
    %3412 = vmatpush1.bf16.msra.mxu0 %v2383
    %3413 = vmatprep.subr.bf16.mxu0 %v2396
    %3414 = vmatpush1.bf16.msra.mxu0 %v2395
    %3415 = vmatprep.mubr.bf16.mxu0 %v988
    %3416 = vmatmul.mubr.bf16.gmra.mrb[0].mxu0 %v987
    %v3417 = vpop.f32.mrb[0].mxu0
    %v3418 = vadd.f32 %v1036, %v3417
    %v3419 = vpop.f32.mrb[0].mxu0
    %v3420 = vadd.f32 %v1040, %v3419
    %v3421 = vpop.f32.mrb[0].mxu0
    %v3422 = vpop.f32.mrb[0].mxu0
    %3423 = vdwg.mxu0
    %3424 = vmatprep.subr.bf16.mxu0 %v2408
    %3425 = vmatpush1.bf16.msra.mxu0 %v2407
    %3426 = vmatprep.subr.bf16.mxu0 %v2420
    %3427 = vmatpush1.bf16.msra.mxu0 %v2419
    %3428 = vmatprep.subr.bf16.mxu0 %v2432
    %3429 = vmatpush1.bf16.msra.mxu0 %v2431
    %3430 = vmatprep.subr.bf16.mxu0 %v2444
    %3431 = vmatpush1.bf16.msra.mxu0 %v2443
    %3432 = vmatprep.subr.bf16.mxu0 %v2456
    %3433 = vmatpush1.bf16.msra.mxu0 %v2455
    %3434 = vmatprep.subr.bf16.mxu0 %v2468
    %3435 = vmatpush1.bf16.msra.mxu0 %v2467
    %3436 = vmatprep.subr.bf16.mxu0 %v2480
    %3437 = vmatpush1.bf16.msra.mxu0 %v2479
    %3438 = vmatprep.subr.bf16.mxu0 %v2492
    %3439 = vmatpush1.bf16.msra.mxu0 %v2491
    %3440 = vmatprep.subr.bf16.mxu0 %v2504
    %3441 = vmatpush1.bf16.msra.mxu0 %v2503
    %3442 = vmatprep.subr.bf16.mxu0 %v2516
    %3443 = vmatpush1.bf16.msra.mxu0 %v2515
    %3444 = vmatprep.subr.bf16.mxu0 %v2528
    %3445 = vmatpush1.bf16.msra.mxu0 %v2527
    %3446 = vmatprep.subr.bf16.mxu0 %v2540
    %3447 = vmatpush1.bf16.msra.mxu0 %v2539
    %3448 = vmatprep.subr.bf16.mxu0 %v2552
    %3449 = vmatpush1.bf16.msra.mxu0 %v2551
    %3450 = vmatprep.subr.bf16.mxu0 %v2564
    %3451 = vmatpush1.bf16.msra.mxu0 %v2563
    %3452 = vmatprep.subr.bf16.mxu0 %v2576
    %3453 = vmatpush1.bf16.msra.mxu0 %v2575
    %3454 = vmatprep.subr.bf16.mxu0 %v2588
    %3455 = vmatpush1.bf16.msra.mxu0 %v2587
    %3456 = vmatprep.mubr.bf16.mxu0 %v990
    %3457 = vmatmul.mubr.bf16.gmra.mrb[0].mxu0 %v989
    %v3458 = vpop.f32.mrb[0].mxu0
    %v3459 = vadd.f32 %v3418, %v3458
    %v3460 = vpop.f32.mrb[0].mxu0
    %v3461 = vadd.f32 %v3420, %v3460
    %v3462 = vpop.f32.mrb[0].mxu0
    %v3463 = vpop.f32.mrb[0].mxu0
    %3464 = vdwg.mxu0
    %v3465 = vmul.f32 %v3049, %v3213
    %v3466 = vsel %vm511, %v3465, 0.0
    %3467 = vadd.xlane.f32.xlu0 %v3466
    %v3468 = vpop.xlane.xlu0 %3467
    %3470 = vrot.lane.b32.xlu0 %v3213, 64
    %v3471 = vpop.permute.xlu0 %3470
    %v3473 = vmul.f32 %v3049, %v3471
    %v3474 = vsel %vm511, %v3473, 0.0
    %3475 = vadd.xlane.f32.xlu0 %v3474
    %v3476 = vpop.xlane.xlu0 %3475
    %v3477 = vmul.f32 %v3049, %v3215
    %v3478 = vsel %vm511, %v3477, 0.0
    %3479 = vadd.xlane.f32.xlu0 %v3478
    %v3480 = vpop.xlane.xlu0 %3479
    %3482 = vrot.lane.b32.xlu0 %v3215, 64
    %v3483 = vpop.permute.xlu0 %3482
    %v3485 = vmul.f32 %v3049, %v3483
    %v3486 = vsel %vm511, %v3485, 0.0
    %3487 = vadd.xlane.f32.xlu0 %v3486
    %v3488 = vpop.xlane.xlu0 %3487
    %v3489 = vmul.f32 %v3049, %v3295
    %v3490 = vsel %vm511, %v3489, 0.0
    %3491 = vadd.xlane.f32.xlu0 %v3490
    %v3492 = vpop.xlane.xlu0 %3491
    %3494 = vrot.lane.b32.xlu0 %v3295, 64
    %v3495 = vpop.permute.xlu0 %3494
    %v3497 = vmul.f32 %v3049, %v3495
    %v3498 = vsel %vm511, %v3497, 0.0
    %3499 = vadd.xlane.f32.xlu0 %v3498
    %v3500 = vpop.xlane.xlu0 %3499
    %v3501 = vmul.f32 %v3049, %v3297
    %v3502 = vsel %vm511, %v3501, 0.0
    %3503 = vadd.xlane.f32.xlu0 %v3502
    %v3504 = vpop.xlane.xlu0 %3503
    %3506 = vrot.lane.b32.xlu0 %v3297, 64
    %v3507 = vpop.permute.xlu0 %3506
    %v3509 = vmul.f32 %v3049, %v3507
    %v3510 = vsel %vm511, %v3509, 0.0
    %3511 = vadd.xlane.f32.xlu0 %v3510
    %v3512 = vpop.xlane.xlu0 %3511
    %v3513 = vmax.f32 %v3468, %v3476
    %v3514 = vmax.f32 %v3513, %v3480
    %v3515 = vmax.f32 %v3514, %v3488
    %v3516 = vmax.f32 %v3515, %v3492
    %v3517 = vmax.f32 %v3516, %v3500
    %v3518 = vmax.f32 %v3517, %v3504
    %v3519 = vmax.f32 %v3518, %v3512
    %v3520 = vsub.f32 %v3468, %v3519
    %v3521 = vmul.f32 %v3520, 1.442695
    %v3522 = vpow.pop %v3521
    %v3523 = vsub.f32 %v3476, %v3519
    %v3524 = vmul.f32 %v3523, 1.442695
    %v3525 = vpow.pop %v3524
    %v3526 = vsub.f32 %v3480, %v3519
    %v3527 = vmul.f32 %v3526, 1.442695
    %v3528 = vpow.pop %v3527
    %v3529 = vsub.f32 %v3488, %v3519
    %v3530 = vmul.f32 %v3529, 1.442695
    %v3531 = vpow.pop %v3530
    %v3532 = vsub.f32 %v3492, %v3519
    %v3533 = vmul.f32 %v3532, 1.442695
    %v3534 = vpow.pop %v3533
    %v3535 = vsub.f32 %v3500, %v3519
    %v3536 = vmul.f32 %v3535, 1.442695
    %v3537 = vpow.pop %v3536
    %v3538 = vsub.f32 %v3504, %v3519
    %v3539 = vmul.f32 %v3538, 1.442695
    %v3540 = vpow.pop %v3539
    %v3541 = vsub.f32 %v3512, %v3519
    %v3542 = vmul.f32 %v3541, 1.442695
    %v3543 = vpow.pop %v3542
    %v3544 = vadd.f32 %v3522, %v3525
    %v3545 = vadd.f32 %v3544, %v3528
    %v3546 = vadd.f32 %v3545, %v3531
    %v3547 = vadd.f32 %v3546, %v3534
    %v3548 = vadd.f32 %v3547, %v3537
    %v3549 = vadd.f32 %v3548, %v3540
    %v3550 = vadd.f32 %v3549, %v3543
    %v3551 = vmul.f32 %v3522, %v3377
    %v3552 = vmul.f32 %v3525, %v3377
    %3554 = vrot.lane.b32.xlu0 %v3552, 64
    %v3555 = vpop.permute.xlu0 %3554
    %v3557 = vadd.f32 %v3551, %v3555
    %v3558 = vmul.f32 %v3528, %v3379
    %v3559 = vadd.f32 %v3557, %v3558
    %v3560 = vmul.f32 %v3531, %v3379
    %3562 = vrot.lane.b32.xlu0 %v3560, 64
    %v3563 = vpop.permute.xlu0 %3562
    %v3565 = vadd.f32 %v3559, %v3563
    %v3566 = vmul.f32 %v3534, %v3459
    %v3567 = vadd.f32 %v3565, %v3566
    %v3568 = vmul.f32 %v3537, %v3459
    %3570 = vrot.lane.b32.xlu0 %v3568, 64
    %v3571 = vpop.permute.xlu0 %3570
    %v3573 = vadd.f32 %v3567, %v3571
    %v3574 = vmul.f32 %v3540, %v3461
    %v3575 = vadd.f32 %v3573, %v3574
    %v3576 = vmul.f32 %v3543, %v3461
    %3578 = vrot.lane.b32.xlu0 %v3576, 64
    %v3579 = vpop.permute.xlu0 %3578
    %v3581 = vadd.f32 %v3575, %v3579
    %v3582 = vrcp.pop %v3550
    %v3583 = vmul.f32 %v3581, %v3582
    %3585 = vrot.lane.b32.xlu0 %v3473, 64
    %v3586 = vpop.permute.xlu0 %3585
    %v3588 = vsel %vm511, %v3586, 0.0
    %3589 = vadd.xlane.f32.xlu0 %v3588
    %v3590 = vpop.xlane.xlu0 %3589
    %3592 = vrot.lane.b32.xlu0 %v3465, 64
    %v3593 = vpop.permute.xlu0 %3592
    %v3595 = vsel %vm511, %v3593, 0.0
    %3596 = vadd.xlane.f32.xlu0 %v3595
    %v3597 = vpop.xlane.xlu0 %3596
    %3599 = vrot.lane.b32.xlu0 %v3485, 64
    %v3600 = vpop.permute.xlu0 %3599
    %v3602 = vsel %vm511, %v3600, 0.0
    %3603 = vadd.xlane.f32.xlu0 %v3602
    %v3604 = vpop.xlane.xlu0 %3603
    %3606 = vrot.lane.b32.xlu0 %v3477, 64
    %v3607 = vpop.permute.xlu0 %3606
    %v3609 = vsel %vm511, %v3607, 0.0
    %3610 = vadd.xlane.f32.xlu0 %v3609
    %v3611 = vpop.xlane.xlu0 %3610
    %3613 = vrot.lane.b32.xlu0 %v3497, 64
    %v3614 = vpop.permute.xlu0 %3613
    %v3616 = vsel %vm511, %v3614, 0.0
    %3617 = vadd.xlane.f32.xlu0 %v3616
    %v3618 = vpop.xlane.xlu0 %3617
    %3620 = vrot.lane.b32.xlu0 %v3489, 64
    %v3621 = vpop.permute.xlu0 %3620
    %v3623 = vsel %vm511, %v3621, 0.0
    %3624 = vadd.xlane.f32.xlu0 %v3623
    %v3625 = vpop.xlane.xlu0 %3624
    %3627 = vrot.lane.b32.xlu0 %v3509, 64
    %v3628 = vpop.permute.xlu0 %3627
    %v3630 = vsel %vm511, %v3628, 0.0
    %3631 = vadd.xlane.f32.xlu0 %v3630
    %v3632 = vpop.xlane.xlu0 %3631
    %3634 = vrot.lane.b32.xlu0 %v3501, 64
    %v3635 = vpop.permute.xlu0 %3634
    %v3637 = vsel %vm511, %v3635, 0.0
    %3638 = vadd.xlane.f32.xlu0 %v3637
    %v3639 = vpop.xlane.xlu0 %3638
    %v3640 = vmax.f32 %v3590, %v3597
    %v3641 = vmax.f32 %v3640, %v3604
    %v3642 = vmax.f32 %v3641, %v3611
    %v3643 = vmax.f32 %v3642, %v3618
    %v3644 = vmax.f32 %v3643, %v3625
    %v3645 = vmax.f32 %v3644, %v3632
    %v3646 = vmax.f32 %v3645, %v3639
    %v3647 = vsub.f32 %v3590, %v3646
    %v3648 = vmul.f32 %v3647, 1.442695
    %v3649 = vpow.pop %v3648
    %v3650 = vsub.f32 %v3597, %v3646
    %v3651 = vmul.f32 %v3650, 1.442695
    %v3652 = vpow.pop %v3651
    %v3653 = vsub.f32 %v3604, %v3646
    %v3654 = vmul.f32 %v3653, 1.442695
    %v3655 = vpow.pop %v3654
    %v3656 = vsub.f32 %v3611, %v3646
    %v3657 = vmul.f32 %v3656, 1.442695
    %v3658 = vpow.pop %v3657
    %v3659 = vsub.f32 %v3618, %v3646
    %v3660 = vmul.f32 %v3659, 1.442695
    %v3661 = vpow.pop %v3660
    %v3662 = vsub.f32 %v3625, %v3646
    %v3663 = vmul.f32 %v3662, 1.442695
    %v3664 = vpow.pop %v3663
    %v3665 = vsub.f32 %v3632, %v3646
    %v3666 = vmul.f32 %v3665, 1.442695
    %v3667 = vpow.pop %v3666
    %v3668 = vsub.f32 %v3639, %v3646
    %v3669 = vmul.f32 %v3668, 1.442695
    %v3670 = vpow.pop %v3669
    %v3671 = vadd.f32 %v3649, %v3652
    %v3672 = vadd.f32 %v3671, %v3655
    %v3673 = vadd.f32 %v3672, %v3658
    %v3674 = vadd.f32 %v3673, %v3661
    %v3675 = vadd.f32 %v3674, %v3664
    %v3676 = vadd.f32 %v3675, %v3667
    %v3677 = vadd.f32 %v3676, %v3670
    %v3678 = vmul.f32 %v3649, %v3377
    %v3679 = vmul.f32 %v3652, %v3377
    %3681 = vrot.lane.b32.xlu0 %v3679, 64
    %v3682 = vpop.permute.xlu0 %3681
    %v3684 = vadd.f32 %v3678, %v3682
    %v3685 = vmul.f32 %v3655, %v3379
    %v3686 = vadd.f32 %v3684, %v3685
    %v3687 = vmul.f32 %v3658, %v3379
    %3689 = vrot.lane.b32.xlu0 %v3687, 64
    %v3690 = vpop.permute.xlu0 %3689
    %v3692 = vadd.f32 %v3686, %v3690
    %v3693 = vmul.f32 %v3661, %v3459
    %v3694 = vadd.f32 %v3692, %v3693
    %v3695 = vmul.f32 %v3664, %v3459
    %3697 = vrot.lane.b32.xlu0 %v3695, 64
    %v3698 = vpop.permute.xlu0 %3697
    %v3700 = vadd.f32 %v3694, %v3698
    %v3701 = vmul.f32 %v3667, %v3461
    %v3702 = vadd.f32 %v3700, %v3701
    %v3703 = vmul.f32 %v3670, %v3461
    %3705 = vrot.lane.b32.xlu0 %v3703, 64
    %v3706 = vpop.permute.xlu0 %3705
    %v3708 = vadd.f32 %v3702, %v3706
    %v3709 = vrcp.pop %v3677
    %v3710 = vmul.f32 %v3708, %v3709
    %v3711 = vmul.f32 %v3051, %v3213
    %v3712 = vsel %vm511, %v3711, 0.0
    %3713 = vadd.xlane.f32.xlu0 %v3712
    %v3714 = vpop.xlane.xlu0 %3713
    %v3715 = vmul.f32 %v3051, %v3471
    %v3716 = vsel %vm511, %v3715, 0.0
    %3717 = vadd.xlane.f32.xlu0 %v3716
    %v3718 = vpop.xlane.xlu0 %3717
    %v3719 = vmul.f32 %v3051, %v3215
    %v3720 = vsel %vm511, %v3719, 0.0
    %3721 = vadd.xlane.f32.xlu0 %v3720
    %v3722 = vpop.xlane.xlu0 %3721
    %v3723 = vmul.f32 %v3051, %v3483
    %v3724 = vsel %vm511, %v3723, 0.0
    %3725 = vadd.xlane.f32.xlu0 %v3724
    %v3726 = vpop.xlane.xlu0 %3725
    %v3727 = vmul.f32 %v3051, %v3295
    %v3728 = vsel %vm511, %v3727, 0.0
    %3729 = vadd.xlane.f32.xlu0 %v3728
    %v3730 = vpop.xlane.xlu0 %3729
    %v3731 = vmul.f32 %v3051, %v3495
    %v3732 = vsel %vm511, %v3731, 0.0
    %3733 = vadd.xlane.f32.xlu0 %v3732
    %v3734 = vpop.xlane.xlu0 %3733
    %v3735 = vmul.f32 %v3051, %v3297
    %v3736 = vsel %vm511, %v3735, 0.0
    %3737 = vadd.xlane.f32.xlu0 %v3736
    %v3738 = vpop.xlane.xlu0 %3737
    %v3739 = vmul.f32 %v3051, %v3507
    %v3740 = vsel %vm511, %v3739, 0.0
    %3741 = vadd.xlane.f32.xlu0 %v3740
    %v3742 = vpop.xlane.xlu0 %3741
    %v3743 = vmax.f32 %v3714, %v3718
    %v3744 = vmax.f32 %v3743, %v3722
    %v3745 = vmax.f32 %v3744, %v3726
    %v3746 = vmax.f32 %v3745, %v3730
    %v3747 = vmax.f32 %v3746, %v3734
    %v3748 = vmax.f32 %v3747, %v3738
    %v3749 = vmax.f32 %v3748, %v3742
    %v3750 = vsub.f32 %v3714, %v3749
    %v3751 = vmul.f32 %v3750, 1.442695
    %v3752 = vpow.pop %v3751
    %v3753 = vsub.f32 %v3718, %v3749
    %v3754 = vmul.f32 %v3753, 1.442695
    %v3755 = vpow.pop %v3754
    %v3756 = vsub.f32 %v3722, %v3749
    %v3757 = vmul.f32 %v3756, 1.442695
    %v3758 = vpow.pop %v3757
    %v3759 = vsub.f32 %v3726, %v3749
    %v3760 = vmul.f32 %v3759, 1.442695
    %v3761 = vpow.pop %v3760
    %v3762 = vsub.f32 %v3730, %v3749
    %v3763 = vmul.f32 %v3762, 1.442695
    %v3764 = vpow.pop %v3763
    %v3765 = vsub.f32 %v3734, %v3749
    %v3766 = vmul.f32 %v3765, 1.442695
    %v3767 = vpow.pop %v3766
    %v3768 = vsub.f32 %v3738, %v3749
    %v3769 = vmul.f32 %v3768, 1.442695
    %v3770 = vpow.pop %v3769
    %v3771 = vsub.f32 %v3742, %v3749
    %v3772 = vmul.f32 %v3771, 1.442695
    %v3773 = vpow.pop %v3772
    %v3774 = vadd.f32 %v3752, %v3755
    %v3775 = vadd.f32 %v3774, %v3758
    %v3776 = vadd.f32 %v3775, %v3761
    %v3777 = vadd.f32 %v3776, %v3764
    %v3778 = vadd.f32 %v3777, %v3767
    %v3779 = vadd.f32 %v3778, %v3770
    %v3780 = vadd.f32 %v3779, %v3773
    %v3781 = vmul.f32 %v3752, %v3377
    %v3782 = vmul.f32 %v3755, %v3377
    %3784 = vrot.lane.b32.xlu0 %v3782, 64
    %v3785 = vpop.permute.xlu0 %3784
    %v3787 = vadd.f32 %v3781, %v3785
    %v3788 = vmul.f32 %v3758, %v3379
    %v3789 = vadd.f32 %v3787, %v3788
    %v3790 = vmul.f32 %v3761, %v3379
    %3792 = vrot.lane.b32.xlu0 %v3790, 64
    %v3793 = vpop.permute.xlu0 %3792
    %v3795 = vadd.f32 %v3789, %v3793
    %v3796 = vmul.f32 %v3764, %v3459
    %v3797 = vadd.f32 %v3795, %v3796
    %v3798 = vmul.f32 %v3767, %v3459
    %3800 = vrot.lane.b32.xlu0 %v3798, 64
    %v3801 = vpop.permute.xlu0 %3800
    %v3803 = vadd.f32 %v3797, %v3801
    %v3804 = vmul.f32 %v3770, %v3461
    %v3805 = vadd.f32 %v3803, %v3804
    %v3806 = vmul.f32 %v3773, %v3461
    %3808 = vrot.lane.b32.xlu0 %v3806, 64
    %v3809 = vpop.permute.xlu0 %3808
    %v3811 = vadd.f32 %v3805, %v3809
    %v3812 = vrcp.pop %v3780
    %v3813 = vmul.f32 %v3811, %v3812
    %3815 = vrot.lane.b32.xlu0 %v3715, 64
    %v3816 = vpop.permute.xlu0 %3815
    %v3818 = vsel %vm511, %v3816, 0.0
    %3819 = vadd.xlane.f32.xlu0 %v3818
    %v3820 = vpop.xlane.xlu0 %3819
    %3822 = vrot.lane.b32.xlu0 %v3711, 64
    %v3823 = vpop.permute.xlu0 %3822
    %v3825 = vsel %vm511, %v3823, 0.0
    %3826 = vadd.xlane.f32.xlu0 %v3825
    %v3827 = vpop.xlane.xlu0 %3826
    %3829 = vrot.lane.b32.xlu0 %v3723, 64
    %v3830 = vpop.permute.xlu0 %3829
    %v3832 = vsel %vm511, %v3830, 0.0
    %3833 = vadd.xlane.f32.xlu0 %v3832
    %v3834 = vpop.xlane.xlu0 %3833
    %3836 = vrot.lane.b32.xlu0 %v3719, 64
    %v3837 = vpop.permute.xlu0 %3836
    %v3839 = vsel %vm511, %v3837, 0.0
    %3840 = vadd.xlane.f32.xlu0 %v3839
    %v3841 = vpop.xlane.xlu0 %3840
    %3843 = vrot.lane.b32.xlu0 %v3731, 64
    %v3844 = vpop.permute.xlu0 %3843
    %v3846 = vsel %vm511, %v3844, 0.0
    %3847 = vadd.xlane.f32.xlu0 %v3846
    %v3848 = vpop.xlane.xlu0 %3847
    %3850 = vrot.lane.b32.xlu0 %v3727, 64
    %v3851 = vpop.permute.xlu0 %3850
    %v3853 = vsel %vm511, %v3851, 0.0
    %3854 = vadd.xlane.f32.xlu0 %v3853
    %v3855 = vpop.xlane.xlu0 %3854
    %3857 = vrot.lane.b32.xlu0 %v3739, 64
    %v3858 = vpop.permute.xlu0 %3857
    %v3860 = vsel %vm511, %v3858, 0.0
    %3861 = vadd.xlane.f32.xlu0 %v3860
    %v3862 = vpop.xlane.xlu0 %3861
    %3864 = vrot.lane.b32.xlu0 %v3735, 64
    %v3865 = vpop.permute.xlu0 %3864
    %v3867 = vsel %vm511, %v3865, 0.0
    %3868 = vadd.xlane.f32.xlu0 %v3867
    %v3869 = vpop.xlane.xlu0 %3868
    %v3870 = vmax.f32 %v3820, %v3827
    %v3871 = vmax.f32 %v3870, %v3834
    %v3872 = vmax.f32 %v3871, %v3841
    %v3873 = vmax.f32 %v3872, %v3848
    %v3874 = vmax.f32 %v3873, %v3855
    %v3875 = vmax.f32 %v3874, %v3862
    %v3876 = vmax.f32 %v3875, %v3869
    %v3877 = vsub.f32 %v3820, %v3876
    %v3878 = vmul.f32 %v3877, 1.442695
    %v3879 = vpow.pop %v3878
    %v3880 = vsub.f32 %v3827, %v3876
    %v3881 = vmul.f32 %v3880, 1.442695
    %v3882 = vpow.pop %v3881
    %v3883 = vsub.f32 %v3834, %v3876
    %v3884 = vmul.f32 %v3883, 1.442695
    %v3885 = vpow.pop %v3884
    %v3886 = vsub.f32 %v3841, %v3876
    %v3887 = vmul.f32 %v3886, 1.442695
    %v3888 = vpow.pop %v3887
    %v3889 = vsub.f32 %v3848, %v3876
    %v3890 = vmul.f32 %v3889, 1.442695
    %v3891 = vpow.pop %v3890
    %v3892 = vsub.f32 %v3855, %v3876
    %v3893 = vmul.f32 %v3892, 1.442695
    %v3894 = vpow.pop %v3893
    %v3895 = vsub.f32 %v3862, %v3876
    %v3896 = vmul.f32 %v3895, 1.442695
    %v3897 = vpow.pop %v3896
    %v3898 = vsub.f32 %v3869, %v3876
    %v3899 = vmul.f32 %v3898, 1.442695
    %v3900 = vpow.pop %v3899
    %v3901 = vadd.f32 %v3879, %v3882
    %v3902 = vadd.f32 %v3901, %v3885
    %v3903 = vadd.f32 %v3902, %v3888
    %v3904 = vadd.f32 %v3903, %v3891
    %v3905 = vadd.f32 %v3904, %v3894
    %v3906 = vadd.f32 %v3905, %v3897
    %v3907 = vadd.f32 %v3906, %v3900
    %v3908 = vmul.f32 %v3879, %v3377
    %v3909 = vmul.f32 %v3882, %v3377
    %3911 = vrot.lane.b32.xlu0 %v3909, 64
    %v3912 = vpop.permute.xlu0 %3911
    %v3914 = vadd.f32 %v3908, %v3912
    %v3915 = vmul.f32 %v3885, %v3379
    %v3916 = vadd.f32 %v3914, %v3915
    %v3917 = vmul.f32 %v3888, %v3379
    %3919 = vrot.lane.b32.xlu0 %v3917, 64
    %v3920 = vpop.permute.xlu0 %3919
    %v3922 = vadd.f32 %v3916, %v3920
    %v3923 = vmul.f32 %v3891, %v3459
    %v3924 = vadd.f32 %v3922, %v3923
    %v3925 = vmul.f32 %v3894, %v3459
    %3927 = vrot.lane.b32.xlu0 %v3925, 64
    %v3928 = vpop.permute.xlu0 %3927
    %v3930 = vadd.f32 %v3924, %v3928
    %v3931 = vmul.f32 %v3897, %v3461
    %v3932 = vadd.f32 %v3930, %v3931
    %v3933 = vmul.f32 %v3900, %v3461
    %3935 = vrot.lane.b32.xlu0 %v3933, 64
    %v3936 = vpop.permute.xlu0 %3935
    %v3938 = vadd.f32 %v3932, %v3936
    %v3939 = vrcp.pop %v3907
    %v3940 = vmul.f32 %v3938, %v3939
    %v3941 = vmul.f32 %v3131, %v3213
    %v3942 = vsel %vm511, %v3941, 0.0
    %3943 = vadd.xlane.f32.xlu0 %v3942
    %v3944 = vpop.xlane.xlu0 %3943
    %v3945 = vmul.f32 %v3131, %v3471
    %v3946 = vsel %vm511, %v3945, 0.0
    %3947 = vadd.xlane.f32.xlu0 %v3946
    %v3948 = vpop.xlane.xlu0 %3947
    %v3949 = vmul.f32 %v3131, %v3215
    %v3950 = vsel %vm511, %v3949, 0.0
    %3951 = vadd.xlane.f32.xlu0 %v3950
    %v3952 = vpop.xlane.xlu0 %3951
    %v3953 = vmul.f32 %v3131, %v3483
    %v3954 = vsel %vm511, %v3953, 0.0
    %3955 = vadd.xlane.f32.xlu0 %v3954
    %v3956 = vpop.xlane.xlu0 %3955
    %v3957 = vmul.f32 %v3131, %v3295
    %v3958 = vsel %vm511, %v3957, 0.0
    %3959 = vadd.xlane.f32.xlu0 %v3958
    %v3960 = vpop.xlane.xlu0 %3959
    %v3961 = vmul.f32 %v3131, %v3495
    %v3962 = vsel %vm511, %v3961, 0.0
    %3963 = vadd.xlane.f32.xlu0 %v3962
    %v3964 = vpop.xlane.xlu0 %3963
    %v3965 = vmul.f32 %v3131, %v3297
    %v3966 = vsel %vm511, %v3965, 0.0
    %3967 = vadd.xlane.f32.xlu0 %v3966
    %v3968 = vpop.xlane.xlu0 %3967
    %v3969 = vmul.f32 %v3131, %v3507
    %v3970 = vsel %vm511, %v3969, 0.0
    %3971 = vadd.xlane.f32.xlu0 %v3970
    %v3972 = vpop.xlane.xlu0 %3971
    %v3973 = vmax.f32 %v3944, %v3948
    %v3974 = vmax.f32 %v3973, %v3952
    %v3975 = vmax.f32 %v3974, %v3956
    %v3976 = vmax.f32 %v3975, %v3960
    %v3977 = vmax.f32 %v3976, %v3964
    %v3978 = vmax.f32 %v3977, %v3968
    %v3979 = vmax.f32 %v3978, %v3972
    %v3980 = vsub.f32 %v3944, %v3979
    %v3981 = vmul.f32 %v3980, 1.442695
    %v3982 = vpow.pop %v3981
    %v3983 = vsub.f32 %v3948, %v3979
    %v3984 = vmul.f32 %v3983, 1.442695
    %v3985 = vpow.pop %v3984
    %v3986 = vsub.f32 %v3952, %v3979
    %v3987 = vmul.f32 %v3986, 1.442695
    %v3988 = vpow.pop %v3987
    %v3989 = vsub.f32 %v3956, %v3979
    %v3990 = vmul.f32 %v3989, 1.442695
    %v3991 = vpow.pop %v3990
    %v3992 = vsub.f32 %v3960, %v3979
    %v3993 = vmul.f32 %v3992, 1.442695
    %v3994 = vpow.pop %v3993
    %v3995 = vsub.f32 %v3964, %v3979
    %v3996 = vmul.f32 %v3995, 1.442695
    %v3997 = vpow.pop %v3996
    %v3998 = vsub.f32 %v3968, %v3979
    %v3999 = vmul.f32 %v3998, 1.442695
    %v4000 = vpow.pop %v3999
    %v4001 = vsub.f32 %v3972, %v3979
    %v4002 = vmul.f32 %v4001, 1.442695
    %v4003 = vpow.pop %v4002
    %v4004 = vadd.f32 %v3982, %v3985
    %v4005 = vadd.f32 %v4004, %v3988
    %v4006 = vadd.f32 %v4005, %v3991
    %v4007 = vadd.f32 %v4006, %v3994
    %v4008 = vadd.f32 %v4007, %v3997
    %v4009 = vadd.f32 %v4008, %v4000
    %v4010 = vadd.f32 %v4009, %v4003
    %v4011 = vmul.f32 %v3982, %v3377
    %v4012 = vmul.f32 %v3985, %v3377
    %4014 = vrot.lane.b32.xlu0 %v4012, 64
    %v4015 = vpop.permute.xlu0 %4014
    %v4017 = vadd.f32 %v4011, %v4015
    %v4018 = vmul.f32 %v3988, %v3379
    %v4019 = vadd.f32 %v4017, %v4018
    %v4020 = vmul.f32 %v3991, %v3379
    %4022 = vrot.lane.b32.xlu0 %v4020, 64
    %v4023 = vpop.permute.xlu0 %4022
    %v4025 = vadd.f32 %v4019, %v4023
    %v4026 = vmul.f32 %v3994, %v3459
    %v4027 = vadd.f32 %v4025, %v4026
    %v4028 = vmul.f32 %v3997, %v3459
    %4030 = vrot.lane.b32.xlu0 %v4028, 64
    %v4031 = vpop.permute.xlu0 %4030
    %v4033 = vadd.f32 %v4027, %v4031
    %v4034 = vmul.f32 %v4000, %v3461
    %v4035 = vadd.f32 %v4033, %v4034
    %v4036 = vmul.f32 %v4003, %v3461
    %4038 = vrot.lane.b32.xlu0 %v4036, 64
    %v4039 = vpop.permute.xlu0 %4038
    %v4041 = vadd.f32 %v4035, %v4039
    %v4042 = vrcp.pop %v4010
    %v4043 = vmul.f32 %v4041, %v4042
    %4045 = vrot.lane.b32.xlu0 %v3945, 64
    %v4046 = vpop.permute.xlu0 %4045
    %v4048 = vsel %vm511, %v4046, 0.0
    %4049 = vadd.xlane.f32.xlu0 %v4048
    %v4050 = vpop.xlane.xlu0 %4049
    %4052 = vrot.lane.b32.xlu0 %v3941, 64
    %v4053 = vpop.permute.xlu0 %4052
    %v4055 = vsel %vm511, %v4053, 0.0
    %4056 = vadd.xlane.f32.xlu0 %v4055
    %v4057 = vpop.xlane.xlu0 %4056
    %4059 = vrot.lane.b32.xlu0 %v3953, 64
    %v4060 = vpop.permute.xlu0 %4059
    %v4062 = vsel %vm511, %v4060, 0.0
    %4063 = vadd.xlane.f32.xlu0 %v4062
    %v4064 = vpop.xlane.xlu0 %4063
    %4066 = vrot.lane.b32.xlu0 %v3949, 64
    %v4067 = vpop.permute.xlu0 %4066
    %v4069 = vsel %vm511, %v4067, 0.0
    %4070 = vadd.xlane.f32.xlu0 %v4069
    %v4071 = vpop.xlane.xlu0 %4070
    %4073 = vrot.lane.b32.xlu0 %v3961, 64
    %v4074 = vpop.permute.xlu0 %4073
    %v4076 = vsel %vm511, %v4074, 0.0
    %4077 = vadd.xlane.f32.xlu0 %v4076
    %v4078 = vpop.xlane.xlu0 %4077
    %4080 = vrot.lane.b32.xlu0 %v3957, 64
    %v4081 = vpop.permute.xlu0 %4080
    %v4083 = vsel %vm511, %v4081, 0.0
    %4084 = vadd.xlane.f32.xlu0 %v4083
    %v4085 = vpop.xlane.xlu0 %4084
    %4087 = vrot.lane.b32.xlu0 %v3969, 64
    %v4088 = vpop.permute.xlu0 %4087
    %v4090 = vsel %vm511, %v4088, 0.0
    %4091 = vadd.xlane.f32.xlu0 %v4090
    %v4092 = vpop.xlane.xlu0 %4091
    %4094 = vrot.lane.b32.xlu0 %v3965, 64
    %v4095 = vpop.permute.xlu0 %4094
    %v4097 = vsel %vm511, %v4095, 0.0
    %4098 = vadd.xlane.f32.xlu0 %v4097
    %v4099 = vpop.xlane.xlu0 %4098
    %v4100 = vmax.f32 %v4050, %v4057
    %v4101 = vmax.f32 %v4100, %v4064
    %v4102 = vmax.f32 %v4101, %v4071
    %v4103 = vmax.f32 %v4102, %v4078
    %v4104 = vmax.f32 %v4103, %v4085
    %v4105 = vmax.f32 %v4104, %v4092
    %v4106 = vmax.f32 %v4105, %v4099
    %v4107 = vsub.f32 %v4050, %v4106
    %v4108 = vmul.f32 %v4107, 1.442695
    %v4109 = vpow.pop %v4108
    %v4110 = vsub.f32 %v4057, %v4106
    %v4111 = vmul.f32 %v4110, 1.442695
    %v4112 = vpow.pop %v4111
    %v4113 = vsub.f32 %v4064, %v4106
    %v4114 = vmul.f32 %v4113, 1.442695
    %v4115 = vpow.pop %v4114
    %v4116 = vsub.f32 %v4071, %v4106
    %v4117 = vmul.f32 %v4116, 1.442695
    %v4118 = vpow.pop %v4117
    %v4119 = vsub.f32 %v4078, %v4106
    %v4120 = vmul.f32 %v4119, 1.442695
    %v4121 = vpow.pop %v4120
    %v4122 = vsub.f32 %v4085, %v4106
    %v4123 = vmul.f32 %v4122, 1.442695
    %v4124 = vpow.pop %v4123
    %v4125 = vsub.f32 %v4092, %v4106
    %v4126 = vmul.f32 %v4125, 1.442695
    %v4127 = vpow.pop %v4126
    %v4128 = vsub.f32 %v4099, %v4106
    %v4129 = vmul.f32 %v4128, 1.442695
    %v4130 = vpow.pop %v4129
    %v4131 = vadd.f32 %v4109, %v4112
    %v4132 = vadd.f32 %v4131, %v4115
    %v4133 = vadd.f32 %v4132, %v4118
    %v4134 = vadd.f32 %v4133, %v4121
    %v4135 = vadd.f32 %v4134, %v4124
    %v4136 = vadd.f32 %v4135, %v4127
    %v4137 = vadd.f32 %v4136, %v4130
    %v4138 = vmul.f32 %v4109, %v3377
    %v4139 = vmul.f32 %v4112, %v3377
    %4141 = vrot.lane.b32.xlu0 %v4139, 64
    %v4142 = vpop.permute.xlu0 %4141
    %v4144 = vadd.f32 %v4138, %v4142
    %v4145 = vmul.f32 %v4115, %v3379
    %v4146 = vadd.f32 %v4144, %v4145
    %v4147 = vmul.f32 %v4118, %v3379
    %4149 = vrot.lane.b32.xlu0 %v4147, 64
    %v4150 = vpop.permute.xlu0 %4149
    %v4152 = vadd.f32 %v4146, %v4150
    %v4153 = vmul.f32 %v4121, %v3459
    %v4154 = vadd.f32 %v4152, %v4153
    %v4155 = vmul.f32 %v4124, %v3459
    %4157 = vrot.lane.b32.xlu0 %v4155, 64
    %v4158 = vpop.permute.xlu0 %4157
    %v4160 = vadd.f32 %v4154, %v4158
    %v4161 = vmul.f32 %v4127, %v3461
    %v4162 = vadd.f32 %v4160, %v4161
    %v4163 = vmul.f32 %v4130, %v3461
    %4165 = vrot.lane.b32.xlu0 %v4163, 64
    %v4166 = vpop.permute.xlu0 %4165
    %v4168 = vadd.f32 %v4162, %v4166
    %v4169 = vrcp.pop %v4137
    %v4170 = vmul.f32 %v4168, %v4169
    %v4171 = vmul.f32 %v3133, %v3213
    %v4172 = vsel %vm511, %v4171, 0.0
    %4173 = vadd.xlane.f32.xlu0 %v4172
    %v4174 = vpop.xlane.xlu0 %4173
    %v4175 = vmul.f32 %v3133, %v3471
    %v4176 = vsel %vm511, %v4175, 0.0
    %4177 = vadd.xlane.f32.xlu0 %v4176
    %v4178 = vpop.xlane.xlu0 %4177
    %v4179 = vmul.f32 %v3133, %v3215
    %v4180 = vsel %vm511, %v4179, 0.0
    %4181 = vadd.xlane.f32.xlu0 %v4180
    %v4182 = vpop.xlane.xlu0 %4181
    %v4183 = vmul.f32 %v3133, %v3483
    %v4184 = vsel %vm511, %v4183, 0.0
    %4185 = vadd.xlane.f32.xlu0 %v4184
    %v4186 = vpop.xlane.xlu0 %4185
    %v4187 = vmul.f32 %v3133, %v3295
    %v4188 = vsel %vm511, %v4187, 0.0
    %4189 = vadd.xlane.f32.xlu0 %v4188
    %v4190 = vpop.xlane.xlu0 %4189
    %v4191 = vmul.f32 %v3133, %v3495
    %v4192 = vsel %vm511, %v4191, 0.0
    %4193 = vadd.xlane.f32.xlu0 %v4192
    %v4194 = vpop.xlane.xlu0 %4193
    %v4195 = vmul.f32 %v3133, %v3297
    %v4196 = vsel %vm511, %v4195, 0.0
    %4197 = vadd.xlane.f32.xlu0 %v4196
    %v4198 = vpop.xlane.xlu0 %4197
    %v4199 = vmul.f32 %v3133, %v3507
    %v4200 = vsel %vm511, %v4199, 0.0
    %4201 = vadd.xlane.f32.xlu0 %v4200
    %v4202 = vpop.xlane.xlu0 %4201
    %v4203 = vmax.f32 %v4174, %v4178
    %v4204 = vmax.f32 %v4203, %v4182
    %v4205 = vmax.f32 %v4204, %v4186
    %v4206 = vmax.f32 %v4205, %v4190
    %v4207 = vmax.f32 %v4206, %v4194
    %v4208 = vmax.f32 %v4207, %v4198
    %v4209 = vmax.f32 %v4208, %v4202
    %v4210 = vsub.f32 %v4174, %v4209
    %v4211 = vmul.f32 %v4210, 1.442695
    %v4212 = vpow.pop %v4211
    %v4213 = vsub.f32 %v4178, %v4209
    %v4214 = vmul.f32 %v4213, 1.442695
    %v4215 = vpow.pop %v4214
    %v4216 = vsub.f32 %v4182, %v4209
    %v4217 = vmul.f32 %v4216, 1.442695
    %v4218 = vpow.pop %v4217
    %v4219 = vsub.f32 %v4186, %v4209
    %v4220 = vmul.f32 %v4219, 1.442695
    %v4221 = vpow.pop %v4220
    %v4222 = vsub.f32 %v4190, %v4209
    %v4223 = vmul.f32 %v4222, 1.442695
    %v4224 = vpow.pop %v4223
    %v4225 = vsub.f32 %v4194, %v4209
    %v4226 = vmul.f32 %v4225, 1.442695
    %v4227 = vpow.pop %v4226
    %v4228 = vsub.f32 %v4198, %v4209
    %v4229 = vmul.f32 %v4228, 1.442695
    %v4230 = vpow.pop %v4229
    %v4231 = vsub.f32 %v4202, %v4209
    %v4232 = vmul.f32 %v4231, 1.442695
    %v4233 = vpow.pop %v4232
    %v4234 = vadd.f32 %v4212, %v4215
    %v4235 = vadd.f32 %v4234, %v4218
    %v4236 = vadd.f32 %v4235, %v4221
    %v4237 = vadd.f32 %v4236, %v4224
    %v4238 = vadd.f32 %v4237, %v4227
    %v4239 = vadd.f32 %v4238, %v4230
    %v4240 = vadd.f32 %v4239, %v4233
    %v4241 = vmul.f32 %v4212, %v3377
    %v4242 = vmul.f32 %v4215, %v3377
    %4244 = vrot.lane.b32.xlu0 %v4242, 64
    %v4245 = vpop.permute.xlu0 %4244
    %v4247 = vadd.f32 %v4241, %v4245
    %v4248 = vmul.f32 %v4218, %v3379
    %v4249 = vadd.f32 %v4247, %v4248
    %v4250 = vmul.f32 %v4221, %v3379
    %4252 = vrot.lane.b32.xlu0 %v4250, 64
    %v4253 = vpop.permute.xlu0 %4252
    %v4255 = vadd.f32 %v4249, %v4253
    %v4256 = vmul.f32 %v4224, %v3459
    %v4257 = vadd.f32 %v4255, %v4256
    %v4258 = vmul.f32 %v4227, %v3459
    %4260 = vrot.lane.b32.xlu0 %v4258, 64
    %v4261 = vpop.permute.xlu0 %4260
    %v4263 = vadd.f32 %v4257, %v4261
    %v4264 = vmul.f32 %v4230, %v3461
    %v4265 = vadd.f32 %v4263, %v4264
    %v4266 = vmul.f32 %v4233, %v3461
    %4268 = vrot.lane.b32.xlu0 %v4266, 64
    %v4269 = vpop.permute.xlu0 %4268
    %v4271 = vadd.f32 %v4265, %v4269
    %v4272 = vrcp.pop %v4240
    %v4273 = vmul.f32 %v4271, %v4272
    %4275 = vrot.lane.b32.xlu0 %v4175, 64
    %v4276 = vpop.permute.xlu0 %4275
    %v4278 = vsel %vm511, %v4276, 0.0
    %4279 = vadd.xlane.f32.xlu0 %v4278
    %v4280 = vpop.xlane.xlu0 %4279
    %4282 = vrot.lane.b32.xlu0 %v4171, 64
    %v4283 = vpop.permute.xlu0 %4282
    %v4285 = vsel %vm511, %v4283, 0.0
    %4286 = vadd.xlane.f32.xlu0 %v4285
    %v4287 = vpop.xlane.xlu0 %4286
    %4289 = vrot.lane.b32.xlu0 %v4183, 64
    %v4290 = vpop.permute.xlu0 %4289
    %v4292 = vsel %vm511, %v4290, 0.0
    %4293 = vadd.xlane.f32.xlu0 %v4292
    %v4294 = vpop.xlane.xlu0 %4293
    %4296 = vrot.lane.b32.xlu0 %v4179, 64
    %v4297 = vpop.permute.xlu0 %4296
    %v4299 = vsel %vm511, %v4297, 0.0
    %4300 = vadd.xlane.f32.xlu0 %v4299
    %v4301 = vpop.xlane.xlu0 %4300
    %4303 = vrot.lane.b32.xlu0 %v4191, 64
    %v4304 = vpop.permute.xlu0 %4303
    %v4306 = vsel %vm511, %v4304, 0.0
    %4307 = vadd.xlane.f32.xlu0 %v4306
    %v4308 = vpop.xlane.xlu0 %4307
    %4310 = vrot.lane.b32.xlu0 %v4187, 64
    %v4311 = vpop.permute.xlu0 %4310
    %v4313 = vsel %vm511, %v4311, 0.0
    %4314 = vadd.xlane.f32.xlu0 %v4313
    %v4315 = vpop.xlane.xlu0 %4314
    %4317 = vrot.lane.b32.xlu0 %v4199, 64
    %v4318 = vpop.permute.xlu0 %4317
    %v4320 = vsel %vm511, %v4318, 0.0
    %4321 = vadd.xlane.f32.xlu0 %v4320
    %v4322 = vpop.xlane.xlu0 %4321
    %4324 = vrot.lane.b32.xlu0 %v4195, 64
    %v4325 = vpop.permute.xlu0 %4324
    %v4327 = vsel %vm511, %v4325, 0.0
    %4328 = vadd.xlane.f32.xlu0 %v4327
    %v4329 = vpop.xlane.xlu0 %4328
    %v4330 = vmax.f32 %v4280, %v4287
    %v4331 = vmax.f32 %v4330, %v4294
    %v4332 = vmax.f32 %v4331, %v4301
    %v4333 = vmax.f32 %v4332, %v4308
    %v4334 = vmax.f32 %v4333, %v4315
    %v4335 = vmax.f32 %v4334, %v4322
    %v4336 = vmax.f32 %v4335, %v4329
    %v4337 = vsub.f32 %v4280, %v4336
    %v4338 = vmul.f32 %v4337, 1.442695
    %v4339 = vpow.pop %v4338
    %v4340 = vsub.f32 %v4287, %v4336
    %v4341 = vmul.f32 %v4340, 1.442695
    %v4342 = vpow.pop %v4341
    %v4343 = vsub.f32 %v4294, %v4336
    %v4344 = vmul.f32 %v4343, 1.442695
    %v4345 = vpow.pop %v4344
    %v4346 = vsub.f32 %v4301, %v4336
    %v4347 = vmul.f32 %v4346, 1.442695
    %v4348 = vpow.pop %v4347
    %v4349 = vsub.f32 %v4308, %v4336
    %v4350 = vmul.f32 %v4349, 1.442695
    %v4351 = vpow.pop %v4350
    %v4352 = vsub.f32 %v4315, %v4336
    %v4353 = vmul.f32 %v4352, 1.442695
    %v4354 = vpow.pop %v4353
    %v4355 = vsub.f32 %v4322, %v4336
    %v4356 = vmul.f32 %v4355, 1.442695
    %v4357 = vpow.pop %v4356
    %v4358 = vsub.f32 %v4329, %v4336
    %v4359 = vmul.f32 %v4358, 1.442695
    %v4360 = vpow.pop %v4359
    %v4361 = vadd.f32 %v4339, %v4342
    %v4362 = vadd.f32 %v4361, %v4345
    %v4363 = vadd.f32 %v4362, %v4348
    %v4364 = vadd.f32 %v4363, %v4351
    %v4365 = vadd.f32 %v4364, %v4354
    %v4366 = vadd.f32 %v4365, %v4357
    %v4367 = vadd.f32 %v4366, %v4360
    %v4368 = vmul.f32 %v4339, %v3377
    %v4369 = vmul.f32 %v4342, %v3377
    %4371 = vrot.lane.b32.xlu0 %v4369, 64
    %v4372 = vpop.permute.xlu0 %4371
    %v4374 = vadd.f32 %v4368, %v4372
    %v4375 = vmul.f32 %v4345, %v3379
    %v4376 = vadd.f32 %v4374, %v4375
    %v4377 = vmul.f32 %v4348, %v3379
    %4379 = vrot.lane.b32.xlu0 %v4377, 64
    %v4380 = vpop.permute.xlu0 %4379
    %v4382 = vadd.f32 %v4376, %v4380
    %v4383 = vmul.f32 %v4351, %v3459
    %v4384 = vadd.f32 %v4382, %v4383
    %v4385 = vmul.f32 %v4354, %v3459
    %4387 = vrot.lane.b32.xlu0 %v4385, 64
    %v4388 = vpop.permute.xlu0 %4387
    %v4390 = vadd.f32 %v4384, %v4388
    %v4391 = vmul.f32 %v4357, %v3461
    %v4392 = vadd.f32 %v4390, %v4391
    %v4393 = vmul.f32 %v4360, %v3461
    %4395 = vrot.lane.b32.xlu0 %v4393, 64
    %v4396 = vpop.permute.xlu0 %4395
    %v4398 = vadd.f32 %v4392, %v4396
    %v4399 = vrcp.pop %v4367
    %v4400 = vmul.f32 %v4398, %v4399
    %4402 = vrot.lane.b32.xlu0 %v3710, 64
    %v4403 = vpop.permute.xlu0 %4402
    %4406 = vrot.lane.b32.xlu0 %v3940, 64
    %v4407 = vpop.permute.xlu0 %4406
    %4410 = vrot.lane.b32.xlu0 %v4170, 64
    %v4411 = vpop.permute.xlu0 %4410
    %4414 = vrot.lane.b32.xlu0 %v4400, 64
    %v4415 = vpop.permute.xlu0 %4414
    %v4417 = vsel %vm511, %v3583, %v4403
    %v4418 = vsel %vm511, %v3813, %v4407
    %v4419 = vsel %vm511, %v4043, %v4411
    %v4420 = vsel %vm511, %v4273, %v4415
    %s4421 = smul.u32 4, 64
    %s4422 = smul.u32 %s4421, 4
    %s4423 = sshll.u32 %s4422, 4
    %4424 = dma.done [#allocation5], %s4423
    %v4425 = vld [vmem:[#allocation2] sm:$0xff]
    %v4426 = vld [vmem:[#allocation2 + $0x8] sm:$0xff]
    %v4427 = vld [vmem:[#allocation2 + $0x10] sm:$0xff]
    %v4428 = vld [vmem:[#allocation2 + $0x18] sm:$0xff]
    %v4429 = vld [vmem:[#allocation2 + $0x20] sm:$0xff]
    %v4430 = vld [vmem:[#allocation2 + $0x28] sm:$0xff]
    %v4431 = vld [vmem:[#allocation2 + $0x30] sm:$0xff]
    %v4432 = vld [vmem:[#allocation2 + $0x38] sm:$0xff]
    %v4433 = vld [vmem:[#allocation2 + $0x40] sm:$0xff]
    %v4434 = vld [vmem:[#allocation2 + $0x48] sm:$0xff]
    %v4435 = vld [vmem:[#allocation2 + $0x50] sm:$0xff]
    %v4436 = vld [vmem:[#allocation2 + $0x58] sm:$0xff]
    %v4437 = vld [vmem:[#allocation2 + $0x60] sm:$0xff]
    %v4438 = vld [vmem:[#allocation2 + $0x68] sm:$0xff]
    %v4439 = vld [vmem:[#allocation2 + $0x70] sm:$0xff]
    %v4440 = vld [vmem:[#allocation2 + $0x78] sm:$0xff]
    %v4441 = vld [vmem:[#allocation2 + $0x80] sm:$0xff]
    %v4442 = vld [vmem:[#allocation2 + $0x88] sm:$0xff]
    %v4443 = vld [vmem:[#allocation2 + $0x90] sm:$0xff]
    %v4444 = vld [vmem:[#allocation2 + $0x98] sm:$0xff]
    %v4445 = vld [vmem:[#allocation2 + $0xa0] sm:$0xff]
    %v4446 = vld [vmem:[#allocation2 + $0xa8] sm:$0xff]
    %v4447 = vld [vmem:[#allocation2 + $0xb0] sm:$0xff]
    %v4448 = vld [vmem:[#allocation2 + $0xb8] sm:$0xff]
    %v4449 = vld [vmem:[#allocation2 + $0xc0] sm:$0xff]
    %v4450 = vld [vmem:[#allocation2 + $0xc8] sm:$0xff]
    %v4451 = vld [vmem:[#allocation2 + $0xd0] sm:$0xff]
    %v4452 = vld [vmem:[#allocation2 + $0xd8] sm:$0xff]
    %v4453 = vld [vmem:[#allocation2 + $0xe0] sm:$0xff]
    %v4454 = vld [vmem:[#allocation2 + $0xe8] sm:$0xff]
    %v4455 = vld [vmem:[#allocation2 + $0xf0] sm:$0xff]
    %v4456 = vld [vmem:[#allocation2 + $0xf8] sm:$0xff]
    %v4457 = vld [vmem:[#allocation2 + $0x100] sm:$0xff]
    %v4458 = vld [vmem:[#allocation2 + $0x108] sm:$0xff]
    %v4459 = vld [vmem:[#allocation2 + $0x110] sm:$0xff]
    %v4460 = vld [vmem:[#allocation2 + $0x118] sm:$0xff]
    %v4461 = vld [vmem:[#allocation2 + $0x120] sm:$0xff]
    %v4462 = vld [vmem:[#allocation2 + $0x128] sm:$0xff]
    %v4463 = vld [vmem:[#allocation2 + $0x130] sm:$0xff]
    %v4464 = vld [vmem:[#allocation2 + $0x138] sm:$0xff]
    %v4465 = vld [vmem:[#allocation2 + $0x140] sm:$0xff]
    %v4466 = vld [vmem:[#allocation2 + $0x148] sm:$0xff]
    %v4467 = vld [vmem:[#allocation2 + $0x150] sm:$0xff]
    %v4468 = vld [vmem:[#allocation2 + $0x158] sm:$0xff]
    %v4469 = vld [vmem:[#allocation2 + $0x160] sm:$0xff]
    %v4470 = vld [vmem:[#allocation2 + $0x168] sm:$0xff]
    %v4471 = vld [vmem:[#allocation2 + $0x170] sm:$0xff]
    %v4472 = vld [vmem:[#allocation2 + $0x178] sm:$0xff]
    %v4473 = vld [vmem:[#allocation2 + $0x180] sm:$0xff]
    %v4474 = vld [vmem:[#allocation2 + $0x188] sm:$0xff]
    %v4475 = vld [vmem:[#allocation2 + $0x190] sm:$0xff]
    %v4476 = vld [vmem:[#allocation2 + $0x198] sm:$0xff]
    %v4477 = vld [vmem:[#allocation2 + $0x1a0] sm:$0xff]
    %v4478 = vld [vmem:[#allocation2 + $0x1a8] sm:$0xff]
    %v4479 = vld [vmem:[#allocation2 + $0x1b0] sm:$0xff]
    %v4480 = vld [vmem:[#allocation2 + $0x1b8] sm:$0xff]
    %v4481 = vld [vmem:[#allocation2 + $0x1c0] sm:$0xff]
    %v4482 = vld [vmem:[#allocation2 + $0x1c8] sm:$0xff]
    %v4483 = vld [vmem:[#allocation2 + $0x1d0] sm:$0xff]
    %v4484 = vld [vmem:[#allocation2 + $0x1d8] sm:$0xff]
    %v4485 = vld [vmem:[#allocation2 + $0x1e0] sm:$0xff]
    %v4486 = vld [vmem:[#allocation2 + $0x1e8] sm:$0xff]
    %v4487 = vld [vmem:[#allocation2 + $0x1f0] sm:$0xff]
    %v4488 = vld [vmem:[#allocation2 + $0x1f8] sm:$0xff]
    %v4489 = vld [vmem:[#allocation2 + $0x200] sm:$0xff]
    %v4490 = vld [vmem:[#allocation2 + $0x208] sm:$0xff]
    %v4491 = vld [vmem:[#allocation2 + $0x210] sm:$0xff]
    %v4492 = vld [vmem:[#allocation2 + $0x218] sm:$0xff]
    %v4493 = vld [vmem:[#allocation2 + $0x220] sm:$0xff]
    %v4494 = vld [vmem:[#allocation2 + $0x228] sm:$0xff]
    %v4495 = vld [vmem:[#allocation2 + $0x230] sm:$0xff]
    %v4496 = vld [vmem:[#allocation2 + $0x238] sm:$0xff]
    %v4497 = vld [vmem:[#allocation2 + $0x240] sm:$0xff]
    %v4498 = vld [vmem:[#allocation2 + $0x248] sm:$0xff]
    %v4499 = vld [vmem:[#allocation2 + $0x250] sm:$0xff]
    %v4500 = vld [vmem:[#allocation2 + $0x258] sm:$0xff]
    %v4501 = vld [vmem:[#allocation2 + $0x260] sm:$0xff]
    %v4502 = vld [vmem:[#allocation2 + $0x268] sm:$0xff]
    %v4503 = vld [vmem:[#allocation2 + $0x270] sm:$0xff]
    %v4504 = vld [vmem:[#allocation2 + $0x278] sm:$0xff]
    %v4505 = vld [vmem:[#allocation2 + $0x280] sm:$0xff]
    %v4506 = vld [vmem:[#allocation2 + $0x288] sm:$0xff]
    %v4507 = vld [vmem:[#allocation2 + $0x290] sm:$0xff]
    %v4508 = vld [vmem:[#allocation2 + $0x298] sm:$0xff]
    %v4509 = vld [vmem:[#allocation2 + $0x2a0] sm:$0xff]
    %v4510 = vld [vmem:[#allocation2 + $0x2a8] sm:$0xff]
    %v4511 = vld [vmem:[#allocation2 + $0x2b0] sm:$0xff]
    %v4512 = vld [vmem:[#allocation2 + $0x2b8] sm:$0xff]
    %v4513 = vld [vmem:[#allocation2 + $0x2c0] sm:$0xff]
    %v4514 = vld [vmem:[#allocation2 + $0x2c8] sm:$0xff]
    %v4515 = vld [vmem:[#allocation2 + $0x2d0] sm:$0xff]
    %v4516 = vld [vmem:[#allocation2 + $0x2d8] sm:$0xff]
    %v4517 = vld [vmem:[#allocation2 + $0x2e0] sm:$0xff]
    %v4518 = vld [vmem:[#allocation2 + $0x2e8] sm:$0xff]
    %v4519 = vld [vmem:[#allocation2 + $0x2f0] sm:$0xff]
    %v4520 = vld [vmem:[#allocation2 + $0x2f8] sm:$0xff]
    %v4521 = vld [vmem:[#allocation2 + $0x300] sm:$0xff]
    %v4522 = vld [vmem:[#allocation2 + $0x308] sm:$0xff]
    %v4523 = vld [vmem:[#allocation2 + $0x310] sm:$0xff]
    %v4524 = vld [vmem:[#allocation2 + $0x318] sm:$0xff]
    %v4525 = vld [vmem:[#allocation2 + $0x320] sm:$0xff]
    %v4526 = vld [vmem:[#allocation2 + $0x328] sm:$0xff]
    %v4527 = vld [vmem:[#allocation2 + $0x330] sm:$0xff]
    %v4528 = vld [vmem:[#allocation2 + $0x338] sm:$0xff]
    %v4529 = vld [vmem:[#allocation2 + $0x340] sm:$0xff]
    %v4530 = vld [vmem:[#allocation2 + $0x348] sm:$0xff]
    %v4531 = vld [vmem:[#allocation2 + $0x350] sm:$0xff]
    %v4532 = vld [vmem:[#allocation2 + $0x358] sm:$0xff]
    %v4533 = vld [vmem:[#allocation2 + $0x360] sm:$0xff]
    %v4534 = vld [vmem:[#allocation2 + $0x368] sm:$0xff]
    %v4535 = vld [vmem:[#allocation2 + $0x370] sm:$0xff]
    %v4536 = vld [vmem:[#allocation2 + $0x378] sm:$0xff]
    %v4537 = vld [vmem:[#allocation2 + $0x380] sm:$0xff]
    %v4538 = vld [vmem:[#allocation2 + $0x388] sm:$0xff]
    %v4539 = vld [vmem:[#allocation2 + $0x390] sm:$0xff]
    %v4540 = vld [vmem:[#allocation2 + $0x398] sm:$0xff]
    %v4541 = vld [vmem:[#allocation2 + $0x3a0] sm:$0xff]
    %v4542 = vld [vmem:[#allocation2 + $0x3a8] sm:$0xff]
    %v4543 = vld [vmem:[#allocation2 + $0x3b0] sm:$0xff]
    %v4544 = vld [vmem:[#allocation2 + $0x3b8] sm:$0xff]
    %v4545 = vld [vmem:[#allocation2 + $0x3c0] sm:$0xff]
    %v4546 = vld [vmem:[#allocation2 + $0x3c8] sm:$0xff]
    %v4547 = vld [vmem:[#allocation2 + $0x3d0] sm:$0xff]
    %v4548 = vld [vmem:[#allocation2 + $0x3d8] sm:$0xff]
    %v4549 = vld [vmem:[#allocation2 + $0x3e0] sm:$0xff]
    %v4550 = vld [vmem:[#allocation2 + $0x3e8] sm:$0xff]
    %v4551 = vld [vmem:[#allocation2 + $0x3f0] sm:$0xff]
    %v4552 = vld [vmem:[#allocation2 + $0x3f8] sm:$0xff]
    %v4553 = vld [vmem:[#allocation14] sm:$0xf]
    %v4554 = vpack.c.bf16 %v4417, %v4417
    %v4555 = vpack.c.bf16 %v4418, %v4418
    %v4556 = vpack.c.bf16 %v4419, %v4419
    %v4557 = vpack.c.bf16 %v4420, %v4420
    %v4559 = vlaneseq
    %v4560 = vshrl.u32 %v4559, 7
    %v4561 = vsub.s32 0, %v4560
    %v4562 = vrot.slane %v4553, %v4561
    %v4563 = vlaneseq
    %v4564 = vshrl.u32 %v4563, 7
    %v4565 = vsub.s32 1, %v4564
    %v4566 = vrot.slane %v4553, %v4565
    %v4567 = vlaneseq
    %v4568 = vshrl.u32 %v4567, 7
    %v4569 = vsub.s32 2, %v4568
    %v4570 = vrot.slane %v4553, %v4569
    %v4571 = vlaneseq
    %v4572 = vshrl.u32 %v4571, 7
    %v4573 = vsub.s32 3, %v4572
    %v4574 = vrot.slane %v4553, %v4573
    %4579 = vmatprep.subr.bf16.mxu0 %v4426
    %4580 = vmatpush1.bf16.msra.mxu0 %v4425
    %4581 = vmatprep.subr.bf16.mxu0 %v4430
    %4582 = vmatpush1.bf16.msra.mxu0 %v4429
    %4583 = vmatprep.subr.bf16.mxu0 %v4434
    %4584 = vmatpush1.bf16.msra.mxu0 %v4433
    %4585 = vmatprep.subr.bf16.mxu0 %v4438
    %4586 = vmatpush1.bf16.msra.mxu0 %v4437
    %4587 = vmatprep.subr.bf16.mxu0 %v4442
    %4588 = vmatpush1.bf16.msra.mxu0 %v4441
    %4589 = vmatprep.subr.bf16.mxu0 %v4446
    %4590 = vmatpush1.bf16.msra.mxu0 %v4445
    %4591 = vmatprep.subr.bf16.mxu0 %v4450
    %4592 = vmatpush1.bf16.msra.mxu0 %v4449
    %4593 = vmatprep.subr.bf16.mxu0 %v4454
    %4594 = vmatpush1.bf16.msra.mxu0 %v4453
    %4595 = vmatprep.subr.bf16.mxu0 %v4458
    %4596 = vmatpush1.bf16.msra.mxu0 %v4457
    %4597 = vmatprep.subr.bf16.mxu0 %v4462
    %4598 = vmatpush1.bf16.msra.mxu0 %v4461
    %4599 = vmatprep.subr.bf16.mxu0 %v4466
    %4600 = vmatpush1.bf16.msra.mxu0 %v4465
    %4601 = vmatprep.subr.bf16.mxu0 %v4470
    %4602 = vmatpush1.bf16.msra.mxu0 %v4469
    %4603 = vmatprep.subr.bf16.mxu0 %v4474
    %4604 = vmatpush1.bf16.msra.mxu0 %v4473
    %4605 = vmatprep.subr.bf16.mxu0 %v4478
    %4606 = vmatpush1.bf16.msra.mxu0 %v4477
    %4607 = vmatprep.subr.bf16.mxu0 %v4482
    %4608 = vmatpush1.bf16.msra.mxu0 %v4481
    %4609 = vmatprep.subr.bf16.mxu0 %v4486
    %4610 = vmatpush1.bf16.msra.mxu0 %v4485
    %4611 = vmatprep.mubr.bf16.mxu0 %v4555
    %4612 = vmatmul.mubr.bf16.gmra.mrb[0].mxu0 %v4554
    %v4613 = vpop.f32.mrb[0].mxu0
    %v4614 = vadd.f32 %v4562, %v4613
    %v4615 = vpop.f32.mrb[0].mxu0
    %v4616 = vadd.f32 %v4566, %v4615
    %v4617 = vpop.f32.mrb[0].mxu0
    %v4618 = vpop.f32.mrb[0].mxu0
    %4619 = vdwg.mxu0
    %4620 = vmatprep.subr.bf16.mxu0 %v4490
    %4621 = vmatpush1.bf16.msra.mxu0 %v4489
    %4622 = vmatprep.subr.bf16.mxu0 %v4494
    %4623 = vmatpush1.bf16.msra.mxu0 %v4493
    %4624 = vmatprep.subr.bf16.mxu0 %v4498
    %4625 = vmatpush1.bf16.msra.mxu0 %v4497
    %4626 = vmatprep.subr.bf16.mxu0 %v4502
    %4627 = vmatpush1.bf16.msra.mxu0 %v4501
    %4628 = vmatprep.subr.bf16.mxu0 %v4506
    %4629 = vmatpush1.bf16.msra.mxu0 %v4505
    %4630 = vmatprep.subr.bf16.mxu0 %v4510
    %4631 = vmatpush1.bf16.msra.mxu0 %v4509
    %4632 = vmatprep.subr.bf16.mxu0 %v4514
    %4633 = vmatpush1.bf16.msra.mxu0 %v4513
    %4634 = vmatprep.subr.bf16.mxu0 %v4518
    %4635 = vmatpush1.bf16.msra.mxu0 %v4517
    %4636 = vmatprep.subr.bf16.mxu0 %v4522
    %4637 = vmatpush1.bf16.msra.mxu0 %v4521
    %4638 = vmatprep.subr.bf16.mxu0 %v4526
    %4639 = vmatpush1.bf16.msra.mxu0 %v4525
    %4640 = vmatprep.subr.bf16.mxu0 %v4530
    %4641 = vmatpush1.bf16.msra.mxu0 %v4529
    %4642 = vmatprep.subr.bf16.mxu0 %v4534
    %4643 = vmatpush1.bf16.msra.mxu0 %v4533
    %4644 = vmatprep.subr.bf16.mxu0 %v4538
    %4645 = vmatpush1.bf16.msra.mxu0 %v4537
    %4646 = vmatprep.subr.bf16.mxu0 %v4542
    %4647 = vmatpush1.bf16.msra.mxu0 %v4541
    %4648 = vmatprep.subr.bf16.mxu0 %v4546
    %4649 = vmatpush1.bf16.msra.mxu0 %v4545
    %4650 = vmatprep.subr.bf16.mxu0 %v4550
    %4651 = vmatpush1.bf16.msra.mxu0 %v4549
    %4652 = vmatprep.mubr.bf16.mxu0 %v4557
    %4653 = vmatmul.mubr.bf16.gmra.mrb[0].mxu0 %v4556
    %v4654 = vpop.f32.mrb[0].mxu0
    %v4655 = vadd.f32 %v4614, %v4654
    %v4656 = vpop.f32.mrb[0].mxu0
    %v4657 = vadd.f32 %v4616, %v4656
    %v4658 = vpop.f32.mrb[0].mxu0
    %v4659 = vpop.f32.mrb[0].mxu0
    %4660 = vdwg.mxu0
    %4661 = vmatprep.subr.bf16.mxu0 %v4428
    %4662 = vmatpush1.bf16.msra.mxu0 %v4427
    %4663 = vmatprep.subr.bf16.mxu0 %v4432
    %4664 = vmatpush1.bf16.msra.mxu0 %v4431
    %4665 = vmatprep.subr.bf16.mxu0 %v4436
    %4666 = vmatpush1.bf16.msra.mxu0 %v4435
    %4667 = vmatprep.subr.bf16.mxu0 %v4440
    %4668 = vmatpush1.bf16.msra.mxu0 %v4439
    %4669 = vmatprep.subr.bf16.mxu0 %v4444
    %4670 = vmatpush1.bf16.msra.mxu0 %v4443
    %4671 = vmatprep.subr.bf16.mxu0 %v4448
    %4672 = vmatpush1.bf16.msra.mxu0 %v4447
    %4673 = vmatprep.subr.bf16.mxu0 %v4452
    %4674 = vmatpush1.bf16.msra.mxu0 %v4451
    %4675 = vmatprep.subr.bf16.mxu0 %v4456
    %4676 = vmatpush1.bf16.msra.mxu0 %v4455
    %4677 = vmatprep.subr.bf16.mxu0 %v4460
    %4678 = vmatpush1.bf16.msra.mxu0 %v4459
    %4679 = vmatprep.subr.bf16.mxu0 %v4464
    %4680 = vmatpush1.bf16.msra.mxu0 %v4463
    %4681 = vmatprep.subr.bf16.mxu0 %v4468
    %4682 = vmatpush1.bf16.msra.mxu0 %v4467
    %4683 = vmatprep.subr.bf16.mxu0 %v4472
    %4684 = vmatpush1.bf16.msra.mxu0 %v4471
    %4685 = vmatprep.subr.bf16.mxu0 %v4476
    %4686 = vmatpush1.bf16.msra.mxu0 %v4475
    %4687 = vmatprep.subr.bf16.mxu0 %v4480
    %4688 = vmatpush1.bf16.msra.mxu0 %v4479
    %4689 = vmatprep.subr.bf16.mxu0 %v4484
    %4690 = vmatpush1.bf16.msra.mxu0 %v4483
    %4691 = vmatprep.subr.bf16.mxu0 %v4488
    %4692 = vmatpush1.bf16.msra.mxu0 %v4487
    %4693 = vmatprep.mubr.bf16.mxu0 %v4555
    %4694 = vmatmul.mubr.bf16.gmra.mrb[0].mxu0 %v4554
    %v4695 = vpop.f32.mrb[0].mxu0
    %v4696 = vadd.f32 %v4570, %v4695
    %v4697 = vpop.f32.mrb[0].mxu0
    %v4698 = vadd.f32 %v4574, %v4697
    %v4699 = vpop.f32.mrb[0].mxu0
    %v4700 = vpop.f32.mrb[0].mxu0
    %4701 = vdwg.mxu0
    %4702 = vmatprep.subr.bf16.mxu0 %v4492
    %4703 = vmatpush1.bf16.msra.mxu0 %v4491
    %4704 = vmatprep.subr.bf16.mxu0 %v4496
    %4705 = vmatpush1.bf16.msra.mxu0 %v4495
    %4706 = vmatprep.subr.bf16.mxu0 %v4500
    %4707 = vmatpush1.bf16.msra.mxu0 %v4499
    %4708 = vmatprep.subr.bf16.mxu0 %v4504
    %4709 = vmatpush1.bf16.msra.mxu0 %v4503
    %4710 = vmatprep.subr.bf16.mxu0 %v4508
    %4711 = vmatpush1.bf16.msra.mxu0 %v4507
    %4712 = vmatprep.subr.bf16.mxu0 %v4512
    %4713 = vmatpush1.bf16.msra.mxu0 %v4511
    %4714 = vmatprep.subr.bf16.mxu0 %v4516
    %4715 = vmatpush1.bf16.msra.mxu0 %v4515
    %4716 = vmatprep.subr.bf16.mxu0 %v4520
    %4717 = vmatpush1.bf16.msra.mxu0 %v4519
    %4718 = vmatprep.subr.bf16.mxu0 %v4524
    %4719 = vmatpush1.bf16.msra.mxu0 %v4523
    %4720 = vmatprep.subr.bf16.mxu0 %v4528
    %4721 = vmatpush1.bf16.msra.mxu0 %v4527
    %4722 = vmatprep.subr.bf16.mxu0 %v4532
    %4723 = vmatpush1.bf16.msra.mxu0 %v4531
    %4724 = vmatprep.subr.bf16.mxu0 %v4536
    %4725 = vmatpush1.bf16.msra.mxu0 %v4535
    %4726 = vmatprep.subr.bf16.mxu0 %v4540
    %4727 = vmatpush1.bf16.msra.mxu0 %v4539
    %4728 = vmatprep.subr.bf16.mxu0 %v4544
    %4729 = vmatpush1.bf16.msra.mxu0 %v4543
    %4730 = vmatprep.subr.bf16.mxu0 %v4548
    %4731 = vmatpush1.bf16.msra.mxu0 %v4547
    %4732 = vmatprep.subr.bf16.mxu0 %v4552
    %4733 = vmatpush1.bf16.msra.mxu0 %v4551
    %4734 = vmatprep.mubr.bf16.mxu0 %v4557
    %4735 = vmatmul.mubr.bf16.gmra.mrb[0].mxu0 %v4556
    %v4736 = vpop.f32.mrb[0].mxu0
    %v4737 = vadd.f32 %v4696, %v4736
    %v4738 = vpop.f32.mrb[0].mxu0
    %v4739 = vadd.f32 %v4698, %v4738
    %v4740 = vpop.f32.mrb[0].mxu0
    %v4741 = vpop.f32.mrb[0].mxu0
    %4742 = vdwg.mxu0
    %v4743 = vadd.f32 %v4655, %v597
    %v4744 = vadd.f32 %v4657, %v598
    %v4745 = vadd.f32 %v4737, %v599
    %v4746 = vadd.f32 %v4739, %v600
    %v4747 = vadd.f32 %v4743, %v4744
    %v4748 = vadd.f32 %v4747, %v4745
    %v4749 = vadd.f32 %v4748, %v4746
    %4750 = vadd.xlane.f32.xlu0 %v4749
    %v4751 = vpop.xlane.xlu0 %4750
    %v4752 = vrcp.pop 512.0
    %v4753 = vmul.f32 %v4751, %v4752
    %v4754 = vsub.f32 %v4743, %v4753
    %v4755 = vsub.f32 %v4744, %v4753
    %v4756 = vsub.f32 %v4745, %v4753
    %v4757 = vsub.f32 %v4746, %v4753
    %v4758 = vmul.f32 %v4754, %v4754
    %v4759 = vmul.f32 %v4755, %v4755
    %v4760 = vmul.f32 %v4756, %v4756
    %v4761 = vmul.f32 %v4757, %v4757
    %v4762 = vadd.f32 %v4758, %v4759
    %v4763 = vadd.f32 %v4762, %v4760
    %v4764 = vadd.f32 %v4763, %v4761
    %4765 = vadd.xlane.f32.xlu0 %v4764
    %v4766 = vpop.xlane.xlu0 %4765
    %v4767 = vmul.f32 %v4766, %v4752
    %v4768 = vadd.f32 %v4767, 1e-05
    %v4769 = vrsqrt.pop %v4768
    %v4770 = vmul.f32 %v4754, %v4769
    %v4771 = vmul.f32 %v4755, %v4769
    %v4772 = vmul.f32 %v4756, %v4769
    %v4773 = vmul.f32 %v4757, %v4769
    %v4774 = vld [vmem:[#allocation16] sm:$0xf]
    %v4776 = vlaneseq
    %v4777 = vshrl.u32 %v4776, 7
    %v4778 = vsub.s32 0, %v4777
    %v4779 = vrot.slane %v4774, %v4778
    %v4780 = vlaneseq
    %v4781 = vshrl.u32 %v4780, 7
    %v4782 = vsub.s32 1, %v4781
    %v4783 = vrot.slane %v4774, %v4782
    %v4784 = vlaneseq
    %v4785 = vshrl.u32 %v4784, 7
    %v4786 = vsub.s32 2, %v4785
    %v4787 = vrot.slane %v4774, %v4786
    %v4788 = vlaneseq
    %v4789 = vshrl.u32 %v4788, 7
    %v4790 = vsub.s32 3, %v4789
    %v4791 = vrot.slane %v4774, %v4790
    %v4796 = vmul.f32 %v4770, %v4779
    %v4797 = vmul.f32 %v4771, %v4783
    %v4798 = vmul.f32 %v4772, %v4787
    %v4799 = vmul.f32 %v4773, %v4791
    %v4800 = vld [vmem:[#allocation17] sm:$0xf]
    %v4802 = vlaneseq
    %v4803 = vshrl.u32 %v4802, 7
    %v4804 = vsub.s32 0, %v4803
    %v4805 = vrot.slane %v4800, %v4804
    %v4806 = vlaneseq
    %v4807 = vshrl.u32 %v4806, 7
    %v4808 = vsub.s32 1, %v4807
    %v4809 = vrot.slane %v4800, %v4808
    %v4810 = vlaneseq
    %v4811 = vshrl.u32 %v4810, 7
    %v4812 = vsub.s32 2, %v4811
    %v4813 = vrot.slane %v4800, %v4812
    %v4814 = vlaneseq
    %v4815 = vshrl.u32 %v4814, 7
    %v4816 = vsub.s32 3, %v4815
    %v4817 = vrot.slane %v4800, %v4816
    %v4822 = vadd.f32 %v4796, %v4805
    %v4823 = vadd.f32 %v4797, %v4809
    %v4824 = vadd.f32 %v4798, %v4813
    %v4825 = vadd.f32 %v4799, %v4817
    %s4826 = smul.u32 4, 3
    %s4827 = smul.u32 %s4826, 64
    %s4828 = smul.u32 %s4827, 2
    %s4829 = sshll.u32 %s4828, 4
    %4830 = dma.done %s321, %s4829
    %s4831 = smul.u32 4, 2
    %s4832 = smul.u32 %s4831, 32
    %s4833 = smul.u32 %s4832, 4
    %s4834 = sshll.u32 %s4833, 4
    %4835 = dma.done %s356, %s4834
    %v4836 = vld [vmem:[#allocation3] sm:$0xff]
    %v4837 = vld [vmem:[#allocation3 + $0x8] sm:$0xff]
    %v4838 = vld [vmem:[#allocation3 + $0x10] sm:$0xff]
    %v4839 = vld [vmem:[#allocation3 + $0x18] sm:$0xff]
    %v4840 = vld [vmem:[#allocation3 + $0x20] sm:$0xff]
    %v4841 = vld [vmem:[#allocation3 + $0x28] sm:$0xff]
    %v4842 = vld [vmem:[#allocation3 + $0x30] sm:$0xff]
    %v4843 = vld [vmem:[#allocation3 + $0x38] sm:$0xff]
    %v4844 = vld [vmem:[#allocation3 + $0x40] sm:$0xff]
    %v4845 = vld [vmem:[#allocation3 + $0x48] sm:$0xff]
    %v4846 = vld [vmem:[#allocation3 + $0x50] sm:$0xff]
    %v4847 = vld [vmem:[#allocation3 + $0x58] sm:$0xff]
    %v4848 = vld [vmem:[#allocation3 + $0x60] sm:$0xff]
    %v4849 = vld [vmem:[#allocation3 + $0x68] sm:$0xff]
    %v4850 = vld [vmem:[#allocation3 + $0x70] sm:$0xff]
    %v4851 = vld [vmem:[#allocation3 + $0x78] sm:$0xff]
    %v4852 = vld [vmem:[#allocation3 + $0x80] sm:$0xff]
    %v4853 = vld [vmem:[#allocation3 + $0x88] sm:$0xff]
    %v4854 = vld [vmem:[#allocation3 + $0x90] sm:$0xff]
    %v4855 = vld [vmem:[#allocation3 + $0x98] sm:$0xff]
    %v4856 = vld [vmem:[#allocation3 + $0xa0] sm:$0xff]
    %v4857 = vld [vmem:[#allocation3 + $0xa8] sm:$0xff]
    %v4858 = vld [vmem:[#allocation3 + $0xb0] sm:$0xff]
    %v4859 = vld [vmem:[#allocation3 + $0xb8] sm:$0xff]
    %v4860 = vld [vmem:[#allocation3 + $0xc0] sm:$0xff]
    %v4861 = vld [vmem:[#allocation3 + $0xc8] sm:$0xff]
    %v4862 = vld [vmem:[#allocation3 + $0xd0] sm:$0xff]
    %v4863 = vld [vmem:[#allocation3 + $0xd8] sm:$0xff]
    %v4864 = vld [vmem:[#allocation3 + $0xe0] sm:$0xff]
    %v4865 = vld [vmem:[#allocation3 + $0xe8] sm:$0xff]
    %v4866 = vld [vmem:[#allocation3 + $0xf0] sm:$0xff]
    %v4867 = vld [vmem:[#allocation3 + $0xf8] sm:$0xff]
    %v4868 = vld [vmem:[#allocation3 + $0x100] sm:$0xff]
    %v4869 = vld [vmem:[#allocation3 + $0x108] sm:$0xff]
    %v4870 = vld [vmem:[#allocation3 + $0x110] sm:$0xff]
    %v4871 = vld [vmem:[#allocation3 + $0x118] sm:$0xff]
    %v4872 = vld [vmem:[#allocation3 + $0x120] sm:$0xff]
    %v4873 = vld [vmem:[#allocation3 + $0x128] sm:$0xff]
    %v4874 = vld [vmem:[#allocation3 + $0x130] sm:$0xff]
    %v4875 = vld [vmem:[#allocation3 + $0x138] sm:$0xff]
    %v4876 = vld [vmem:[#allocation3 + $0x140] sm:$0xff]
    %v4877 = vld [vmem:[#allocation3 + $0x148] sm:$0xff]
    %v4878 = vld [vmem:[#allocation3 + $0x150] sm:$0xff]
    %v4879 = vld [vmem:[#allocation3 + $0x158] sm:$0xff]
    %v4880 = vld [vmem:[#allocation3 + $0x160] sm:$0xff]
    %v4881 = vld [vmem:[#allocation3 + $0x168] sm:$0xff]
    %v4882 = vld [vmem:[#allocation3 + $0x170] sm:$0xff]
    %v4883 = vld [vmem:[#allocation3 + $0x178] sm:$0xff]
    %v4884 = vld [vmem:[#allocation3 + $0x180] sm:$0xff]
    %v4885 = vld [vmem:[#allocation3 + $0x188] sm:$0xff]
    %v4886 = vld [vmem:[#allocation3 + $0x190] sm:$0xff]
    %v4887 = vld [vmem:[#allocation3 + $0x198] sm:$0xff]
    %v4888 = vld [vmem:[#allocation3 + $0x1a0] sm:$0xff]
    %v4889 = vld [vmem:[#allocation3 + $0x1a8] sm:$0xff]
    %v4890 = vld [vmem:[#allocation3 + $0x1b0] sm:$0xff]
    %v4891 = vld [vmem:[#allocation3 + $0x1b8] sm:$0xff]
    %v4892 = vld [vmem:[#allocation3 + $0x1c0] sm:$0xff]
    %v4893 = vld [vmem:[#allocation3 + $0x1c8] sm:$0xff]
    %v4894 = vld [vmem:[#allocation3 + $0x1d0] sm:$0xff]
    %v4895 = vld [vmem:[#allocation3 + $0x1d8] sm:$0xff]
    %v4896 = vld [vmem:[#allocation3 + $0x1e0] sm:$0xff]
    %v4897 = vld [vmem:[#allocation3 + $0x1e8] sm:$0xff]
    %v4898 = vld [vmem:[#allocation3 + $0x1f0] sm:$0xff]
    %v4899 = vld [vmem:[#allocation3 + $0x1f8] sm:$0xff]
    %v4900 = vld [vmem:[#allocation19] sm:$0x3]
    %v4901 = vld [vmem:[#allocation4] sm:$0xff]
    %v4902 = vld [vmem:[#allocation4 + $0x8] sm:$0xff]
    %v4903 = vld [vmem:[#allocation4 + $0x10] sm:$0xff]
    %v4904 = vld [vmem:[#allocation4 + $0x18] sm:$0xff]
    %v4905 = vld [vmem:[#allocation4 + $0x20] sm:$0xff]
    %v4906 = vld [vmem:[#allocation4 + $0x28] sm:$0xff]
    %v4907 = vld [vmem:[#allocation4 + $0x30] sm:$0xff]
    %v4908 = vld [vmem:[#allocation4 + $0x38] sm:$0xff]
    %v4909 = vld [vmem:[#allocation4 + $0x40] sm:$0xff]
    %v4910 = vld [vmem:[#allocation4 + $0x48] sm:$0xff]
    %v4911 = vld [vmem:[#allocation4 + $0x50] sm:$0xff]
    %v4912 = vld [vmem:[#allocation4 + $0x58] sm:$0xff]
    %v4913 = vld [vmem:[#allocation4 + $0x60] sm:$0xff]
    %v4914 = vld [vmem:[#allocation4 + $0x68] sm:$0xff]
    %v4915 = vld [vmem:[#allocation4 + $0x70] sm:$0xff]
    %v4916 = vld [vmem:[#allocation4 + $0x78] sm:$0xff]
    %v4917 = vld [vmem:[#allocation4 + $0x80] sm:$0xff]
    %v4918 = vld [vmem:[#allocation4 + $0x88] sm:$0xff]
    %v4919 = vld [vmem:[#allocation4 + $0x90] sm:$0xff]
    %v4920 = vld [vmem:[#allocation4 + $0x98] sm:$0xff]
    %v4921 = vld [vmem:[#allocation4 + $0xa0] sm:$0xff]
    %v4922 = vld [vmem:[#allocation4 + $0xa8] sm:$0xff]
    %v4923 = vld [vmem:[#allocation4 + $0xb0] sm:$0xff]
    %v4924 = vld [vmem:[#allocation4 + $0xb8] sm:$0xff]
    %v4925 = vld [vmem:[#allocation4 + $0xc0] sm:$0xff]
    %v4926 = vld [vmem:[#allocation4 + $0xc8] sm:$0xff]
    %v4927 = vld [vmem:[#allocation4 + $0xd0] sm:$0xff]
    %v4928 = vld [vmem:[#allocation4 + $0xd8] sm:$0xff]
    %v4929 = vld [vmem:[#allocation4 + $0xe0] sm:$0xff]
    %v4930 = vld [vmem:[#allocation4 + $0xe8] sm:$0xff]
    %v4931 = vld [vmem:[#allocation4 + $0xf0] sm:$0xff]
    %v4932 = vld [vmem:[#allocation4 + $0xf8] sm:$0xff]
    %v4933 = vld [vmem:[#allocation4 + $0x100] sm:$0xff]
    %v4934 = vld [vmem:[#allocation4 + $0x108] sm:$0xff]
    %v4935 = vld [vmem:[#allocation4 + $0x110] sm:$0xff]
    %v4936 = vld [vmem:[#allocation4 + $0x118] sm:$0xff]
    %v4937 = vld [vmem:[#allocation4 + $0x120] sm:$0xff]
    %v4938 = vld [vmem:[#allocation4 + $0x128] sm:$0xff]
    %v4939 = vld [vmem:[#allocation4 + $0x130] sm:$0xff]
    %v4940 = vld [vmem:[#allocation4 + $0x138] sm:$0xff]
    %v4941 = vld [vmem:[#allocation4 + $0x140] sm:$0xff]
    %v4942 = vld [vmem:[#allocation4 + $0x148] sm:$0xff]
    %v4943 = vld [vmem:[#allocation4 + $0x150] sm:$0xff]
    %v4944 = vld [vmem:[#allocation4 + $0x158] sm:$0xff]
    %v4945 = vld [vmem:[#allocation4 + $0x160] sm:$0xff]
    %v4946 = vld [vmem:[#allocation4 + $0x168] sm:$0xff]
    %v4947 = vld [vmem:[#allocation4 + $0x170] sm:$0xff]
    %v4948 = vld [vmem:[#allocation4 + $0x178] sm:$0xff]
    %v4949 = vld [vmem:[#allocation4 + $0x180] sm:$0xff]
    %v4950 = vld [vmem:[#allocation4 + $0x188] sm:$0xff]
    %v4951 = vld [vmem:[#allocation4 + $0x190] sm:$0xff]
    %v4952 = vld [vmem:[#allocation4 + $0x198] sm:$0xff]
    %v4953 = vld [vmem:[#allocation4 + $0x1a0] sm:$0xff]
    %v4954 = vld [vmem:[#allocation4 + $0x1a8] sm:$0xff]
    %v4955 = vld [vmem:[#allocation4 + $0x1b0] sm:$0xff]
    %v4956 = vld [vmem:[#allocation4 + $0x1b8] sm:$0xff]
    %v4957 = vld [vmem:[#allocation4 + $0x1c0] sm:$0xff]
    %v4958 = vld [vmem:[#allocation4 + $0x1c8] sm:$0xff]
    %v4959 = vld [vmem:[#allocation4 + $0x1d0] sm:$0xff]
    %v4960 = vld [vmem:[#allocation4 + $0x1d8] sm:$0xff]
    %v4961 = vld [vmem:[#allocation4 + $0x1e0] sm:$0xff]
    %v4962 = vld [vmem:[#allocation4 + $0x1e8] sm:$0xff]
    %v4963 = vld [vmem:[#allocation4 + $0x1f0] sm:$0xff]
    %v4964 = vld [vmem:[#allocation4 + $0x1f8] sm:$0xff]
    %v4965 = vld [vmem:[#allocation20] sm:$0xf]
    %v4966 = vpack.c.bf16 %v4822, %v4822
    %v4967 = vpack.c.bf16 %v4823, %v4823
    %v4968 = vpack.c.bf16 %v4824, %v4824
    %v4969 = vpack.c.bf16 %v4825, %v4825
    %v4971 = vlaneseq
    %v4972 = vshrl.u32 %v4971, 7
    %v4973 = vsub.s32 0, %v4972
    %v4974 = vrot.slane %v4900, %v4973
    %v4975 = vlaneseq
    %v4976 = vshrl.u32 %v4975, 7
    %v4977 = vsub.s32 1, %v4976
    %v4978 = vrot.slane %v4900, %v4977
    %4981 = vmatprep.subr.bf16.mxu0 %v4837
    %4982 = vmatpush1.bf16.msra.mxu0 %v4836
    %4983 = vmatprep.subr.bf16.mxu0 %v4839
    %4984 = vmatpush1.bf16.msra.mxu0 %v4838
    %4985 = vmatprep.subr.bf16.mxu0 %v4841
    %4986 = vmatpush1.bf16.msra.mxu0 %v4840
    %4987 = vmatprep.subr.bf16.mxu0 %v4843
    %4988 = vmatpush1.bf16.msra.mxu0 %v4842
    %4989 = vmatprep.subr.bf16.mxu0 %v4845
    %4990 = vmatpush1.bf16.msra.mxu0 %v4844
    %4991 = vmatprep.subr.bf16.mxu0 %v4847
    %4992 = vmatpush1.bf16.msra.mxu0 %v4846
    %4993 = vmatprep.subr.bf16.mxu0 %v4849
    %4994 = vmatpush1.bf16.msra.mxu0 %v4848
    %4995 = vmatprep.subr.bf16.mxu0 %v4851
    %4996 = vmatpush1.bf16.msra.mxu0 %v4850
    %4997 = vmatprep.subr.bf16.mxu0 %v4853
    %4998 = vmatpush1.bf16.msra.mxu0 %v4852
    %4999 = vmatprep.subr.bf16.mxu0 %v4855
    %5000 = vmatpush1.bf16.msra.mxu0 %v4854
    %5001 = vmatprep.subr.bf16.mxu0 %v4857
    %5002 = vmatpush1.bf16.msra.mxu0 %v4856
    %5003 = vmatprep.subr.bf16.mxu0 %v4859
    %5004 = vmatpush1.bf16.msra.mxu0 %v4858
    %5005 = vmatprep.subr.bf16.mxu0 %v4861
    %5006 = vmatpush1.bf16.msra.mxu0 %v4860
    %5007 = vmatprep.subr.bf16.mxu0 %v4863
    %5008 = vmatpush1.bf16.msra.mxu0 %v4862
    %5009 = vmatprep.subr.bf16.mxu0 %v4865
    %5010 = vmatpush1.bf16.msra.mxu0 %v4864
    %5011 = vmatprep.subr.bf16.mxu0 %v4867
    %5012 = vmatpush1.bf16.msra.mxu0 %v4866
    %5013 = vmatprep.mubr.bf16.mxu0 %v4967
    %5014 = vmatmul.mubr.bf16.gmra.mrb[0].mxu0 %v4966
    %v5015 = vpop.f32.mrb[0].mxu0
    %v5016 = vadd.f32 %v4974, %v5015
    %v5017 = vpop.f32.mrb[0].mxu0
    %v5018 = vadd.f32 %v4978, %v5017
    %v5019 = vpop.f32.mrb[0].mxu0
    %v5020 = vpop.f32.mrb[0].mxu0
    %5021 = vdwg.mxu0
    %5022 = vmatprep.subr.bf16.mxu0 %v4869
    %5023 = vmatpush1.bf16.msra.mxu0 %v4868
    %5024 = vmatprep.subr.bf16.mxu0 %v4871
    %5025 = vmatpush1.bf16.msra.mxu0 %v4870
    %5026 = vmatprep.subr.bf16.mxu0 %v4873
    %5027 = vmatpush1.bf16.msra.mxu0 %v4872
    %5028 = vmatprep.subr.bf16.mxu0 %v4875
    %5029 = vmatpush1.bf16.msra.mxu0 %v4874
    %5030 = vmatprep.subr.bf16.mxu0 %v4877
    %5031 = vmatpush1.bf16.msra.mxu0 %v4876
    %5032 = vmatprep.subr.bf16.mxu0 %v4879
    %5033 = vmatpush1.bf16.msra.mxu0 %v4878
    %5034 = vmatprep.subr.bf16.mxu0 %v4881
    %5035 = vmatpush1.bf16.msra.mxu0 %v4880
    %5036 = vmatprep.subr.bf16.mxu0 %v4883
    %5037 = vmatpush1.bf16.msra.mxu0 %v4882
    %5038 = vmatprep.subr.bf16.mxu0 %v4885
    %5039 = vmatpush1.bf16.msra.mxu0 %v4884
    %5040 = vmatprep.subr.bf16.mxu0 %v4887
    %5041 = vmatpush1.bf16.msra.mxu0 %v4886
    %5042 = vmatprep.subr.bf16.mxu0 %v4889
    %5043 = vmatpush1.bf16.msra.mxu0 %v4888
    %5044 = vmatprep.subr.bf16.mxu0 %v4891
    %5045 = vmatpush1.bf16.msra.mxu0 %v4890
    %5046 = vmatprep.subr.bf16.mxu0 %v4893
    %5047 = vmatpush1.bf16.msra.mxu0 %v4892
    %5048 = vmatprep.subr.bf16.mxu0 %v4895
    %5049 = vmatpush1.bf16.msra.mxu0 %v4894
    %5050 = vmatprep.subr.bf16.mxu0 %v4897
    %5051 = vmatpush1.bf16.msra.mxu0 %v4896
    %5052 = vmatprep.subr.bf16.mxu0 %v4899
    %5053 = vmatpush1.bf16.msra.mxu0 %v4898
    %5054 = vmatprep.mubr.bf16.mxu0 %v4969
    %5055 = vmatmul.mubr.bf16.gmra.mrb[0].mxu0 %v4968
    %v5056 = vpop.f32.mrb[0].mxu0
    %v5057 = vadd.f32 %v5016, %v5056
    %v5058 = vpop.f32.mrb[0].mxu0
    %v5059 = vadd.f32 %v5018, %v5058
    %v5060 = vpop.f32.mrb[0].mxu0
    %v5061 = vpop.f32.mrb[0].mxu0
    %5062 = vdwg.mxu0
    %v5063 = vmax.f32 %v5057, 0.0
    %v5064 = vmax.f32 %v5059, 0.0
    %v5065 = vpack.c.bf16 %v5063, %v5063
    %v5066 = vpack.c.bf16 %v5064, %v5064
    %v5068 = vlaneseq
    %v5069 = vshrl.u32 %v5068, 7
    %v5070 = vsub.s32 0, %v5069
    %v5071 = vrot.slane %v4965, %v5070
    %v5072 = vlaneseq
    %v5073 = vshrl.u32 %v5072, 7
    %v5074 = vsub.s32 1, %v5073
    %v5075 = vrot.slane %v4965, %v5074
    %v5076 = vlaneseq
    %v5077 = vshrl.u32 %v5076, 7
    %v5078 = vsub.s32 2, %v5077
    %v5079 = vrot.slane %v4965, %v5078
    %v5080 = vlaneseq
    %v5081 = vshrl.u32 %v5080, 7
    %v5082 = vsub.s32 3, %v5081
    %v5083 = vrot.slane %v4965, %v5082
    %5088 = vmatprep.subr.bf16.mxu0 %v4902
    %5089 = vmatpush1.bf16.msra.mxu0 %v4901
    %5090 = vmatprep.subr.bf16.mxu0 %v4906
    %5091 = vmatpush1.bf16.msra.mxu0 %v4905
    %5092 = vmatprep.subr.bf16.mxu0 %v4910
    %5093 = vmatpush1.bf16.msra.mxu0 %v4909
    %5094 = vmatprep.subr.bf16.mxu0 %v4914
    %5095 = vmatpush1.bf16.msra.mxu0 %v4913
    %5096 = vmatprep.subr.bf16.mxu0 %v4918
    %5097 = vmatpush1.bf16.msra.mxu0 %v4917
    %5098 = vmatprep.subr.bf16.mxu0 %v4922
    %5099 = vmatpush1.bf16.msra.mxu0 %v4921
    %5100 = vmatprep.subr.bf16.mxu0 %v4926
    %5101 = vmatpush1.bf16.msra.mxu0 %v4925
    %5102 = vmatprep.subr.bf16.mxu0 %v4930
    %5103 = vmatpush1.bf16.msra.mxu0 %v4929
    %5104 = vmatprep.subr.bf16.mxu0 %v4934
    %5105 = vmatpush1.bf16.msra.mxu0 %v4933
    %5106 = vmatprep.subr.bf16.mxu0 %v4938
    %5107 = vmatpush1.bf16.msra.mxu0 %v4937
    %5108 = vmatprep.subr.bf16.mxu0 %v4942
    %5109 = vmatpush1.bf16.msra.mxu0 %v4941
    %5110 = vmatprep.subr.bf16.mxu0 %v4946
    %5111 = vmatpush1.bf16.msra.mxu0 %v4945
    %5112 = vmatprep.subr.bf16.mxu0 %v4950
    %5113 = vmatpush1.bf16.msra.mxu0 %v4949
    %5114 = vmatprep.subr.bf16.mxu0 %v4954
    %5115 = vmatpush1.bf16.msra.mxu0 %v4953
    %5116 = vmatprep.subr.bf16.mxu0 %v4958
    %5117 = vmatpush1.bf16.msra.mxu0 %v4957
    %5118 = vmatprep.subr.bf16.mxu0 %v4962
    %5119 = vmatpush1.bf16.msra.mxu0 %v4961
    %5120 = vmatprep.mubr.bf16.mxu0 %v5066
    %5121 = vmatmul.mubr.bf16.gmra.mrb[0].mxu0 %v5065
    %v5122 = vpop.f32.mrb[0].mxu0
    %v5123 = vadd.f32 %v5071, %v5122
    %v5124 = vpop.f32.mrb[0].mxu0
    %v5125 = vadd.f32 %v5075, %v5124
    %v5126 = vpop.f32.mrb[0].mxu0
    %v5127 = vpop.f32.mrb[0].mxu0
    %5128 = vdwg.mxu0
    %5129 = vmatprep.subr.bf16.mxu0 %v4904
    %5130 = vmatpush1.bf16.msra.mxu0 %v4903
    %5131 = vmatprep.subr.bf16.mxu0 %v4908
    %5132 = vmatpush1.bf16.msra.mxu0 %v4907
    %5133 = vmatprep.subr.bf16.mxu0 %v4912
    %5134 = vmatpush1.bf16.msra.mxu0 %v4911
    %5135 = vmatprep.subr.bf16.mxu0 %v4916
    %5136 = vmatpush1.bf16.msra.mxu0 %v4915
    %5137 = vmatprep.subr.bf16.mxu0 %v4920
    %5138 = vmatpush1.bf16.msra.mxu0 %v4919
    %5139 = vmatprep.subr.bf16.mxu0 %v4924
    %5140 = vmatpush1.bf16.msra.mxu0 %v4923
    %5141 = vmatprep.subr.bf16.mxu0 %v4928
    %5142 = vmatpush1.bf16.msra.mxu0 %v4927
    %5143 = vmatprep.subr.bf16.mxu0 %v4932
    %5144 = vmatpush1.bf16.msra.mxu0 %v4931
    %5145 = vmatprep.subr.bf16.mxu0 %v4936
    %5146 = vmatpush1.bf16.msra.mxu0 %v4935
    %5147 = vmatprep.subr.bf16.mxu0 %v4940
    %5148 = vmatpush1.bf16.msra.mxu0 %v4939
    %5149 = vmatprep.subr.bf16.mxu0 %v4944
    %5150 = vmatpush1.bf16.msra.mxu0 %v4943
    %5151 = vmatprep.subr.bf16.mxu0 %v4948
    %5152 = vmatpush1.bf16.msra.mxu0 %v4947
    %5153 = vmatprep.subr.bf16.mxu0 %v4952
    %5154 = vmatpush1.bf16.msra.mxu0 %v4951
    %5155 = vmatprep.subr.bf16.mxu0 %v4956
    %5156 = vmatpush1.bf16.msra.mxu0 %v4955
    %5157 = vmatprep.subr.bf16.mxu0 %v4960
    %5158 = vmatpush1.bf16.msra.mxu0 %v4959
    %5159 = vmatprep.subr.bf16.mxu0 %v4964
    %5160 = vmatpush1.bf16.msra.mxu0 %v4963
    %5161 = vmatprep.mubr.bf16.mxu0 %v5066
    %5162 = vmatmul.mubr.bf16.gmra.mrb[0].mxu0 %v5065
    %v5163 = vpop.f32.mrb[0].mxu0
    %v5164 = vadd.f32 %v5079, %v5163
    %v5165 = vpop.f32.mrb[0].mxu0
    %v5166 = vadd.f32 %v5083, %v5165
    %v5167 = vpop.f32.mrb[0].mxu0
    %v5168 = vpop.f32.mrb[0].mxu0
    %5169 = vdwg.mxu0
    %v5170 = vadd.f32 %v5123, %v4822
    %v5171 = vadd.f32 %v5125, %v4823
    %v5172 = vadd.f32 %v5164, %v4824
    %v5173 = vadd.f32 %v5166, %v4825
    %v5174 = vmax.f32 %v5170, 0.0
    %v5175 = vmax.f32 %v5171, 0.0
    %v5176 = vmax.f32 %v5172, 0.0
    %v5177 = vmax.f32 %v5173, 0.0
    %s5178 = scalar_lea.vmem [#allocation3], 512
    %v5179 = vld [vmem:[%s5178] sm:$0xff]
    %v5180 = vld [vmem:[%s5178 + $0x8] sm:$0xff]
    %v5181 = vld [vmem:[%s5178 + $0x10] sm:$0xff]
    %v5182 = vld [vmem:[%s5178 + $0x18] sm:$0xff]
    %v5183 = vld [vmem:[%s5178 + $0x20] sm:$0xff]
    %v5184 = vld [vmem:[%s5178 + $0x28] sm:$0xff]
    %v5185 = vld [vmem:[%s5178 + $0x30] sm:$0xff]
    %v5186 = vld [vmem:[%s5178 + $0x38] sm:$0xff]
    %v5187 = vld [vmem:[%s5178 + $0x40] sm:$0xff]
    %v5188 = vld [vmem:[%s5178 + $0x48] sm:$0xff]
    %v5189 = vld [vmem:[%s5178 + $0x50] sm:$0xff]
    %v5190 = vld [vmem:[%s5178 + $0x58] sm:$0xff]
    %v5191 = vld [vmem:[%s5178 + $0x60] sm:$0xff]
    %v5192 = vld [vmem:[%s5178 + $0x68] sm:$0xff]
    %v5193 = vld [vmem:[%s5178 + $0x70] sm:$0xff]
    %v5194 = vld [vmem:[%s5178 + $0x78] sm:$0xff]
    %v5195 = vld [vmem:[%s5178 + $0x80] sm:$0xff]
    %v5196 = vld [vmem:[%s5178 + $0x88] sm:$0xff]
    %v5197 = vld [vmem:[%s5178 + $0x90] sm:$0xff]
    %v5198 = vld [vmem:[%s5178 + $0x98] sm:$0xff]
    %v5199 = vld [vmem:[%s5178 + $0xa0] sm:$0xff]
    %v5200 = vld [vmem:[%s5178 + $0xa8] sm:$0xff]
    %v5201 = vld [vmem:[%s5178 + $0xb0] sm:$0xff]
    %v5202 = vld [vmem:[%s5178 + $0xb8] sm:$0xff]
    %v5203 = vld [vmem:[%s5178 + $0xc0] sm:$0xff]
    %v5204 = vld [vmem:[%s5178 + $0xc8] sm:$0xff]
    %v5205 = vld [vmem:[%s5178 + $0xd0] sm:$0xff]
    %v5206 = vld [vmem:[%s5178 + $0xd8] sm:$0xff]
    %v5207 = vld [vmem:[%s5178 + $0xe0] sm:$0xff]
    %v5208 = vld [vmem:[%s5178 + $0xe8] sm:$0xff]
    %v5209 = vld [vmem:[%s5178 + $0xf0] sm:$0xff]
    %v5210 = vld [vmem:[%s5178 + $0xf8] sm:$0xff]
    %v5211 = vld [vmem:[%s5178 + $0x100] sm:$0xff]
    %v5212 = vld [vmem:[%s5178 + $0x108] sm:$0xff]
    %v5213 = vld [vmem:[%s5178 + $0x110] sm:$0xff]
    %v5214 = vld [vmem:[%s5178 + $0x118] sm:$0xff]
    %v5215 = vld [vmem:[%s5178 + $0x120] sm:$0xff]
    %v5216 = vld [vmem:[%s5178 + $0x128] sm:$0xff]
    %v5217 = vld [vmem:[%s5178 + $0x130] sm:$0xff]
    %v5218 = vld [vmem:[%s5178 + $0x138] sm:$0xff]
    %v5219 = vld [vmem:[%s5178 + $0x140] sm:$0xff]
    %v5220 = vld [vmem:[%s5178 + $0x148] sm:$0xff]
    %v5221 = vld [vmem:[%s5178 + $0x150] sm:$0xff]
    %v5222 = vld [vmem:[%s5178 + $0x158] sm:$0xff]
    %v5223 = vld [vmem:[%s5178 + $0x160] sm:$0xff]
    %v5224 = vld [vmem:[%s5178 + $0x168] sm:$0xff]
    %v5225 = vld [vmem:[%s5178 + $0x170] sm:$0xff]
    %v5226 = vld [vmem:[%s5178 + $0x178] sm:$0xff]
    %v5227 = vld [vmem:[%s5178 + $0x180] sm:$0xff]
    %v5228 = vld [vmem:[%s5178 + $0x188] sm:$0xff]
    %v5229 = vld [vmem:[%s5178 + $0x190] sm:$0xff]
    %v5230 = vld [vmem:[%s5178 + $0x198] sm:$0xff]
    %v5231 = vld [vmem:[%s5178 + $0x1a0] sm:$0xff]
    %v5232 = vld [vmem:[%s5178 + $0x1a8] sm:$0xff]
    %v5233 = vld [vmem:[%s5178 + $0x1b0] sm:$0xff]
    %v5234 = vld [vmem:[%s5178 + $0x1b8] sm:$0xff]
    %v5235 = vld [vmem:[%s5178 + $0x1c0] sm:$0xff]
    %v5236 = vld [vmem:[%s5178 + $0x1c8] sm:$0xff]
    %v5237 = vld [vmem:[%s5178 + $0x1d0] sm:$0xff]
    %v5238 = vld [vmem:[%s5178 + $0x1d8] sm:$0xff]
    %v5239 = vld [vmem:[%s5178 + $0x1e0] sm:$0xff]
    %v5240 = vld [vmem:[%s5178 + $0x1e8] sm:$0xff]
    %v5241 = vld [vmem:[%s5178 + $0x1f0] sm:$0xff]
    %v5242 = vld [vmem:[%s5178 + $0x1f8] sm:$0xff]
    %v5243 = vld [vmem:[#allocation22] sm:$0x3]
    %s5244 = scalar_lea.vmem [#allocation4], 512
    %v5245 = vld [vmem:[%s5244] sm:$0xff]
    %v5246 = vld [vmem:[%s5244 + $0x8] sm:$0xff]
    %v5247 = vld [vmem:[%s5244 + $0x10] sm:$0xff]
    %v5248 = vld [vmem:[%s5244 + $0x18] sm:$0xff]
    %v5249 = vld [vmem:[%s5244 + $0x20] sm:$0xff]
    %v5250 = vld [vmem:[%s5244 + $0x28] sm:$0xff]
    %v5251 = vld [vmem:[%s5244 + $0x30] sm:$0xff]
    %v5252 = vld [vmem:[%s5244 + $0x38] sm:$0xff]
    %v5253 = vld [vmem:[%s5244 + $0x40] sm:$0xff]
    %v5254 = vld [vmem:[%s5244 + $0x48] sm:$0xff]
    %v5255 = vld [vmem:[%s5244 + $0x50] sm:$0xff]
    %v5256 = vld [vmem:[%s5244 + $0x58] sm:$0xff]
    %v5257 = vld [vmem:[%s5244 + $0x60] sm:$0xff]
    %v5258 = vld [vmem:[%s5244 + $0x68] sm:$0xff]
    %v5259 = vld [vmem:[%s5244 + $0x70] sm:$0xff]
    %v5260 = vld [vmem:[%s5244 + $0x78] sm:$0xff]
    %v5261 = vld [vmem:[%s5244 + $0x80] sm:$0xff]
    %v5262 = vld [vmem:[%s5244 + $0x88] sm:$0xff]
    %v5263 = vld [vmem:[%s5244 + $0x90] sm:$0xff]
    %v5264 = vld [vmem:[%s5244 + $0x98] sm:$0xff]
    %v5265 = vld [vmem:[%s5244 + $0xa0] sm:$0xff]
    %v5266 = vld [vmem:[%s5244 + $0xa8] sm:$0xff]
    %v5267 = vld [vmem:[%s5244 + $0xb0] sm:$0xff]
    %v5268 = vld [vmem:[%s5244 + $0xb8] sm:$0xff]
    %v5269 = vld [vmem:[%s5244 + $0xc0] sm:$0xff]
    %v5270 = vld [vmem:[%s5244 + $0xc8] sm:$0xff]
    %v5271 = vld [vmem:[%s5244 + $0xd0] sm:$0xff]
    %v5272 = vld [vmem:[%s5244 + $0xd8] sm:$0xff]
    %v5273 = vld [vmem:[%s5244 + $0xe0] sm:$0xff]
    %v5274 = vld [vmem:[%s5244 + $0xe8] sm:$0xff]
    %v5275 = vld [vmem:[%s5244 + $0xf0] sm:$0xff]
    %v5276 = vld [vmem:[%s5244 + $0xf8] sm:$0xff]
    %v5277 = vld [vmem:[%s5244 + $0x100] sm:$0xff]
    %v5278 = vld [vmem:[%s5244 + $0x108] sm:$0xff]
    %v5279 = vld [vmem:[%s5244 + $0x110] sm:$0xff]
    %v5280 = vld [vmem:[%s5244 + $0x118] sm:$0xff]
    %v5281 = vld [vmem:[%s5244 + $0x120] sm:$0xff]
    %v5282 = vld [vmem:[%s5244 + $0x128] sm:$0xff]
    %v5283 = vld [vmem:[%s5244 + $0x130] sm:$0xff]
    %v5284 = vld [vmem:[%s5244 + $0x138] sm:$0xff]
    %v5285 = vld [vmem:[%s5244 + $0x140] sm:$0xff]
    %v5286 = vld [vmem:[%s5244 + $0x148] sm:$0xff]
    %v5287 = vld [vmem:[%s5244 + $0x150] sm:$0xff]
    %v5288 = vld [vmem:[%s5244 + $0x158] sm:$0xff]
    %v5289 = vld [vmem:[%s5244 + $0x160] sm:$0xff]
    %v5290 = vld [vmem:[%s5244 + $0x168] sm:$0xff]
    %v5291 = vld [vmem:[%s5244 + $0x170] sm:$0xff]
    %v5292 = vld [vmem:[%s5244 + $0x178] sm:$0xff]
    %v5293 = vld [vmem:[%s5244 + $0x180] sm:$0xff]
    %v5294 = vld [vmem:[%s5244 + $0x188] sm:$0xff]
    %v5295 = vld [vmem:[%s5244 + $0x190] sm:$0xff]
    %v5296 = vld [vmem:[%s5244 + $0x198] sm:$0xff]
    %v5297 = vld [vmem:[%s5244 + $0x1a0] sm:$0xff]
    %v5298 = vld [vmem:[%s5244 + $0x1a8] sm:$0xff]
    %v5299 = vld [vmem:[%s5244 + $0x1b0] sm:$0xff]
    %v5300 = vld [vmem:[%s5244 + $0x1b8] sm:$0xff]
    %v5301 = vld [vmem:[%s5244 + $0x1c0] sm:$0xff]
    %v5302 = vld [vmem:[%s5244 + $0x1c8] sm:$0xff]
    %v5303 = vld [vmem:[%s5244 + $0x1d0] sm:$0xff]
    %v5304 = vld [vmem:[%s5244 + $0x1d8] sm:$0xff]
    %v5305 = vld [vmem:[%s5244 + $0x1e0] sm:$0xff]
    %v5306 = vld [vmem:[%s5244 + $0x1e8] sm:$0xff]
    %v5307 = vld [vmem:[%s5244 + $0x1f0] sm:$0xff]
    %v5308 = vld [vmem:[%s5244 + $0x1f8] sm:$0xff]
    %v5309 = vld [vmem:[#allocation23] sm:$0xf]
    %v5310 = vpack.c.bf16 %v5174, %v5174
    %v5311 = vpack.c.bf16 %v5175, %v5175
    %v5312 = vpack.c.bf16 %v5176, %v5176
    %v5313 = vpack.c.bf16 %v5177, %v5177
    %v5315 = vlaneseq
    %v5316 = vshrl.u32 %v5315, 7
    %v5317 = vsub.s32 0, %v5316
    %v5318 = vrot.slane %v5243, %v5317
    %v5319 = vlaneseq
    %v5320 = vshrl.u32 %v5319, 7
    %v5321 = vsub.s32 1, %v5320
    %v5322 = vrot.slane %v5243, %v5321
    %5325 = vmatprep.subr.bf16.mxu0 %v5180
    %5326 = vmatpush1.bf16.msra.mxu0 %v5179
    %5327 = vmatprep.subr.bf16.mxu0 %v5182
    %5328 = vmatpush1.bf16.msra.mxu0 %v5181
    %5329 = vmatprep.subr.bf16.mxu0 %v5184
    %5330 = vmatpush1.bf16.msra.mxu0 %v5183
    %5331 = vmatprep.subr.bf16.mxu0 %v5186
    %5332 = vmatpush1.bf16.msra.mxu0 %v5185
    %5333 = vmatprep.subr.bf16.mxu0 %v5188
    %5334 = vmatpush1.bf16.msra.mxu0 %v5187
    %5335 = vmatprep.subr.bf16.mxu0 %v5190
    %5336 = vmatpush1.bf16.msra.mxu0 %v5189
    %5337 = vmatprep.subr.bf16.mxu0 %v5192
    %5338 = vmatpush1.bf16.msra.mxu0 %v5191
    %5339 = vmatprep.subr.bf16.mxu0 %v5194
    %5340 = vmatpush1.bf16.msra.mxu0 %v5193
    %5341 = vmatprep.subr.bf16.mxu0 %v5196
    %5342 = vmatpush1.bf16.msra.mxu0 %v5195
    %5343 = vmatprep.subr.bf16.mxu0 %v5198
    %5344 = vmatpush1.bf16.msra.mxu0 %v5197
    %5345 = vmatprep.subr.bf16.mxu0 %v5200
    %5346 = vmatpush1.bf16.msra.mxu0 %v5199
    %5347 = vmatprep.subr.bf16.mxu0 %v5202
    %5348 = vmatpush1.bf16.msra.mxu0 %v5201
    %5349 = vmatprep.subr.bf16.mxu0 %v5204
    %5350 = vmatpush1.bf16.msra.mxu0 %v5203
    %5351 = vmatprep.subr.bf16.mxu0 %v5206
    %5352 = vmatpush1.bf16.msra.mxu0 %v5205
    %5353 = vmatprep.subr.bf16.mxu0 %v5208
    %5354 = vmatpush1.bf16.msra.mxu0 %v5207
    %5355 = vmatprep.subr.bf16.mxu0 %v5210
    %5356 = vmatpush1.bf16.msra.mxu0 %v5209
    %5357 = vmatprep.mubr.bf16.mxu0 %v5311
    %5358 = vmatmul.mubr.bf16.gmra.mrb[0].mxu0 %v5310
    %v5359 = vpop.f32.mrb[0].mxu0
    %v5360 = vadd.f32 %v5318, %v5359
    %v5361 = vpop.f32.mrb[0].mxu0
    %v5362 = vadd.f32 %v5322, %v5361
    %v5363 = vpop.f32.mrb[0].mxu0
    %v5364 = vpop.f32.mrb[0].mxu0
    %5365 = vdwg.mxu0
    %5366 = vmatprep.subr.bf16.mxu0 %v5212
    %5367 = vmatpush1.bf16.msra.mxu0 %v5211
    %5368 = vmatprep.subr.bf16.mxu0 %v5214
    %5369 = vmatpush1.bf16.msra.mxu0 %v5213
    %5370 = vmatprep.subr.bf16.mxu0 %v5216
    %5371 = vmatpush1.bf16.msra.mxu0 %v5215
    %5372 = vmatprep.subr.bf16.mxu0 %v5218
    %5373 = vmatpush1.bf16.msra.mxu0 %v5217
    %5374 = vmatprep.subr.bf16.mxu0 %v5220
    %5375 = vmatpush1.bf16.msra.mxu0 %v5219
    %5376 = vmatprep.subr.bf16.mxu0 %v5222
    %5377 = vmatpush1.bf16.msra.mxu0 %v5221
    %5378 = vmatprep.subr.bf16.mxu0 %v5224
    %5379 = vmatpush1.bf16.msra.mxu0 %v5223
    %5380 = vmatprep.subr.bf16.mxu0 %v5226
    %5381 = vmatpush1.bf16.msra.mxu0 %v5225
    %5382 = vmatprep.subr.bf16.mxu0 %v5228
    %5383 = vmatpush1.bf16.msra.mxu0 %v5227
    %5384 = vmatprep.subr.bf16.mxu0 %v5230
    %5385 = vmatpush1.bf16.msra.mxu0 %v5229
    %5386 = vmatprep.subr.bf16.mxu0 %v5232
    %5387 = vmatpush1.bf16.msra.mxu0 %v5231
    %5388 = vmatprep.subr.bf16.mxu0 %v5234
    %5389 = vmatpush1.bf16.msra.mxu0 %v5233
    %5390 = vmatprep.subr.bf16.mxu0 %v5236
    %5391 = vmatpush1.bf16.msra.mxu0 %v5235
    %5392 = vmatprep.subr.bf16.mxu0 %v5238
    %5393 = vmatpush1.bf16.msra.mxu0 %v5237
    %5394 = vmatprep.subr.bf16.mxu0 %v5240
    %5395 = vmatpush1.bf16.msra.mxu0 %v5239
    %5396 = vmatprep.subr.bf16.mxu0 %v5242
    %5397 = vmatpush1.bf16.msra.mxu0 %v5241
    %5398 = vmatprep.mubr.bf16.mxu0 %v5313
    %5399 = vmatmul.mubr.bf16.gmra.mrb[0].mxu0 %v5312
    %v5400 = vpop.f32.mrb[0].mxu0
    %v5401 = vadd.f32 %v5360, %v5400
    %v5402 = vpop.f32.mrb[0].mxu0
    %v5403 = vadd.f32 %v5362, %v5402
    %v5404 = vpop.f32.mrb[0].mxu0
    %v5405 = vpop.f32.mrb[0].mxu0
    %5406 = vdwg.mxu0
    %v5407 = vmax.f32 %v5401, 0.0
    %v5408 = vmax.f32 %v5403, 0.0
    %v5409 = vpack.c.bf16 %v5407, %v5407
    %v5410 = vpack.c.bf16 %v5408, %v5408
    %v5412 = vlaneseq
    %v5413 = vshrl.u32 %v5412, 7
    %v5414 = vsub.s32 0, %v5413
    %v5415 = vrot.slane %v5309, %v5414
    %v5416 = vlaneseq
    %v5417 = vshrl.u32 %v5416, 7
    %v5418 = vsub.s32 1, %v5417
    %v5419 = vrot.slane %v5309, %v5418
    %v5420 = vlaneseq
    %v5421 = vshrl.u32 %v5420, 7
    %v5422 = vsub.s32 2, %v5421
    %v5423 = vrot.slane %v5309, %v5422
    %v5424 = vlaneseq
    %v5425 = vshrl.u32 %v5424, 7
    %v5426 = vsub.s32 3, %v5425
    %v5427 = vrot.slane %v5309, %v5426
    %5432 = vmatprep.subr.bf16.mxu0 %v5246
    %5433 = vmatpush1.bf16.msra.mxu0 %v5245
    %5434 = vmatprep.subr.bf16.mxu0 %v5250
    %5435 = vmatpush1.bf16.msra.mxu0 %v5249
    %5436 = vmatprep.subr.bf16.mxu0 %v5254
    %5437 = vmatpush1.bf16.msra.mxu0 %v5253
    %5438 = vmatprep.subr.bf16.mxu0 %v5258
    %5439 = vmatpush1.bf16.msra.mxu0 %v5257
    %5440 = vmatprep.subr.bf16.mxu0 %v5262
    %5441 = vmatpush1.bf16.msra.mxu0 %v5261
    %5442 = vmatprep.subr.bf16.mxu0 %v5266
    %5443 = vmatpush1.bf16.msra.mxu0 %v5265
    %5444 = vmatprep.subr.bf16.mxu0 %v5270
    %5445 = vmatpush1.bf16.msra.mxu0 %v5269
    %5446 = vmatprep.subr.bf16.mxu0 %v5274
    %5447 = vmatpush1.bf16.msra.mxu0 %v5273
    %5448 = vmatprep.subr.bf16.mxu0 %v5278
    %5449 = vmatpush1.bf16.msra.mxu0 %v5277
    %5450 = vmatprep.subr.bf16.mxu0 %v5282
    %5451 = vmatpush1.bf16.msra.mxu0 %v5281
    %5452 = vmatprep.subr.bf16.mxu0 %v5286
    %5453 = vmatpush1.bf16.msra.mxu0 %v5285
    %5454 = vmatprep.subr.bf16.mxu0 %v5290
    %5455 = vmatpush1.bf16.msra.mxu0 %v5289
    %5456 = vmatprep.subr.bf16.mxu0 %v5294
    %5457 = vmatpush1.bf16.msra.mxu0 %v5293
    %5458 = vmatprep.subr.bf16.mxu0 %v5298
    %5459 = vmatpush1.bf16.msra.mxu0 %v5297
    %5460 = vmatprep.subr.bf16.mxu0 %v5302
    %5461 = vmatpush1.bf16.msra.mxu0 %v5301
    %5462 = vmatprep.subr.bf16.mxu0 %v5306
    %5463 = vmatpush1.bf16.msra.mxu0 %v5305
    %5464 = vmatprep.mubr.bf16.mxu0 %v5410
    %5465 = vmatmul.mubr.bf16.gmra.mrb[0].mxu0 %v5409
    %v5466 = vpop.f32.mrb[0].mxu0
    %v5467 = vadd.f32 %v5415, %v5466
    %v5468 = vpop.f32.mrb[0].mxu0
    %v5469 = vadd.f32 %v5419, %v5468
    %v5470 = vpop.f32.mrb[0].mxu0
    %v5471 = vpop.f32.mrb[0].mxu0
    %5472 = vdwg.mxu0
    %5473 = vmatprep.subr.bf16.mxu0 %v5248
    %5474 = vmatpush1.bf16.msra.mxu0 %v5247
    %5475 = vmatprep.subr.bf16.mxu0 %v5252
    %5476 = vmatpush1.bf16.msra.mxu0 %v5251
    %5477 = vmatprep.subr.bf16.mxu0 %v5256
    %5478 = vmatpush1.bf16.msra.mxu0 %v5255
    %5479 = vmatprep.subr.bf16.mxu0 %v5260
    %5480 = vmatpush1.bf16.msra.mxu0 %v5259
    %5481 = vmatprep.subr.bf16.mxu0 %v5264
    %5482 = vmatpush1.bf16.msra.mxu0 %v5263
    %5483 = vmatprep.subr.bf16.mxu0 %v5268
    %5484 = vmatpush1.bf16.msra.mxu0 %v5267
    %5485 = vmatprep.subr.bf16.mxu0 %v5272
    %5486 = vmatpush1.bf16.msra.mxu0 %v5271
    %5487 = vmatprep.subr.bf16.mxu0 %v5276
    %5488 = vmatpush1.bf16.msra.mxu0 %v5275
    %5489 = vmatprep.subr.bf16.mxu0 %v5280
    %5490 = vmatpush1.bf16.msra.mxu0 %v5279
    %5491 = vmatprep.subr.bf16.mxu0 %v5284
    %5492 = vmatpush1.bf16.msra.mxu0 %v5283
    %5493 = vmatprep.subr.bf16.mxu0 %v5288
    %5494 = vmatpush1.bf16.msra.mxu0 %v5287
    %5495 = vmatprep.subr.bf16.mxu0 %v5292
    %5496 = vmatpush1.bf16.msra.mxu0 %v5291
    %5497 = vmatprep.subr.bf16.mxu0 %v5296
    %5498 = vmatpush1.bf16.msra.mxu0 %v5295
    %5499 = vmatprep.subr.bf16.mxu0 %v5300
    %5500 = vmatpush1.bf16.msra.mxu0 %v5299
    %5501 = vmatprep.subr.bf16.mxu0 %v5304
    %5502 = vmatpush1.bf16.msra.mxu0 %v5303
    %5503 = vmatprep.subr.bf16.mxu0 %v5308
    %5504 = vmatpush1.bf16.msra.mxu0 %v5307
    %5505 = vmatprep.mubr.bf16.mxu0 %v5410
    %5506 = vmatmul.mubr.bf16.gmra.mrb[0].mxu0 %v5409
    %v5507 = vpop.f32.mrb[0].mxu0
    %v5508 = vadd.f32 %v5423, %v5507
    %v5509 = vpop.f32.mrb[0].mxu0
    %v5510 = vadd.f32 %v5427, %v5509
    %v5511 = vpop.f32.mrb[0].mxu0
    %v5512 = vpop.f32.mrb[0].mxu0
    %5513 = vdwg.mxu0
    %v5514 = vadd.f32 %v5467, %v5174
    %v5515 = vadd.f32 %v5469, %v5175
    %v5516 = vadd.f32 %v5508, %v5176
    %v5517 = vadd.f32 %v5510, %v5177
    %v5518 = vmax.f32 %v5514, 0.0
    %v5519 = vmax.f32 %v5515, 0.0
    %v5520 = vmax.f32 %v5516, 0.0
    %v5521 = vmax.f32 %v5517, 0.0
    %s5522 = scalar_lea.vmem [#allocation3], 1024
    %v5523 = vld [vmem:[%s5522] sm:$0xff]
    %v5524 = vld [vmem:[%s5522 + $0x8] sm:$0xff]
    %v5525 = vld [vmem:[%s5522 + $0x10] sm:$0xff]
    %v5526 = vld [vmem:[%s5522 + $0x18] sm:$0xff]
    %v5527 = vld [vmem:[%s5522 + $0x20] sm:$0xff]
    %v5528 = vld [vmem:[%s5522 + $0x28] sm:$0xff]
    %v5529 = vld [vmem:[%s5522 + $0x30] sm:$0xff]
    %v5530 = vld [vmem:[%s5522 + $0x38] sm:$0xff]
    %v5531 = vld [vmem:[%s5522 + $0x40] sm:$0xff]
    %v5532 = vld [vmem:[%s5522 + $0x48] sm:$0xff]
    %v5533 = vld [vmem:[%s5522 + $0x50] sm:$0xff]
    %v5534 = vld [vmem:[%s5522 + $0x58] sm:$0xff]
    %v5535 = vld [vmem:[%s5522 + $0x60] sm:$0xff]
    %v5536 = vld [vmem:[%s5522 + $0x68] sm:$0xff]
    %v5537 = vld [vmem:[%s5522 + $0x70] sm:$0xff]
    %v5538 = vld [vmem:[%s5522 + $0x78] sm:$0xff]
    %v5539 = vld [vmem:[%s5522 + $0x80] sm:$0xff]
    %v5540 = vld [vmem:[%s5522 + $0x88] sm:$0xff]
    %v5541 = vld [vmem:[%s5522 + $0x90] sm:$0xff]
    %v5542 = vld [vmem:[%s5522 + $0x98] sm:$0xff]
    %v5543 = vld [vmem:[%s5522 + $0xa0] sm:$0xff]
    %v5544 = vld [vmem:[%s5522 + $0xa8] sm:$0xff]
    %v5545 = vld [vmem:[%s5522 + $0xb0] sm:$0xff]
    %v5546 = vld [vmem:[%s5522 + $0xb8] sm:$0xff]
    %v5547 = vld [vmem:[%s5522 + $0xc0] sm:$0xff]
    %v5548 = vld [vmem:[%s5522 + $0xc8] sm:$0xff]
    %v5549 = vld [vmem:[%s5522 + $0xd0] sm:$0xff]
    %v5550 = vld [vmem:[%s5522 + $0xd8] sm:$0xff]
    %v5551 = vld [vmem:[%s5522 + $0xe0] sm:$0xff]
    %v5552 = vld [vmem:[%s5522 + $0xe8] sm:$0xff]
    %v5553 = vld [vmem:[%s5522 + $0xf0] sm:$0xff]
    %v5554 = vld [vmem:[%s5522 + $0xf8] sm:$0xff]
    %v5555 = vld [vmem:[%s5522 + $0x100] sm:$0xff]
    %v5556 = vld [vmem:[%s5522 + $0x108] sm:$0xff]
    %v5557 = vld [vmem:[%s5522 + $0x110] sm:$0xff]
    %v5558 = vld [vmem:[%s5522 + $0x118] sm:$0xff]
    %v5559 = vld [vmem:[%s5522 + $0x120] sm:$0xff]
    %v5560 = vld [vmem:[%s5522 + $0x128] sm:$0xff]
    %v5561 = vld [vmem:[%s5522 + $0x130] sm:$0xff]
    %v5562 = vld [vmem:[%s5522 + $0x138] sm:$0xff]
    %v5563 = vld [vmem:[%s5522 + $0x140] sm:$0xff]
    %v5564 = vld [vmem:[%s5522 + $0x148] sm:$0xff]
    %v5565 = vld [vmem:[%s5522 + $0x150] sm:$0xff]
    %v5566 = vld [vmem:[%s5522 + $0x158] sm:$0xff]
    %v5567 = vld [vmem:[%s5522 + $0x160] sm:$0xff]
    %v5568 = vld [vmem:[%s5522 + $0x168] sm:$0xff]
    %v5569 = vld [vmem:[%s5522 + $0x170] sm:$0xff]
    %v5570 = vld [vmem:[%s5522 + $0x178] sm:$0xff]
    %v5571 = vld [vmem:[%s5522 + $0x180] sm:$0xff]
    %v5572 = vld [vmem:[%s5522 + $0x188] sm:$0xff]
    %v5573 = vld [vmem:[%s5522 + $0x190] sm:$0xff]
    %v5574 = vld [vmem:[%s5522 + $0x198] sm:$0xff]
    %v5575 = vld [vmem:[%s5522 + $0x1a0] sm:$0xff]
    %v5576 = vld [vmem:[%s5522 + $0x1a8] sm:$0xff]
    %v5577 = vld [vmem:[%s5522 + $0x1b0] sm:$0xff]
    %v5578 = vld [vmem:[%s5522 + $0x1b8] sm:$0xff]
    %v5579 = vld [vmem:[%s5522 + $0x1c0] sm:$0xff]
    %v5580 = vld [vmem:[%s5522 + $0x1c8] sm:$0xff]
    %v5581 = vld [vmem:[%s5522 + $0x1d0] sm:$0xff]
    %v5582 = vld [vmem:[%s5522 + $0x1d8] sm:$0xff]
    %v5583 = vld [vmem:[%s5522 + $0x1e0] sm:$0xff]
    %v5584 = vld [vmem:[%s5522 + $0x1e8] sm:$0xff]
    %v5585 = vld [vmem:[%s5522 + $0x1f0] sm:$0xff]
    %v5586 = vld [vmem:[%s5522 + $0x1f8] sm:$0xff]
    %v5587 = vld [vmem:[#allocation25] sm:$0x3]
    %v5588 = vpack.c.bf16 %v5518, %v5518
    %v5589 = vpack.c.bf16 %v5519, %v5519
    %v5590 = vpack.c.bf16 %v5520, %v5520
    %v5591 = vpack.c.bf16 %v5521, %v5521
    %v5593 = vlaneseq
    %v5594 = vshrl.u32 %v5593, 7
    %v5595 = vsub.s32 0, %v5594
    %v5596 = vrot.slane %v5587, %v5595
    %v5597 = vlaneseq
    %v5598 = vshrl.u32 %v5597, 7
    %v5599 = vsub.s32 1, %v5598
    %v5600 = vrot.slane %v5587, %v5599
    %5603 = vmatprep.subr.bf16.mxu0 %v5524
    %5604 = vmatpush1.bf16.msra.mxu0 %v5523
    %5605 = vmatprep.subr.bf16.mxu0 %v5526
    %5606 = vmatpush1.bf16.msra.mxu0 %v5525
    %5607 = vmatprep.subr.bf16.mxu0 %v5528
    %5608 = vmatpush1.bf16.msra.mxu0 %v5527
    %5609 = vmatprep.subr.bf16.mxu0 %v5530
    %5610 = vmatpush1.bf16.msra.mxu0 %v5529
    %5611 = vmatprep.subr.bf16.mxu0 %v5532
    %5612 = vmatpush1.bf16.msra.mxu0 %v5531
    %5613 = vmatprep.subr.bf16.mxu0 %v5534
    %5614 = vmatpush1.bf16.msra.mxu0 %v5533
    %5615 = vmatprep.subr.bf16.mxu0 %v5536
    %5616 = vmatpush1.bf16.msra.mxu0 %v5535
    %5617 = vmatprep.subr.bf16.mxu0 %v5538
    %5618 = vmatpush1.bf16.msra.mxu0 %v5537
    %5619 = vmatprep.subr.bf16.mxu0 %v5540
    %5620 = vmatpush1.bf16.msra.mxu0 %v5539
    %5621 = vmatprep.subr.bf16.mxu0 %v5542
    %5622 = vmatpush1.bf16.msra.mxu0 %v5541
    %5623 = vmatprep.subr.bf16.mxu0 %v5544
    %5624 = vmatpush1.bf16.msra.mxu0 %v5543
    %5625 = vmatprep.subr.bf16.mxu0 %v5546
    %5626 = vmatpush1.bf16.msra.mxu0 %v5545
    %5627 = vmatprep.subr.bf16.mxu0 %v5548
    %5628 = vmatpush1.bf16.msra.mxu0 %v5547
    %5629 = vmatprep.subr.bf16.mxu0 %v5550
    %5630 = vmatpush1.bf16.msra.mxu0 %v5549
    %5631 = vmatprep.subr.bf16.mxu0 %v5552
    %5632 = vmatpush1.bf16.msra.mxu0 %v5551
    %5633 = vmatprep.subr.bf16.mxu0 %v5554
    %5634 = vmatpush1.bf16.msra.mxu0 %v5553
    %5635 = vmatprep.mubr.bf16.mxu0 %v5589
    %5636 = vmatmul.mubr.bf16.gmra.mrb[0].mxu0 %v5588
    %v5637 = vpop.f32.mrb[0].mxu0
    %v5638 = vadd.f32 %v5596, %v5637
    %v5639 = vpop.f32.mrb[0].mxu0
    %v5640 = vadd.f32 %v5600, %v5639
    %v5641 = vpop.f32.mrb[0].mxu0
    %v5642 = vpop.f32.mrb[0].mxu0
    %5643 = vdwg.mxu0
    %5644 = vmatprep.subr.bf16.mxu0 %v5556
    %5645 = vmatpush1.bf16.msra.mxu0 %v5555
    %5646 = vmatprep.subr.bf16.mxu0 %v5558
    %5647 = vmatpush1.bf16.msra.mxu0 %v5557
    %5648 = vmatprep.subr.bf16.mxu0 %v5560
    %5649 = vmatpush1.bf16.msra.mxu0 %v5559
    %5650 = vmatprep.subr.bf16.mxu0 %v5562
    %5651 = vmatpush1.bf16.msra.mxu0 %v5561
    %5652 = vmatprep.subr.bf16.mxu0 %v5564
    %5653 = vmatpush1.bf16.msra.mxu0 %v5563
    %5654 = vmatprep.subr.bf16.mxu0 %v5566
    %5655 = vmatpush1.bf16.msra.mxu0 %v5565
    %5656 = vmatprep.subr.bf16.mxu0 %v5568
    %5657 = vmatpush1.bf16.msra.mxu0 %v5567
    %5658 = vmatprep.subr.bf16.mxu0 %v5570
    %5659 = vmatpush1.bf16.msra.mxu0 %v5569
    %5660 = vmatprep.subr.bf16.mxu0 %v5572
    %5661 = vmatpush1.bf16.msra.mxu0 %v5571
    %5662 = vmatprep.subr.bf16.mxu0 %v5574
    %5663 = vmatpush1.bf16.msra.mxu0 %v5573
    %5664 = vmatprep.subr.bf16.mxu0 %v5576
    %5665 = vmatpush1.bf16.msra.mxu0 %v5575
    %5666 = vmatprep.subr.bf16.mxu0 %v5578
    %5667 = vmatpush1.bf16.msra.mxu0 %v5577
    %5668 = vmatprep.subr.bf16.mxu0 %v5580
    %5669 = vmatpush1.bf16.msra.mxu0 %v5579
    %5670 = vmatprep.subr.bf16.mxu0 %v5582
    %5671 = vmatpush1.bf16.msra.mxu0 %v5581
    %5672 = vmatprep.subr.bf16.mxu0 %v5584
    %5673 = vmatpush1.bf16.msra.mxu0 %v5583
    %5674 = vmatprep.subr.bf16.mxu0 %v5586
    %5675 = vmatpush1.bf16.msra.mxu0 %v5585
    %5676 = vmatprep.mubr.bf16.mxu0 %v5591
    %5677 = vmatmul.mubr.bf16.gmra.mrb[0].mxu0 %v5590
    %v5678 = vpop.f32.mrb[0].mxu0
    %v5679 = vadd.f32 %v5638, %v5678
    %v5680 = vpop.f32.mrb[0].mxu0
    %v5681 = vadd.f32 %v5640, %v5680
    %v5682 = vpop.f32.mrb[0].mxu0
    %v5683 = vpop.f32.mrb[0].mxu0
    %5684 = vdwg.mxu0
    %v5685 = vmax.f32 %v5679, 0.0
    %v5686 = vmax.f32 %v5681, 0.0
    %v5687 = vld [vmem:[#allocation26] sm:$0xf]
    %v5688 = vld [vmem:[#allocation26 + $0x4] sm:$0xf]
    %v5689 = vld [vmem:[#allocation26 + $0x8] sm:$0xf]
    %v5690 = vld [vmem:[#allocation26 + $0xc] sm:$0xf]
    %v5691 = vld [vmem:[#allocation26 + $0x10] sm:$0xf]
    %v5692 = vld [vmem:[#allocation26 + $0x14] sm:$0xf]
    %v5693 = vld [vmem:[#allocation26 + $0x18] sm:$0xf]
    %v5694 = vld [vmem:[#allocation26 + $0x1c] sm:$0xf]
    %v5695 = vld [vmem:[#allocation26 + $0x20] sm:$0xf]
    %v5696 = vld [vmem:[#allocation26 + $0x24] sm:$0xf]
    %v5697 = vld [vmem:[#allocation26 + $0x28] sm:$0xf]
    %v5698 = vld [vmem:[#allocation26 + $0x2c] sm:$0xf]
    %v5699 = vld [vmem:[#allocation26 + $0x30] sm:$0xf]
    %v5700 = vld [vmem:[#allocation26 + $0x34] sm:$0xf]
    %v5701 = vld [vmem:[#allocation26 + $0x38] sm:$0xf]
    %v5702 = vld [vmem:[#allocation26 + $0x3c] sm:$0xf]
    %v5703 = vld [vmem:[#allocation26 + $0x40] sm:$0xf]
    %v5704 = vld [vmem:[#allocation26 + $0x44] sm:$0xf]
    %v5705 = vld [vmem:[#allocation26 + $0x48] sm:$0xf]
    %v5706 = vld [vmem:[#allocation26 + $0x4c] sm:$0xf]
    %v5707 = vld [vmem:[#allocation26 + $0x50] sm:$0xf]
    %v5708 = vld [vmem:[#allocation26 + $0x54] sm:$0xf]
    %v5709 = vld [vmem:[#allocation26 + $0x58] sm:$0xf]
    %v5710 = vld [vmem:[#allocation26 + $0x5c] sm:$0xf]
    %v5711 = vld [vmem:[#allocation26 + $0x60] sm:$0xf]
    %v5712 = vld [vmem:[#allocation26 + $0x64] sm:$0xf]
    %v5713 = vld [vmem:[#allocation26 + $0x68] sm:$0xf]
    %v5714 = vld [vmem:[#allocation26 + $0x6c] sm:$0xf]
    %v5715 = vld [vmem:[#allocation26 + $0x70] sm:$0xf]
    %v5716 = vld [vmem:[#allocation26 + $0x74] sm:$0xf]
    %v5717 = vld [vmem:[#allocation26 + $0x78] sm:$0xf]
    %v5718 = vld [vmem:[#allocation26 + $0x7c] sm:$0xf]
    %v5719 = vld [vmem:[#allocation28] sm:$0x1]
    %v5720 = vpack.c.bf16 %v5685, %v5685
    %v5721 = vpack.c.bf16 %v5686, %v5686
    %v5723 = vlaneseq
    %v5724 = vshrl.u32 %v5723, 7
    %v5725 = vsub.s32 0, %v5724
    %v5726 = vrot.slane %v5719, %v5725
    %v5760 = vunpack.c.l.b16 %v5687
    %v5761 = vunpack.c.l.b16 %v5688
    %v5762 = vunpack.c.l.b16 %v5689
    %v5763 = vunpack.c.l.b16 %v5690
    %v5764 = vunpack.c.l.b16 %v5691
    %v5765 = vunpack.c.l.b16 %v5692
    %v5766 = vunpack.c.l.b16 %v5693
    %v5767 = vunpack.c.l.b16 %v5694
    %v5768 = vunpack.c.l.b16 %v5695
    %v5769 = vunpack.c.l.b16 %v5696
    %v5770 = vunpack.c.l.b16 %v5697
    %v5771 = vunpack.c.l.b16 %v5698
    %v5772 = vunpack.c.l.b16 %v5699
    %v5773 = vunpack.c.l.b16 %v5700
    %v5774 = vunpack.c.l.b16 %v5701
    %v5775 = vunpack.c.l.b16 %v5702
    %v5776 = vunpack.c.l.b16 %v5703
    %v5777 = vunpack.c.l.b16 %v5704
    %v5778 = vunpack.c.l.b16 %v5705
    %v5779 = vunpack.c.l.b16 %v5706
    %v5780 = vunpack.c.l.b16 %v5707
    %v5781 = vunpack.c.l.b16 %v5708
    %v5782 = vunpack.c.l.b16 %v5709
    %v5783 = vunpack.c.l.b16 %v5710
    %v5784 = vunpack.c.l.b16 %v5711
    %v5785 = vunpack.c.l.b16 %v5712
    %v5786 = vunpack.c.l.b16 %v5713
    %v5787 = vunpack.c.l.b16 %v5714
    %v5788 = vunpack.c.l.b16 %v5715
    %v5789 = vunpack.c.l.b16 %v5716
    %v5790 = vunpack.c.l.b16 %v5717
    %v5791 = vunpack.c.l.b16 %v5718
    %v5792 = vpack.c.b16 %v5761, %v5760
    %v5793 = vpack.c.b16 %v5763, %v5762
    %v5794 = vpack.c.b16 %v5765, %v5764
    %v5795 = vpack.c.b16 %v5767, %v5766
    %v5796 = vpack.c.b16 %v5769, %v5768
    %v5797 = vpack.c.b16 %v5771, %v5770
    %v5798 = vpack.c.b16 %v5773, %v5772
    %v5799 = vpack.c.b16 %v5775, %v5774
    %v5800 = vpack.c.b16 %v5777, %v5776
    %v5801 = vpack.c.b16 %v5779, %v5778
    %v5802 = vpack.c.b16 %v5781, %v5780
    %v5803 = vpack.c.b16 %v5783, %v5782
    %v5804 = vpack.c.b16 %v5785, %v5784
    %v5805 = vpack.c.b16 %v5787, %v5786
    %v5806 = vpack.c.b16 %v5789, %v5788
    %v5807 = vpack.c.b16 %v5791, %v5790
    %5824 = vmatprep.subr.bf16.mxu0 0
    %5825 = vmatpush1.bf16.msra.mxu0 %v5792
    %5826 = vmatprep.subr.bf16.mxu0 0
    %5827 = vmatpush1.bf16.msra.mxu0 %v5793
    %5828 = vmatprep.subr.bf16.mxu0 0
    %5829 = vmatpush1.bf16.msra.mxu0 %v5794
    %5830 = vmatprep.subr.bf16.mxu0 0
    %5831 = vmatpush1.bf16.msra.mxu0 %v5795
    %5832 = vmatprep.subr.bf16.mxu0 0
    %5833 = vmatpush1.bf16.msra.mxu0 %v5796
    %5834 = vmatprep.subr.bf16.mxu0 0
    %5835 = vmatpush1.bf16.msra.mxu0 %v5797
    %5836 = vmatprep.subr.bf16.mxu0 0
    %5837 = vmatpush1.bf16.msra.mxu0 %v5798
    %5838 = vmatprep.subr.bf16.mxu0 0
    %5839 = vmatpush1.bf16.msra.mxu0 %v5799
    %5840 = vmatprep.subr.bf16.mxu0 0
    %5841 = vmatpush1.bf16.msra.mxu0 %v5800
    %5842 = vmatprep.subr.bf16.mxu0 0
    %5843 = vmatpush1.bf16.msra.mxu0 %v5801
    %5844 = vmatprep.subr.bf16.mxu0 0
    %5845 = vmatpush1.bf16.msra.mxu0 %v5802
    %5846 = vmatprep.subr.bf16.mxu0 0
    %5847 = vmatpush1.bf16.msra.mxu0 %v5803
    %5848 = vmatprep.subr.bf16.mxu0 0
    %5849 = vmatpush1.bf16.msra.mxu0 %v5804
    %5850 = vmatprep.subr.bf16.mxu0 0
    %5851 = vmatpush1.bf16.msra.mxu0 %v5805
    %5852 = vmatprep.subr.bf16.mxu0 0
    %5853 = vmatpush1.bf16.msra.mxu0 %v5806
    %5854 = vmatprep.subr.bf16.mxu0 0
    %5855 = vmatpush1.bf16.msra.mxu0 %v5807
    %5856 = vmatprep.mubr.bf16.mxu0 %v5721
    %5857 = vmatmul.mubr.bf16.gmra.mrb[0].mxu0 %v5720
    %v5858 = vpop.f32.mrb[0].mxu0
    %v5859 = vadd.f32 %v5726, %v5858
    %v5860 = vpop.f32.mrb[0].mxu0
    %v5861 = vpop.f32.mrb[0].mxu0
    %v5862 = vpop.f32.mrb[0].mxu0
    %5863 = vdwg.mxu0
    %v5864 = vmax.f32 %v5859, 0.0
    %v5865 = vld [vmem:[%s15] sm:$0xf]
    %v5866 = vld [vmem:[%s15 + $0x4] sm:$0xf]
    %v5867 = vld [vmem:[%s15 + $0x8] sm:$0xf]
    %v5868 = vld [vmem:[%s15 + $0xc] sm:$0xf]
    %v5869 = vld [vmem:[%s15 + $0x10] sm:$0xf]
    %v5870 = vld [vmem:[%s15 + $0x14] sm:$0xf]
    %v5871 = vld [vmem:[%s15 + $0x18] sm:$0xf]
    %v5872 = vld [vmem:[%s15 + $0x1c] sm:$0xf]
    %v5873 = vld [vmem:[%s15 + $0x20] sm:$0xf]
    %v5874 = vld [vmem:[%s15 + $0x24] sm:$0xf]
    %v5875 = vld [vmem:[%s15 + $0x28] sm:$0xf]
    %v5876 = vld [vmem:[%s15 + $0x2c] sm:$0xf]
    %v5877 = vld [vmem:[%s15 + $0x30] sm:$0xf]
    %v5878 = vld [vmem:[%s15 + $0x34] sm:$0xf]
    %v5879 = vld [vmem:[%s15 + $0x38] sm:$0xf]
    %v5880 = vld [vmem:[%s15 + $0x3c] sm:$0xf]
    %v5881 = vld [vmem:[#allocation29] sm:$0x1]
    %v5882 = vpack.c.bf16 %v5864, %v5864
    %v5884 = vlaneseq
    %v5885 = vshrl.u32 %v5884, 7
    %v5886 = vsub.s32 0, %v5885
    %v5887 = vrot.slane %v5881, %v5886
    %v5905 = vunpack.c.l.b16 %v5865
    %v5906 = vunpack.c.l.b16 %v5866
    %v5907 = vunpack.c.l.b16 %v5867
    %v5908 = vunpack.c.l.b16 %v5868
    %v5909 = vunpack.c.l.b16 %v5869
    %v5910 = vunpack.c.l.b16 %v5870
    %v5911 = vunpack.c.l.b16 %v5871
    %v5912 = vunpack.c.l.b16 %v5872
    %v5913 = vunpack.c.l.b16 %v5873
    %v5914 = vunpack.c.l.b16 %v5874
    %v5915 = vunpack.c.l.b16 %v5875
    %v5916 = vunpack.c.l.b16 %v5876
    %v5917 = vunpack.c.l.b16 %v5877
    %v5918 = vunpack.c.l.b16 %v5878
    %v5919 = vunpack.c.l.b16 %v5879
    %v5920 = vunpack.c.l.b16 %v5880
    %v5921 = vpack.c.b16 %v5906, %v5905
    %v5922 = vpack.c.b16 %v5908, %v5907
    %v5923 = vpack.c.b16 %v5910, %v5909
    %v5924 = vpack.c.b16 %v5912, %v5911
    %v5925 = vpack.c.b16 %v5914, %v5913
    %v5926 = vpack.c.b16 %v5916, %v5915
    %v5927 = vpack.c.b16 %v5918, %v5917
    %v5928 = vpack.c.b16 %v5920, %v5919
    %5937 = vmatprep.subr.bf16.mxu0 0
    %5938 = vmatpush1.bf16.msra.mxu0 %v5921
    %5939 = vmatprep.subr.bf16.mxu0 0
    %5940 = vmatpush1.bf16.msra.mxu0 %v5922
    %5941 = vmatprep.subr.bf16.mxu0 0
    %5942 = vmatpush1.bf16.msra.mxu0 %v5923
    %5943 = vmatprep.subr.bf16.mxu0 0
    %5944 = vmatpush1.bf16.msra.mxu0 %v5924
    %5945 = vmatprep.subr.bf16.mxu0 0
    %5946 = vmatpush1.bf16.msra.mxu0 %v5925
    %5947 = vmatprep.subr.bf16.mxu0 0
    %5948 = vmatpush1.bf16.msra.mxu0 %v5926
    %5949 = vmatprep.subr.bf16.mxu0 0
    %5950 = vmatpush1.bf16.msra.mxu0 %v5927
    %5951 = vmatprep.subr.bf16.mxu0 0
    %5952 = vmatpush1.bf16.msra.mxu0 %v5928
    %5953 = vmatprep.subr.bf16.mxu0 0
    %5954 = vmatpush1.bf16.msra.mxu0 0
    %5955 = vmatprep.subr.bf16.mxu0 0
    %5956 = vmatpush1.bf16.msra.mxu0 0
    %5957 = vmatprep.subr.bf16.mxu0 0
    %5958 = vmatpush1.bf16.msra.mxu0 0
    %5959 = vmatprep.subr.bf16.mxu0 0
    %5960 = vmatpush1.bf16.msra.mxu0 0
    %5961 = vmatprep.subr.bf16.mxu0 0
    %5962 = vmatpush1.bf16.msra.mxu0 0
    %5963 = vmatprep.subr.bf16.mxu0 0
    %5964 = vmatpush1.bf16.msra.mxu0 0
    %5965 = vmatprep.subr.bf16.mxu0 0
    %5966 = vmatpush1.bf16.msra.mxu0 0
    %5967 = vmatprep.subr.bf16.mxu0 0
    %5968 = vmatpush1.bf16.msra.mxu0 0
    %5969 = vmatprep.mubr.bf16.mxu0 0
    %5970 = vmatmul.mubr.bf16.gmra.mrb[0].mxu0 %v5882
    %v5971 = vpop.f32.mrb[0].mxu0
    %v5972 = vadd.f32 %v5887, %v5971
    %v5973 = vpop.f32.mrb[0].mxu0
    %v5974 = vpop.f32.mrb[0].mxu0
    %v5975 = vpop.f32.mrb[0].mxu0
    %5976 = vdwg.mxu0
    %v5977 = vmax.f32 %v5972, 0.0
    %v5978 = vld [vmem:[%s17] sm:$0xf]
    %v5979 = vld [vmem:[%s17 + $0x4] sm:$0xf]
    %v5980 = vld [vmem:[%s17 + $0x8] sm:$0xf]
    %v5981 = vld [vmem:[%s17 + $0xc] sm:$0xf]
    %v5982 = vld [vmem:[%s17 + $0x10] sm:$0xf]
    %v5983 = vld [vmem:[%s17 + $0x14] sm:$0xf]
    %v5984 = vld [vmem:[%s17 + $0x18] sm:$0xf]
    %v5985 = vld [vmem:[%s17 + $0x1c] sm:$0xf]
    %v5986 = vld [vmem:[#allocation31] sm:$0x1]
    %v5987 = vpack.c.bf16 %v5977, %v5977
    %v5989 = vlaneseq
    %v5990 = vshrl.u32 %v5989, 7
    %v5991 = vsub.s32 0, %v5990
    %v5992 = vrot.slane %v5986, %v5991
    %v6002 = vunpack.c.l.b16 %v5978
    %v6003 = vunpack.c.l.b16 %v5979
    %v6004 = vunpack.c.l.b16 %v5980
    %v6005 = vunpack.c.l.b16 %v5981
    %v6006 = vunpack.c.l.b16 %v5982
    %v6007 = vunpack.c.l.b16 %v5983
    %v6008 = vunpack.c.l.b16 %v5984
    %v6009 = vunpack.c.l.b16 %v5985
    %v6010 = vpack.c.b16 %v6003, %v6002
    %v6011 = vpack.c.b16 %v6005, %v6004
    %v6012 = vpack.c.b16 %v6007, %v6006
    %v6013 = vpack.c.b16 %v6009, %v6008
    %v6019 = vsel %vm511, %v5987, 0
    %6021 = vmatprep.subr.bf16.mxu0 0
    %6022 = vmatpush1.bf16.msra.mxu0 %v6010
    %6023 = vmatprep.subr.bf16.mxu0 0
    %6024 = vmatpush1.bf16.msra.mxu0 %v6011
    %6025 = vmatprep.subr.bf16.mxu0 0
    %6026 = vmatpush1.bf16.msra.mxu0 %v6012
    %6027 = vmatprep.subr.bf16.mxu0 0
    %6028 = vmatpush1.bf16.msra.mxu0 %v6013
    %6029 = vmatprep.subr.bf16.mxu0 0
    %6030 = vmatpush1.bf16.msra.mxu0 0
    %6031 = vmatprep.subr.bf16.mxu0 0
    %6032 = vmatpush1.bf16.msra.mxu0 0
    %6033 = vmatprep.subr.bf16.mxu0 0
    %6034 = vmatpush1.bf16.msra.mxu0 0
    %6035 = vmatprep.subr.bf16.mxu0 0
    %6036 = vmatpush1.bf16.msra.mxu0 0
    %6037 = vmatprep.subr.bf16.mxu0 0
    %6038 = vmatpush1.bf16.msra.mxu0 0
    %6039 = vmatprep.subr.bf16.mxu0 0
    %6040 = vmatpush1.bf16.msra.mxu0 0
    %6041 = vmatprep.subr.bf16.mxu0 0
    %6042 = vmatpush1.bf16.msra.mxu0 0
    %6043 = vmatprep.subr.bf16.mxu0 0
    %6044 = vmatpush1.bf16.msra.mxu0 0
    %6045 = vmatprep.subr.bf16.mxu0 0
    %6046 = vmatpush1.bf16.msra.mxu0 0
    %6047 = vmatprep.subr.bf16.mxu0 0
    %6048 = vmatpush1.bf16.msra.mxu0 0
    %6049 = vmatprep.subr.bf16.mxu0 0
    %6050 = vmatpush1.bf16.msra.mxu0 0
    %6051 = vmatprep.subr.bf16.mxu0 0
    %6052 = vmatpush1.bf16.msra.mxu0 0
    %6053 = vmatprep.mubr.bf16.mxu0 0
    %6054 = vmatmul.mubr.bf16.gmra.mrb[0].mxu0 %v6019
    %v6055 = vpop.f32.mrb[0].mxu0
    %v6056 = vadd.f32 %v5992, %v6055
    %v6057 = vpop.f32.mrb[0].mxu0
    %v6058 = vpop.f32.mrb[0].mxu0
    %v6059 = vpop.f32.mrb[0].mxu0
    %6060 = vdwg.mxu0
    %v6061 = vmax.f32 %v6056, 0.0
    %v6062 = vld [vmem:[%s19] sm:$0xf]
    %v6063 = vld [vmem:[%s19 + $0x4] sm:$0xf]
    %v6064 = vld [vmem:[%s19 + $0x8] sm:$0xf]
    %v6065 = vld [vmem:[%s19 + $0xc] sm:$0xf]
    %v6066 = vld [vmem:[#allocation32] sm:$0x1]
    %v6067 = vpack.c.bf16 %v6061, %v6061
    %v6069 = vlaneseq
    %v6070 = vshrl.u32 %v6069, 7
    %v6071 = vsub.s32 0, %v6070
    %v6072 = vrot.slane %v6066, %v6071
    %v6078 = vunpack.c.l.b16 %v6062
    %v6079 = vunpack.c.l.b16 %v6063
    %v6080 = vunpack.c.l.b16 %v6064
    %v6081 = vunpack.c.l.b16 %v6065
    %v6082 = vpack.c.b16 %v6079, %v6078
    %v6083 = vpack.c.b16 %v6081, %v6080
    %vm6086 = vcmask 261120
    %v6088 = vsel %vm6086, %v6067, 0
    %6090 = vmatprep.subr.bf16.mxu0 0
    %6091 = vmatpush1.bf16.msra.mxu0 %v6082
    %6092 = vmatprep.subr.bf16.mxu0 0
    %6093 = vmatpush1.bf16.msra.mxu0 %v6083
    %6094 = vmatprep.subr.bf16.mxu0 0
    %6095 = vmatpush1.bf16.msra.mxu0 0
    %6096 = vmatprep.subr.bf16.mxu0 0
    %6097 = vmatpush1.bf16.msra.mxu0 0
    %6098 = vmatprep.subr.bf16.mxu0 0
    %6099 = vmatpush1.bf16.msra.mxu0 0
    %6100 = vmatprep.subr.bf16.mxu0 0
    %6101 = vmatpush1.bf16.msra.mxu0 0
    %6102 = vmatprep.subr.bf16.mxu0 0
    %6103 = vmatpush1.bf16.msra.mxu0 0
    %6104 = vmatprep.subr.bf16.mxu0 0
    %6105 = vmatpush1.bf16.msra.mxu0 0
    %6106 = vmatprep.subr.bf16.mxu0 0
    %6107 = vmatpush1.bf16.msra.mxu0 0
    %6108 = vmatprep.subr.bf16.mxu0 0
    %6109 = vmatpush1.bf16.msra.mxu0 0
    %6110 = vmatprep.subr.bf16.mxu0 0
    %6111 = vmatpush1.bf16.msra.mxu0 0
    %6112 = vmatprep.subr.bf16.mxu0 0
    %6113 = vmatpush1.bf16.msra.mxu0 0
    %6114 = vmatprep.subr.bf16.mxu0 0
    %6115 = vmatpush1.bf16.msra.mxu0 0
    %6116 = vmatprep.subr.bf16.mxu0 0
    %6117 = vmatpush1.bf16.msra.mxu0 0
    %6118 = vmatprep.subr.bf16.mxu0 0
    %6119 = vmatpush1.bf16.msra.mxu0 0
    %6120 = vmatprep.subr.bf16.mxu0 0
    %6121 = vmatpush1.bf16.msra.mxu0 0
    %6122 = vmatprep.mubr.bf16.mxu0 0
    %6123 = vmatmul.mubr.bf16.gmra.mrb[0].mxu0 %v6088
    %v6124 = vpop.f32.mrb[0].mxu0
    %v6125 = vadd.f32 %v6072, %v6124
    %v6126 = vpop.f32.mrb[0].mxu0
    %v6127 = vpop.f32.mrb[0].mxu0
    %v6128 = vpop.f32.mrb[0].mxu0
    %6129 = vdwg.mxu0
    %vm6130 = vcmask 23552
    %6131 = vst.msk [vmem:[%s24] sm:$0xff] %vm6130, %v6125
    // Predicated region
    $region158: #{tpu_custom_call.1} parent=1 // pred_check
      _
    $region159: #{tpu_custom_call.1} parent=1 // pred_check_branch
      %6133 = sbr.rel (0) target = $region161
    $region160: #{tpu_custom_call.1} parent=1 // pred_region
      _
    $region161: #{tpu_custom_call.1} parent=1 // pred_fallthru
      _
    // Predicated region
    $region162: #{tpu_custom_call.1} parent=1 // pred_check
      _
    $region163: #{tpu_custom_call.1} parent=1 // pred_check_branch
      %6135 = sbr.rel (0) target = $region165
    $region164: #{tpu_custom_call.1} parent=1 // pred_region
      _
    $region165: #{tpu_custom_call.1} parent=1 // pred_fallthru
      _
    %6136 = vsyncpa [#allocation7], 1
    %6137 = vsyncpa [#allocation9], 1
    %6138 = vsyncpa [#allocation12], 1
    %6139 = vsyncpa [#allocation15], 1
    %6140 = vsyncpa [#allocation18], 1
    %6141 = vsyncpa [#allocation21], 1
    %6142 = vsyncpa [#allocation24], 1
    %6143 = vsyncpa [#allocation27], 1
    %6144 = vsyncpa [#allocation30], 1
    %6145 = vsyncpa [#allocation33], 1
  %6146 = vsyncmov [#allocation5]
  %s6147 = vpop.sfrf %6146
  %p6148 = scmp.eq.s32.totalorder %s6147, 0
  %p6149 = pneg %p6148
  %6151 = shalt.err (%p6149)
  %s6152 = scalar_lea.sflag [#allocation5], 1
  %6153 = vsyncmov %s6152
  %s6154 = vpop.sfrf %6153
  %p6155 = scmp.eq.s32.totalorder %s6154, 0
  %p6156 = pneg %p6155
  %6158 = shalt.err (%p6156)
  %s6159 = scalar_lea.sflag [#allocation5], 2
  %6160 = vsyncmov %s6159
  %s6161 = vpop.sfrf %6160
  %p6162 = scmp.eq.s32.totalorder %s6161, 0
  %p6163 = pneg %p6162
  %6165 = shalt.err (%p6163)

</llo_original>
